<compile_context>
chip_gen: v5e
topology: v5e:2x2
jax: 0.10.0
libtpu: 0.0.40
codegen_flags: <defaults>
</compile_context>

<pallas_src>
import numpy as np

import jax
import jax.numpy as jnp
from jax.experimental import pallas as pl
from jax.experimental.pallas import tpu as pltpu


# ----------------------------- Pallas kernel --------------------------------

def _dual_critic_kernel(ximg_ref, vec_ref, act_ref,
                        t1_ref, cb1_ref, t2_ref, cb2_ref,
                        w1i_ref, w1v_ref, w1a_ref, b1_ref,
                        w2_ref, b2_ref, w3_ref, b3_ref,
                        q_ref):
    """One grid step = one full Q-head: conv1->conv2->fc1->fc2->fc3."""
    f32 = jnp.float32

    # conv1 + ReLU  (3x3 'same' conv as a Toeplitz matmul on flattened NCHW)
    x = jnp.dot(ximg_ref[...], t1_ref[0], preferred_element_type=f32)
    x = jnp.maximum(x + cb1_ref[0], 0.0)                      # (B, 16*H*W)

    # conv2 + ReLU
    x = jnp.dot(x, t2_ref[0], preferred_element_type=f32)
    x = jnp.maximum(x + cb2_ref[0], 0.0)                      # (B, 32*H*W)

    # fc1 + ReLU  (concat-free: image / vector / action contributions summed)
    h = (jnp.dot(x, w1i_ref[0], preferred_element_type=f32)
         + jnp.dot(vec_ref[...], w1v_ref[0], preferred_element_type=f32)
         + jnp.dot(act_ref[...], w1a_ref[0], preferred_element_type=f32)
         + b1_ref[0])
    h = jnp.maximum(h, 0.0)                                   # (B, 256)

    # fc2 + ReLU
    h = jnp.dot(h, w2_ref[0], preferred_element_type=f32)
    h = jnp.maximum(h + b2_ref[0], 0.0)                       # (B, 256)

    # fc3 (out_features = 1) as an elementwise mul + lane reduction
    q = jnp.sum(h * w3_ref[0], axis=1, keepdims=True) + b3_ref[0]   # (B, 1)
    q_ref[0] = q.astype(q_ref.dtype)


# ----------------------------- parameter packing ----------------------------

def _conv3x3_same_toeplitz(w_oihw, H, W):
    """Dense Toeplitz matrix T (Cin*H*W, Cout*H*W) so that

        out_flat = in_flat @ T

    implements nn.Conv2d(k=3, stride=1, padding=1) on NCHW-flattened rows
    (index = c*H*W + y*W + x), matching torch's `x.view(B, -1)` order."""
    w = np.asarray(w_oihw, dtype=np.float32)        # (Co, Ci, 3, 3)
    Co, Ci = w.shape[0], w.shape[1]
    S = H * W
    T = np.zeros((Ci, H, W, Co, H, W), dtype=np.float32)
    for ky in range(3):
        for kx in range(3):
            dy, dx = ky - 1, kx - 1
            wk = np.transpose(w[:, :, ky, kx])      # (Ci, Co)
            for yo in range(H):
                yi = yo + dy
                if yi < 0 or yi >= H:
                    continue
                for xo in range(W):
                    xi = xo + dx
                    if xi < 0 or xi >= W:
                        continue
                    T[:, yi, xi, :, yo, xo] = wk
    return T.reshape(Ci * S, Co * S)


def pack_params(params, state_size, action_size, h, w):
    """One-time (outside jit) repacking: Toeplitz conv matrices, transposed
    fc weights, fc1 split into image/vector/action parts, stacked per head."""
    S = h * w
    img_feats = 32 * S

    def head(cw1, cb1, cw2, cb2, fw1, fb1, fw2, fb2, fw3, fb3):
        t1 = _conv3x3_same_toeplitz(cw1, h, w)                       # (3S, 16S)
        t2 = _conv3x3_same_toeplitz(cw2, h, w)                       # (16S, 32S)
        cb1r = np.repeat(np.asarray(cb1, np.float32), S)[None, :]    # (1, 16S)
        cb2r = np.repeat(np.asarray(cb2, np.float32), S)[None, :]    # (1, 32S)
        fw1 = np.asarray(fw1, np.float32)
        assert fw1.shape[1] == img_feats + state_size + action_size
        w1i = np.ascontiguousarray(fw1[:, :img_feats].T)             # (2048, 256)
        w1v = np.ascontiguousarray(
            fw1[:, img_feats:img_feats + state_size].T)              # (8, 256)
        w1a = np.ascontiguousarray(fw1[:, img_feats + state_size:].T)  # (4, 256)
        return [t1, cb1r, t2, cb2r, w1i, w1v, w1a,
                np.asarray(fb1, np.float32)[None, :],                # (1, 256)
                np.ascontiguousarray(np.asarray(fw2, np.float32).T),  # (256, 256)
                np.asarray(fb2, np.float32)[None, :],                # (1, 256)
                np.asarray(fw3, np.float32),                         # (1, 256)
                np.asarray(fb3, np.float32)[None, :]]                # (1, 1)

    p = params
    h1 = head(p["conv1_w"], p["conv1_b"], p["conv2_w"], p["conv2_b"],
              p["fc1_w"], p["fc1_b"], p["fc2_w"], p["fc2_b"],
              p["fc3_w"], p["fc3_b"])
    h2 = head(p["conv3_w"], p["conv3_b"], p["conv4_w"], p["conv4_b"],
              p["fc4_w"], p["fc4_b"], p["fc5_w"], p["fc5_b"],
              p["fc6_w"], p["fc6_b"])
    return tuple(jnp.asarray(np.stack([a, b], axis=0)) for a, b in zip(h1, h2))


# ----------------------------- fused forward --------------------------------

def dual_critic_forward(packed, vector_input, visual_input, action):
    B = visual_input.shape[0]
    x_img = visual_input.reshape(B, -1)     # NCHW flatten == torch view order

    shared_inputs = (x_img, vector_input, action)
    shared_specs = [pl.BlockSpec(a.shape, lambda head_idx: (0, 0))
                    for a in shared_inputs]
    head_specs = [pl.BlockSpec((1,) + tuple(a.shape[1:]),
                               lambda head_idx: (head_idx, 0, 0))
                  for a in packed]

    q_all = pl.pallas_call(
        _dual_critic_kernel,
        out_shape=jax.ShapeDtypeStruct((2, B, 1), jnp.float32),
        grid=(2,),                                    # one step per Q-head
        in_specs=shared_specs + head_specs,
        out_specs=pl.BlockSpec((1, B, 1), lambda head_idx: (head_idx, 0, 0)),
        compiler_params=pltpu.CompilerParams(
            dimension_semantics=("parallel",),        # 2 heads -> 2 TCs on v7x
            vmem_limit_bytes=48 * 1024 * 1024),       # ~23 MiB resident weights
    )(*shared_inputs, *packed)

    return q_all[0], q_all[1]


# ----------------------------- reference (pure JAX) --------------------------

def reference_forward(params, vector_input, visual_input, action):
    def conv(x, w, b):
        y = jax.lax.conv_general_dilated(
            x, w, window_strides=(1, 1), padding="SAME",
            dimension_numbers=("NCHW", "OIHW", "NCHW"))
        return jnp.maximum(y + b[None, :, None, None], 0.0)

    def branch(cw1, cb1, cw2, cb2, w1, b1, w2, b2, w3, b3):
        x = conv(visual_input, cw1, cb1)
        x = conv(x, cw2, cb2)
        xa = jnp.concatenate(
            [x.reshape(x.shape[0], -1), vector_input, action], axis=1)
        h = jnp.maximum(xa @ w1.T + b1, 0.0)
        h = jnp.maximum(h @ w2.T + b2, 0.0)
        return h @ w3.T + b3

    p = params
    q1 = branch(p["conv1_w"], p["conv1_b"], p["conv2_w"], p["conv2_b"],
                p["fc1_w"], p["fc1_b"], p["fc2_w"], p["fc2_b"],
                p["fc3_w"], p["fc3_b"])
    q2 = branch(p["conv3_w"], p["conv3_b"], p["conv4_w"], p["conv4_b"],
                p["fc4_w"], p["fc4_b"], p["fc5_w"], p["fc5_b"],
                p["fc6_w"], p["fc6_b"])
    return q1, q2


# ----------------------------- parameter init --------------------------------

def init_params(key, state_size, action_size, h, w):
    conv_out = 32 * h * w
    fc_in = conv_out + state_size + action_size
    shapes = {
        "conv1_w": (16, 3, 3, 3),  "conv1_b": (16,),
        "conv2_w": (32, 16, 3, 3), "conv2_b": (32,),
        "fc1_w": (256, fc_in),     "fc1_b": (256,),
        "fc2_w": (256, 256),       "fc2_b": (256,),
        "fc3_w": (1, 256),         "fc3_b": (1,),
        "conv3_w": (16, 3, 3, 3),  "conv3_b": (16,),
        "conv4_w": (32, 16, 3, 3), "conv4_b": (32,),
        "fc4_w": (256, fc_in),     "fc4_b": (256,),
        "fc5_w": (256, 256),       "fc5_b": (256,),
        "fc6_w": (1, 256),         "fc6_b": (1,),
    }
    params = {}
    for name, shape in shapes.items():
        key, sub = jax.random.split(key)
        params[name] = 0.05 * jax.random.normal(sub, shape, dtype=jnp.float32)
    return params


# ----------------------------- main ------------------------------------------

if __name__ == "__main__":
    B, H, W = 2, 8, 8
    state_size, action_size = 8, 4

    key = jax.random.PRNGKey(0)
    k_params, k_vis, k_vec, k_act = jax.random.split(key, 4)

    params = init_params(k_params, state_size, action_size, H, W)
    visual_input = jax.random.normal(k_vis, (B, 3, H, W), dtype=jnp.float32)
    vector_input = jax.random.normal(k_vec, (B, state_size), dtype=jnp.float32)
    action = jax.random.normal(k_act, (B, action_size), dtype=jnp.float32)

    # One-time weight packing (outside jit): Toeplitz conv matrices,
    # pre-transposed fc weights, fc1 split into image/vector/action parts.
    packed = pack_params(params, state_size, action_size, H, W)

    fwd = jax.jit(dual_critic_forward)
    q1, q2 = fwd(packed, vector_input, visual_input, action)
    jax.block_until_ready((q1, q2))

    r1, r2 = reference_forward(params, vector_input, visual_input, action)
    assert q1.shape == (B, 1) and q2.shape == (B, 1)
    assert jnp.allclose(q1, r1, atol=1e-3, rtol=1e-3)
    assert jnp.allclose(q2, r2, atol=1e-3, rtol=1e-3)

    print("KERNEL_OK")
</pallas_src>

<mosaic_0001>
module attributes {stable_mosaic.version = 11 : i64} {
  func.func @_dual_critic_kernel(%arg0: i32, %arg1: memref<2x192xf32, #tpu.memory_space<vmem>>, %arg2: memref<2x8xf32, #tpu.memory_space<vmem>>, %arg3: memref<2x4xf32, #tpu.memory_space<vmem>>, %arg4: memref<1x192x1024xf32, #tpu.memory_space<vmem>>, %arg5: memref<1x1x1024xf32, #tpu.memory_space<vmem>>, %arg6: memref<1x1024x2048xf32, #tpu.memory_space<vmem>>, %arg7: memref<1x1x2048xf32, #tpu.memory_space<vmem>>, %arg8: memref<1x2048x256xf32, #tpu.memory_space<vmem>>, %arg9: memref<1x8x256xf32, #tpu.memory_space<vmem>>, %arg10: memref<1x4x256xf32, #tpu.memory_space<vmem>>, %arg11: memref<1x1x256xf32, #tpu.memory_space<vmem>>, %arg12: memref<1x256x256xf32, #tpu.memory_space<vmem>>, %arg13: memref<1x1x256xf32, #tpu.memory_space<vmem>>, %arg14: memref<1x1x256xf32, #tpu.memory_space<vmem>>, %arg15: memref<1x1x1xf32, #tpu.memory_space<vmem>>, %arg16: memref<1x2x1xf32, #tpu.memory_space<vmem>>) attributes {dimension_semantics = [#tpu.dimension_semantics<parallel>], iteration_bounds = array<i64: 2>, scalar_prefetch = 0 : i64, scratch_operands = 0 : i64, tpu.core_type = #tpu.core_type<tc>, window_params = [{pipeline_mode = #tpu.pipeline_mode<synchronous>, transform_indices = @transform_0, window_bounds = array<i64: 2, 192>}, {pipeline_mode = #tpu.pipeline_mode<synchronous>, transform_indices = @transform_1, window_bounds = array<i64: 2, 8>}, {pipeline_mode = #tpu.pipeline_mode<synchronous>, transform_indices = @transform_2, window_bounds = array<i64: 2, 4>}, {transform_indices = @transform_3, window_bounds = array<i64: 1, 192, 1024>}, {transform_indices = @transform_4, window_bounds = array<i64: 1, 1, 1024>}, {transform_indices = @transform_5, window_bounds = array<i64: 1, 1024, 2048>}, {transform_indices = @transform_6, window_bounds = array<i64: 1, 1, 2048>}, {transform_indices = @transform_7, window_bounds = array<i64: 1, 2048, 256>}, {transform_indices = @transform_8, window_bounds = array<i64: 1, 8, 256>}, {transform_indices = @transform_9, window_bounds = array<i64: 1, 4, 256>}, {transform_indices = @transform_10, window_bounds = array<i64: 1, 1, 256>}, {transform_indices = @transform_11, window_bounds = array<i64: 1, 256, 256>}, {transform_indices = @transform_12, window_bounds = array<i64: 1, 1, 256>}, {transform_indices = @transform_13, window_bounds = array<i64: 1, 1, 256>}, {transform_indices = @transform_14, window_bounds = array<i64: 1, 1, 1>}, {transform_indices = @transform_15, window_bounds = array<i64: 1, 2, 1>}]} {
    %c0 = arith.constant 0 : index
    %c0_0 = arith.constant 0 : index
    %0 = vector.load %arg1[%c0, %c0_0] : memref<2x192xf32, #tpu.memory_space<vmem>>, vector<2x192xf32>
    %c0_1 = arith.constant 0 : index
    %c0_2 = arith.constant 0 : index
    %c0_3 = arith.constant 0 : index
    %1 = vector.load %arg4[%c0_1, %c0_2, %c0_3] : memref<1x192x1024xf32, #tpu.memory_space<vmem>>, vector<1x192x1024xf32>
    %2 = vector.shape_cast %1 : vector<1x192x1024xf32> to vector<192x1024xf32>
    %cst = arith.constant dense<0.000000e+00> : vector<2x1024xf32>
    %3 = tpu.matmul %0, %2, %cst {dimension_numbers = #tpu.dot_dimension_numbers<[1], [0], [0], [1], [0, 0, 1, 1], [], []>} : vector<2x192xf32>, vector<192x1024xf32>, vector<2x1024xf32> -> vector<2x1024xf32>
    %c0_4 = arith.constant 0 : index
    %c0_5 = arith.constant 0 : index
    %c0_6 = arith.constant 0 : index
    %4 = vector.load %arg5[%c0_4, %c0_5, %c0_6] : memref<1x1x1024xf32, #tpu.memory_space<vmem>>, vector<1x1x1024xf32>
    %5 = vector.shape_cast %4 : vector<1x1x1024xf32> to vector<1x1024xf32>
    %6 = vector.broadcast %5 : vector<1x1024xf32> to vector<2x1024xf32>
    %7 = arith.addf %3, %6 : vector<2x1024xf32>
    %cst_7 = arith.constant 0.000000e+00 : f32
    %8 = vector.broadcast %cst_7 : f32 to vector<2x1024xf32>
    %9 = arith.maximumf %7, %8 : vector<2x1024xf32>
    %c0_8 = arith.constant 0 : index
    %c0_9 = arith.constant 0 : index
    %c0_10 = arith.constant 0 : index
    %10 = vector.load %arg6[%c0_8, %c0_9, %c0_10] : memref<1x1024x2048xf32, #tpu.memory_space<vmem>>, vector<1x1024x2048xf32>
    %11 = vector.shape_cast %10 : vector<1x1024x2048xf32> to vector<1024x2048xf32>
    %cst_11 = arith.constant dense<0.000000e+00> : vector<2x2048xf32>
    %12 = tpu.matmul %9, %11, %cst_11 {dimension_numbers = #tpu.dot_dimension_numbers<[1], [0], [0], [1], [0, 0, 1, 1], [], []>} : vector<2x1024xf32>, vector<1024x2048xf32>, vector<2x2048xf32> -> vector<2x2048xf32>
    %c0_12 = arith.constant 0 : index
    %c0_13 = arith.constant 0 : index
    %c0_14 = arith.constant 0 : index
    %13 = vector.load %arg7[%c0_12, %c0_13, %c0_14] : memref<1x1x2048xf32, #tpu.memory_space<vmem>>, vector<1x1x2048xf32>
    %14 = vector.shape_cast %13 : vector<1x1x2048xf32> to vector<1x2048xf32>
    %15 = vector.broadcast %14 : vector<1x2048xf32> to vector<2x2048xf32>
    %16 = arith.addf %12, %15 : vector<2x2048xf32>
    %cst_15 = arith.constant 0.000000e+00 : f32
    %17 = vector.broadcast %cst_15 : f32 to vector<2x2048xf32>
    %18 = arith.maximumf %16, %17 : vector<2x2048xf32>
    %c0_16 = arith.constant 0 : index
    %c0_17 = arith.constant 0 : index
    %c0_18 = arith.constant 0 : index
    %19 = vector.load %arg8[%c0_16, %c0_17, %c0_18] : memref<1x2048x256xf32, #tpu.memory_space<vmem>>, vector<1x2048x256xf32>
    %20 = vector.shape_cast %19 : vector<1x2048x256xf32> to vector<2048x256xf32>
    %cst_19 = arith.constant dense<0.000000e+00> : vector<2x256xf32>
    %21 = tpu.matmul %18, %20, %cst_19 {dimension_numbers = #tpu.dot_dimension_numbers<[1], [0], [0], [1], [0, 0, 1, 1], [], []>} : vector<2x2048xf32>, vector<2048x256xf32>, vector<2x256xf32> -> vector<2x256xf32>
    %c0_20 = arith.constant 0 : index
    %c0_21 = arith.constant 0 : index
    %22 = vector.load %arg2[%c0_20, %c0_21] : memref<2x8xf32, #tpu.memory_space<vmem>>, vector<2x8xf32>
    %c0_22 = arith.constant 0 : index
    %c0_23 = arith.constant 0 : index
    %c0_24 = arith.constant 0 : index
    %23 = vector.load %arg9[%c0_22, %c0_23, %c0_24] : memref<1x8x256xf32, #tpu.memory_space<vmem>>, vector<1x8x256xf32>
    %24 = vector.shape_cast %23 : vector<1x8x256xf32> to vector<8x256xf32>
    %cst_25 = arith.constant dense<0.000000e+00> : vector<2x256xf32>
    %25 = tpu.matmul %22, %24, %cst_25 {dimension_numbers = #tpu.dot_dimension_numbers<[1], [0], [0], [1], [0, 0, 1, 1], [], []>} : vector<2x8xf32>, vector<8x256xf32>, vector<2x256xf32> -> vector<2x256xf32>
    %26 = arith.addf %21, %25 : vector<2x256xf32>
    %c0_26 = arith.constant 0 : index
    %c0_27 = arith.constant 0 : index
    %27 = vector.load %arg3[%c0_26, %c0_27] : memref<2x4xf32, #tpu.memory_space<vmem>>, vector<2x4xf32>
    %c0_28 = arith.constant 0 : index
    %c0_29 = arith.constant 0 : index
    %c0_30 = arith.constant 0 : index
    %28 = vector.load %arg10[%c0_28, %c0_29, %c0_30] : memref<1x4x256xf32, #tpu.memory_space<vmem>>, vector<1x4x256xf32>
    %29 = vector.shape_cast %28 : vector<1x4x256xf32> to vector<4x256xf32>
    %cst_31 = arith.constant dense<0.000000e+00> : vector<2x256xf32>
    %30 = tpu.matmul %27, %29, %cst_31 {dimension_numbers = #tpu.dot_dimension_numbers<[1], [0], [0], [1], [0, 0, 1, 1], [], []>} : vector<2x4xf32>, vector<4x256xf32>, vector<2x256xf32> -> vector<2x256xf32>
    %31 = arith.addf %26, %30 : vector<2x256xf32>
    %c0_32 = arith.constant 0 : index
    %c0_33 = arith.constant 0 : index
    %c0_34 = arith.constant 0 : index
    %32 = vector.load %arg11[%c0_32, %c0_33, %c0_34] : memref<1x1x256xf32, #tpu.memory_space<vmem>>, vector<1x1x256xf32>
    %33 = vector.shape_cast %32 : vector<1x1x256xf32> to vector<1x256xf32>
    %34 = vector.broadcast %33 : vector<1x256xf32> to vector<2x256xf32>
    %35 = arith.addf %31, %34 : vector<2x256xf32>
    %cst_35 = arith.constant 0.000000e+00 : f32
    %36 = vector.broadcast %cst_35 : f32 to vector<2x256xf32>
    %37 = arith.maximumf %35, %36 : vector<2x256xf32>
    %c0_36 = arith.constant 0 : index
    %c0_37 = arith.constant 0 : index
    %c0_38 = arith.constant 0 : index
    %38 = vector.load %arg12[%c0_36, %c0_37, %c0_38] : memref<1x256x256xf32, #tpu.memory_space<vmem>>, vector<1x256x256xf32>
    %39 = vector.shape_cast %38 : vector<1x256x256xf32> to vector<256x256xf32>
    %cst_39 = arith.constant dense<0.000000e+00> : vector<2x256xf32>
    %40 = tpu.matmul %37, %39, %cst_39 {dimension_numbers = #tpu.dot_dimension_numbers<[1], [0], [0], [1], [0, 0, 1, 1], [], []>} : vector<2x256xf32>, vector<256x256xf32>, vector<2x256xf32> -> vector<2x256xf32>
    %c0_40 = arith.constant 0 : index
    %c0_41 = arith.constant 0 : index
    %c0_42 = arith.constant 0 : index
    %41 = vector.load %arg13[%c0_40, %c0_41, %c0_42] : memref<1x1x256xf32, #tpu.memory_space<vmem>>, vector<1x1x256xf32>
    %42 = vector.shape_cast %41 : vector<1x1x256xf32> to vector<1x256xf32>
    %43 = vector.broadcast %42 : vector<1x256xf32> to vector<2x256xf32>
    %44 = arith.addf %40, %43 : vector<2x256xf32>
    %cst_43 = arith.constant 0.000000e+00 : f32
    %45 = vector.broadcast %cst_43 : f32 to vector<2x256xf32>
    %46 = arith.maximumf %44, %45 : vector<2x256xf32>
    %c0_44 = arith.constant 0 : index
    %c0_45 = arith.constant 0 : index
    %c0_46 = arith.constant 0 : index
    %47 = vector.load %arg14[%c0_44, %c0_45, %c0_46] : memref<1x1x256xf32, #tpu.memory_space<vmem>>, vector<1x1x256xf32>
    %48 = vector.shape_cast %47 : vector<1x1x256xf32> to vector<1x256xf32>
    %49 = vector.broadcast %48 : vector<1x256xf32> to vector<2x256xf32>
    %50 = arith.mulf %46, %49 : vector<2x256xf32>
    %cst_47 = arith.constant dense<0.000000e+00> : vector<2xf32>
    %51 = vector.multi_reduction <add>, %50, %cst_47 [1] : vector<2x256xf32> to vector<2xf32>
    %52 = vector.shape_cast %51 : vector<2xf32> to vector<2x1xf32>
    %c0_48 = arith.constant 0 : index
    %c0_49 = arith.constant 0 : index
    %c0_50 = arith.constant 0 : index
    %53 = vector.load %arg15[%c0_48, %c0_49, %c0_50] : memref<1x1x1xf32, #tpu.memory_space<vmem>>, vector<1x1x1xf32>
    %54 = vector.shape_cast %53 : vector<1x1x1xf32> to vector<1x1xf32>
    %55 = vector.broadcast %54 : vector<1x1xf32> to vector<2x1xf32>
    %56 = arith.addf %52, %55 : vector<2x1xf32>
    %c0_51 = arith.constant 0 : index
    %c0_52 = arith.constant 0 : index
    %c0_53 = arith.constant 0 : index
    %57 = vector.load %arg16[%c0_51, %c0_52, %c0_53] : memref<1x2x1xf32, #tpu.memory_space<vmem>>, vector<1x2x1xf32>
    %58 = vector.shape_cast %57 : vector<1x2x1xf32> to vector<2x1xf32>
    %59 = vector.shape_cast %56 : vector<2x1xf32> to vector<1x2x1xf32>
    tpu.vector_store %arg16[%c0_51, %c0_52, %c0_53], %59 {strides = array<i32>} : memref<1x2x1xf32, #tpu.memory_space<vmem>>, vector<1x2x1xf32>,
    return
  }
  func.func @transform_0(%arg0: i32) -> (i32, i32) {
    %c0_i32 = arith.constant 0 : i32
    %c0_i32_0 = arith.constant 0 : i32
    %c0_i32_1 = arith.constant 0 : i32
    return %c0_i32, %c0_i32_0 : i32, i32
  }
  func.func @transform_1(%arg0: i32) -> (i32, i32) {
    %c0_i32 = arith.constant 0 : i32
    %c0_i32_0 = arith.constant 0 : i32
    %c0_i32_1 = arith.constant 0 : i32
    return %c0_i32, %c0_i32_0 : i32, i32
  }
  func.func @transform_2(%arg0: i32) -> (i32, i32) {
    %c0_i32 = arith.constant 0 : i32
    %c0_i32_0 = arith.constant 0 : i32
    %c0_i32_1 = arith.constant 0 : i32
    return %c0_i32, %c0_i32_0 : i32, i32
  }
  func.func @transform_3(%arg0: i32) -> (i32, i32, i32) {
    %c0_i32 = arith.constant 0 : i32
    %c0_i32_0 = arith.constant 0 : i32
    %c0_i32_1 = arith.constant 0 : i32
    return %arg0, %c0_i32, %c0_i32_0 : i32, i32, i32
  }
  func.func @transform_4(%arg0: i32) -> (i32, i32, i32) {
    %c0_i32 = arith.constant 0 : i32
    %c0_i32_0 = arith.constant 0 : i32
    %c0_i32_1 = arith.constant 0 : i32
    return %arg0, %c0_i32, %c0_i32_0 : i32, i32, i32
  }
  func.func @transform_5(%arg0: i32) -> (i32, i32, i32) {
    %c0_i32 = arith.constant 0 : i32
    %c0_i32_0 = arith.constant 0 : i32
    %c0_i32_1 = arith.constant 0 : i32
    return %arg0, %c0_i32, %c0_i32_0 : i32, i32, i32
  }
  func.func @transform_6(%arg0: i32) -> (i32, i32, i32) {
    %c0_i32 = arith.constant 0 : i32
    %c0_i32_0 = arith.constant 0 : i32
    %c0_i32_1 = arith.constant 0 : i32
    return %arg0, %c0_i32, %c0_i32_0 : i32, i32, i32
  }
  func.func @transform_7(%arg0: i32) -> (i32, i32, i32) {
    %c0_i32 = arith.constant 0 : i32
    %c0_i32_0 = arith.constant 0 : i32
    %c0_i32_1 = arith.constant 0 : i32
    return %arg0, %c0_i32, %c0_i32_0 : i32, i32, i32
  }
  func.func @transform_8(%arg0: i32) -> (i32, i32, i32) {
    %c0_i32 = arith.constant 0 : i32
    %c0_i32_0 = arith.constant 0 : i32
    %c0_i32_1 = arith.constant 0 : i32
    return %arg0, %c0_i32, %c0_i32_0 : i32, i32, i32
  }
  func.func @transform_9(%arg0: i32) -> (i32, i32, i32) {
    %c0_i32 = arith.constant 0 : i32
    %c0_i32_0 = arith.constant 0 : i32
    %c0_i32_1 = arith.constant 0 : i32
    return %arg0, %c0_i32, %c0_i32_0 : i32, i32, i32
  }
  func.func @transform_10(%arg0: i32) -> (i32, i32, i32) {
    %c0_i32 = arith.constant 0 : i32
    %c0_i32_0 = arith.constant 0 : i32
    %c0_i32_1 = arith.constant 0 : i32
    return %arg0, %c0_i32, %c0_i32_0 : i32, i32, i32
  }
  func.func @transform_11(%arg0: i32) -> (i32, i32, i32) {
    %c0_i32 = arith.constant 0 : i32
    %c0_i32_0 = arith.constant 0 : i32
    %c0_i32_1 = arith.constant 0 : i32
    return %arg0, %c0_i32, %c0_i32_0 : i32, i32, i32
  }
  func.func @transform_12(%arg0: i32) -> (i32, i32, i32) {
    %c0_i32 = arith.constant 0 : i32
    %c0_i32_0 = arith.constant 0 : i32
    %c0_i32_1 = arith.constant 0 : i32
    return %arg0, %c0_i32, %c0_i32_0 : i32, i32, i32
  }
  func.func @transform_13(%arg0: i32) -> (i32, i32, i32) {
    %c0_i32 = arith.constant 0 : i32
    %c0_i32_0 = arith.constant 0 : i32
    %c0_i32_1 = arith.constant 0 : i32
    return %arg0, %c0_i32, %c0_i32_0 : i32, i32, i32
  }
  func.func @transform_14(%arg0: i32) -> (i32, i32, i32) {
    %c0_i32 = arith.constant 0 : i32
    %c0_i32_0 = arith.constant 0 : i32
    %c0_i32_1 = arith.constant 0 : i32
    return %arg0, %c0_i32, %c0_i32_0 : i32, i32, i32
  }
  func.func @transform_15(%arg0: i32) -> (i32, i32, i32) {
    %c0_i32 = arith.constant 0 : i32
    %c0_i32_0 = arith.constant 0 : i32
    %c0_i32_1 = arith.constant 0 : i32
    return %arg0, %c0_i32, %c0_i32_0 : i32, i32, i32
  }
}

</mosaic_0001>

<llo_original>
// kernel: dual_critic_forward.1
$region0: #{dual_critic_forward.1}
  #allocation0 [shape = 'u32[]', space=smem, size = 0x4, offset = 0x4, fixed_abs, tag = 'smem constant byte address 0x4 - core index']
  #allocation1 [shape = 'u32[72,128]{1,0:T(1,128)}', space=vmem, size = 0x9000, scoped, tag = 'internal scratch']
  %s0 = inlined_call_operand.vmem [shape: f32[2,192], index: 0, kind: input, shape index: {}]
  %s1 = inlined_call_operand.hbm [shape: f32[2,8], index: 1, kind: input, shape index: {}]
  %s2 = inlined_call_operand.hbm [shape: f32[2,4], index: 2, kind: input, shape index: {}]
  %s3 = inlined_call_operand.hbm [shape: f32[2,192,1024], index: 3, kind: input, shape index: {}]
  %s4 = inlined_call_operand.hbm [shape: f32[2,1,1024], index: 4, kind: input, shape index: {}]
  %s5 = inlined_call_operand.hbm [shape: f32[2,1024,2048], index: 5, kind: input, shape index: {}]
  %s6 = inlined_call_operand.hbm [shape: f32[2,1,2048], index: 6, kind: input, shape index: {}]
  %s7 = inlined_call_operand.hbm [shape: f32[2,2048,256], index: 7, kind: input, shape index: {}]
  %s8 = inlined_call_operand.hbm [shape: f32[2,8,256], index: 8, kind: input, shape index: {}]
  %s9 = inlined_call_operand.hbm [shape: f32[2,4,256], index: 9, kind: input, shape index: {}]
  %s10 = inlined_call_operand.hbm [shape: f32[2,1,256], index: 10, kind: input, shape index: {}]
  %s11 = inlined_call_operand.hbm [shape: f32[2,256,256], index: 11, kind: input, shape index: {}]
  %s12 = inlined_call_operand.hbm [shape: f32[2,1,256], index: 12, kind: input, shape index: {}]
  %s13 = inlined_call_operand.hbm [shape: f32[2,1,256], index: 13, kind: input, shape index: {}]
  %s14 = inlined_call_operand.vmem [shape: f32[2,1,1], index: 14, kind: input, shape index: {}]
  %s15 = inlined_call_operand.vmem [shape: f32[2,2,1], index: 15, kind: output, shape index: {}]
  %s16 = sld [smem:[#allocation0]]
  $region145: #{dual_critic_forward.1} parent=0
    _
  %s18 = ssub.s32 1, %s16
  %s19 = scalar_select 0, %s18, %s16
  $region1: #{dual_critic_forward.1} parent=0
    #allocation2 [shape = 'u8[1024]{0}', space=vmem, size = 0x400, scoped, tag = 'input window, operand 1, single buffered']
    #allocation3 [shape = 's32[2]{0}', space=sflag, size = 0x8, scoped, tag = 'scoped memory for dual_critic_forward.1']
    #allocation4 [shape = 'u8[1024]{0}', space=vmem, size = 0x400, scoped, tag = 'input window, operand 2, single buffered']
    #allocation5 [shape = 's32[1]{0}', space=sflag, size = 0x4, scoped, tag = 'scoped memory for dual_critic_forward.1']
    #allocation6 [shape = 'u8[1572864]{0}', space=vmem, size = 0x180000, scoped, tag = 'input window, operand 3']
    #allocation7 [shape = 'u8[8192]{0}', space=vmem, size = 0x2000, scoped, tag = 'input window, operand 4']
    #allocation8 [shape = 'u8[16777216]{0}', space=vmem, size = 0x1000000, scoped, tag = 'input window, operand 5']
    #allocation9 [shape = 'u8[16384]{0}', space=vmem, size = 0x4000, scoped, tag = 'input window, operand 6']
    #allocation10 [shape = 'u8[4194304]{0}', space=vmem, size = 0x400000, scoped, tag = 'input window, operand 7']
    #allocation11 [shape = 'u8[16384]{0}', space=vmem, size = 0x4000, scoped, tag = 'input window, operand 8']
    #allocation12 [shape = 'u8[8192]{0}', space=vmem, size = 0x2000, scoped, tag = 'input window, operand 9']
    #allocation13 [shape = 'u8[2048]{0}', space=vmem, size = 0x800, scoped, tag = 'input window, operand 10']
    #allocation14 [shape = 'u8[524288]{0}', space=vmem, size = 0x80000, scoped, tag = 'input window, operand 11']
    #allocation15 [shape = 'u8[2048]{0}', space=vmem, size = 0x800, scoped, tag = 'input window, operand 12']
    #allocation16 [shape = 'u8[2048]{0}', space=vmem, size = 0x800, scoped, tag = 'input window, operand 13']
    %20 = vsyncpa [#allocation3], 0
    %21 = vsyncpa [#allocation5], 0
    loop: start=0, step=1, limit=4
    $region2: #{dual_critic_forward.1} parent=1 // loop_pre_header
      _
    $region3: #{dual_critic_forward.1} parent=1 // loop_header
      %s23 = sphi 0, %s27
      %p24 = scmp.ge.s32.totalorder %s23, 4
      %s31 = sphi 0, %s31
      %s33 = sphi 0, %s31
      %s34 = sphi 0, %s33
      %s48 = sphi 0, %s34
      %s52 = sphi 0, %s52
      %s54 = sphi 0, %s52
      %s55 = sphi 0, %s54
      %s69 = sphi 0, %s55
      %s73 = sphi 0, %s73
      %s75 = sphi 0, %s73
      %s76 = sphi 0, %s75
      %s90 = sphi 0, %s76
      %s96 = sphi 0, %s98
      %s99 = sphi 0, %s96
      %s100 = sphi 0, %s99
      %s116 = sphi 0, %s100
      %s122 = sphi 0, %s124
      %s125 = sphi 0, %s122
      %s126 = sphi 0, %s125
      %s142 = sphi 0, %s126
      %s148 = sphi 0, %s150
      %s151 = sphi 0, %s148
      %s152 = sphi 0, %s151
      %s168 = sphi 0, %s152
      %s174 = sphi 0, %s176
      %s177 = sphi 0, %s174
      %s178 = sphi 0, %s177
      %s194 = sphi 0, %s178
      %s200 = sphi 0, %s202
      %s203 = sphi 0, %s200
      %s204 = sphi 0, %s203
      %s220 = sphi 0, %s204
      %s226 = sphi 0, %s228
      %s229 = sphi 0, %s226
      %s230 = sphi 0, %s229
      %s246 = sphi 0, %s230
      %s252 = sphi 0, %s254
      %s255 = sphi 0, %s252
      %s256 = sphi 0, %s255
      %s272 = sphi 0, %s256
      %s278 = sphi 0, %s280
      %s281 = sphi 0, %s278
      %s282 = sphi 0, %s281
      %s298 = sphi 0, %s282
      %s304 = sphi 0, %s306
      %s307 = sphi 0, %s304
      %s308 = sphi 0, %s307
      %s324 = sphi 0, %s308
      %s330 = sphi 0, %s332
      %s333 = sphi 0, %s330
      %s334 = sphi 0, %s333
      %s350 = sphi 0, %s334
      %s356 = sphi 0, %s358
      %s359 = sphi 0, %s356
      %s360 = sphi 0, %s359
      %s376 = sphi 0, %s360
      %s382 = sphi 0, %s384
      %s385 = sphi 0, %s382
      %s386 = sphi 0, %s385
      %s402 = sphi 0, %s386
      %s408 = sphi 0, %s410
      %s411 = sphi 0, %s408
      %s412 = sphi 0, %s411
      %s428 = sphi 0, %s412
    $region4: #{dual_critic_forward.1} parent=1 // loop_header_branch
      %26 = sbr.rel (%p24) target = $region8
    $region5: #{dual_critic_forward.1} parent=1 // loop_body
      %s28 = ssub.s32 %s23, 1
      %s29 = ssub.s32 %s23, 2
      %s30 = sadd.s32 %s23, 1
      %s32 = sadd.s32 %s31, 1
      %p35 = scmp.eq.s32.totalorder %s23, 1
      %p36 = scmp.ne.s32.totalorder %s31, %s33
      %p37 = scmp.eq.s32.totalorder %s23, 0
      %p38 = por %p36, %p37
      %p39 = scmp.ne.s32.totalorder %s31, %s33
      %p40 = scmp.eq.s32.totalorder %s28, 1
      %p41 = por %p39, %p40
      %p42 = scmp.ne.s32.totalorder %s33, %s34
      %p43 = scmp.eq.s32.totalorder %s28, 0
      %p44 = por %p42, %p43
      %p45 = scmp.ne.s32.totalorder %s33, %s34
      %p46 = scmp.eq.s32.totalorder %s29, 1
      %p47 = por %p45, %p46
      %p49 = scmp.ne.s32.totalorder %s34, %s48
      %p50 = scmp.eq.s32.totalorder %s29, 0
      %p51 = por %p49, %p50
      %s53 = sadd.s32 %s52, 1
      %p56 = scmp.eq.s32.totalorder %s23, 1
      %p57 = scmp.ne.s32.totalorder %s52, %s54
      %p58 = scmp.eq.s32.totalorder %s23, 0
      %p59 = por %p57, %p58
      %p60 = scmp.ne.s32.totalorder %s52, %s54
      %p61 = scmp.eq.s32.totalorder %s28, 1
      %p62 = por %p60, %p61
      %p63 = scmp.ne.s32.totalorder %s54, %s55
      %p64 = scmp.eq.s32.totalorder %s28, 0
      %p65 = por %p63, %p64
      %p66 = scmp.ne.s32.totalorder %s54, %s55
      %p67 = scmp.eq.s32.totalorder %s29, 1
      %p68 = por %p66, %p67
      %p70 = scmp.ne.s32.totalorder %s55, %s69
      %p71 = scmp.eq.s32.totalorder %s29, 0
      %p72 = por %p70, %p71
      %s74 = sadd.s32 %s73, 1
      %p77 = scmp.eq.s32.totalorder %s23, 1
      %p78 = scmp.ne.s32.totalorder %s73, %s75
      %p79 = scmp.eq.s32.totalorder %s23, 0
      %p80 = por %p78, %p79
      %p81 = scmp.ne.s32.totalorder %s73, %s75
      %p82 = scmp.eq.s32.totalorder %s28, 1
      %p83 = por %p81, %p82
      %p84 = scmp.ne.s32.totalorder %s75, %s76
      %p85 = scmp.eq.s32.totalorder %s28, 0
      %p86 = por %p84, %p85
      %p87 = scmp.ne.s32.totalorder %s75, %s76
      %p88 = scmp.eq.s32.totalorder %s29, 1
      %p89 = por %p87, %p88
      %p91 = scmp.ne.s32.totalorder %s76, %s90
      %p92 = scmp.eq.s32.totalorder %s29, 0
      %p93 = por %p91, %p92
      %s94 = ssub.s32 %s23, %s30
      %p95 = scmp.eq.s32.totalorder %s94, 0
      %s97 = sadd.s32 %s96, 1
      %s98 = scalar_select %p95, %s96, %s97
      %p101 = pneg %p95
      %p102 = scmp.eq.s32.totalorder %s23, 1
      %p103 = por %p101, %p102
      %p104 = scmp.ne.s32.totalorder %s96, %s99
      %p105 = scmp.eq.s32.totalorder %s23, 0
      %p106 = por %p104, %p105
      %p107 = scmp.ne.s32.totalorder %s96, %s99
      %p108 = scmp.eq.s32.totalorder %s28, 1
      %p109 = por %p107, %p108
      %p110 = scmp.ne.s32.totalorder %s99, %s100
      %p111 = scmp.eq.s32.totalorder %s28, 0
      %p112 = por %p110, %p111
      %p113 = scmp.ne.s32.totalorder %s99, %s100
      %p114 = scmp.eq.s32.totalorder %s29, 1
      %p115 = por %p113, %p114
      %p117 = scmp.ne.s32.totalorder %s100, %s116
      %p118 = scmp.eq.s32.totalorder %s29, 0
      %p119 = por %p117, %p118
      %s120 = ssub.s32 %s23, %s30
      %p121 = scmp.eq.s32.totalorder %s120, 0
      %s123 = sadd.s32 %s122, 1
      %s124 = scalar_select %p121, %s122, %s123
      %p127 = pneg %p121
      %p128 = scmp.eq.s32.totalorder %s23, 1
      %p129 = por %p127, %p128
      %p130 = scmp.ne.s32.totalorder %s122, %s125
      %p131 = scmp.eq.s32.totalorder %s23, 0
      %p132 = por %p130, %p131
      %p133 = scmp.ne.s32.totalorder %s122, %s125
      %p134 = scmp.eq.s32.totalorder %s28, 1
      %p135 = por %p133, %p134
      %p136 = scmp.ne.s32.totalorder %s125, %s126
      %p137 = scmp.eq.s32.totalorder %s28, 0
      %p138 = por %p136, %p137
      %p139 = scmp.ne.s32.totalorder %s125, %s126
      %p140 = scmp.eq.s32.totalorder %s29, 1
      %p141 = por %p139, %p140
      %p143 = scmp.ne.s32.totalorder %s126, %s142
      %p144 = scmp.eq.s32.totalorder %s29, 0
      %p145 = por %p143, %p144
      %s146 = ssub.s32 %s23, %s30
      %p147 = scmp.eq.s32.totalorder %s146, 0
      %s149 = sadd.s32 %s148, 1
      %s150 = scalar_select %p147, %s148, %s149
      %p153 = pneg %p147
      %p154 = scmp.eq.s32.totalorder %s23, 1
      %p155 = por %p153, %p154
      %p156 = scmp.ne.s32.totalorder %s148, %s151
      %p157 = scmp.eq.s32.totalorder %s23, 0
      %p158 = por %p156, %p157
      %p159 = scmp.ne.s32.totalorder %s148, %s151
      %p160 = scmp.eq.s32.totalorder %s28, 1
      %p161 = por %p159, %p160
      %p162 = scmp.ne.s32.totalorder %s151, %s152
      %p163 = scmp.eq.s32.totalorder %s28, 0
      %p164 = por %p162, %p163
      %p165 = scmp.ne.s32.totalorder %s151, %s152
      %p166 = scmp.eq.s32.totalorder %s29, 1
      %p167 = por %p165, %p166
      %p169 = scmp.ne.s32.totalorder %s152, %s168
      %p170 = scmp.eq.s32.totalorder %s29, 0
      %p171 = por %p169, %p170
      %s172 = ssub.s32 %s23, %s30
      %p173 = scmp.eq.s32.totalorder %s172, 0
      %s175 = sadd.s32 %s174, 1
      %s176 = scalar_select %p173, %s174, %s175
      %p179 = pneg %p173
      %p180 = scmp.eq.s32.totalorder %s23, 1
      %p181 = por %p179, %p180
      %p182 = scmp.ne.s32.totalorder %s174, %s177
      %p183 = scmp.eq.s32.totalorder %s23, 0
      %p184 = por %p182, %p183
      %p185 = scmp.ne.s32.totalorder %s174, %s177
      %p186 = scmp.eq.s32.totalorder %s28, 1
      %p187 = por %p185, %p186
      %p188 = scmp.ne.s32.totalorder %s177, %s178
      %p189 = scmp.eq.s32.totalorder %s28, 0
      %p190 = por %p188, %p189
      %p191 = scmp.ne.s32.totalorder %s177, %s178
      %p192 = scmp.eq.s32.totalorder %s29, 1
      %p193 = por %p191, %p192
      %p195 = scmp.ne.s32.totalorder %s178, %s194
      %p196 = scmp.eq.s32.totalorder %s29, 0
      %p197 = por %p195, %p196
      %s198 = ssub.s32 %s23, %s30
      %p199 = scmp.eq.s32.totalorder %s198, 0
      %s201 = sadd.s32 %s200, 1
      %s202 = scalar_select %p199, %s200, %s201
      %p205 = pneg %p199
      %p206 = scmp.eq.s32.totalorder %s23, 1
      %p207 = por %p205, %p206
      %p208 = scmp.ne.s32.totalorder %s200, %s203
      %p209 = scmp.eq.s32.totalorder %s23, 0
      %p210 = por %p208, %p209
      %p211 = scmp.ne.s32.totalorder %s200, %s203
      %p212 = scmp.eq.s32.totalorder %s28, 1
      %p213 = por %p211, %p212
      %p214 = scmp.ne.s32.totalorder %s203, %s204
      %p215 = scmp.eq.s32.totalorder %s28, 0
      %p216 = por %p214, %p215
      %p217 = scmp.ne.s32.totalorder %s203, %s204
      %p218 = scmp.eq.s32.totalorder %s29, 1
      %p219 = por %p217, %p218
      %p221 = scmp.ne.s32.totalorder %s204, %s220
      %p222 = scmp.eq.s32.totalorder %s29, 0
      %p223 = por %p221, %p222
      %s224 = ssub.s32 %s23, %s30
      %p225 = scmp.eq.s32.totalorder %s224, 0
      %s227 = sadd.s32 %s226, 1
      %s228 = scalar_select %p225, %s226, %s227
      %p231 = pneg %p225
      %p232 = scmp.eq.s32.totalorder %s23, 1
      %p233 = por %p231, %p232
      %p234 = scmp.ne.s32.totalorder %s226, %s229
      %p235 = scmp.eq.s32.totalorder %s23, 0
      %p236 = por %p234, %p235
      %p237 = scmp.ne.s32.totalorder %s226, %s229
      %p238 = scmp.eq.s32.totalorder %s28, 1
      %p239 = por %p237, %p238
      %p240 = scmp.ne.s32.totalorder %s229, %s230
      %p241 = scmp.eq.s32.totalorder %s28, 0
      %p242 = por %p240, %p241
      %p243 = scmp.ne.s32.totalorder %s229, %s230
      %p244 = scmp.eq.s32.totalorder %s29, 1
      %p245 = por %p243, %p244
      %p247 = scmp.ne.s32.totalorder %s230, %s246
      %p248 = scmp.eq.s32.totalorder %s29, 0
      %p249 = por %p247, %p248
      %s250 = ssub.s32 %s23, %s30
      %p251 = scmp.eq.s32.totalorder %s250, 0
      %s253 = sadd.s32 %s252, 1
      %s254 = scalar_select %p251, %s252, %s253
      %p257 = pneg %p251
      %p258 = scmp.eq.s32.totalorder %s23, 1
      %p259 = por %p257, %p258
      %p260 = scmp.ne.s32.totalorder %s252, %s255
      %p261 = scmp.eq.s32.totalorder %s23, 0
      %p262 = por %p260, %p261
      %p263 = scmp.ne.s32.totalorder %s252, %s255
      %p264 = scmp.eq.s32.totalorder %s28, 1
      %p265 = por %p263, %p264
      %p266 = scmp.ne.s32.totalorder %s255, %s256
      %p267 = scmp.eq.s32.totalorder %s28, 0
      %p268 = por %p266, %p267
      %p269 = scmp.ne.s32.totalorder %s255, %s256
      %p270 = scmp.eq.s32.totalorder %s29, 1
      %p271 = por %p269, %p270
      %p273 = scmp.ne.s32.totalorder %s256, %s272
      %p274 = scmp.eq.s32.totalorder %s29, 0
      %p275 = por %p273, %p274
      %s276 = ssub.s32 %s23, %s30
      %p277 = scmp.eq.s32.totalorder %s276, 0
      %s279 = sadd.s32 %s278, 1
      %s280 = scalar_select %p277, %s278, %s279
      %p283 = pneg %p277
      %p284 = scmp.eq.s32.totalorder %s23, 1
      %p285 = por %p283, %p284
      %p286 = scmp.ne.s32.totalorder %s278, %s281
      %p287 = scmp.eq.s32.totalorder %s23, 0
      %p288 = por %p286, %p287
      %p289 = scmp.ne.s32.totalorder %s278, %s281
      %p290 = scmp.eq.s32.totalorder %s28, 1
      %p291 = por %p289, %p290
      %p292 = scmp.ne.s32.totalorder %s281, %s282
      %p293 = scmp.eq.s32.totalorder %s28, 0
      %p294 = por %p292, %p293
      %p295 = scmp.ne.s32.totalorder %s281, %s282
      %p296 = scmp.eq.s32.totalorder %s29, 1
      %p297 = por %p295, %p296
      %p299 = scmp.ne.s32.totalorder %s282, %s298
      %p300 = scmp.eq.s32.totalorder %s29, 0
      %p301 = por %p299, %p300
      %s302 = ssub.s32 %s23, %s30
      %p303 = scmp.eq.s32.totalorder %s302, 0
      %s305 = sadd.s32 %s304, 1
      %s306 = scalar_select %p303, %s304, %s305
      %p309 = pneg %p303
      %p310 = scmp.eq.s32.totalorder %s23, 1
      %p311 = por %p309, %p310
      %p312 = scmp.ne.s32.totalorder %s304, %s307
      %p313 = scmp.eq.s32.totalorder %s23, 0
      %p314 = por %p312, %p313
      %p315 = scmp.ne.s32.totalorder %s304, %s307
      %p316 = scmp.eq.s32.totalorder %s28, 1
      %p317 = por %p315, %p316
      %p318 = scmp.ne.s32.totalorder %s307, %s308
      %p319 = scmp.eq.s32.totalorder %s28, 0
      %p320 = por %p318, %p319
      %p321 = scmp.ne.s32.totalorder %s307, %s308
      %p322 = scmp.eq.s32.totalorder %s29, 1
      %p323 = por %p321, %p322
      %p325 = scmp.ne.s32.totalorder %s308, %s324
      %p326 = scmp.eq.s32.totalorder %s29, 0
      %p327 = por %p325, %p326
      %s328 = ssub.s32 %s23, %s30
      %p329 = scmp.eq.s32.totalorder %s328, 0
      %s331 = sadd.s32 %s330, 1
      %s332 = scalar_select %p329, %s330, %s331
      %p335 = pneg %p329
      %p336 = scmp.eq.s32.totalorder %s23, 1
      %p337 = por %p335, %p336
      %p338 = scmp.ne.s32.totalorder %s330, %s333
      %p339 = scmp.eq.s32.totalorder %s23, 0
      %p340 = por %p338, %p339
      %p341 = scmp.ne.s32.totalorder %s330, %s333
      %p342 = scmp.eq.s32.totalorder %s28, 1
      %p343 = por %p341, %p342
      %p344 = scmp.ne.s32.totalorder %s333, %s334
      %p345 = scmp.eq.s32.totalorder %s28, 0
      %p346 = por %p344, %p345
      %p347 = scmp.ne.s32.totalorder %s333, %s334
      %p348 = scmp.eq.s32.totalorder %s29, 1
      %p349 = por %p347, %p348
      %p351 = scmp.ne.s32.totalorder %s334, %s350
      %p352 = scmp.eq.s32.totalorder %s29, 0
      %p353 = por %p351, %p352
      %s354 = ssub.s32 %s23, %s30
      %p355 = scmp.eq.s32.totalorder %s354, 0
      %s357 = sadd.s32 %s356, 1
      %s358 = scalar_select %p355, %s356, %s357
      %p361 = pneg %p355
      %p362 = scmp.eq.s32.totalorder %s23, 1
      %p363 = por %p361, %p362
      %p364 = scmp.ne.s32.totalorder %s356, %s359
      %p365 = scmp.eq.s32.totalorder %s23, 0
      %p366 = por %p364, %p365
      %p367 = scmp.ne.s32.totalorder %s356, %s359
      %p368 = scmp.eq.s32.totalorder %s28, 1
      %p369 = por %p367, %p368
      %p370 = scmp.ne.s32.totalorder %s359, %s360
      %p371 = scmp.eq.s32.totalorder %s28, 0
      %p372 = por %p370, %p371
      %p373 = scmp.ne.s32.totalorder %s359, %s360
      %p374 = scmp.eq.s32.totalorder %s29, 1
      %p375 = por %p373, %p374
      %p377 = scmp.ne.s32.totalorder %s360, %s376
      %p378 = scmp.eq.s32.totalorder %s29, 0
      %p379 = por %p377, %p378
      %s380 = ssub.s32 %s23, %s30
      %p381 = scmp.eq.s32.totalorder %s380, 0
      %s383 = sadd.s32 %s382, 1
      %s384 = scalar_select %p381, %s382, %s383
      %p387 = pneg %p381
      %p388 = scmp.eq.s32.totalorder %s23, 1
      %p389 = por %p387, %p388
      %p390 = scmp.ne.s32.totalorder %s382, %s385
      %p391 = scmp.eq.s32.totalorder %s23, 0
      %p392 = por %p390, %p391
      %p393 = scmp.ne.s32.totalorder %s382, %s385
      %p394 = scmp.eq.s32.totalorder %s28, 1
      %p395 = por %p393, %p394
      %p396 = scmp.ne.s32.totalorder %s385, %s386
      %p397 = scmp.eq.s32.totalorder %s28, 0
      %p398 = por %p396, %p397
      %p399 = scmp.ne.s32.totalorder %s385, %s386
      %p400 = scmp.eq.s32.totalorder %s29, 1
      %p401 = por %p399, %p400
      %p403 = scmp.ne.s32.totalorder %s386, %s402
      %p404 = scmp.eq.s32.totalorder %s29, 0
      %p405 = por %p403, %p404
      %s406 = ssub.s32 %s23, %s30
      %p407 = scmp.eq.s32.totalorder %s406, 0
      %s409 = sadd.s32 %s408, 1
      %s410 = scalar_select %p407, %s408, %s409
      %p413 = pneg %p407
      %p414 = scmp.eq.s32.totalorder %s23, 1
      %p415 = por %p413, %p414
      %p416 = scmp.ne.s32.totalorder %s408, %s411
      %p417 = scmp.eq.s32.totalorder %s23, 0
      %p418 = por %p416, %p417
      %p419 = scmp.ne.s32.totalorder %s408, %s411
      %p420 = scmp.eq.s32.totalorder %s28, 1
      %p421 = por %p419, %p420
      %p422 = scmp.ne.s32.totalorder %s411, %s412
      %p423 = scmp.eq.s32.totalorder %s28, 0
      %p424 = por %p422, %p423
      %p425 = scmp.ne.s32.totalorder %s411, %s412
      %p426 = scmp.eq.s32.totalorder %s29, 1
      %p427 = por %p425, %p426
      %p429 = scmp.ne.s32.totalorder %s412, %s428
      %p430 = scmp.eq.s32.totalorder %s29, 0
      %p431 = por %p429, %p430
      %p432 = scmp.le.s32.totalorder 1, %s23
      %p433 = scmp.lt.s32.totalorder %s23, 3
      %p434 = pnand %p432, %p433
      %p435 = pneg %p434
      // Predicated region
      $region9: #{dual_critic_forward.1} parent=5 // pred_check
        _
      $region10: #{dual_critic_forward.1} parent=5 // pred_check_branch
        %437 = sbr.rel (%p434) target = $region12
      $region11: #{dual_critic_forward.1} parent=5 // pred_region
        %s438 = ssub.s32 %s23, 1
        // Predicated region
        $region13: #{dual_critic_forward.1} parent=11 // pred_check
          %p439 = pneg %p44
        $region14: #{dual_critic_forward.1} parent=11 // pred_check_branch
          %441 = sbr.rel (%p439) target = $region16
        $region15: #{dual_critic_forward.1} parent=11 // pred_region
          _
        $region16: #{dual_critic_forward.1} parent=11 // pred_fallthru
          _
        // Predicated region
        $region17: #{dual_critic_forward.1} parent=11 // pred_check
          %p442 = pneg %p65
        $region18: #{dual_critic_forward.1} parent=11 // pred_check_branch
          %444 = sbr.rel (%p442) target = $region20
        $region19: #{dual_critic_forward.1} parent=11 // pred_region
          %446 = vsyncadd [#allocation3], 0
          %s448 = sshll.u32 %s1, 4
          %s449 = int_to_ptr.hbm [resolvable:$true] %s448
          %s450 = sshll.u32 [#allocation2], 4
          %s451 = int_to_ptr.vmem [resolvable:$true] %s450
          %453 = dma.hbm_to_vmem [thread:$0]  %s449, 32, %s451, [#allocation3]
        $region20: #{dual_critic_forward.1} parent=11 // pred_fallthru
          _
        // Predicated region
        $region21: #{dual_critic_forward.1} parent=11 // pred_check
          %p454 = pneg %p86
        $region22: #{dual_critic_forward.1} parent=11 // pred_check_branch
          %456 = sbr.rel (%p454) target = $region24
        $region23: #{dual_critic_forward.1} parent=11 // pred_region
          %458 = vsyncadd [#allocation5], 0
          %s460 = sshll.u32 %s2, 4
          %s461 = int_to_ptr.hbm [resolvable:$true] %s460
          %s462 = sshll.u32 [#allocation4], 4
          %s463 = int_to_ptr.vmem [resolvable:$true] %s462
          %465 = dma.hbm_to_vmem [thread:$0]  %s461, 32, %s463, [#allocation5]
        $region24: #{dual_critic_forward.1} parent=11 // pred_fallthru
          _
      $region12: #{dual_critic_forward.1} parent=5 // pred_fallthru
        _
      %p466 = scmp.lt.s32.totalorder %s23, 2
      // Predicated region
      $region25: #{dual_critic_forward.1} parent=5 // pred_check
        %p467 = pneg %p466
      $region26: #{dual_critic_forward.1} parent=5 // pred_check_branch
        %469 = sbr.rel (%p467) target = $region28
      $region27: #{dual_critic_forward.1} parent=5 // pred_region
        // Predicated region
        $region29: #{dual_critic_forward.1} parent=27 // pred_check
          %p470 = pneg %p106
        $region30: #{dual_critic_forward.1} parent=27 // pred_check_branch
          %472 = sbr.rel (%p470) target = $region32
        $region31: #{dual_critic_forward.1} parent=27 // pred_region
          %s473 = sand.u32 %s23, 1
          %s474 = scalar_lea.sflag [#allocation3], %s473
          %s475 = sand.u32 %s96, 1
          %s476 = smul.addr %s475, 1536
          %s477 = scalar_lea.vmem [#allocation6], %s476
          %479 = vsyncadd %s474, 0
          %s480 = smul.addr %s23, 192
          %s481 = smul.addr %s480, 8
          %s482 = scalar_lea.hbm %s3, %s481
          %s483 = sshll.u32 %s482, 4
          %s484 = int_to_ptr.hbm [resolvable:$true] %s483
          %s485 = sshll.u32 %s477, 4
          %s486 = int_to_ptr.vmem [resolvable:$true] %s485
          %491 = dma.hbm_to_vmem [thread:$0]  %s484, 24576, %s486, %s474, 1024, 1024, 64
        $region32: #{dual_critic_forward.1} parent=27 // pred_fallthru
          _
        // Predicated region
        $region33: #{dual_critic_forward.1} parent=27 // pred_check
          %p492 = pneg %p132
        $region34: #{dual_critic_forward.1} parent=27 // pred_check_branch
          %494 = sbr.rel (%p492) target = $region36
        $region35: #{dual_critic_forward.1} parent=27 // pred_region
          %s495 = sand.u32 %s23, 1
          %s496 = scalar_lea.sflag [#allocation3], %s495
          %s497 = sand.u32 %s122, 1
          %s498 = smul.addr %s497, 8
          %s499 = scalar_lea.vmem [#allocation7], %s498
          %501 = vsyncadd %s496, 0
          %s502 = smul.addr %s23, 8
          %s503 = scalar_lea.hbm %s4, %s502
          %s505 = sshll.u32 %s503, 4
          %s506 = int_to_ptr.hbm [resolvable:$true] %s505
          %s507 = sshll.u32 %s499, 4
          %s508 = int_to_ptr.vmem [resolvable:$true] %s507
          %510 = dma.hbm_to_vmem [thread:$0]  %s506, 128, %s508, %s496
        $region36: #{dual_critic_forward.1} parent=27 // pred_fallthru
          _
        // Predicated region
        $region37: #{dual_critic_forward.1} parent=27 // pred_check
          %p511 = pneg %p158
        $region38: #{dual_critic_forward.1} parent=27 // pred_check_branch
          %513 = sbr.rel (%p511) target = $region40
        $region39: #{dual_critic_forward.1} parent=27 // pred_region
          %s514 = sand.u32 %s23, 1
          %s515 = scalar_lea.sflag [#allocation3], %s514
          %s516 = sand.u32 %s148, 1
          %s517 = smul.addr %s516, 16384
          %s518 = scalar_lea.vmem [#allocation8], %s517
          %520 = vsyncadd %s515, 0
          %s521 = smul.addr %s23, 2048
          %s522 = smul.addr %s521, 8
          %s523 = scalar_lea.hbm %s5, %s522
          %s524 = sshll.u32 %s523, 4
          %s525 = int_to_ptr.hbm [resolvable:$true] %s524
          %s526 = sshll.u32 %s518, 4
          %s527 = int_to_ptr.vmem [resolvable:$true] %s526
          %532 = dma.hbm_to_vmem [thread:$0]  %s525, 262144, %s527, %s515, 2048, 2048, 128
        $region40: #{dual_critic_forward.1} parent=27 // pred_fallthru
          _
        // Predicated region
        $region41: #{dual_critic_forward.1} parent=27 // pred_check
          %p533 = pneg %p184
        $region42: #{dual_critic_forward.1} parent=27 // pred_check_branch
          %535 = sbr.rel (%p533) target = $region44
        $region43: #{dual_critic_forward.1} parent=27 // pred_region
          %s536 = sand.u32 %s23, 1
          %s537 = scalar_lea.sflag [#allocation3], %s536
          %s538 = sand.u32 %s174, 1
          %s539 = smul.addr %s538, 16
          %s540 = scalar_lea.vmem [#allocation9], %s539
          %542 = vsyncadd %s537, 0
          %s543 = smul.addr %s23, 16
          %s544 = scalar_lea.hbm %s6, %s543
          %s546 = sshll.u32 %s544, 4
          %s547 = int_to_ptr.hbm [resolvable:$true] %s546
          %s548 = sshll.u32 %s540, 4
          %s549 = int_to_ptr.vmem [resolvable:$true] %s548
          %551 = dma.hbm_to_vmem [thread:$0]  %s547, 256, %s549, %s537
        $region44: #{dual_critic_forward.1} parent=27 // pred_fallthru
          _
        // Predicated region
        $region45: #{dual_critic_forward.1} parent=27 // pred_check
          %p552 = pneg %p210
        $region46: #{dual_critic_forward.1} parent=27 // pred_check_branch
          %554 = sbr.rel (%p552) target = $region48
        $region47: #{dual_critic_forward.1} parent=27 // pred_region
          %s555 = sand.u32 %s23, 1
          %s556 = scalar_lea.sflag [#allocation3], %s555
          %s557 = sand.u32 %s200, 1
          %s558 = smul.addr %s557, 4096
          %s559 = scalar_lea.vmem [#allocation10], %s558
          %561 = vsyncadd %s556, 0
          %s562 = smul.addr %s23, 512
          %s563 = smul.addr %s562, 8
          %s564 = scalar_lea.hbm %s7, %s563
          %s565 = sshll.u32 %s564, 4
          %s566 = int_to_ptr.hbm [resolvable:$true] %s565
          %s567 = sshll.u32 %s559, 4
          %s568 = int_to_ptr.vmem [resolvable:$true] %s567
          %573 = dma.hbm_to_vmem [thread:$0]  %s566, 65536, %s568, %s556, 256, 256, 16
        $region48: #{dual_critic_forward.1} parent=27 // pred_fallthru
          _
        // Predicated region
        $region49: #{dual_critic_forward.1} parent=27 // pred_check
          %p574 = pneg %p236
        $region50: #{dual_critic_forward.1} parent=27 // pred_check_branch
          %576 = sbr.rel (%p574) target = $region52
        $region51: #{dual_critic_forward.1} parent=27 // pred_region
          %s577 = sand.u32 %s23, 1
          %s578 = scalar_lea.sflag [#allocation3], %s577
          %s579 = sand.u32 %s226, 1
          %s580 = smul.addr %s579, 16
          %s581 = scalar_lea.vmem [#allocation11], %s580
          %583 = vsyncadd %s578, 0
          %s584 = smul.addr %s23, 2
          %s585 = smul.addr %s584, 8
          %s586 = scalar_lea.hbm %s8, %s585
          %s588 = sshll.u32 %s586, 4
          %s589 = int_to_ptr.hbm [resolvable:$true] %s588
          %s590 = sshll.u32 %s581, 4
          %s591 = int_to_ptr.vmem [resolvable:$true] %s590
          %593 = dma.hbm_to_vmem [thread:$0]  %s589, 256, %s591, %s578
        $region52: #{dual_critic_forward.1} parent=27 // pred_fallthru
          _
        // Predicated region
        $region53: #{dual_critic_forward.1} parent=27 // pred_check
          %p594 = pneg %p262
        $region54: #{dual_critic_forward.1} parent=27 // pred_check_branch
          %596 = sbr.rel (%p594) target = $region56
        $region55: #{dual_critic_forward.1} parent=27 // pred_region
          %s597 = sand.u32 %s23, 1
          %s598 = scalar_lea.sflag [#allocation3], %s597
          %s599 = sand.u32 %s252, 1
          %s600 = smul.addr %s599, 8
          %s601 = scalar_lea.vmem [#allocation12], %s600
          %603 = vsyncadd %s598, 0
          %s604 = smul.addr %s23, 2
          %s605 = smul.addr %s604, 4
          %s606 = scalar_lea.hbm %s9, %s605
          %s608 = sshll.u32 %s606, 4
          %s609 = int_to_ptr.hbm [resolvable:$true] %s608
          %s610 = sshll.u32 %s601, 4
          %s611 = int_to_ptr.vmem [resolvable:$true] %s610
          %613 = dma.hbm_to_vmem [thread:$0]  %s609, 128, %s611, %s598
        $region56: #{dual_critic_forward.1} parent=27 // pred_fallthru
          _
        // Predicated region
        $region57: #{dual_critic_forward.1} parent=27 // pred_check
          %p614 = pneg %p288
        $region58: #{dual_critic_forward.1} parent=27 // pred_check_branch
          %616 = sbr.rel (%p614) target = $region60
        $region59: #{dual_critic_forward.1} parent=27 // pred_region
          %s617 = sand.u32 %s23, 1
          %s618 = scalar_lea.sflag [#allocation3], %s617
          %s619 = sand.u32 %s278, 1
          %s620 = smul.addr %s619, 2
          %s621 = scalar_lea.vmem [#allocation13], %s620
          %623 = vsyncadd %s618, 0
          %s624 = smul.addr %s23, 2
          %s625 = scalar_lea.hbm %s10, %s624
          %s627 = sshll.u32 %s625, 4
          %s628 = int_to_ptr.hbm [resolvable:$true] %s627
          %s629 = sshll.u32 %s621, 4
          %s630 = int_to_ptr.vmem [resolvable:$true] %s629
          %632 = dma.hbm_to_vmem [thread:$0]  %s628, 32, %s630, %s618
        $region60: #{dual_critic_forward.1} parent=27 // pred_fallthru
          _
        // Predicated region
        $region61: #{dual_critic_forward.1} parent=27 // pred_check
          %p633 = pneg %p314
        $region62: #{dual_critic_forward.1} parent=27 // pred_check_branch
          %635 = sbr.rel (%p633) target = $region64
        $region63: #{dual_critic_forward.1} parent=27 // pred_region
          %s636 = sand.u32 %s23, 1
          %s637 = scalar_lea.sflag [#allocation3], %s636
          %s638 = sand.u32 %s304, 1
          %s639 = smul.addr %s638, 512
          %s640 = scalar_lea.vmem [#allocation14], %s639
          %642 = vsyncadd %s637, 0
          %s643 = smul.addr %s23, 64
          %s644 = smul.addr %s643, 8
          %s645 = scalar_lea.hbm %s11, %s644
          %s646 = sshll.u32 %s645, 4
          %s647 = int_to_ptr.hbm [resolvable:$true] %s646
          %s648 = sshll.u32 %s640, 4
          %s649 = int_to_ptr.vmem [resolvable:$true] %s648
          %654 = dma.hbm_to_vmem [thread:$0]  %s647, 8192, %s649, %s637, 256, 256, 16
        $region64: #{dual_critic_forward.1} parent=27 // pred_fallthru
          _
        // Predicated region
        $region65: #{dual_critic_forward.1} parent=27 // pred_check
          %p655 = pneg %p340
        $region66: #{dual_critic_forward.1} parent=27 // pred_check_branch
          %657 = sbr.rel (%p655) target = $region68
        $region67: #{dual_critic_forward.1} parent=27 // pred_region
          %s658 = sand.u32 %s23, 1
          %s659 = scalar_lea.sflag [#allocation3], %s658
          %s660 = sand.u32 %s330, 1
          %s661 = smul.addr %s660, 2
          %s662 = scalar_lea.vmem [#allocation15], %s661
          %664 = vsyncadd %s659, 0
          %s665 = smul.addr %s23, 2
          %s666 = scalar_lea.hbm %s12, %s665
          %s668 = sshll.u32 %s666, 4
          %s669 = int_to_ptr.hbm [resolvable:$true] %s668
          %s670 = sshll.u32 %s662, 4
          %s671 = int_to_ptr.vmem [resolvable:$true] %s670
          %673 = dma.hbm_to_vmem [thread:$0]  %s669, 32, %s671, %s659
        $region68: #{dual_critic_forward.1} parent=27 // pred_fallthru
          _
        // Predicated region
        $region69: #{dual_critic_forward.1} parent=27 // pred_check
          %p674 = pneg %p366
        $region70: #{dual_critic_forward.1} parent=27 // pred_check_branch
          %676 = sbr.rel (%p674) target = $region72
        $region71: #{dual_critic_forward.1} parent=27 // pred_region
          %s677 = sand.u32 %s23, 1
          %s678 = scalar_lea.sflag [#allocation3], %s677
          %s679 = sand.u32 %s356, 1
          %s680 = smul.addr %s679, 2
          %s681 = scalar_lea.vmem [#allocation16], %s680
          %683 = vsyncadd %s678, 0
          %s684 = smul.addr %s23, 2
          %s685 = scalar_lea.hbm %s13, %s684
          %s687 = sshll.u32 %s685, 4
          %s688 = int_to_ptr.hbm [resolvable:$true] %s687
          %s689 = sshll.u32 %s681, 4
          %s690 = int_to_ptr.vmem [resolvable:$true] %s689
          %692 = dma.hbm_to_vmem [thread:$0]  %s688, 32, %s690, %s678
        $region72: #{dual_critic_forward.1} parent=27 // pred_fallthru
          _
        // Predicated region
        $region73: #{dual_critic_forward.1} parent=27 // pred_check
          %p693 = pneg %p392
        $region74: #{dual_critic_forward.1} parent=27 // pred_check_branch
          %695 = sbr.rel (%p693) target = $region76
        $region75: #{dual_critic_forward.1} parent=27 // pred_region
          %p696 = scmp.lt.s32.totalorder %s23, 1
          %s697 = scalar_select %p696, %s23, 1
          %s698 = scalar_lea.vmem %s14, %s697
        $region76: #{dual_critic_forward.1} parent=27 // pred_fallthru
          _
      $region28: #{dual_critic_forward.1} parent=5 // pred_fallthru
        _
      %p699 = scmp.le.s32.totalorder 1, %s23
      %p700 = scmp.lt.s32.totalorder %s23, 3
      %p701 = pnand %p699, %p700
      %p702 = pneg %p701
      // Predicated region
      $region77: #{dual_critic_forward.1} parent=5 // pred_check
        _
      $region78: #{dual_critic_forward.1} parent=5 // pred_check_branch
        %704 = sbr.rel (%p701) target = $region80
      $region79: #{dual_critic_forward.1} parent=5 // pred_region
        %s705 = ssub.s32 %s23, 1
        // Predicated region
        $region81: #{dual_critic_forward.1} parent=79 // pred_check
          %p706 = pneg %p65
        $region82: #{dual_critic_forward.1} parent=79 // pred_check_branch
          %708 = sbr.rel (%p706) target = $region84
        $region83: #{dual_critic_forward.1} parent=79 // pred_region
          %710 = dma.done [#allocation3], 32
        $region84: #{dual_critic_forward.1} parent=79 // pred_fallthru
          _
        // Predicated region
        $region85: #{dual_critic_forward.1} parent=79 // pred_check
          %p711 = pneg %p86
        $region86: #{dual_critic_forward.1} parent=79 // pred_check_branch
          %713 = sbr.rel (%p711) target = $region88
        $region87: #{dual_critic_forward.1} parent=79 // pred_region
          %715 = dma.done [#allocation5], 32
        $region88: #{dual_critic_forward.1} parent=79 // pred_fallthru
          _
        %s716 = sand.u32 %s28, 1
        %s717 = scalar_lea.sflag [#allocation3], %s716
        %s718 = sand.u32 %s99, 1
        %s719 = smul.addr %s718, 1536
        %s720 = scalar_lea.vmem [#allocation6], %s719
        // Predicated region
        $region89: #{dual_critic_forward.1} parent=79 // pred_check
          %p721 = pneg %p112
        $region90: #{dual_critic_forward.1} parent=79 // pred_check_branch
          %723 = sbr.rel (%p721) target = $region92
        $region91: #{dual_critic_forward.1} parent=79 // pred_region
          %725 = dma.done %s717, 24576
        $region92: #{dual_critic_forward.1} parent=79 // pred_fallthru
          _
        %s726 = sand.u32 %s28, 1
        %s727 = scalar_lea.sflag [#allocation3], %s726
        %s728 = sand.u32 %s125, 1
        %s729 = smul.addr %s728, 8
        %s730 = scalar_lea.vmem [#allocation7], %s729
        // Predicated region
        $region93: #{dual_critic_forward.1} parent=79 // pred_check
          %p731 = pneg %p138
        $region94: #{dual_critic_forward.1} parent=79 // pred_check_branch
          %733 = sbr.rel (%p731) target = $region96
        $region95: #{dual_critic_forward.1} parent=79 // pred_region
          %735 = dma.done %s727, 128
        $region96: #{dual_critic_forward.1} parent=79 // pred_fallthru
          _
        %s736 = sand.u32 %s28, 1
        %s737 = scalar_lea.sflag [#allocation3], %s736
        %s738 = sand.u32 %s151, 1
        %s739 = smul.addr %s738, 16384
        %s740 = scalar_lea.vmem [#allocation8], %s739
        // Predicated region
        $region97: #{dual_critic_forward.1} parent=79 // pred_check
          %p741 = pneg %p164
        $region98: #{dual_critic_forward.1} parent=79 // pred_check_branch
          %743 = sbr.rel (%p741) target = $region100
        $region99: #{dual_critic_forward.1} parent=79 // pred_region
          %745 = dma.done %s737, 262144
        $region100: #{dual_critic_forward.1} parent=79 // pred_fallthru
          _
        %s746 = sand.u32 %s28, 1
        %s747 = scalar_lea.sflag [#allocation3], %s746
        %s748 = sand.u32 %s177, 1
        %s749 = smul.addr %s748, 16
        %s750 = scalar_lea.vmem [#allocation9], %s749
        // Predicated region
        $region101: #{dual_critic_forward.1} parent=79 // pred_check
          %p751 = pneg %p190
        $region102: #{dual_critic_forward.1} parent=79 // pred_check_branch
          %753 = sbr.rel (%p751) target = $region104
        $region103: #{dual_critic_forward.1} parent=79 // pred_region
          %755 = dma.done %s747, 256
        $region104: #{dual_critic_forward.1} parent=79 // pred_fallthru
          _
        %s756 = sand.u32 %s28, 1
        %s757 = scalar_lea.sflag [#allocation3], %s756
        %s758 = sand.u32 %s203, 1
        %s759 = smul.addr %s758, 4096
        %s760 = scalar_lea.vmem [#allocation10], %s759
        // Predicated region
        $region105: #{dual_critic_forward.1} parent=79 // pred_check
          %p761 = pneg %p216
        $region106: #{dual_critic_forward.1} parent=79 // pred_check_branch
          %763 = sbr.rel (%p761) target = $region108
        $region107: #{dual_critic_forward.1} parent=79 // pred_region
          %765 = dma.done %s757, 65536
        $region108: #{dual_critic_forward.1} parent=79 // pred_fallthru
          _
        %s766 = sand.u32 %s28, 1
        %s767 = scalar_lea.sflag [#allocation3], %s766
        %s768 = sand.u32 %s229, 1
        %s769 = smul.addr %s768, 16
        %s770 = scalar_lea.vmem [#allocation11], %s769
        // Predicated region
        $region109: #{dual_critic_forward.1} parent=79 // pred_check
          %p771 = pneg %p242
        $region110: #{dual_critic_forward.1} parent=79 // pred_check_branch
          %773 = sbr.rel (%p771) target = $region112
        $region111: #{dual_critic_forward.1} parent=79 // pred_region
          %775 = dma.done %s767, 256
        $region112: #{dual_critic_forward.1} parent=79 // pred_fallthru
          _
        %s776 = sand.u32 %s28, 1
        %s777 = scalar_lea.sflag [#allocation3], %s776
        %s778 = sand.u32 %s255, 1
        %s779 = smul.addr %s778, 8
        %s780 = scalar_lea.vmem [#allocation12], %s779
        // Predicated region
        $region113: #{dual_critic_forward.1} parent=79 // pred_check
          %p781 = pneg %p268
        $region114: #{dual_critic_forward.1} parent=79 // pred_check_branch
          %783 = sbr.rel (%p781) target = $region116
        $region115: #{dual_critic_forward.1} parent=79 // pred_region
          %785 = dma.done %s777, 128
        $region116: #{dual_critic_forward.1} parent=79 // pred_fallthru
          _
        %s786 = sand.u32 %s28, 1
        %s787 = scalar_lea.sflag [#allocation3], %s786
        %s788 = sand.u32 %s281, 1
        %s789 = smul.addr %s788, 2
        %s790 = scalar_lea.vmem [#allocation13], %s789
        // Predicated region
        $region117: #{dual_critic_forward.1} parent=79 // pred_check
          %p791 = pneg %p294
        $region118: #{dual_critic_forward.1} parent=79 // pred_check_branch
          %793 = sbr.rel (%p791) target = $region120
        $region119: #{dual_critic_forward.1} parent=79 // pred_region
          %795 = dma.done %s787, 32
        $region120: #{dual_critic_forward.1} parent=79 // pred_fallthru
          _
        %s796 = sand.u32 %s28, 1
        %s797 = scalar_lea.sflag [#allocation3], %s796
        %s798 = sand.u32 %s307, 1
        %s799 = smul.addr %s798, 512
        %s800 = scalar_lea.vmem [#allocation14], %s799
        // Predicated region
        $region121: #{dual_critic_forward.1} parent=79 // pred_check
          %p801 = pneg %p320
        $region122: #{dual_critic_forward.1} parent=79 // pred_check_branch
          %803 = sbr.rel (%p801) target = $region124
        $region123: #{dual_critic_forward.1} parent=79 // pred_region
          %805 = dma.done %s797, 8192
        $region124: #{dual_critic_forward.1} parent=79 // pred_fallthru
          _
        %s806 = sand.u32 %s28, 1
        %s807 = scalar_lea.sflag [#allocation3], %s806
        %s808 = sand.u32 %s333, 1
        %s809 = smul.addr %s808, 2
        %s810 = scalar_lea.vmem [#allocation15], %s809
        // Predicated region
        $region125: #{dual_critic_forward.1} parent=79 // pred_check
          %p811 = pneg %p346
        $region126: #{dual_critic_forward.1} parent=79 // pred_check_branch
          %813 = sbr.rel (%p811) target = $region128
        $region127: #{dual_critic_forward.1} parent=79 // pred_region
          %815 = dma.done %s807, 32
        $region128: #{dual_critic_forward.1} parent=79 // pred_fallthru
          _
        %s816 = sand.u32 %s28, 1
        %s817 = scalar_lea.sflag [#allocation3], %s816
        %s818 = sand.u32 %s359, 1
        %s819 = smul.addr %s818, 2
        %s820 = scalar_lea.vmem [#allocation16], %s819
        // Predicated region
        $region129: #{dual_critic_forward.1} parent=79 // pred_check
          %p821 = pneg %p372
        $region130: #{dual_critic_forward.1} parent=79 // pred_check_branch
          %823 = sbr.rel (%p821) target = $region132
        $region131: #{dual_critic_forward.1} parent=79 // pred_region
          %825 = dma.done %s817, 32
        $region132: #{dual_critic_forward.1} parent=79 // pred_fallthru
          _
        %p826 = pneg %p44
        %p827 = pneg %p41
        %p828 = pneg %p65
        %p829 = pneg %p62
        %p830 = pneg %p86
        %p831 = pneg %p83
        %s832 = sand.u32 %s28, 1
        %s833 = scalar_lea.sflag [#allocation3], %s832
        %s834 = sand.u32 %s99, 1
        %s835 = smul.addr %s834, 1536
        %s836 = scalar_lea.vmem [#allocation6], %s835
        %p837 = pneg %p112
        %p838 = pneg %p109
        %s839 = sand.u32 %s28, 1
        %s840 = scalar_lea.sflag [#allocation3], %s839
        %s841 = sand.u32 %s125, 1
        %s842 = smul.addr %s841, 8
        %s843 = scalar_lea.vmem [#allocation7], %s842
        %p844 = pneg %p138
        %p845 = pneg %p135
        %s846 = sand.u32 %s28, 1
        %s847 = scalar_lea.sflag [#allocation3], %s846
        %s848 = sand.u32 %s151, 1
        %s849 = smul.addr %s848, 16384
        %s850 = scalar_lea.vmem [#allocation8], %s849
        %p851 = pneg %p164
        %p852 = pneg %p161
        %s853 = sand.u32 %s28, 1
        %s854 = scalar_lea.sflag [#allocation3], %s853
        %s855 = sand.u32 %s177, 1
        %s856 = smul.addr %s855, 16
        %s857 = scalar_lea.vmem [#allocation9], %s856
        %p858 = pneg %p190
        %p859 = pneg %p187
        %s860 = sand.u32 %s28, 1
        %s861 = scalar_lea.sflag [#allocation3], %s860
        %s862 = sand.u32 %s203, 1
        %s863 = smul.addr %s862, 4096
        %s864 = scalar_lea.vmem [#allocation10], %s863
        %p865 = pneg %p216
        %p866 = pneg %p213
        %s867 = sand.u32 %s28, 1
        %s868 = scalar_lea.sflag [#allocation3], %s867
        %s869 = sand.u32 %s229, 1
        %s870 = smul.addr %s869, 16
        %s871 = scalar_lea.vmem [#allocation11], %s870
        %p872 = pneg %p242
        %p873 = pneg %p239
        %s874 = sand.u32 %s28, 1
        %s875 = scalar_lea.sflag [#allocation3], %s874
        %s876 = sand.u32 %s255, 1
        %s877 = smul.addr %s876, 8
        %s878 = scalar_lea.vmem [#allocation12], %s877
        %p879 = pneg %p268
        %p880 = pneg %p265
        %s881 = sand.u32 %s28, 1
        %s882 = scalar_lea.sflag [#allocation3], %s881
        %s883 = sand.u32 %s281, 1
        %s884 = smul.addr %s883, 2
        %s885 = scalar_lea.vmem [#allocation13], %s884
        %p886 = pneg %p294
        %p887 = pneg %p291
        %s888 = sand.u32 %s28, 1
        %s889 = scalar_lea.sflag [#allocation3], %s888
        %s890 = sand.u32 %s307, 1
        %s891 = smul.addr %s890, 512
        %s892 = scalar_lea.vmem [#allocation14], %s891
        %p893 = pneg %p320
        %p894 = pneg %p317
        %s895 = sand.u32 %s28, 1
        %s896 = scalar_lea.sflag [#allocation3], %s895
        %s897 = sand.u32 %s333, 1
        %s898 = smul.addr %s897, 2
        %s899 = scalar_lea.vmem [#allocation15], %s898
        %p900 = pneg %p346
        %p901 = pneg %p343
        %s902 = sand.u32 %s28, 1
        %s903 = scalar_lea.sflag [#allocation3], %s902
        %s904 = sand.u32 %s359, 1
        %s905 = smul.addr %s904, 2
        %s906 = scalar_lea.vmem [#allocation16], %s905
        %p907 = pneg %p372
        %p908 = pneg %p369
        %p909 = scmp.lt.s32.totalorder %s28, 1
        %s910 = scalar_select %p909, %s28, 1
        %s911 = scalar_lea.vmem %s14, %s910
        %p912 = pneg %p398
        %p913 = pneg %p395
        %p914 = pneg %p424
        %p915 = pneg %p421
        %p916 = scmp.lt.s32.totalorder %s28, 1
        %s917 = scalar_select %p916, %s28, 1
        %s918 = smul.addr %s917, 2
        %s919 = scalar_lea.vmem %s15, %s918
        %p920 = scmp.lt.s32.totalorder %s28, 1
        %s921 = scalar_select %p920, %s28, 1
        %s922 = scalar_lea.vmem %s14, %s921
        %p923 = scmp.lt.s32.totalorder %s28, 1
        %s924 = scalar_select %p923, %s28, 1
        %s925 = smul.addr %s924, 2
        %s926 = scalar_lea.vmem %s15, %s925
        %v927 = vld [vmem:[%s0] sm:$0xf]
        %v928 = vld [vmem:[%s720] sm:$0xff]
        %v929 = vld [vmem:[%s720 + $0x8] sm:$0xff]
        %v930 = vld [vmem:[%s720 + $0x10] sm:$0xff]
        %v931 = vld [vmem:[%s720 + $0x18] sm:$0xff]
        %v932 = vld [vmem:[%s720 + $0x20] sm:$0xff]
        %v933 = vld [vmem:[%s720 + $0x28] sm:$0xff]
        %v934 = vld [vmem:[%s720 + $0x30] sm:$0xff]
        %v935 = vld [vmem:[%s720 + $0x38] sm:$0xff]
        %v936 = vld [vmem:[%s720 + $0x40] sm:$0xff]
        %v937 = vld [vmem:[%s720 + $0x48] sm:$0xff]
        %v938 = vld [vmem:[%s720 + $0x50] sm:$0xff]
        %v939 = vld [vmem:[%s720 + $0x58] sm:$0xff]
        %v940 = vld [vmem:[%s720 + $0x60] sm:$0xff]
        %v941 = vld [vmem:[%s720 + $0x68] sm:$0xff]
        %v942 = vld [vmem:[%s720 + $0x70] sm:$0xff]
        %v943 = vld [vmem:[%s720 + $0x78] sm:$0xff]
        %v944 = vld [vmem:[%s720 + $0x80] sm:$0xff]
        %v945 = vld [vmem:[%s720 + $0x88] sm:$0xff]
        %v946 = vld [vmem:[%s720 + $0x90] sm:$0xff]
        %v947 = vld [vmem:[%s720 + $0x98] sm:$0xff]
        %v948 = vld [vmem:[%s720 + $0xa0] sm:$0xff]
        %v949 = vld [vmem:[%s720 + $0xa8] sm:$0xff]
        %v950 = vld [vmem:[%s720 + $0xb0] sm:$0xff]
        %v951 = vld [vmem:[%s720 + $0xb8] sm:$0xff]
        %v952 = vld [vmem:[%s720 + $0xc0] sm:$0xff]
        %v953 = vld [vmem:[%s720 + $0xc8] sm:$0xff]
        %v954 = vld [vmem:[%s720 + $0xd0] sm:$0xff]
        %v955 = vld [vmem:[%s720 + $0xd8] sm:$0xff]
        %v956 = vld [vmem:[%s720 + $0xe0] sm:$0xff]
        %v957 = vld [vmem:[%s720 + $0xe8] sm:$0xff]
        %v958 = vld [vmem:[%s720 + $0xf0] sm:$0xff]
        %v959 = vld [vmem:[%s720 + $0xf8] sm:$0xff]
        %v960 = vld [vmem:[%s720 + $0x100] sm:$0xff]
        %v961 = vld [vmem:[%s720 + $0x108] sm:$0xff]
        %v962 = vld [vmem:[%s720 + $0x110] sm:$0xff]
        %v963 = vld [vmem:[%s720 + $0x118] sm:$0xff]
        %v964 = vld [vmem:[%s720 + $0x120] sm:$0xff]
        %v965 = vld [vmem:[%s720 + $0x128] sm:$0xff]
        %v966 = vld [vmem:[%s720 + $0x130] sm:$0xff]
        %v967 = vld [vmem:[%s720 + $0x138] sm:$0xff]
        %v968 = vld [vmem:[%s720 + $0x140] sm:$0xff]
        %v969 = vld [vmem:[%s720 + $0x148] sm:$0xff]
        %v970 = vld [vmem:[%s720 + $0x150] sm:$0xff]
        %v971 = vld [vmem:[%s720 + $0x158] sm:$0xff]
        %v972 = vld [vmem:[%s720 + $0x160] sm:$0xff]
        %v973 = vld [vmem:[%s720 + $0x168] sm:$0xff]
        %v974 = vld [vmem:[%s720 + $0x170] sm:$0xff]
        %v975 = vld [vmem:[%s720 + $0x178] sm:$0xff]
        %v976 = vld [vmem:[%s720 + $0x180] sm:$0xff]
        %v977 = vld [vmem:[%s720 + $0x188] sm:$0xff]
        %v978 = vld [vmem:[%s720 + $0x190] sm:$0xff]
        %v979 = vld [vmem:[%s720 + $0x198] sm:$0xff]
        %v980 = vld [vmem:[%s720 + $0x1a0] sm:$0xff]
        %v981 = vld [vmem:[%s720 + $0x1a8] sm:$0xff]
        %v982 = vld [vmem:[%s720 + $0x1b0] sm:$0xff]
        %v983 = vld [vmem:[%s720 + $0x1b8] sm:$0xff]
        %v984 = vld [vmem:[%s720 + $0x1c0] sm:$0xff]
        %v985 = vld [vmem:[%s720 + $0x1c8] sm:$0xff]
        %v986 = vld [vmem:[%s720 + $0x1d0] sm:$0xff]
        %v987 = vld [vmem:[%s720 + $0x1d8] sm:$0xff]
        %v988 = vld [vmem:[%s720 + $0x1e0] sm:$0xff]
        %v989 = vld [vmem:[%s720 + $0x1e8] sm:$0xff]
        %v990 = vld [vmem:[%s720 + $0x1f0] sm:$0xff]
        %v991 = vld [vmem:[%s720 + $0x1f8] sm:$0xff]
        %v992 = vld [vmem:[%s720 + $0x200] sm:$0xff]
        %v993 = vld [vmem:[%s720 + $0x208] sm:$0xff]
        %v994 = vld [vmem:[%s720 + $0x210] sm:$0xff]
        %v995 = vld [vmem:[%s720 + $0x218] sm:$0xff]
        %v996 = vld [vmem:[%s720 + $0x220] sm:$0xff]
        %v997 = vld [vmem:[%s720 + $0x228] sm:$0xff]
        %v998 = vld [vmem:[%s720 + $0x230] sm:$0xff]
        %v999 = vld [vmem:[%s720 + $0x238] sm:$0xff]
        %v1000 = vld [vmem:[%s720 + $0x240] sm:$0xff]
        %v1001 = vld [vmem:[%s720 + $0x248] sm:$0xff]
        %v1002 = vld [vmem:[%s720 + $0x250] sm:$0xff]
        %v1003 = vld [vmem:[%s720 + $0x258] sm:$0xff]
        %v1004 = vld [vmem:[%s720 + $0x260] sm:$0xff]
        %v1005 = vld [vmem:[%s720 + $0x268] sm:$0xff]
        %v1006 = vld [vmem:[%s720 + $0x270] sm:$0xff]
        %v1007 = vld [vmem:[%s720 + $0x278] sm:$0xff]
        %v1008 = vld [vmem:[%s720 + $0x280] sm:$0xff]
        %v1009 = vld [vmem:[%s720 + $0x288] sm:$0xff]
        %v1010 = vld [vmem:[%s720 + $0x290] sm:$0xff]
        %v1011 = vld [vmem:[%s720 + $0x298] sm:$0xff]
        %v1012 = vld [vmem:[%s720 + $0x2a0] sm:$0xff]
        %v1013 = vld [vmem:[%s720 + $0x2a8] sm:$0xff]
        %v1014 = vld [vmem:[%s720 + $0x2b0] sm:$0xff]
        %v1015 = vld [vmem:[%s720 + $0x2b8] sm:$0xff]
        %v1016 = vld [vmem:[%s720 + $0x2c0] sm:$0xff]
        %v1017 = vld [vmem:[%s720 + $0x2c8] sm:$0xff]
        %v1018 = vld [vmem:[%s720 + $0x2d0] sm:$0xff]
        %v1019 = vld [vmem:[%s720 + $0x2d8] sm:$0xff]
        %v1020 = vld [vmem:[%s720 + $0x2e0] sm:$0xff]
        %v1021 = vld [vmem:[%s720 + $0x2e8] sm:$0xff]
        %v1022 = vld [vmem:[%s720 + $0x2f0] sm:$0xff]
        %v1023 = vld [vmem:[%s720 + $0x2f8] sm:$0xff]
        %v1024 = vld [vmem:[%s720 + $0x300] sm:$0xff]
        %v1025 = vld [vmem:[%s720 + $0x308] sm:$0xff]
        %v1026 = vld [vmem:[%s720 + $0x310] sm:$0xff]
        %v1027 = vld [vmem:[%s720 + $0x318] sm:$0xff]
        %v1028 = vld [vmem:[%s720 + $0x320] sm:$0xff]
        %v1029 = vld [vmem:[%s720 + $0x328] sm:$0xff]
        %v1030 = vld [vmem:[%s720 + $0x330] sm:$0xff]
        %v1031 = vld [vmem:[%s720 + $0x338] sm:$0xff]
        %v1032 = vld [vmem:[%s720 + $0x340] sm:$0xff]
        %v1033 = vld [vmem:[%s720 + $0x348] sm:$0xff]
        %v1034 = vld [vmem:[%s720 + $0x350] sm:$0xff]
        %v1035 = vld [vmem:[%s720 + $0x358] sm:$0xff]
        %v1036 = vld [vmem:[%s720 + $0x360] sm:$0xff]
        %v1037 = vld [vmem:[%s720 + $0x368] sm:$0xff]
        %v1038 = vld [vmem:[%s720 + $0x370] sm:$0xff]
        %v1039 = vld [vmem:[%s720 + $0x378] sm:$0xff]
        %v1040 = vld [vmem:[%s720 + $0x380] sm:$0xff]
        %v1041 = vld [vmem:[%s720 + $0x388] sm:$0xff]
        %v1042 = vld [vmem:[%s720 + $0x390] sm:$0xff]
        %v1043 = vld [vmem:[%s720 + $0x398] sm:$0xff]
        %v1044 = vld [vmem:[%s720 + $0x3a0] sm:$0xff]
        %v1045 = vld [vmem:[%s720 + $0x3a8] sm:$0xff]
        %v1046 = vld [vmem:[%s720 + $0x3b0] sm:$0xff]
        %v1047 = vld [vmem:[%s720 + $0x3b8] sm:$0xff]
        %v1048 = vld [vmem:[%s720 + $0x3c0] sm:$0xff]
        %v1049 = vld [vmem:[%s720 + $0x3c8] sm:$0xff]
        %v1050 = vld [vmem:[%s720 + $0x3d0] sm:$0xff]
        %v1051 = vld [vmem:[%s720 + $0x3d8] sm:$0xff]
        %v1052 = vld [vmem:[%s720 + $0x3e0] sm:$0xff]
        %v1053 = vld [vmem:[%s720 + $0x3e8] sm:$0xff]
        %v1054 = vld [vmem:[%s720 + $0x3f0] sm:$0xff]
        %v1055 = vld [vmem:[%s720 + $0x3f8] sm:$0xff]
        %v1056 = vld [vmem:[%s720 + $0x400] sm:$0xff]
        %v1057 = vld [vmem:[%s720 + $0x408] sm:$0xff]
        %v1058 = vld [vmem:[%s720 + $0x410] sm:$0xff]
        %v1059 = vld [vmem:[%s720 + $0x418] sm:$0xff]
        %v1060 = vld [vmem:[%s720 + $0x420] sm:$0xff]
        %v1061 = vld [vmem:[%s720 + $0x428] sm:$0xff]
        %v1062 = vld [vmem:[%s720 + $0x430] sm:$0xff]
        %v1063 = vld [vmem:[%s720 + $0x438] sm:$0xff]
        %v1064 = vld [vmem:[%s720 + $0x440] sm:$0xff]
        %v1065 = vld [vmem:[%s720 + $0x448] sm:$0xff]
        %v1066 = vld [vmem:[%s720 + $0x450] sm:$0xff]
        %v1067 = vld [vmem:[%s720 + $0x458] sm:$0xff]
        %v1068 = vld [vmem:[%s720 + $0x460] sm:$0xff]
        %v1069 = vld [vmem:[%s720 + $0x468] sm:$0xff]
        %v1070 = vld [vmem:[%s720 + $0x470] sm:$0xff]
        %v1071 = vld [vmem:[%s720 + $0x478] sm:$0xff]
        %v1072 = vld [vmem:[%s720 + $0x480] sm:$0xff]
        %v1073 = vld [vmem:[%s720 + $0x488] sm:$0xff]
        %v1074 = vld [vmem:[%s720 + $0x490] sm:$0xff]
        %v1075 = vld [vmem:[%s720 + $0x498] sm:$0xff]
        %v1076 = vld [vmem:[%s720 + $0x4a0] sm:$0xff]
        %v1077 = vld [vmem:[%s720 + $0x4a8] sm:$0xff]
        %v1078 = vld [vmem:[%s720 + $0x4b0] sm:$0xff]
        %v1079 = vld [vmem:[%s720 + $0x4b8] sm:$0xff]
        %v1080 = vld [vmem:[%s720 + $0x4c0] sm:$0xff]
        %v1081 = vld [vmem:[%s720 + $0x4c8] sm:$0xff]
        %v1082 = vld [vmem:[%s720 + $0x4d0] sm:$0xff]
        %v1083 = vld [vmem:[%s720 + $0x4d8] sm:$0xff]
        %v1084 = vld [vmem:[%s720 + $0x4e0] sm:$0xff]
        %v1085 = vld [vmem:[%s720 + $0x4e8] sm:$0xff]
        %v1086 = vld [vmem:[%s720 + $0x4f0] sm:$0xff]
        %v1087 = vld [vmem:[%s720 + $0x4f8] sm:$0xff]
        %v1088 = vld [vmem:[%s720 + $0x500] sm:$0xff]
        %v1089 = vld [vmem:[%s720 + $0x508] sm:$0xff]
        %v1090 = vld [vmem:[%s720 + $0x510] sm:$0xff]
        %v1091 = vld [vmem:[%s720 + $0x518] sm:$0xff]
        %v1092 = vld [vmem:[%s720 + $0x520] sm:$0xff]
        %v1093 = vld [vmem:[%s720 + $0x528] sm:$0xff]
        %v1094 = vld [vmem:[%s720 + $0x530] sm:$0xff]
        %v1095 = vld [vmem:[%s720 + $0x538] sm:$0xff]
        %v1096 = vld [vmem:[%s720 + $0x540] sm:$0xff]
        %v1097 = vld [vmem:[%s720 + $0x548] sm:$0xff]
        %v1098 = vld [vmem:[%s720 + $0x550] sm:$0xff]
        %v1099 = vld [vmem:[%s720 + $0x558] sm:$0xff]
        %v1100 = vld [vmem:[%s720 + $0x560] sm:$0xff]
        %v1101 = vld [vmem:[%s720 + $0x568] sm:$0xff]
        %v1102 = vld [vmem:[%s720 + $0x570] sm:$0xff]
        %v1103 = vld [vmem:[%s720 + $0x578] sm:$0xff]
        %v1104 = vld [vmem:[%s720 + $0x580] sm:$0xff]
        %v1105 = vld [vmem:[%s720 + $0x588] sm:$0xff]
        %v1106 = vld [vmem:[%s720 + $0x590] sm:$0xff]
        %v1107 = vld [vmem:[%s720 + $0x598] sm:$0xff]
        %v1108 = vld [vmem:[%s720 + $0x5a0] sm:$0xff]
        %v1109 = vld [vmem:[%s720 + $0x5a8] sm:$0xff]
        %v1110 = vld [vmem:[%s720 + $0x5b0] sm:$0xff]
        %v1111 = vld [vmem:[%s720 + $0x5b8] sm:$0xff]
        %v1112 = vld [vmem:[%s720 + $0x5c0] sm:$0xff]
        %v1113 = vld [vmem:[%s720 + $0x5c8] sm:$0xff]
        %v1114 = vld [vmem:[%s720 + $0x5d0] sm:$0xff]
        %v1115 = vld [vmem:[%s720 + $0x5d8] sm:$0xff]
        %v1116 = vld [vmem:[%s720 + $0x5e0] sm:$0xff]
        %v1117 = vld [vmem:[%s720 + $0x5e8] sm:$0xff]
        %v1118 = vld [vmem:[%s720 + $0x5f0] sm:$0xff]
        %v1119 = vld [vmem:[%s720 + $0x5f8] sm:$0xff]
        %v1120 = vld [vmem:[%s730] sm:$0xff]
        %v1122 = vperm.slane %v1120, 0
        %v1123 = vperm.slane %v1120, 1
        %v1124 = vperm.slane %v1120, 2
        %v1125 = vperm.slane %v1120, 3
        %v1126 = vperm.slane %v1120, 4
        %v1127 = vperm.slane %v1120, 5
        %v1128 = vperm.slane %v1120, 6
        %v1129 = vperm.slane %v1120, 7
        %1139 = vst [vmem:[#allocation1] ss:$4 sm:$0xff] %v927
        %v1140 = vld.sshfl [vmem:[#allocation1] sm:$0xff pattern:$0x73625140]
        %v1141 = vld.sshfl [vmem:[#allocation1 + $0x8] sm:$0xff pattern:$0x73625140]
        %vm1143 = vcmask 523264
        %v1144 = vsel %vm1143, %v1141, 0
        %1146 = vmatpush.msra.mxu0 %v1048
        %1147 = vmatpush.msra.mxu0 %v1040
        %1148 = vmatpush.msra.mxu0 %v1032
        %1149 = vmatpush.msra.mxu0 %v1024
        %1150 = vmatpush.msra.mxu0 %v1016
        %1151 = vmatpush.msra.mxu0 %v1008
        %1152 = vmatpush.msra.mxu0 %v1000
        %1153 = vmatpush.msra.mxu0 %v992
        %1154 = vmatpush.msra.mxu0 %v984
        %1155 = vmatpush.msra.mxu0 %v976
        %1156 = vmatpush.msra.mxu0 %v968
        %1157 = vmatpush.msra.mxu0 %v960
        %1158 = vmatpush.msra.mxu0 %v952
        %1159 = vmatpush.msra.mxu0 %v944
        %1160 = vmatpush.msra.mxu0 %v936
        %1161 = vmatpush.msra.mxu0 %v928
        %1162 = vmatmul.f32.gmra.mxu0 %v1140
        %v1163 = vpop.f32.mrf.mxu0
        %v1164 = vadd.f32 %v1122, %v1163
        %1165 = vdwg.mxu0
        %1166 = vmatpush.msra.mxu0 0.0
        %1167 = vmatpush.msra.mxu0 0.0
        %1168 = vmatpush.msra.mxu0 0.0
        %1169 = vmatpush.msra.mxu0 0.0
        %1170 = vmatpush.msra.mxu0 0.0
        %1171 = vmatpush.msra.mxu0 0.0
        %1172 = vmatpush.msra.mxu0 0.0
        %1173 = vmatpush.msra.mxu0 0.0
        %1174 = vmatpush.msra.mxu0 %v1112
        %1175 = vmatpush.msra.mxu0 %v1104
        %1176 = vmatpush.msra.mxu0 %v1096
        %1177 = vmatpush.msra.mxu0 %v1088
        %1178 = vmatpush.msra.mxu0 %v1080
        %1179 = vmatpush.msra.mxu0 %v1072
        %1180 = vmatpush.msra.mxu0 %v1064
        %1181 = vmatpush.msra.mxu0 %v1056
        %1182 = vmatmul.f32.gmra.mxu0 %v1144
        %v1183 = vpop.f32.mrf.mxu0
        %v1184 = vadd.f32 %v1164, %v1183
        %1185 = vdwg.mxu0
        %1186 = vmatpush.msra.mxu0 %v1049
        %1187 = vmatpush.msra.mxu0 %v1041
        %1188 = vmatpush.msra.mxu0 %v1033
        %1189 = vmatpush.msra.mxu0 %v1025
        %1190 = vmatpush.msra.mxu0 %v1017
        %1191 = vmatpush.msra.mxu0 %v1009
        %1192 = vmatpush.msra.mxu0 %v1001
        %1193 = vmatpush.msra.mxu0 %v993
        %1194 = vmatpush.msra.mxu0 %v985
        %1195 = vmatpush.msra.mxu0 %v977
        %1196 = vmatpush.msra.mxu0 %v969
        %1197 = vmatpush.msra.mxu0 %v961
        %1198 = vmatpush.msra.mxu0 %v953
        %1199 = vmatpush.msra.mxu0 %v945
        %1200 = vmatpush.msra.mxu0 %v937
        %1201 = vmatpush.msra.mxu0 %v929
        %1202 = vmatmul.f32.gmra.mxu0 %v1140
        %v1203 = vpop.f32.mrf.mxu0
        %v1204 = vadd.f32 %v1123, %v1203
        %1205 = vdwg.mxu0
        %1206 = vmatpush.msra.mxu0 0.0
        %1207 = vmatpush.msra.mxu0 0.0
        %1208 = vmatpush.msra.mxu0 0.0
        %1209 = vmatpush.msra.mxu0 0.0
        %1210 = vmatpush.msra.mxu0 0.0
        %1211 = vmatpush.msra.mxu0 0.0
        %1212 = vmatpush.msra.mxu0 0.0
        %1213 = vmatpush.msra.mxu0 0.0
        %1214 = vmatpush.msra.mxu0 %v1113
        %1215 = vmatpush.msra.mxu0 %v1105
        %1216 = vmatpush.msra.mxu0 %v1097
        %1217 = vmatpush.msra.mxu0 %v1089
        %1218 = vmatpush.msra.mxu0 %v1081
        %1219 = vmatpush.msra.mxu0 %v1073
        %1220 = vmatpush.msra.mxu0 %v1065
        %1221 = vmatpush.msra.mxu0 %v1057
        %1222 = vmatmul.f32.gmra.mxu0 %v1144
        %v1223 = vpop.f32.mrf.mxu0
        %v1224 = vadd.f32 %v1204, %v1223
        %1225 = vdwg.mxu0
        %1226 = vmatpush.msra.mxu0 %v1050
        %1227 = vmatpush.msra.mxu0 %v1042
        %1228 = vmatpush.msra.mxu0 %v1034
        %1229 = vmatpush.msra.mxu0 %v1026
        %1230 = vmatpush.msra.mxu0 %v1018
        %1231 = vmatpush.msra.mxu0 %v1010
        %1232 = vmatpush.msra.mxu0 %v1002
        %1233 = vmatpush.msra.mxu0 %v994
        %1234 = vmatpush.msra.mxu0 %v986
        %1235 = vmatpush.msra.mxu0 %v978
        %1236 = vmatpush.msra.mxu0 %v970
        %1237 = vmatpush.msra.mxu0 %v962
        %1238 = vmatpush.msra.mxu0 %v954
        %1239 = vmatpush.msra.mxu0 %v946
        %1240 = vmatpush.msra.mxu0 %v938
        %1241 = vmatpush.msra.mxu0 %v930
        %1242 = vmatmul.f32.gmra.mxu0 %v1140
        %v1243 = vpop.f32.mrf.mxu0
        %v1244 = vadd.f32 %v1124, %v1243
        %1245 = vdwg.mxu0
        %1246 = vmatpush.msra.mxu0 0.0
        %1247 = vmatpush.msra.mxu0 0.0
        %1248 = vmatpush.msra.mxu0 0.0
        %1249 = vmatpush.msra.mxu0 0.0
        %1250 = vmatpush.msra.mxu0 0.0
        %1251 = vmatpush.msra.mxu0 0.0
        %1252 = vmatpush.msra.mxu0 0.0
        %1253 = vmatpush.msra.mxu0 0.0
        %1254 = vmatpush.msra.mxu0 %v1114
        %1255 = vmatpush.msra.mxu0 %v1106
        %1256 = vmatpush.msra.mxu0 %v1098
        %1257 = vmatpush.msra.mxu0 %v1090
        %1258 = vmatpush.msra.mxu0 %v1082
        %1259 = vmatpush.msra.mxu0 %v1074
        %1260 = vmatpush.msra.mxu0 %v1066
        %1261 = vmatpush.msra.mxu0 %v1058
        %1262 = vmatmul.f32.gmra.mxu0 %v1144
        %v1263 = vpop.f32.mrf.mxu0
        %v1264 = vadd.f32 %v1244, %v1263
        %1265 = vdwg.mxu0
        %1266 = vmatpush.msra.mxu0 %v1051
        %1267 = vmatpush.msra.mxu0 %v1043
        %1268 = vmatpush.msra.mxu0 %v1035
        %1269 = vmatpush.msra.mxu0 %v1027
        %1270 = vmatpush.msra.mxu0 %v1019
        %1271 = vmatpush.msra.mxu0 %v1011
        %1272 = vmatpush.msra.mxu0 %v1003
        %1273 = vmatpush.msra.mxu0 %v995
        %1274 = vmatpush.msra.mxu0 %v987
        %1275 = vmatpush.msra.mxu0 %v979
        %1276 = vmatpush.msra.mxu0 %v971
        %1277 = vmatpush.msra.mxu0 %v963
        %1278 = vmatpush.msra.mxu0 %v955
        %1279 = vmatpush.msra.mxu0 %v947
        %1280 = vmatpush.msra.mxu0 %v939
        %1281 = vmatpush.msra.mxu0 %v931
        %1282 = vmatmul.f32.gmra.mxu0 %v1140
        %v1283 = vpop.f32.mrf.mxu0
        %v1284 = vadd.f32 %v1125, %v1283
        %1285 = vdwg.mxu0
        %1286 = vmatpush.msra.mxu0 0.0
        %1287 = vmatpush.msra.mxu0 0.0
        %1288 = vmatpush.msra.mxu0 0.0
        %1289 = vmatpush.msra.mxu0 0.0
        %1290 = vmatpush.msra.mxu0 0.0
        %1291 = vmatpush.msra.mxu0 0.0
        %1292 = vmatpush.msra.mxu0 0.0
        %1293 = vmatpush.msra.mxu0 0.0
        %1294 = vmatpush.msra.mxu0 %v1115
        %1295 = vmatpush.msra.mxu0 %v1107
        %1296 = vmatpush.msra.mxu0 %v1099
        %1297 = vmatpush.msra.mxu0 %v1091
        %1298 = vmatpush.msra.mxu0 %v1083
        %1299 = vmatpush.msra.mxu0 %v1075
        %1300 = vmatpush.msra.mxu0 %v1067
        %1301 = vmatpush.msra.mxu0 %v1059
        %1302 = vmatmul.f32.gmra.mxu0 %v1144
        %v1303 = vpop.f32.mrf.mxu0
        %v1304 = vadd.f32 %v1284, %v1303
        %1305 = vdwg.mxu0
        %1306 = vmatpush.msra.mxu0 %v1052
        %1307 = vmatpush.msra.mxu0 %v1044
        %1308 = vmatpush.msra.mxu0 %v1036
        %1309 = vmatpush.msra.mxu0 %v1028
        %1310 = vmatpush.msra.mxu0 %v1020
        %1311 = vmatpush.msra.mxu0 %v1012
        %1312 = vmatpush.msra.mxu0 %v1004
        %1313 = vmatpush.msra.mxu0 %v996
        %1314 = vmatpush.msra.mxu0 %v988
        %1315 = vmatpush.msra.mxu0 %v980
        %1316 = vmatpush.msra.mxu0 %v972
        %1317 = vmatpush.msra.mxu0 %v964
        %1318 = vmatpush.msra.mxu0 %v956
        %1319 = vmatpush.msra.mxu0 %v948
        %1320 = vmatpush.msra.mxu0 %v940
        %1321 = vmatpush.msra.mxu0 %v932
        %1322 = vmatmul.f32.gmra.mxu0 %v1140
        %v1323 = vpop.f32.mrf.mxu0
        %v1324 = vadd.f32 %v1126, %v1323
        %1325 = vdwg.mxu0
        %1326 = vmatpush.msra.mxu0 0.0
        %1327 = vmatpush.msra.mxu0 0.0
        %1328 = vmatpush.msra.mxu0 0.0
        %1329 = vmatpush.msra.mxu0 0.0
        %1330 = vmatpush.msra.mxu0 0.0
        %1331 = vmatpush.msra.mxu0 0.0
        %1332 = vmatpush.msra.mxu0 0.0
        %1333 = vmatpush.msra.mxu0 0.0
        %1334 = vmatpush.msra.mxu0 %v1116
        %1335 = vmatpush.msra.mxu0 %v1108
        %1336 = vmatpush.msra.mxu0 %v1100
        %1337 = vmatpush.msra.mxu0 %v1092
        %1338 = vmatpush.msra.mxu0 %v1084
        %1339 = vmatpush.msra.mxu0 %v1076
        %1340 = vmatpush.msra.mxu0 %v1068
        %1341 = vmatpush.msra.mxu0 %v1060
        %1342 = vmatmul.f32.gmra.mxu0 %v1144
        %v1343 = vpop.f32.mrf.mxu0
        %v1344 = vadd.f32 %v1324, %v1343
        %1345 = vdwg.mxu0
        %1346 = vmatpush.msra.mxu0 %v1053
        %1347 = vmatpush.msra.mxu0 %v1045
        %1348 = vmatpush.msra.mxu0 %v1037
        %1349 = vmatpush.msra.mxu0 %v1029
        %1350 = vmatpush.msra.mxu0 %v1021
        %1351 = vmatpush.msra.mxu0 %v1013
        %1352 = vmatpush.msra.mxu0 %v1005
        %1353 = vmatpush.msra.mxu0 %v997
        %1354 = vmatpush.msra.mxu0 %v989
        %1355 = vmatpush.msra.mxu0 %v981
        %1356 = vmatpush.msra.mxu0 %v973
        %1357 = vmatpush.msra.mxu0 %v965
        %1358 = vmatpush.msra.mxu0 %v957
        %1359 = vmatpush.msra.mxu0 %v949
        %1360 = vmatpush.msra.mxu0 %v941
        %1361 = vmatpush.msra.mxu0 %v933
        %1362 = vmatmul.f32.gmra.mxu0 %v1140
        %v1363 = vpop.f32.mrf.mxu0
        %v1364 = vadd.f32 %v1127, %v1363
        %1365 = vdwg.mxu0
        %1366 = vmatpush.msra.mxu0 0.0
        %1367 = vmatpush.msra.mxu0 0.0
        %1368 = vmatpush.msra.mxu0 0.0
        %1369 = vmatpush.msra.mxu0 0.0
        %1370 = vmatpush.msra.mxu0 0.0
        %1371 = vmatpush.msra.mxu0 0.0
        %1372 = vmatpush.msra.mxu0 0.0
        %1373 = vmatpush.msra.mxu0 0.0
        %1374 = vmatpush.msra.mxu0 %v1117
        %1375 = vmatpush.msra.mxu0 %v1109
        %1376 = vmatpush.msra.mxu0 %v1101
        %1377 = vmatpush.msra.mxu0 %v1093
        %1378 = vmatpush.msra.mxu0 %v1085
        %1379 = vmatpush.msra.mxu0 %v1077
        %1380 = vmatpush.msra.mxu0 %v1069
        %1381 = vmatpush.msra.mxu0 %v1061
        %1382 = vmatmul.f32.gmra.mxu0 %v1144
        %v1383 = vpop.f32.mrf.mxu0
        %v1384 = vadd.f32 %v1364, %v1383
        %1385 = vdwg.mxu0
        %1386 = vmatpush.msra.mxu0 %v1054
        %1387 = vmatpush.msra.mxu0 %v1046
        %1388 = vmatpush.msra.mxu0 %v1038
        %1389 = vmatpush.msra.mxu0 %v1030
        %1390 = vmatpush.msra.mxu0 %v1022
        %1391 = vmatpush.msra.mxu0 %v1014
        %1392 = vmatpush.msra.mxu0 %v1006
        %1393 = vmatpush.msra.mxu0 %v998
        %1394 = vmatpush.msra.mxu0 %v990
        %1395 = vmatpush.msra.mxu0 %v982
        %1396 = vmatpush.msra.mxu0 %v974
        %1397 = vmatpush.msra.mxu0 %v966
        %1398 = vmatpush.msra.mxu0 %v958
        %1399 = vmatpush.msra.mxu0 %v950
        %1400 = vmatpush.msra.mxu0 %v942
        %1401 = vmatpush.msra.mxu0 %v934
        %1402 = vmatmul.f32.gmra.mxu0 %v1140
        %v1403 = vpop.f32.mrf.mxu0
        %v1404 = vadd.f32 %v1128, %v1403
        %1405 = vdwg.mxu0
        %1406 = vmatpush.msra.mxu0 0.0
        %1407 = vmatpush.msra.mxu0 0.0
        %1408 = vmatpush.msra.mxu0 0.0
        %1409 = vmatpush.msra.mxu0 0.0
        %1410 = vmatpush.msra.mxu0 0.0
        %1411 = vmatpush.msra.mxu0 0.0
        %1412 = vmatpush.msra.mxu0 0.0
        %1413 = vmatpush.msra.mxu0 0.0
        %1414 = vmatpush.msra.mxu0 %v1118
        %1415 = vmatpush.msra.mxu0 %v1110
        %1416 = vmatpush.msra.mxu0 %v1102
        %1417 = vmatpush.msra.mxu0 %v1094
        %1418 = vmatpush.msra.mxu0 %v1086
        %1419 = vmatpush.msra.mxu0 %v1078
        %1420 = vmatpush.msra.mxu0 %v1070
        %1421 = vmatpush.msra.mxu0 %v1062
        %1422 = vmatmul.f32.gmra.mxu0 %v1144
        %v1423 = vpop.f32.mrf.mxu0
        %v1424 = vadd.f32 %v1404, %v1423
        %1425 = vdwg.mxu0
        %1426 = vmatpush.msra.mxu0 %v1055
        %1427 = vmatpush.msra.mxu0 %v1047
        %1428 = vmatpush.msra.mxu0 %v1039
        %1429 = vmatpush.msra.mxu0 %v1031
        %1430 = vmatpush.msra.mxu0 %v1023
        %1431 = vmatpush.msra.mxu0 %v1015
        %1432 = vmatpush.msra.mxu0 %v1007
        %1433 = vmatpush.msra.mxu0 %v999
        %1434 = vmatpush.msra.mxu0 %v991
        %1435 = vmatpush.msra.mxu0 %v983
        %1436 = vmatpush.msra.mxu0 %v975
        %1437 = vmatpush.msra.mxu0 %v967
        %1438 = vmatpush.msra.mxu0 %v959
        %1439 = vmatpush.msra.mxu0 %v951
        %1440 = vmatpush.msra.mxu0 %v943
        %1441 = vmatpush.msra.mxu0 %v935
        %1442 = vmatmul.f32.gmra.mxu0 %v1140
        %v1443 = vpop.f32.mrf.mxu0
        %v1444 = vadd.f32 %v1129, %v1443
        %1445 = vdwg.mxu0
        %1446 = vmatpush.msra.mxu0 0.0
        %1447 = vmatpush.msra.mxu0 0.0
        %1448 = vmatpush.msra.mxu0 0.0
        %1449 = vmatpush.msra.mxu0 0.0
        %1450 = vmatpush.msra.mxu0 0.0
        %1451 = vmatpush.msra.mxu0 0.0
        %1452 = vmatpush.msra.mxu0 0.0
        %1453 = vmatpush.msra.mxu0 0.0
        %1454 = vmatpush.msra.mxu0 %v1119
        %1455 = vmatpush.msra.mxu0 %v1111
        %1456 = vmatpush.msra.mxu0 %v1103
        %1457 = vmatpush.msra.mxu0 %v1095
        %1458 = vmatpush.msra.mxu0 %v1087
        %1459 = vmatpush.msra.mxu0 %v1079
        %1460 = vmatpush.msra.mxu0 %v1071
        %1461 = vmatpush.msra.mxu0 %v1063
        %1462 = vmatmul.f32.gmra.mxu0 %v1144
        %v1463 = vpop.f32.mrf.mxu0
        %v1464 = vadd.f32 %v1444, %v1463
        %1465 = vdwg.mxu0
        %v1466 = vmax.f32 %v1184, 0.0
        %v1467 = vmax.f32 %v1224, 0.0
        %v1468 = vmax.f32 %v1264, 0.0
        %v1469 = vmax.f32 %v1304, 0.0
        %v1470 = vmax.f32 %v1344, 0.0
        %v1471 = vmax.f32 %v1384, 0.0
        %v1472 = vmax.f32 %v1424, 0.0
        %v1473 = vmax.f32 %v1464, 0.0
        %v1474 = vld [vmem:[%s740] sm:$0xff]
        %v1475 = vld [vmem:[%s740 + $0x8] sm:$0xff]
        %v1476 = vld [vmem:[%s740 + $0x10] sm:$0xff]
        %v1477 = vld [vmem:[%s740 + $0x18] sm:$0xff]
        %v1478 = vld [vmem:[%s740 + $0x20] sm:$0xff]
        %v1479 = vld [vmem:[%s740 + $0x28] sm:$0xff]
        %v1480 = vld [vmem:[%s740 + $0x30] sm:$0xff]
        %v1481 = vld [vmem:[%s740 + $0x38] sm:$0xff]
        %v1482 = vld [vmem:[%s740 + $0x40] sm:$0xff]
        %v1483 = vld [vmem:[%s740 + $0x48] sm:$0xff]
        %v1484 = vld [vmem:[%s740 + $0x50] sm:$0xff]
        %v1485 = vld [vmem:[%s740 + $0x58] sm:$0xff]
        %v1486 = vld [vmem:[%s740 + $0x60] sm:$0xff]
        %v1487 = vld [vmem:[%s740 + $0x68] sm:$0xff]
        %v1488 = vld [vmem:[%s740 + $0x70] sm:$0xff]
        %v1489 = vld [vmem:[%s740 + $0x78] sm:$0xff]
        %v1490 = vld [vmem:[%s740 + $0x80] sm:$0xff]
        %v1491 = vld [vmem:[%s740 + $0x88] sm:$0xff]
        %v1492 = vld [vmem:[%s740 + $0x90] sm:$0xff]
        %v1493 = vld [vmem:[%s740 + $0x98] sm:$0xff]
        %v1494 = vld [vmem:[%s740 + $0xa0] sm:$0xff]
        %v1495 = vld [vmem:[%s740 + $0xa8] sm:$0xff]
        %v1496 = vld [vmem:[%s740 + $0xb0] sm:$0xff]
        %v1497 = vld [vmem:[%s740 + $0xb8] sm:$0xff]
        %v1498 = vld [vmem:[%s740 + $0xc0] sm:$0xff]
        %v1499 = vld [vmem:[%s740 + $0xc8] sm:$0xff]
        %v1500 = vld [vmem:[%s740 + $0xd0] sm:$0xff]
        %v1501 = vld [vmem:[%s740 + $0xd8] sm:$0xff]
        %v1502 = vld [vmem:[%s740 + $0xe0] sm:$0xff]
        %v1503 = vld [vmem:[%s740 + $0xe8] sm:$0xff]
        %v1504 = vld [vmem:[%s740 + $0xf0] sm:$0xff]
        %v1505 = vld [vmem:[%s740 + $0xf8] sm:$0xff]
        %v1506 = vld [vmem:[%s740 + $0x100] sm:$0xff]
        %v1507 = vld [vmem:[%s740 + $0x108] sm:$0xff]
        %v1508 = vld [vmem:[%s740 + $0x110] sm:$0xff]
        %v1509 = vld [vmem:[%s740 + $0x118] sm:$0xff]
        %v1510 = vld [vmem:[%s740 + $0x120] sm:$0xff]
        %v1511 = vld [vmem:[%s740 + $0x128] sm:$0xff]
        %v1512 = vld [vmem:[%s740 + $0x130] sm:$0xff]
        %v1513 = vld [vmem:[%s740 + $0x138] sm:$0xff]
        %v1514 = vld [vmem:[%s740 + $0x140] sm:$0xff]
        %v1515 = vld [vmem:[%s740 + $0x148] sm:$0xff]
        %v1516 = vld [vmem:[%s740 + $0x150] sm:$0xff]
        %v1517 = vld [vmem:[%s740 + $0x158] sm:$0xff]
        %v1518 = vld [vmem:[%s740 + $0x160] sm:$0xff]
        %v1519 = vld [vmem:[%s740 + $0x168] sm:$0xff]
        %v1520 = vld [vmem:[%s740 + $0x170] sm:$0xff]
        %v1521 = vld [vmem:[%s740 + $0x178] sm:$0xff]
        %v1522 = vld [vmem:[%s740 + $0x180] sm:$0xff]
        %v1523 = vld [vmem:[%s740 + $0x188] sm:$0xff]
        %v1524 = vld [vmem:[%s740 + $0x190] sm:$0xff]
        %v1525 = vld [vmem:[%s740 + $0x198] sm:$0xff]
        %v1526 = vld [vmem:[%s740 + $0x1a0] sm:$0xff]
        %v1527 = vld [vmem:[%s740 + $0x1a8] sm:$0xff]
        %v1528 = vld [vmem:[%s740 + $0x1b0] sm:$0xff]
        %v1529 = vld [vmem:[%s740 + $0x1b8] sm:$0xff]
        %v1530 = vld [vmem:[%s740 + $0x1c0] sm:$0xff]
        %v1531 = vld [vmem:[%s740 + $0x1c8] sm:$0xff]
        %v1532 = vld [vmem:[%s740 + $0x1d0] sm:$0xff]
        %v1533 = vld [vmem:[%s740 + $0x1d8] sm:$0xff]
        %v1534 = vld [vmem:[%s740 + $0x1e0] sm:$0xff]
        %v1535 = vld [vmem:[%s740 + $0x1e8] sm:$0xff]
        %v1536 = vld [vmem:[%s740 + $0x1f0] sm:$0xff]
        %v1537 = vld [vmem:[%s740 + $0x1f8] sm:$0xff]
        %v1538 = vld [vmem:[%s740 + $0x200] sm:$0xff]
        %v1539 = vld [vmem:[%s740 + $0x208] sm:$0xff]
        %v1540 = vld [vmem:[%s740 + $0x210] sm:$0xff]
        %v1541 = vld [vmem:[%s740 + $0x218] sm:$0xff]
        %v1542 = vld [vmem:[%s740 + $0x220] sm:$0xff]
        %v1543 = vld [vmem:[%s740 + $0x228] sm:$0xff]
        %v1544 = vld [vmem:[%s740 + $0x230] sm:$0xff]
        %v1545 = vld [vmem:[%s740 + $0x238] sm:$0xff]
        %v1546 = vld [vmem:[%s740 + $0x240] sm:$0xff]
        %v1547 = vld [vmem:[%s740 + $0x248] sm:$0xff]
        %v1548 = vld [vmem:[%s740 + $0x250] sm:$0xff]
        %v1549 = vld [vmem:[%s740 + $0x258] sm:$0xff]
        %v1550 = vld [vmem:[%s740 + $0x260] sm:$0xff]
        %v1551 = vld [vmem:[%s740 + $0x268] sm:$0xff]
        %v1552 = vld [vmem:[%s740 + $0x270] sm:$0xff]
        %v1553 = vld [vmem:[%s740 + $0x278] sm:$0xff]
        %v1554 = vld [vmem:[%s740 + $0x280] sm:$0xff]
        %v1555 = vld [vmem:[%s740 + $0x288] sm:$0xff]
        %v1556 = vld [vmem:[%s740 + $0x290] sm:$0xff]
        %v1557 = vld [vmem:[%s740 + $0x298] sm:$0xff]
        %v1558 = vld [vmem:[%s740 + $0x2a0] sm:$0xff]
        %v1559 = vld [vmem:[%s740 + $0x2a8] sm:$0xff]
        %v1560 = vld [vmem:[%s740 + $0x2b0] sm:$0xff]
        %v1561 = vld [vmem:[%s740 + $0x2b8] sm:$0xff]
        %v1562 = vld [vmem:[%s740 + $0x2c0] sm:$0xff]
        %v1563 = vld [vmem:[%s740 + $0x2c8] sm:$0xff]
        %v1564 = vld [vmem:[%s740 + $0x2d0] sm:$0xff]
        %v1565 = vld [vmem:[%s740 + $0x2d8] sm:$0xff]
        %v1566 = vld [vmem:[%s740 + $0x2e0] sm:$0xff]
        %v1567 = vld [vmem:[%s740 + $0x2e8] sm:$0xff]
        %v1568 = vld [vmem:[%s740 + $0x2f0] sm:$0xff]
        %v1569 = vld [vmem:[%s740 + $0x2f8] sm:$0xff]
        %v1570 = vld [vmem:[%s740 + $0x300] sm:$0xff]
        %v1571 = vld [vmem:[%s740 + $0x308] sm:$0xff]
        %v1572 = vld [vmem:[%s740 + $0x310] sm:$0xff]
        %v1573 = vld [vmem:[%s740 + $0x318] sm:$0xff]
        %v1574 = vld [vmem:[%s740 + $0x320] sm:$0xff]
        %v1575 = vld [vmem:[%s740 + $0x328] sm:$0xff]
        %v1576 = vld [vmem:[%s740 + $0x330] sm:$0xff]
        %v1577 = vld [vmem:[%s740 + $0x338] sm:$0xff]
        %v1578 = vld [vmem:[%s740 + $0x340] sm:$0xff]
        %v1579 = vld [vmem:[%s740 + $0x348] sm:$0xff]
        %v1580 = vld [vmem:[%s740 + $0x350] sm:$0xff]
        %v1581 = vld [vmem:[%s740 + $0x358] sm:$0xff]
        %v1582 = vld [vmem:[%s740 + $0x360] sm:$0xff]
        %v1583 = vld [vmem:[%s740 + $0x368] sm:$0xff]
        %v1584 = vld [vmem:[%s740 + $0x370] sm:$0xff]
        %v1585 = vld [vmem:[%s740 + $0x378] sm:$0xff]
        %v1586 = vld [vmem:[%s740 + $0x380] sm:$0xff]
        %v1587 = vld [vmem:[%s740 + $0x388] sm:$0xff]
        %v1588 = vld [vmem:[%s740 + $0x390] sm:$0xff]
        %v1589 = vld [vmem:[%s740 + $0x398] sm:$0xff]
        %v1590 = vld [vmem:[%s740 + $0x3a0] sm:$0xff]
        %v1591 = vld [vmem:[%s740 + $0x3a8] sm:$0xff]
        %v1592 = vld [vmem:[%s740 + $0x3b0] sm:$0xff]
        %v1593 = vld [vmem:[%s740 + $0x3b8] sm:$0xff]
        %v1594 = vld [vmem:[%s740 + $0x3c0] sm:$0xff]
        %v1595 = vld [vmem:[%s740 + $0x3c8] sm:$0xff]
        %v1596 = vld [vmem:[%s740 + $0x3d0] sm:$0xff]
        %v1597 = vld [vmem:[%s740 + $0x3d8] sm:$0xff]
        %v1598 = vld [vmem:[%s740 + $0x3e0] sm:$0xff]
        %v1599 = vld [vmem:[%s740 + $0x3e8] sm:$0xff]
        %v1600 = vld [vmem:[%s740 + $0x3f0] sm:$0xff]
        %v1601 = vld [vmem:[%s740 + $0x3f8] sm:$0xff]
        %v1602 = vld [vmem:[%s740 + $0x400] sm:$0xff]
        %v1603 = vld [vmem:[%s740 + $0x408] sm:$0xff]
        %v1604 = vld [vmem:[%s740 + $0x410] sm:$0xff]
        %v1605 = vld [vmem:[%s740 + $0x418] sm:$0xff]
        %v1606 = vld [vmem:[%s740 + $0x420] sm:$0xff]
        %v1607 = vld [vmem:[%s740 + $0x428] sm:$0xff]
        %v1608 = vld [vmem:[%s740 + $0x430] sm:$0xff]
        %v1609 = vld [vmem:[%s740 + $0x438] sm:$0xff]
        %v1610 = vld [vmem:[%s740 + $0x440] sm:$0xff]
        %v1611 = vld [vmem:[%s740 + $0x448] sm:$0xff]
        %v1612 = vld [vmem:[%s740 + $0x450] sm:$0xff]
        %v1613 = vld [vmem:[%s740 + $0x458] sm:$0xff]
        %v1614 = vld [vmem:[%s740 + $0x460] sm:$0xff]
        %v1615 = vld [vmem:[%s740 + $0x468] sm:$0xff]
        %v1616 = vld [vmem:[%s740 + $0x470] sm:$0xff]
        %v1617 = vld [vmem:[%s740 + $0x478] sm:$0xff]
        %v1618 = vld [vmem:[%s740 + $0x480] sm:$0xff]
        %v1619 = vld [vmem:[%s740 + $0x488] sm:$0xff]
        %v1620 = vld [vmem:[%s740 + $0x490] sm:$0xff]
        %v1621 = vld [vmem:[%s740 + $0x498] sm:$0xff]
        %v1622 = vld [vmem:[%s740 + $0x4a0] sm:$0xff]
        %v1623 = vld [vmem:[%s740 + $0x4a8] sm:$0xff]
        %v1624 = vld [vmem:[%s740 + $0x4b0] sm:$0xff]
        %v1625 = vld [vmem:[%s740 + $0x4b8] sm:$0xff]
        %v1626 = vld [vmem:[%s740 + $0x4c0] sm:$0xff]
        %v1627 = vld [vmem:[%s740 + $0x4c8] sm:$0xff]
        %v1628 = vld [vmem:[%s740 + $0x4d0] sm:$0xff]
        %v1629 = vld [vmem:[%s740 + $0x4d8] sm:$0xff]
        %v1630 = vld [vmem:[%s740 + $0x4e0] sm:$0xff]
        %v1631 = vld [vmem:[%s740 + $0x4e8] sm:$0xff]
        %v1632 = vld [vmem:[%s740 + $0x4f0] sm:$0xff]
        %v1633 = vld [vmem:[%s740 + $0x4f8] sm:$0xff]
        %v1634 = vld [vmem:[%s740 + $0x500] sm:$0xff]
        %v1635 = vld [vmem:[%s740 + $0x508] sm:$0xff]
        %v1636 = vld [vmem:[%s740 + $0x510] sm:$0xff]
        %v1637 = vld [vmem:[%s740 + $0x518] sm:$0xff]
        %v1638 = vld [vmem:[%s740 + $0x520] sm:$0xff]
        %v1639 = vld [vmem:[%s740 + $0x528] sm:$0xff]
        %v1640 = vld [vmem:[%s740 + $0x530] sm:$0xff]
        %v1641 = vld [vmem:[%s740 + $0x538] sm:$0xff]
        %v1642 = vld [vmem:[%s740 + $0x540] sm:$0xff]
        %v1643 = vld [vmem:[%s740 + $0x548] sm:$0xff]
        %v1644 = vld [vmem:[%s740 + $0x550] sm:$0xff]
        %v1645 = vld [vmem:[%s740 + $0x558] sm:$0xff]
        %v1646 = vld [vmem:[%s740 + $0x560] sm:$0xff]
        %v1647 = vld [vmem:[%s740 + $0x568] sm:$0xff]
        %v1648 = vld [vmem:[%s740 + $0x570] sm:$0xff]
        %v1649 = vld [vmem:[%s740 + $0x578] sm:$0xff]
        %v1650 = vld [vmem:[%s740 + $0x580] sm:$0xff]
        %v1651 = vld [vmem:[%s740 + $0x588] sm:$0xff]
        %v1652 = vld [vmem:[%s740 + $0x590] sm:$0xff]
        %v1653 = vld [vmem:[%s740 + $0x598] sm:$0xff]
        %v1654 = vld [vmem:[%s740 + $0x5a0] sm:$0xff]
        %v1655 = vld [vmem:[%s740 + $0x5a8] sm:$0xff]
        %v1656 = vld [vmem:[%s740 + $0x5b0] sm:$0xff]
        %v1657 = vld [vmem:[%s740 + $0x5b8] sm:$0xff]
        %v1658 = vld [vmem:[%s740 + $0x5c0] sm:$0xff]
        %v1659 = vld [vmem:[%s740 + $0x5c8] sm:$0xff]
        %v1660 = vld [vmem:[%s740 + $0x5d0] sm:$0xff]
        %v1661 = vld [vmem:[%s740 + $0x5d8] sm:$0xff]
        %v1662 = vld [vmem:[%s740 + $0x5e0] sm:$0xff]
        %v1663 = vld [vmem:[%s740 + $0x5e8] sm:$0xff]
        %v1664 = vld [vmem:[%s740 + $0x5f0] sm:$0xff]
        %v1665 = vld [vmem:[%s740 + $0x5f8] sm:$0xff]
        %v1666 = vld [vmem:[%s740 + $0x600] sm:$0xff]
        %v1667 = vld [vmem:[%s740 + $0x608] sm:$0xff]
        %v1668 = vld [vmem:[%s740 + $0x610] sm:$0xff]
        %v1669 = vld [vmem:[%s740 + $0x618] sm:$0xff]
        %v1670 = vld [vmem:[%s740 + $0x620] sm:$0xff]
        %v1671 = vld [vmem:[%s740 + $0x628] sm:$0xff]
        %v1672 = vld [vmem:[%s740 + $0x630] sm:$0xff]
        %v1673 = vld [vmem:[%s740 + $0x638] sm:$0xff]
        %v1674 = vld [vmem:[%s740 + $0x640] sm:$0xff]
        %v1675 = vld [vmem:[%s740 + $0x648] sm:$0xff]
        %v1676 = vld [vmem:[%s740 + $0x650] sm:$0xff]
        %v1677 = vld [vmem:[%s740 + $0x658] sm:$0xff]
        %v1678 = vld [vmem:[%s740 + $0x660] sm:$0xff]
        %v1679 = vld [vmem:[%s740 + $0x668] sm:$0xff]
        %v1680 = vld [vmem:[%s740 + $0x670] sm:$0xff]
        %v1681 = vld [vmem:[%s740 + $0x678] sm:$0xff]
        %v1682 = vld [vmem:[%s740 + $0x680] sm:$0xff]
        %v1683 = vld [vmem:[%s740 + $0x688] sm:$0xff]
        %v1684 = vld [vmem:[%s740 + $0x690] sm:$0xff]
        %v1685 = vld [vmem:[%s740 + $0x698] sm:$0xff]
        %v1686 = vld [vmem:[%s740 + $0x6a0] sm:$0xff]
        %v1687 = vld [vmem:[%s740 + $0x6a8] sm:$0xff]
        %v1688 = vld [vmem:[%s740 + $0x6b0] sm:$0xff]
        %v1689 = vld [vmem:[%s740 + $0x6b8] sm:$0xff]
        %v1690 = vld [vmem:[%s740 + $0x6c0] sm:$0xff]
        %v1691 = vld [vmem:[%s740 + $0x6c8] sm:$0xff]
        %v1692 = vld [vmem:[%s740 + $0x6d0] sm:$0xff]
        %v1693 = vld [vmem:[%s740 + $0x6d8] sm:$0xff]
        %v1694 = vld [vmem:[%s740 + $0x6e0] sm:$0xff]
        %v1695 = vld [vmem:[%s740 + $0x6e8] sm:$0xff]
        %v1696 = vld [vmem:[%s740 + $0x6f0] sm:$0xff]
        %v1697 = vld [vmem:[%s740 + $0x6f8] sm:$0xff]
        %v1698 = vld [vmem:[%s740 + $0x700] sm:$0xff]
        %v1699 = vld [vmem:[%s740 + $0x708] sm:$0xff]
        %v1700 = vld [vmem:[%s740 + $0x710] sm:$0xff]
        %v1701 = vld [vmem:[%s740 + $0x718] sm:$0xff]
        %v1702 = vld [vmem:[%s740 + $0x720] sm:$0xff]
        %v1703 = vld [vmem:[%s740 + $0x728] sm:$0xff]
        %v1704 = vld [vmem:[%s740 + $0x730] sm:$0xff]
        %v1705 = vld [vmem:[%s740 + $0x738] sm:$0xff]
        %v1706 = vld [vmem:[%s740 + $0x740] sm:$0xff]
        %v1707 = vld [vmem:[%s740 + $0x748] sm:$0xff]
        %v1708 = vld [vmem:[%s740 + $0x750] sm:$0xff]
        %v1709 = vld [vmem:[%s740 + $0x758] sm:$0xff]
        %v1710 = vld [vmem:[%s740 + $0x760] sm:$0xff]
        %v1711 = vld [vmem:[%s740 + $0x768] sm:$0xff]
        %v1712 = vld [vmem:[%s740 + $0x770] sm:$0xff]
        %v1713 = vld [vmem:[%s740 + $0x778] sm:$0xff]
        %v1714 = vld [vmem:[%s740 + $0x780] sm:$0xff]
        %v1715 = vld [vmem:[%s740 + $0x788] sm:$0xff]
        %v1716 = vld [vmem:[%s740 + $0x790] sm:$0xff]
        %v1717 = vld [vmem:[%s740 + $0x798] sm:$0xff]
        %v1718 = vld [vmem:[%s740 + $0x7a0] sm:$0xff]
        %v1719 = vld [vmem:[%s740 + $0x7a8] sm:$0xff]
        %v1720 = vld [vmem:[%s740 + $0x7b0] sm:$0xff]
        %v1721 = vld [vmem:[%s740 + $0x7b8] sm:$0xff]
        %v1722 = vld [vmem:[%s740 + $0x7c0] sm:$0xff]
        %v1723 = vld [vmem:[%s740 + $0x7c8] sm:$0xff]
        %v1724 = vld [vmem:[%s740 + $0x7d0] sm:$0xff]
        %v1725 = vld [vmem:[%s740 + $0x7d8] sm:$0xff]
        %v1726 = vld [vmem:[%s740 + $0x7e0] sm:$0xff]
        %v1727 = vld [vmem:[%s740 + $0x7e8] sm:$0xff]
        %v1728 = vld [vmem:[%s740 + $0x7f0] sm:$0xff]
        %v1729 = vld [vmem:[%s740 + $0x7f8] sm:$0xff]
        %v1730 = vld [vmem:[%s740 + $0x800] sm:$0xff]
        %v1731 = vld [vmem:[%s740 + $0x808] sm:$0xff]
        %v1732 = vld [vmem:[%s740 + $0x810] sm:$0xff]
        %v1733 = vld [vmem:[%s740 + $0x818] sm:$0xff]
        %v1734 = vld [vmem:[%s740 + $0x820] sm:$0xff]
        %v1735 = vld [vmem:[%s740 + $0x828] sm:$0xff]
        %v1736 = vld [vmem:[%s740 + $0x830] sm:$0xff]
        %v1737 = vld [vmem:[%s740 + $0x838] sm:$0xff]
        %v1738 = vld [vmem:[%s740 + $0x840] sm:$0xff]
        %v1739 = vld [vmem:[%s740 + $0x848] sm:$0xff]
        %v1740 = vld [vmem:[%s740 + $0x850] sm:$0xff]
        %v1741 = vld [vmem:[%s740 + $0x858] sm:$0xff]
        %v1742 = vld [vmem:[%s740 + $0x860] sm:$0xff]
        %v1743 = vld [vmem:[%s740 + $0x868] sm:$0xff]
        %v1744 = vld [vmem:[%s740 + $0x870] sm:$0xff]
        %v1745 = vld [vmem:[%s740 + $0x878] sm:$0xff]
        %v1746 = vld [vmem:[%s740 + $0x880] sm:$0xff]
        %v1747 = vld [vmem:[%s740 + $0x888] sm:$0xff]
        %v1748 = vld [vmem:[%s740 + $0x890] sm:$0xff]
        %v1749 = vld [vmem:[%s740 + $0x898] sm:$0xff]
        %v1750 = vld [vmem:[%s740 + $0x8a0] sm:$0xff]
        %v1751 = vld [vmem:[%s740 + $0x8a8] sm:$0xff]
        %v1752 = vld [vmem:[%s740 + $0x8b0] sm:$0xff]
        %v1753 = vld [vmem:[%s740 + $0x8b8] sm:$0xff]
        %v1754 = vld [vmem:[%s740 + $0x8c0] sm:$0xff]
        %v1755 = vld [vmem:[%s740 + $0x8c8] sm:$0xff]
        %v1756 = vld [vmem:[%s740 + $0x8d0] sm:$0xff]
        %v1757 = vld [vmem:[%s740 + $0x8d8] sm:$0xff]
        %v1758 = vld [vmem:[%s740 + $0x8e0] sm:$0xff]
        %v1759 = vld [vmem:[%s740 + $0x8e8] sm:$0xff]
        %v1760 = vld [vmem:[%s740 + $0x8f0] sm:$0xff]
        %v1761 = vld [vmem:[%s740 + $0x8f8] sm:$0xff]
        %v1762 = vld [vmem:[%s740 + $0x900] sm:$0xff]
        %v1763 = vld [vmem:[%s740 + $0x908] sm:$0xff]
        %v1764 = vld [vmem:[%s740 + $0x910] sm:$0xff]
        %v1765 = vld [vmem:[%s740 + $0x918] sm:$0xff]
        %v1766 = vld [vmem:[%s740 + $0x920] sm:$0xff]
        %v1767 = vld [vmem:[%s740 + $0x928] sm:$0xff]
        %v1768 = vld [vmem:[%s740 + $0x930] sm:$0xff]
        %v1769 = vld [vmem:[%s740 + $0x938] sm:$0xff]
        %v1770 = vld [vmem:[%s740 + $0x940] sm:$0xff]
        %v1771 = vld [vmem:[%s740 + $0x948] sm:$0xff]
        %v1772 = vld [vmem:[%s740 + $0x950] sm:$0xff]
        %v1773 = vld [vmem:[%s740 + $0x958] sm:$0xff]
        %v1774 = vld [vmem:[%s740 + $0x960] sm:$0xff]
        %v1775 = vld [vmem:[%s740 + $0x968] sm:$0xff]
        %v1776 = vld [vmem:[%s740 + $0x970] sm:$0xff]
        %v1777 = vld [vmem:[%s740 + $0x978] sm:$0xff]
        %v1778 = vld [vmem:[%s740 + $0x980] sm:$0xff]
        %v1779 = vld [vmem:[%s740 + $0x988] sm:$0xff]
        %v1780 = vld [vmem:[%s740 + $0x990] sm:$0xff]
        %v1781 = vld [vmem:[%s740 + $0x998] sm:$0xff]
        %v1782 = vld [vmem:[%s740 + $0x9a0] sm:$0xff]
        %v1783 = vld [vmem:[%s740 + $0x9a8] sm:$0xff]
        %v1784 = vld [vmem:[%s740 + $0x9b0] sm:$0xff]
        %v1785 = vld [vmem:[%s740 + $0x9b8] sm:$0xff]
        %v1786 = vld [vmem:[%s740 + $0x9c0] sm:$0xff]
        %v1787 = vld [vmem:[%s740 + $0x9c8] sm:$0xff]
        %v1788 = vld [vmem:[%s740 + $0x9d0] sm:$0xff]
        %v1789 = vld [vmem:[%s740 + $0x9d8] sm:$0xff]
        %v1790 = vld [vmem:[%s740 + $0x9e0] sm:$0xff]
        %v1791 = vld [vmem:[%s740 + $0x9e8] sm:$0xff]
        %v1792 = vld [vmem:[%s740 + $0x9f0] sm:$0xff]
        %v1793 = vld [vmem:[%s740 + $0x9f8] sm:$0xff]
        %v1794 = vld [vmem:[%s740 + $0xa00] sm:$0xff]
        %v1795 = vld [vmem:[%s740 + $0xa08] sm:$0xff]
        %v1796 = vld [vmem:[%s740 + $0xa10] sm:$0xff]
        %v1797 = vld [vmem:[%s740 + $0xa18] sm:$0xff]
        %v1798 = vld [vmem:[%s740 + $0xa20] sm:$0xff]
        %v1799 = vld [vmem:[%s740 + $0xa28] sm:$0xff]
        %v1800 = vld [vmem:[%s740 + $0xa30] sm:$0xff]
        %v1801 = vld [vmem:[%s740 + $0xa38] sm:$0xff]
        %v1802 = vld [vmem:[%s740 + $0xa40] sm:$0xff]
        %v1803 = vld [vmem:[%s740 + $0xa48] sm:$0xff]
        %v1804 = vld [vmem:[%s740 + $0xa50] sm:$0xff]
        %v1805 = vld [vmem:[%s740 + $0xa58] sm:$0xff]
        %v1806 = vld [vmem:[%s740 + $0xa60] sm:$0xff]
        %v1807 = vld [vmem:[%s740 + $0xa68] sm:$0xff]
        %v1808 = vld [vmem:[%s740 + $0xa70] sm:$0xff]
        %v1809 = vld [vmem:[%s740 + $0xa78] sm:$0xff]
        %v1810 = vld [vmem:[%s740 + $0xa80] sm:$0xff]
        %v1811 = vld [vmem:[%s740 + $0xa88] sm:$0xff]
        %v1812 = vld [vmem:[%s740 + $0xa90] sm:$0xff]
        %v1813 = vld [vmem:[%s740 + $0xa98] sm:$0xff]
        %v1814 = vld [vmem:[%s740 + $0xaa0] sm:$0xff]
        %v1815 = vld [vmem:[%s740 + $0xaa8] sm:$0xff]
        %v1816 = vld [vmem:[%s740 + $0xab0] sm:$0xff]
        %v1817 = vld [vmem:[%s740 + $0xab8] sm:$0xff]
        %v1818 = vld [vmem:[%s740 + $0xac0] sm:$0xff]
        %v1819 = vld [vmem:[%s740 + $0xac8] sm:$0xff]
        %v1820 = vld [vmem:[%s740 + $0xad0] sm:$0xff]
        %v1821 = vld [vmem:[%s740 + $0xad8] sm:$0xff]
        %v1822 = vld [vmem:[%s740 + $0xae0] sm:$0xff]
        %v1823 = vld [vmem:[%s740 + $0xae8] sm:$0xff]
        %v1824 = vld [vmem:[%s740 + $0xaf0] sm:$0xff]
        %v1825 = vld [vmem:[%s740 + $0xaf8] sm:$0xff]
        %v1826 = vld [vmem:[%s740 + $0xb00] sm:$0xff]
        %v1827 = vld [vmem:[%s740 + $0xb08] sm:$0xff]
        %v1828 = vld [vmem:[%s740 + $0xb10] sm:$0xff]
        %v1829 = vld [vmem:[%s740 + $0xb18] sm:$0xff]
        %v1830 = vld [vmem:[%s740 + $0xb20] sm:$0xff]
        %v1831 = vld [vmem:[%s740 + $0xb28] sm:$0xff]
        %v1832 = vld [vmem:[%s740 + $0xb30] sm:$0xff]
        %v1833 = vld [vmem:[%s740 + $0xb38] sm:$0xff]
        %v1834 = vld [vmem:[%s740 + $0xb40] sm:$0xff]
        %v1835 = vld [vmem:[%s740 + $0xb48] sm:$0xff]
        %v1836 = vld [vmem:[%s740 + $0xb50] sm:$0xff]
        %v1837 = vld [vmem:[%s740 + $0xb58] sm:$0xff]
        %v1838 = vld [vmem:[%s740 + $0xb60] sm:$0xff]
        %v1839 = vld [vmem:[%s740 + $0xb68] sm:$0xff]
        %v1840 = vld [vmem:[%s740 + $0xb70] sm:$0xff]
        %v1841 = vld [vmem:[%s740 + $0xb78] sm:$0xff]
        %v1842 = vld [vmem:[%s740 + $0xb80] sm:$0xff]
        %v1843 = vld [vmem:[%s740 + $0xb88] sm:$0xff]
        %v1844 = vld [vmem:[%s740 + $0xb90] sm:$0xff]
        %v1845 = vld [vmem:[%s740 + $0xb98] sm:$0xff]
        %v1846 = vld [vmem:[%s740 + $0xba0] sm:$0xff]
        %v1847 = vld [vmem:[%s740 + $0xba8] sm:$0xff]
        %v1848 = vld [vmem:[%s740 + $0xbb0] sm:$0xff]
        %v1849 = vld [vmem:[%s740 + $0xbb8] sm:$0xff]
        %v1850 = vld [vmem:[%s740 + $0xbc0] sm:$0xff]
        %v1851 = vld [vmem:[%s740 + $0xbc8] sm:$0xff]
        %v1852 = vld [vmem:[%s740 + $0xbd0] sm:$0xff]
        %v1853 = vld [vmem:[%s740 + $0xbd8] sm:$0xff]
        %v1854 = vld [vmem:[%s740 + $0xbe0] sm:$0xff]
        %v1855 = vld [vmem:[%s740 + $0xbe8] sm:$0xff]
        %v1856 = vld [vmem:[%s740 + $0xbf0] sm:$0xff]
        %v1857 = vld [vmem:[%s740 + $0xbf8] sm:$0xff]
        %v1858 = vld [vmem:[%s740 + $0xc00] sm:$0xff]
        %v1859 = vld [vmem:[%s740 + $0xc08] sm:$0xff]
        %v1860 = vld [vmem:[%s740 + $0xc10] sm:$0xff]
        %v1861 = vld [vmem:[%s740 + $0xc18] sm:$0xff]
        %v1862 = vld [vmem:[%s740 + $0xc20] sm:$0xff]
        %v1863 = vld [vmem:[%s740 + $0xc28] sm:$0xff]
        %v1864 = vld [vmem:[%s740 + $0xc30] sm:$0xff]
        %v1865 = vld [vmem:[%s740 + $0xc38] sm:$0xff]
        %v1866 = vld [vmem:[%s740 + $0xc40] sm:$0xff]
        %v1867 = vld [vmem:[%s740 + $0xc48] sm:$0xff]
        %v1868 = vld [vmem:[%s740 + $0xc50] sm:$0xff]
        %v1869 = vld [vmem:[%s740 + $0xc58] sm:$0xff]
        %v1870 = vld [vmem:[%s740 + $0xc60] sm:$0xff]
        %v1871 = vld [vmem:[%s740 + $0xc68] sm:$0xff]
        %v1872 = vld [vmem:[%s740 + $0xc70] sm:$0xff]
        %v1873 = vld [vmem:[%s740 + $0xc78] sm:$0xff]
        %v1874 = vld [vmem:[%s740 + $0xc80] sm:$0xff]
        %v1875 = vld [vmem:[%s740 + $0xc88] sm:$0xff]
        %v1876 = vld [vmem:[%s740 + $0xc90] sm:$0xff]
        %v1877 = vld [vmem:[%s740 + $0xc98] sm:$0xff]
        %v1878 = vld [vmem:[%s740 + $0xca0] sm:$0xff]
        %v1879 = vld [vmem:[%s740 + $0xca8] sm:$0xff]
        %v1880 = vld [vmem:[%s740 + $0xcb0] sm:$0xff]
        %v1881 = vld [vmem:[%s740 + $0xcb8] sm:$0xff]
        %v1882 = vld [vmem:[%s740 + $0xcc0] sm:$0xff]
        %v1883 = vld [vmem:[%s740 + $0xcc8] sm:$0xff]
        %v1884 = vld [vmem:[%s740 + $0xcd0] sm:$0xff]
        %v1885 = vld [vmem:[%s740 + $0xcd8] sm:$0xff]
        %v1886 = vld [vmem:[%s740 + $0xce0] sm:$0xff]
        %v1887 = vld [vmem:[%s740 + $0xce8] sm:$0xff]
        %v1888 = vld [vmem:[%s740 + $0xcf0] sm:$0xff]
        %v1889 = vld [vmem:[%s740 + $0xcf8] sm:$0xff]
        %v1890 = vld [vmem:[%s740 + $0xd00] sm:$0xff]
        %v1891 = vld [vmem:[%s740 + $0xd08] sm:$0xff]
        %v1892 = vld [vmem:[%s740 + $0xd10] sm:$0xff]
        %v1893 = vld [vmem:[%s740 + $0xd18] sm:$0xff]
        %v1894 = vld [vmem:[%s740 + $0xd20] sm:$0xff]
        %v1895 = vld [vmem:[%s740 + $0xd28] sm:$0xff]
        %v1896 = vld [vmem:[%s740 + $0xd30] sm:$0xff]
        %v1897 = vld [vmem:[%s740 + $0xd38] sm:$0xff]
        %v1898 = vld [vmem:[%s740 + $0xd40] sm:$0xff]
        %v1899 = vld [vmem:[%s740 + $0xd48] sm:$0xff]
        %v1900 = vld [vmem:[%s740 + $0xd50] sm:$0xff]
        %v1901 = vld [vmem:[%s740 + $0xd58] sm:$0xff]
        %v1902 = vld [vmem:[%s740 + $0xd60] sm:$0xff]
        %v1903 = vld [vmem:[%s740 + $0xd68] sm:$0xff]
        %v1904 = vld [vmem:[%s740 + $0xd70] sm:$0xff]
        %v1905 = vld [vmem:[%s740 + $0xd78] sm:$0xff]
        %v1906 = vld [vmem:[%s740 + $0xd80] sm:$0xff]
        %v1907 = vld [vmem:[%s740 + $0xd88] sm:$0xff]
        %v1908 = vld [vmem:[%s740 + $0xd90] sm:$0xff]
        %v1909 = vld [vmem:[%s740 + $0xd98] sm:$0xff]
        %v1910 = vld [vmem:[%s740 + $0xda0] sm:$0xff]
        %v1911 = vld [vmem:[%s740 + $0xda8] sm:$0xff]
        %v1912 = vld [vmem:[%s740 + $0xdb0] sm:$0xff]
        %v1913 = vld [vmem:[%s740 + $0xdb8] sm:$0xff]
        %v1914 = vld [vmem:[%s740 + $0xdc0] sm:$0xff]
        %v1915 = vld [vmem:[%s740 + $0xdc8] sm:$0xff]
        %v1916 = vld [vmem:[%s740 + $0xdd0] sm:$0xff]
        %v1917 = vld [vmem:[%s740 + $0xdd8] sm:$0xff]
        %v1918 = vld [vmem:[%s740 + $0xde0] sm:$0xff]
        %v1919 = vld [vmem:[%s740 + $0xde8] sm:$0xff]
        %v1920 = vld [vmem:[%s740 + $0xdf0] sm:$0xff]
        %v1921 = vld [vmem:[%s740 + $0xdf8] sm:$0xff]
        %v1922 = vld [vmem:[%s740 + $0xe00] sm:$0xff]
        %v1923 = vld [vmem:[%s740 + $0xe08] sm:$0xff]
        %v1924 = vld [vmem:[%s740 + $0xe10] sm:$0xff]
        %v1925 = vld [vmem:[%s740 + $0xe18] sm:$0xff]
        %v1926 = vld [vmem:[%s740 + $0xe20] sm:$0xff]
        %v1927 = vld [vmem:[%s740 + $0xe28] sm:$0xff]
        %v1928 = vld [vmem:[%s740 + $0xe30] sm:$0xff]
        %v1929 = vld [vmem:[%s740 + $0xe38] sm:$0xff]
        %v1930 = vld [vmem:[%s740 + $0xe40] sm:$0xff]
        %v1931 = vld [vmem:[%s740 + $0xe48] sm:$0xff]
        %v1932 = vld [vmem:[%s740 + $0xe50] sm:$0xff]
        %v1933 = vld [vmem:[%s740 + $0xe58] sm:$0xff]
        %v1934 = vld [vmem:[%s740 + $0xe60] sm:$0xff]
        %v1935 = vld [vmem:[%s740 + $0xe68] sm:$0xff]
        %v1936 = vld [vmem:[%s740 + $0xe70] sm:$0xff]
        %v1937 = vld [vmem:[%s740 + $0xe78] sm:$0xff]
        %v1938 = vld [vmem:[%s740 + $0xe80] sm:$0xff]
        %v1939 = vld [vmem:[%s740 + $0xe88] sm:$0xff]
        %v1940 = vld [vmem:[%s740 + $0xe90] sm:$0xff]
        %v1941 = vld [vmem:[%s740 + $0xe98] sm:$0xff]
        %v1942 = vld [vmem:[%s740 + $0xea0] sm:$0xff]
        %v1943 = vld [vmem:[%s740 + $0xea8] sm:$0xff]
        %v1944 = vld [vmem:[%s740 + $0xeb0] sm:$0xff]
        %v1945 = vld [vmem:[%s740 + $0xeb8] sm:$0xff]
        %v1946 = vld [vmem:[%s740 + $0xec0] sm:$0xff]
        %v1947 = vld [vmem:[%s740 + $0xec8] sm:$0xff]
        %v1948 = vld [vmem:[%s740 + $0xed0] sm:$0xff]
        %v1949 = vld [vmem:[%s740 + $0xed8] sm:$0xff]
        %v1950 = vld [vmem:[%s740 + $0xee0] sm:$0xff]
        %v1951 = vld [vmem:[%s740 + $0xee8] sm:$0xff]
        %v1952 = vld [vmem:[%s740 + $0xef0] sm:$0xff]
        %v1953 = vld [vmem:[%s740 + $0xef8] sm:$0xff]
        %v1954 = vld [vmem:[%s740 + $0xf00] sm:$0xff]
        %v1955 = vld [vmem:[%s740 + $0xf08] sm:$0xff]
        %v1956 = vld [vmem:[%s740 + $0xf10] sm:$0xff]
        %v1957 = vld [vmem:[%s740 + $0xf18] sm:$0xff]
        %v1958 = vld [vmem:[%s740 + $0xf20] sm:$0xff]
        %v1959 = vld [vmem:[%s740 + $0xf28] sm:$0xff]
        %v1960 = vld [vmem:[%s740 + $0xf30] sm:$0xff]
        %v1961 = vld [vmem:[%s740 + $0xf38] sm:$0xff]
        %v1962 = vld [vmem:[%s740 + $0xf40] sm:$0xff]
        %v1963 = vld [vmem:[%s740 + $0xf48] sm:$0xff]
        %v1964 = vld [vmem:[%s740 + $0xf50] sm:$0xff]
        %v1965 = vld [vmem:[%s740 + $0xf58] sm:$0xff]
        %v1966 = vld [vmem:[%s740 + $0xf60] sm:$0xff]
        %v1967 = vld [vmem:[%s740 + $0xf68] sm:$0xff]
        %v1968 = vld [vmem:[%s740 + $0xf70] sm:$0xff]
        %v1969 = vld [vmem:[%s740 + $0xf78] sm:$0xff]
        %v1970 = vld [vmem:[%s740 + $0xf80] sm:$0xff]
        %v1971 = vld [vmem:[%s740 + $0xf88] sm:$0xff]
        %v1972 = vld [vmem:[%s740 + $0xf90] sm:$0xff]
        %v1973 = vld [vmem:[%s740 + $0xf98] sm:$0xff]
        %v1974 = vld [vmem:[%s740 + $0xfa0] sm:$0xff]
        %v1975 = vld [vmem:[%s740 + $0xfa8] sm:$0xff]
        %v1976 = vld [vmem:[%s740 + $0xfb0] sm:$0xff]
        %v1977 = vld [vmem:[%s740 + $0xfb8] sm:$0xff]
        %v1978 = vld [vmem:[%s740 + $0xfc0] sm:$0xff]
        %v1979 = vld [vmem:[%s740 + $0xfc8] sm:$0xff]
        %v1980 = vld [vmem:[%s740 + $0xfd0] sm:$0xff]
        %v1981 = vld [vmem:[%s740 + $0xfd8] sm:$0xff]
        %v1982 = vld [vmem:[%s740 + $0xfe0] sm:$0xff]
        %v1983 = vld [vmem:[%s740 + $0xfe8] sm:$0xff]
        %v1984 = vld [vmem:[%s740 + $0xff0] sm:$0xff]
        %v1985 = vld [vmem:[%s740 + $0xff8] sm:$0xff]
        %v1986 = vld [vmem:[%s740 + $0x1000] sm:$0xff]
        %v1987 = vld [vmem:[%s740 + $0x1008] sm:$0xff]
        %v1988 = vld [vmem:[%s740 + $0x1010] sm:$0xff]
        %v1989 = vld [vmem:[%s740 + $0x1018] sm:$0xff]
        %v1990 = vld [vmem:[%s740 + $0x1020] sm:$0xff]
        %v1991 = vld [vmem:[%s740 + $0x1028] sm:$0xff]
        %v1992 = vld [vmem:[%s740 + $0x1030] sm:$0xff]
        %v1993 = vld [vmem:[%s740 + $0x1038] sm:$0xff]
        %v1994 = vld [vmem:[%s740 + $0x1040] sm:$0xff]
        %v1995 = vld [vmem:[%s740 + $0x1048] sm:$0xff]
        %v1996 = vld [vmem:[%s740 + $0x1050] sm:$0xff]
        %v1997 = vld [vmem:[%s740 + $0x1058] sm:$0xff]
        %v1998 = vld [vmem:[%s740 + $0x1060] sm:$0xff]
        %v1999 = vld [vmem:[%s740 + $0x1068] sm:$0xff]
        %v2000 = vld [vmem:[%s740 + $0x1070] sm:$0xff]
        %v2001 = vld [vmem:[%s740 + $0x1078] sm:$0xff]
        %v2002 = vld [vmem:[%s740 + $0x1080] sm:$0xff]
        %v2003 = vld [vmem:[%s740 + $0x1088] sm:$0xff]
        %v2004 = vld [vmem:[%s740 + $0x1090] sm:$0xff]
        %v2005 = vld [vmem:[%s740 + $0x1098] sm:$0xff]
        %v2006 = vld [vmem:[%s740 + $0x10a0] sm:$0xff]
        %v2007 = vld [vmem:[%s740 + $0x10a8] sm:$0xff]
        %v2008 = vld [vmem:[%s740 + $0x10b0] sm:$0xff]
        %v2009 = vld [vmem:[%s740 + $0x10b8] sm:$0xff]
        %v2010 = vld [vmem:[%s740 + $0x10c0] sm:$0xff]
        %v2011 = vld [vmem:[%s740 + $0x10c8] sm:$0xff]
        %v2012 = vld [vmem:[%s740 + $0x10d0] sm:$0xff]
        %v2013 = vld [vmem:[%s740 + $0x10d8] sm:$0xff]
        %v2014 = vld [vmem:[%s740 + $0x10e0] sm:$0xff]
        %v2015 = vld [vmem:[%s740 + $0x10e8] sm:$0xff]
        %v2016 = vld [vmem:[%s740 + $0x10f0] sm:$0xff]
        %v2017 = vld [vmem:[%s740 + $0x10f8] sm:$0xff]
        %v2018 = vld [vmem:[%s740 + $0x1100] sm:$0xff]
        %v2019 = vld [vmem:[%s740 + $0x1108] sm:$0xff]
        %v2020 = vld [vmem:[%s740 + $0x1110] sm:$0xff]
        %v2021 = vld [vmem:[%s740 + $0x1118] sm:$0xff]
        %v2022 = vld [vmem:[%s740 + $0x1120] sm:$0xff]
        %v2023 = vld [vmem:[%s740 + $0x1128] sm:$0xff]
        %v2024 = vld [vmem:[%s740 + $0x1130] sm:$0xff]
        %v2025 = vld [vmem:[%s740 + $0x1138] sm:$0xff]
        %v2026 = vld [vmem:[%s740 + $0x1140] sm:$0xff]
        %v2027 = vld [vmem:[%s740 + $0x1148] sm:$0xff]
        %v2028 = vld [vmem:[%s740 + $0x1150] sm:$0xff]
        %v2029 = vld [vmem:[%s740 + $0x1158] sm:$0xff]
        %v2030 = vld [vmem:[%s740 + $0x1160] sm:$0xff]
        %v2031 = vld [vmem:[%s740 + $0x1168] sm:$0xff]
        %v2032 = vld [vmem:[%s740 + $0x1170] sm:$0xff]
        %v2033 = vld [vmem:[%s740 + $0x1178] sm:$0xff]
        %v2034 = vld [vmem:[%s740 + $0x1180] sm:$0xff]
        %v2035 = vld [vmem:[%s740 + $0x1188] sm:$0xff]
        %v2036 = vld [vmem:[%s740 + $0x1190] sm:$0xff]
        %v2037 = vld [vmem:[%s740 + $0x1198] sm:$0xff]
        %v2038 = vld [vmem:[%s740 + $0x11a0] sm:$0xff]
        %v2039 = vld [vmem:[%s740 + $0x11a8] sm:$0xff]
        %v2040 = vld [vmem:[%s740 + $0x11b0] sm:$0xff]
        %v2041 = vld [vmem:[%s740 + $0x11b8] sm:$0xff]
        %v2042 = vld [vmem:[%s740 + $0x11c0] sm:$0xff]
        %v2043 = vld [vmem:[%s740 + $0x11c8] sm:$0xff]
        %v2044 = vld [vmem:[%s740 + $0x11d0] sm:$0xff]
        %v2045 = vld [vmem:[%s740 + $0x11d8] sm:$0xff]
        %v2046 = vld [vmem:[%s740 + $0x11e0] sm:$0xff]
        %v2047 = vld [vmem:[%s740 + $0x11e8] sm:$0xff]
        %v2048 = vld [vmem:[%s740 + $0x11f0] sm:$0xff]
        %v2049 = vld [vmem:[%s740 + $0x11f8] sm:$0xff]
        %v2050 = vld [vmem:[%s740 + $0x1200] sm:$0xff]
        %v2051 = vld [vmem:[%s740 + $0x1208] sm:$0xff]
        %v2052 = vld [vmem:[%s740 + $0x1210] sm:$0xff]
        %v2053 = vld [vmem:[%s740 + $0x1218] sm:$0xff]
        %v2054 = vld [vmem:[%s740 + $0x1220] sm:$0xff]
        %v2055 = vld [vmem:[%s740 + $0x1228] sm:$0xff]
        %v2056 = vld [vmem:[%s740 + $0x1230] sm:$0xff]
        %v2057 = vld [vmem:[%s740 + $0x1238] sm:$0xff]
        %v2058 = vld [vmem:[%s740 + $0x1240] sm:$0xff]
        %v2059 = vld [vmem:[%s740 + $0x1248] sm:$0xff]
        %v2060 = vld [vmem:[%s740 + $0x1250] sm:$0xff]
        %v2061 = vld [vmem:[%s740 + $0x1258] sm:$0xff]
        %v2062 = vld [vmem:[%s740 + $0x1260] sm:$0xff]
        %v2063 = vld [vmem:[%s740 + $0x1268] sm:$0xff]
        %v2064 = vld [vmem:[%s740 + $0x1270] sm:$0xff]
        %v2065 = vld [vmem:[%s740 + $0x1278] sm:$0xff]
        %v2066 = vld [vmem:[%s740 + $0x1280] sm:$0xff]
        %v2067 = vld [vmem:[%s740 + $0x1288] sm:$0xff]
        %v2068 = vld [vmem:[%s740 + $0x1290] sm:$0xff]
        %v2069 = vld [vmem:[%s740 + $0x1298] sm:$0xff]
        %v2070 = vld [vmem:[%s740 + $0x12a0] sm:$0xff]
        %v2071 = vld [vmem:[%s740 + $0x12a8] sm:$0xff]
        %v2072 = vld [vmem:[%s740 + $0x12b0] sm:$0xff]
        %v2073 = vld [vmem:[%s740 + $0x12b8] sm:$0xff]
        %v2074 = vld [vmem:[%s740 + $0x12c0] sm:$0xff]
        %v2075 = vld [vmem:[%s740 + $0x12c8] sm:$0xff]
        %v2076 = vld [vmem:[%s740 + $0x12d0] sm:$0xff]
        %v2077 = vld [vmem:[%s740 + $0x12d8] sm:$0xff]
        %v2078 = vld [vmem:[%s740 + $0x12e0] sm:$0xff]
        %v2079 = vld [vmem:[%s740 + $0x12e8] sm:$0xff]
        %v2080 = vld [vmem:[%s740 + $0x12f0] sm:$0xff]
        %v2081 = vld [vmem:[%s740 + $0x12f8] sm:$0xff]
        %v2082 = vld [vmem:[%s740 + $0x1300] sm:$0xff]
        %v2083 = vld [vmem:[%s740 + $0x1308] sm:$0xff]
        %v2084 = vld [vmem:[%s740 + $0x1310] sm:$0xff]
        %v2085 = vld [vmem:[%s740 + $0x1318] sm:$0xff]
        %v2086 = vld [vmem:[%s740 + $0x1320] sm:$0xff]
        %v2087 = vld [vmem:[%s740 + $0x1328] sm:$0xff]
        %v2088 = vld [vmem:[%s740 + $0x1330] sm:$0xff]
        %v2089 = vld [vmem:[%s740 + $0x1338] sm:$0xff]
        %v2090 = vld [vmem:[%s740 + $0x1340] sm:$0xff]
        %v2091 = vld [vmem:[%s740 + $0x1348] sm:$0xff]
        %v2092 = vld [vmem:[%s740 + $0x1350] sm:$0xff]
        %v2093 = vld [vmem:[%s740 + $0x1358] sm:$0xff]
        %v2094 = vld [vmem:[%s740 + $0x1360] sm:$0xff]
        %v2095 = vld [vmem:[%s740 + $0x1368] sm:$0xff]
        %v2096 = vld [vmem:[%s740 + $0x1370] sm:$0xff]
        %v2097 = vld [vmem:[%s740 + $0x1378] sm:$0xff]
        %v2098 = vld [vmem:[%s740 + $0x1380] sm:$0xff]
        %v2099 = vld [vmem:[%s740 + $0x1388] sm:$0xff]
        %v2100 = vld [vmem:[%s740 + $0x1390] sm:$0xff]
        %v2101 = vld [vmem:[%s740 + $0x1398] sm:$0xff]
        %v2102 = vld [vmem:[%s740 + $0x13a0] sm:$0xff]
        %v2103 = vld [vmem:[%s740 + $0x13a8] sm:$0xff]
        %v2104 = vld [vmem:[%s740 + $0x13b0] sm:$0xff]
        %v2105 = vld [vmem:[%s740 + $0x13b8] sm:$0xff]
        %v2106 = vld [vmem:[%s740 + $0x13c0] sm:$0xff]
        %v2107 = vld [vmem:[%s740 + $0x13c8] sm:$0xff]
        %v2108 = vld [vmem:[%s740 + $0x13d0] sm:$0xff]
        %v2109 = vld [vmem:[%s740 + $0x13d8] sm:$0xff]
        %v2110 = vld [vmem:[%s740 + $0x13e0] sm:$0xff]
        %v2111 = vld [vmem:[%s740 + $0x13e8] sm:$0xff]
        %v2112 = vld [vmem:[%s740 + $0x13f0] sm:$0xff]
        %v2113 = vld [vmem:[%s740 + $0x13f8] sm:$0xff]
        %v2114 = vld [vmem:[%s740 + $0x1400] sm:$0xff]
        %v2115 = vld [vmem:[%s740 + $0x1408] sm:$0xff]
        %v2116 = vld [vmem:[%s740 + $0x1410] sm:$0xff]
        %v2117 = vld [vmem:[%s740 + $0x1418] sm:$0xff]
        %v2118 = vld [vmem:[%s740 + $0x1420] sm:$0xff]
        %v2119 = vld [vmem:[%s740 + $0x1428] sm:$0xff]
        %v2120 = vld [vmem:[%s740 + $0x1430] sm:$0xff]
        %v2121 = vld [vmem:[%s740 + $0x1438] sm:$0xff]
        %v2122 = vld [vmem:[%s740 + $0x1440] sm:$0xff]
        %v2123 = vld [vmem:[%s740 + $0x1448] sm:$0xff]
        %v2124 = vld [vmem:[%s740 + $0x1450] sm:$0xff]
        %v2125 = vld [vmem:[%s740 + $0x1458] sm:$0xff]
        %v2126 = vld [vmem:[%s740 + $0x1460] sm:$0xff]
        %v2127 = vld [vmem:[%s740 + $0x1468] sm:$0xff]
        %v2128 = vld [vmem:[%s740 + $0x1470] sm:$0xff]
        %v2129 = vld [vmem:[%s740 + $0x1478] sm:$0xff]
        %v2130 = vld [vmem:[%s740 + $0x1480] sm:$0xff]
        %v2131 = vld [vmem:[%s740 + $0x1488] sm:$0xff]
        %v2132 = vld [vmem:[%s740 + $0x1490] sm:$0xff]
        %v2133 = vld [vmem:[%s740 + $0x1498] sm:$0xff]
        %v2134 = vld [vmem:[%s740 + $0x14a0] sm:$0xff]
        %v2135 = vld [vmem:[%s740 + $0x14a8] sm:$0xff]
        %v2136 = vld [vmem:[%s740 + $0x14b0] sm:$0xff]
        %v2137 = vld [vmem:[%s740 + $0x14b8] sm:$0xff]
        %v2138 = vld [vmem:[%s740 + $0x14c0] sm:$0xff]
        %v2139 = vld [vmem:[%s740 + $0x14c8] sm:$0xff]
        %v2140 = vld [vmem:[%s740 + $0x14d0] sm:$0xff]
        %v2141 = vld [vmem:[%s740 + $0x14d8] sm:$0xff]
        %v2142 = vld [vmem:[%s740 + $0x14e0] sm:$0xff]
        %v2143 = vld [vmem:[%s740 + $0x14e8] sm:$0xff]
        %v2144 = vld [vmem:[%s740 + $0x14f0] sm:$0xff]
        %v2145 = vld [vmem:[%s740 + $0x14f8] sm:$0xff]
        %v2146 = vld [vmem:[%s740 + $0x1500] sm:$0xff]
        %v2147 = vld [vmem:[%s740 + $0x1508] sm:$0xff]
        %v2148 = vld [vmem:[%s740 + $0x1510] sm:$0xff]
        %v2149 = vld [vmem:[%s740 + $0x1518] sm:$0xff]
        %v2150 = vld [vmem:[%s740 + $0x1520] sm:$0xff]
        %v2151 = vld [vmem:[%s740 + $0x1528] sm:$0xff]
        %v2152 = vld [vmem:[%s740 + $0x1530] sm:$0xff]
        %v2153 = vld [vmem:[%s740 + $0x1538] sm:$0xff]
        %v2154 = vld [vmem:[%s740 + $0x1540] sm:$0xff]
        %v2155 = vld [vmem:[%s740 + $0x1548] sm:$0xff]
        %v2156 = vld [vmem:[%s740 + $0x1550] sm:$0xff]
        %v2157 = vld [vmem:[%s740 + $0x1558] sm:$0xff]
        %v2158 = vld [vmem:[%s740 + $0x1560] sm:$0xff]
        %v2159 = vld [vmem:[%s740 + $0x1568] sm:$0xff]
        %v2160 = vld [vmem:[%s740 + $0x1570] sm:$0xff]
        %v2161 = vld [vmem:[%s740 + $0x1578] sm:$0xff]
        %v2162 = vld [vmem:[%s740 + $0x1580] sm:$0xff]
        %v2163 = vld [vmem:[%s740 + $0x1588] sm:$0xff]
        %v2164 = vld [vmem:[%s740 + $0x1590] sm:$0xff]
        %v2165 = vld [vmem:[%s740 + $0x1598] sm:$0xff]
        %v2166 = vld [vmem:[%s740 + $0x15a0] sm:$0xff]
        %v2167 = vld [vmem:[%s740 + $0x15a8] sm:$0xff]
        %v2168 = vld [vmem:[%s740 + $0x15b0] sm:$0xff]
        %v2169 = vld [vmem:[%s740 + $0x15b8] sm:$0xff]
        %v2170 = vld [vmem:[%s740 + $0x15c0] sm:$0xff]
        %v2171 = vld [vmem:[%s740 + $0x15c8] sm:$0xff]
        %v2172 = vld [vmem:[%s740 + $0x15d0] sm:$0xff]
        %v2173 = vld [vmem:[%s740 + $0x15d8] sm:$0xff]
        %v2174 = vld [vmem:[%s740 + $0x15e0] sm:$0xff]
        %v2175 = vld [vmem:[%s740 + $0x15e8] sm:$0xff]
        %v2176 = vld [vmem:[%s740 + $0x15f0] sm:$0xff]
        %v2177 = vld [vmem:[%s740 + $0x15f8] sm:$0xff]
        %v2178 = vld [vmem:[%s740 + $0x1600] sm:$0xff]
        %v2179 = vld [vmem:[%s740 + $0x1608] sm:$0xff]
        %v2180 = vld [vmem:[%s740 + $0x1610] sm:$0xff]
        %v2181 = vld [vmem:[%s740 + $0x1618] sm:$0xff]
        %v2182 = vld [vmem:[%s740 + $0x1620] sm:$0xff]
        %v2183 = vld [vmem:[%s740 + $0x1628] sm:$0xff]
        %v2184 = vld [vmem:[%s740 + $0x1630] sm:$0xff]
        %v2185 = vld [vmem:[%s740 + $0x1638] sm:$0xff]
        %v2186 = vld [vmem:[%s740 + $0x1640] sm:$0xff]
        %v2187 = vld [vmem:[%s740 + $0x1648] sm:$0xff]
        %v2188 = vld [vmem:[%s740 + $0x1650] sm:$0xff]
        %v2189 = vld [vmem:[%s740 + $0x1658] sm:$0xff]
        %v2190 = vld [vmem:[%s740 + $0x1660] sm:$0xff]
        %v2191 = vld [vmem:[%s740 + $0x1668] sm:$0xff]
        %v2192 = vld [vmem:[%s740 + $0x1670] sm:$0xff]
        %v2193 = vld [vmem:[%s740 + $0x1678] sm:$0xff]
        %v2194 = vld [vmem:[%s740 + $0x1680] sm:$0xff]
        %v2195 = vld [vmem:[%s740 + $0x1688] sm:$0xff]
        %v2196 = vld [vmem:[%s740 + $0x1690] sm:$0xff]
        %v2197 = vld [vmem:[%s740 + $0x1698] sm:$0xff]
        %v2198 = vld [vmem:[%s740 + $0x16a0] sm:$0xff]
        %v2199 = vld [vmem:[%s740 + $0x16a8] sm:$0xff]
        %v2200 = vld [vmem:[%s740 + $0x16b0] sm:$0xff]
        %v2201 = vld [vmem:[%s740 + $0x16b8] sm:$0xff]
        %v2202 = vld [vmem:[%s740 + $0x16c0] sm:$0xff]
        %v2203 = vld [vmem:[%s740 + $0x16c8] sm:$0xff]
        %v2204 = vld [vmem:[%s740 + $0x16d0] sm:$0xff]
        %v2205 = vld [vmem:[%s740 + $0x16d8] sm:$0xff]
        %v2206 = vld [vmem:[%s740 + $0x16e0] sm:$0xff]
        %v2207 = vld [vmem:[%s740 + $0x16e8] sm:$0xff]
        %v2208 = vld [vmem:[%s740 + $0x16f0] sm:$0xff]
        %v2209 = vld [vmem:[%s740 + $0x16f8] sm:$0xff]
        %v2210 = vld [vmem:[%s740 + $0x1700] sm:$0xff]
        %v2211 = vld [vmem:[%s740 + $0x1708] sm:$0xff]
        %v2212 = vld [vmem:[%s740 + $0x1710] sm:$0xff]
        %v2213 = vld [vmem:[%s740 + $0x1718] sm:$0xff]
        %v2214 = vld [vmem:[%s740 + $0x1720] sm:$0xff]
        %v2215 = vld [vmem:[%s740 + $0x1728] sm:$0xff]
        %v2216 = vld [vmem:[%s740 + $0x1730] sm:$0xff]
        %v2217 = vld [vmem:[%s740 + $0x1738] sm:$0xff]
        %v2218 = vld [vmem:[%s740 + $0x1740] sm:$0xff]
        %v2219 = vld [vmem:[%s740 + $0x1748] sm:$0xff]
        %v2220 = vld [vmem:[%s740 + $0x1750] sm:$0xff]
        %v2221 = vld [vmem:[%s740 + $0x1758] sm:$0xff]
        %v2222 = vld [vmem:[%s740 + $0x1760] sm:$0xff]
        %v2223 = vld [vmem:[%s740 + $0x1768] sm:$0xff]
        %v2224 = vld [vmem:[%s740 + $0x1770] sm:$0xff]
        %v2225 = vld [vmem:[%s740 + $0x1778] sm:$0xff]
        %v2226 = vld [vmem:[%s740 + $0x1780] sm:$0xff]
        %v2227 = vld [vmem:[%s740 + $0x1788] sm:$0xff]
        %v2228 = vld [vmem:[%s740 + $0x1790] sm:$0xff]
        %v2229 = vld [vmem:[%s740 + $0x1798] sm:$0xff]
        %v2230 = vld [vmem:[%s740 + $0x17a0] sm:$0xff]
        %v2231 = vld [vmem:[%s740 + $0x17a8] sm:$0xff]
        %v2232 = vld [vmem:[%s740 + $0x17b0] sm:$0xff]
        %v2233 = vld [vmem:[%s740 + $0x17b8] sm:$0xff]
        %v2234 = vld [vmem:[%s740 + $0x17c0] sm:$0xff]
        %v2235 = vld [vmem:[%s740 + $0x17c8] sm:$0xff]
        %v2236 = vld [vmem:[%s740 + $0x17d0] sm:$0xff]
        %v2237 = vld [vmem:[%s740 + $0x17d8] sm:$0xff]
        %v2238 = vld [vmem:[%s740 + $0x17e0] sm:$0xff]
        %v2239 = vld [vmem:[%s740 + $0x17e8] sm:$0xff]
        %v2240 = vld [vmem:[%s740 + $0x17f0] sm:$0xff]
        %v2241 = vld [vmem:[%s740 + $0x17f8] sm:$0xff]
        %v2242 = vld [vmem:[%s740 + $0x1800] sm:$0xff]
        %v2243 = vld [vmem:[%s740 + $0x1808] sm:$0xff]
        %v2244 = vld [vmem:[%s740 + $0x1810] sm:$0xff]
        %v2245 = vld [vmem:[%s740 + $0x1818] sm:$0xff]
        %v2246 = vld [vmem:[%s740 + $0x1820] sm:$0xff]
        %v2247 = vld [vmem:[%s740 + $0x1828] sm:$0xff]
        %v2248 = vld [vmem:[%s740 + $0x1830] sm:$0xff]
        %v2249 = vld [vmem:[%s740 + $0x1838] sm:$0xff]
        %v2250 = vld [vmem:[%s740 + $0x1840] sm:$0xff]
        %v2251 = vld [vmem:[%s740 + $0x1848] sm:$0xff]
        %v2252 = vld [vmem:[%s740 + $0x1850] sm:$0xff]
        %v2253 = vld [vmem:[%s740 + $0x1858] sm:$0xff]
        %v2254 = vld [vmem:[%s740 + $0x1860] sm:$0xff]
        %v2255 = vld [vmem:[%s740 + $0x1868] sm:$0xff]
        %v2256 = vld [vmem:[%s740 + $0x1870] sm:$0xff]
        %v2257 = vld [vmem:[%s740 + $0x1878] sm:$0xff]
        %v2258 = vld [vmem:[%s740 + $0x1880] sm:$0xff]
        %v2259 = vld [vmem:[%s740 + $0x1888] sm:$0xff]
        %v2260 = vld [vmem:[%s740 + $0x1890] sm:$0xff]
        %v2261 = vld [vmem:[%s740 + $0x1898] sm:$0xff]
        %v2262 = vld [vmem:[%s740 + $0x18a0] sm:$0xff]
        %v2263 = vld [vmem:[%s740 + $0x18a8] sm:$0xff]
        %v2264 = vld [vmem:[%s740 + $0x18b0] sm:$0xff]
        %v2265 = vld [vmem:[%s740 + $0x18b8] sm:$0xff]
        %v2266 = vld [vmem:[%s740 + $0x18c0] sm:$0xff]
        %v2267 = vld [vmem:[%s740 + $0x18c8] sm:$0xff]
        %v2268 = vld [vmem:[%s740 + $0x18d0] sm:$0xff]
        %v2269 = vld [vmem:[%s740 + $0x18d8] sm:$0xff]
        %v2270 = vld [vmem:[%s740 + $0x18e0] sm:$0xff]
        %v2271 = vld [vmem:[%s740 + $0x18e8] sm:$0xff]
        %v2272 = vld [vmem:[%s740 + $0x18f0] sm:$0xff]
        %v2273 = vld [vmem:[%s740 + $0x18f8] sm:$0xff]
        %v2274 = vld [vmem:[%s740 + $0x1900] sm:$0xff]
        %v2275 = vld [vmem:[%s740 + $0x1908] sm:$0xff]
        %v2276 = vld [vmem:[%s740 + $0x1910] sm:$0xff]
        %v2277 = vld [vmem:[%s740 + $0x1918] sm:$0xff]
        %v2278 = vld [vmem:[%s740 + $0x1920] sm:$0xff]
        %v2279 = vld [vmem:[%s740 + $0x1928] sm:$0xff]
        %v2280 = vld [vmem:[%s740 + $0x1930] sm:$0xff]
        %v2281 = vld [vmem:[%s740 + $0x1938] sm:$0xff]
        %v2282 = vld [vmem:[%s740 + $0x1940] sm:$0xff]
        %v2283 = vld [vmem:[%s740 + $0x1948] sm:$0xff]
        %v2284 = vld [vmem:[%s740 + $0x1950] sm:$0xff]
        %v2285 = vld [vmem:[%s740 + $0x1958] sm:$0xff]
        %v2286 = vld [vmem:[%s740 + $0x1960] sm:$0xff]
        %v2287 = vld [vmem:[%s740 + $0x1968] sm:$0xff]
        %v2288 = vld [vmem:[%s740 + $0x1970] sm:$0xff]
        %v2289 = vld [vmem:[%s740 + $0x1978] sm:$0xff]
        %v2290 = vld [vmem:[%s740 + $0x1980] sm:$0xff]
        %v2291 = vld [vmem:[%s740 + $0x1988] sm:$0xff]
        %v2292 = vld [vmem:[%s740 + $0x1990] sm:$0xff]
        %v2293 = vld [vmem:[%s740 + $0x1998] sm:$0xff]
        %v2294 = vld [vmem:[%s740 + $0x19a0] sm:$0xff]
        %v2295 = vld [vmem:[%s740 + $0x19a8] sm:$0xff]
        %v2296 = vld [vmem:[%s740 + $0x19b0] sm:$0xff]
        %v2297 = vld [vmem:[%s740 + $0x19b8] sm:$0xff]
        %v2298 = vld [vmem:[%s740 + $0x19c0] sm:$0xff]
        %v2299 = vld [vmem:[%s740 + $0x19c8] sm:$0xff]
        %v2300 = vld [vmem:[%s740 + $0x19d0] sm:$0xff]
        %v2301 = vld [vmem:[%s740 + $0x19d8] sm:$0xff]
        %v2302 = vld [vmem:[%s740 + $0x19e0] sm:$0xff]
        %v2303 = vld [vmem:[%s740 + $0x19e8] sm:$0xff]
        %v2304 = vld [vmem:[%s740 + $0x19f0] sm:$0xff]
        %v2305 = vld [vmem:[%s740 + $0x19f8] sm:$0xff]
        %v2306 = vld [vmem:[%s740 + $0x1a00] sm:$0xff]
        %v2307 = vld [vmem:[%s740 + $0x1a08] sm:$0xff]
        %v2308 = vld [vmem:[%s740 + $0x1a10] sm:$0xff]
        %v2309 = vld [vmem:[%s740 + $0x1a18] sm:$0xff]
        %v2310 = vld [vmem:[%s740 + $0x1a20] sm:$0xff]
        %v2311 = vld [vmem:[%s740 + $0x1a28] sm:$0xff]
        %v2312 = vld [vmem:[%s740 + $0x1a30] sm:$0xff]
        %v2313 = vld [vmem:[%s740 + $0x1a38] sm:$0xff]
        %v2314 = vld [vmem:[%s740 + $0x1a40] sm:$0xff]
        %v2315 = vld [vmem:[%s740 + $0x1a48] sm:$0xff]
        %v2316 = vld [vmem:[%s740 + $0x1a50] sm:$0xff]
        %v2317 = vld [vmem:[%s740 + $0x1a58] sm:$0xff]
        %v2318 = vld [vmem:[%s740 + $0x1a60] sm:$0xff]
        %v2319 = vld [vmem:[%s740 + $0x1a68] sm:$0xff]
        %v2320 = vld [vmem:[%s740 + $0x1a70] sm:$0xff]
        %v2321 = vld [vmem:[%s740 + $0x1a78] sm:$0xff]
        %v2322 = vld [vmem:[%s740 + $0x1a80] sm:$0xff]
        %v2323 = vld [vmem:[%s740 + $0x1a88] sm:$0xff]
        %v2324 = vld [vmem:[%s740 + $0x1a90] sm:$0xff]
        %v2325 = vld [vmem:[%s740 + $0x1a98] sm:$0xff]
        %v2326 = vld [vmem:[%s740 + $0x1aa0] sm:$0xff]
        %v2327 = vld [vmem:[%s740 + $0x1aa8] sm:$0xff]
        %v2328 = vld [vmem:[%s740 + $0x1ab0] sm:$0xff]
        %v2329 = vld [vmem:[%s740 + $0x1ab8] sm:$0xff]
        %v2330 = vld [vmem:[%s740 + $0x1ac0] sm:$0xff]
        %v2331 = vld [vmem:[%s740 + $0x1ac8] sm:$0xff]
        %v2332 = vld [vmem:[%s740 + $0x1ad0] sm:$0xff]
        %v2333 = vld [vmem:[%s740 + $0x1ad8] sm:$0xff]
        %v2334 = vld [vmem:[%s740 + $0x1ae0] sm:$0xff]
        %v2335 = vld [vmem:[%s740 + $0x1ae8] sm:$0xff]
        %v2336 = vld [vmem:[%s740 + $0x1af0] sm:$0xff]
        %v2337 = vld [vmem:[%s740 + $0x1af8] sm:$0xff]
        %v2338 = vld [vmem:[%s740 + $0x1b00] sm:$0xff]
        %v2339 = vld [vmem:[%s740 + $0x1b08] sm:$0xff]
        %v2340 = vld [vmem:[%s740 + $0x1b10] sm:$0xff]
        %v2341 = vld [vmem:[%s740 + $0x1b18] sm:$0xff]
        %v2342 = vld [vmem:[%s740 + $0x1b20] sm:$0xff]
        %v2343 = vld [vmem:[%s740 + $0x1b28] sm:$0xff]
        %v2344 = vld [vmem:[%s740 + $0x1b30] sm:$0xff]
        %v2345 = vld [vmem:[%s740 + $0x1b38] sm:$0xff]
        %v2346 = vld [vmem:[%s740 + $0x1b40] sm:$0xff]
        %v2347 = vld [vmem:[%s740 + $0x1b48] sm:$0xff]
        %v2348 = vld [vmem:[%s740 + $0x1b50] sm:$0xff]
        %v2349 = vld [vmem:[%s740 + $0x1b58] sm:$0xff]
        %v2350 = vld [vmem:[%s740 + $0x1b60] sm:$0xff]
        %v2351 = vld [vmem:[%s740 + $0x1b68] sm:$0xff]
        %v2352 = vld [vmem:[%s740 + $0x1b70] sm:$0xff]
        %v2353 = vld [vmem:[%s740 + $0x1b78] sm:$0xff]
        %v2354 = vld [vmem:[%s740 + $0x1b80] sm:$0xff]
        %v2355 = vld [vmem:[%s740 + $0x1b88] sm:$0xff]
        %v2356 = vld [vmem:[%s740 + $0x1b90] sm:$0xff]
        %v2357 = vld [vmem:[%s740 + $0x1b98] sm:$0xff]
        %v2358 = vld [vmem:[%s740 + $0x1ba0] sm:$0xff]
        %v2359 = vld [vmem:[%s740 + $0x1ba8] sm:$0xff]
        %v2360 = vld [vmem:[%s740 + $0x1bb0] sm:$0xff]
        %v2361 = vld [vmem:[%s740 + $0x1bb8] sm:$0xff]
        %v2362 = vld [vmem:[%s740 + $0x1bc0] sm:$0xff]
        %v2363 = vld [vmem:[%s740 + $0x1bc8] sm:$0xff]
        %v2364 = vld [vmem:[%s740 + $0x1bd0] sm:$0xff]
        %v2365 = vld [vmem:[%s740 + $0x1bd8] sm:$0xff]
        %v2366 = vld [vmem:[%s740 + $0x1be0] sm:$0xff]
        %v2367 = vld [vmem:[%s740 + $0x1be8] sm:$0xff]
        %v2368 = vld [vmem:[%s740 + $0x1bf0] sm:$0xff]
        %v2369 = vld [vmem:[%s740 + $0x1bf8] sm:$0xff]
        %v2370 = vld [vmem:[%s740 + $0x1c00] sm:$0xff]
        %v2371 = vld [vmem:[%s740 + $0x1c08] sm:$0xff]
        %v2372 = vld [vmem:[%s740 + $0x1c10] sm:$0xff]
        %v2373 = vld [vmem:[%s740 + $0x1c18] sm:$0xff]
        %v2374 = vld [vmem:[%s740 + $0x1c20] sm:$0xff]
        %v2375 = vld [vmem:[%s740 + $0x1c28] sm:$0xff]
        %v2376 = vld [vmem:[%s740 + $0x1c30] sm:$0xff]
        %v2377 = vld [vmem:[%s740 + $0x1c38] sm:$0xff]
        %v2378 = vld [vmem:[%s740 + $0x1c40] sm:$0xff]
        %v2379 = vld [vmem:[%s740 + $0x1c48] sm:$0xff]
        %v2380 = vld [vmem:[%s740 + $0x1c50] sm:$0xff]
        %v2381 = vld [vmem:[%s740 + $0x1c58] sm:$0xff]
        %v2382 = vld [vmem:[%s740 + $0x1c60] sm:$0xff]
        %v2383 = vld [vmem:[%s740 + $0x1c68] sm:$0xff]
        %v2384 = vld [vmem:[%s740 + $0x1c70] sm:$0xff]
        %v2385 = vld [vmem:[%s740 + $0x1c78] sm:$0xff]
        %v2386 = vld [vmem:[%s740 + $0x1c80] sm:$0xff]
        %v2387 = vld [vmem:[%s740 + $0x1c88] sm:$0xff]
        %v2388 = vld [vmem:[%s740 + $0x1c90] sm:$0xff]
        %v2389 = vld [vmem:[%s740 + $0x1c98] sm:$0xff]
        %v2390 = vld [vmem:[%s740 + $0x1ca0] sm:$0xff]
        %v2391 = vld [vmem:[%s740 + $0x1ca8] sm:$0xff]
        %v2392 = vld [vmem:[%s740 + $0x1cb0] sm:$0xff]
        %v2393 = vld [vmem:[%s740 + $0x1cb8] sm:$0xff]
        %v2394 = vld [vmem:[%s740 + $0x1cc0] sm:$0xff]
        %v2395 = vld [vmem:[%s740 + $0x1cc8] sm:$0xff]
        %v2396 = vld [vmem:[%s740 + $0x1cd0] sm:$0xff]
        %v2397 = vld [vmem:[%s740 + $0x1cd8] sm:$0xff]
        %v2398 = vld [vmem:[%s740 + $0x1ce0] sm:$0xff]
        %v2399 = vld [vmem:[%s740 + $0x1ce8] sm:$0xff]
        %v2400 = vld [vmem:[%s740 + $0x1cf0] sm:$0xff]
        %v2401 = vld [vmem:[%s740 + $0x1cf8] sm:$0xff]
        %v2402 = vld [vmem:[%s740 + $0x1d00] sm:$0xff]
        %v2403 = vld [vmem:[%s740 + $0x1d08] sm:$0xff]
        %v2404 = vld [vmem:[%s740 + $0x1d10] sm:$0xff]
        %v2405 = vld [vmem:[%s740 + $0x1d18] sm:$0xff]
        %v2406 = vld [vmem:[%s740 + $0x1d20] sm:$0xff]
        %v2407 = vld [vmem:[%s740 + $0x1d28] sm:$0xff]
        %v2408 = vld [vmem:[%s740 + $0x1d30] sm:$0xff]
        %v2409 = vld [vmem:[%s740 + $0x1d38] sm:$0xff]
        %v2410 = vld [vmem:[%s740 + $0x1d40] sm:$0xff]
        %v2411 = vld [vmem:[%s740 + $0x1d48] sm:$0xff]
        %v2412 = vld [vmem:[%s740 + $0x1d50] sm:$0xff]
        %v2413 = vld [vmem:[%s740 + $0x1d58] sm:$0xff]
        %v2414 = vld [vmem:[%s740 + $0x1d60] sm:$0xff]
        %v2415 = vld [vmem:[%s740 + $0x1d68] sm:$0xff]
        %v2416 = vld [vmem:[%s740 + $0x1d70] sm:$0xff]
        %v2417 = vld [vmem:[%s740 + $0x1d78] sm:$0xff]
        %v2418 = vld [vmem:[%s740 + $0x1d80] sm:$0xff]
        %v2419 = vld [vmem:[%s740 + $0x1d88] sm:$0xff]
        %v2420 = vld [vmem:[%s740 + $0x1d90] sm:$0xff]
        %v2421 = vld [vmem:[%s740 + $0x1d98] sm:$0xff]
        %v2422 = vld [vmem:[%s740 + $0x1da0] sm:$0xff]
        %v2423 = vld [vmem:[%s740 + $0x1da8] sm:$0xff]
        %v2424 = vld [vmem:[%s740 + $0x1db0] sm:$0xff]
        %v2425 = vld [vmem:[%s740 + $0x1db8] sm:$0xff]
        %v2426 = vld [vmem:[%s740 + $0x1dc0] sm:$0xff]
        %v2427 = vld [vmem:[%s740 + $0x1dc8] sm:$0xff]
        %v2428 = vld [vmem:[%s740 + $0x1dd0] sm:$0xff]
        %v2429 = vld [vmem:[%s740 + $0x1dd8] sm:$0xff]
        %v2430 = vld [vmem:[%s740 + $0x1de0] sm:$0xff]
        %v2431 = vld [vmem:[%s740 + $0x1de8] sm:$0xff]
        %v2432 = vld [vmem:[%s740 + $0x1df0] sm:$0xff]
        %v2433 = vld [vmem:[%s740 + $0x1df8] sm:$0xff]
        %v2434 = vld [vmem:[%s740 + $0x1e00] sm:$0xff]
        %v2435 = vld [vmem:[%s740 + $0x1e08] sm:$0xff]
        %v2436 = vld [vmem:[%s740 + $0x1e10] sm:$0xff]
        %v2437 = vld [vmem:[%s740 + $0x1e18] sm:$0xff]
        %v2438 = vld [vmem:[%s740 + $0x1e20] sm:$0xff]
        %v2439 = vld [vmem:[%s740 + $0x1e28] sm:$0xff]
        %v2440 = vld [vmem:[%s740 + $0x1e30] sm:$0xff]
        %v2441 = vld [vmem:[%s740 + $0x1e38] sm:$0xff]
        %v2442 = vld [vmem:[%s740 + $0x1e40] sm:$0xff]
        %v2443 = vld [vmem:[%s740 + $0x1e48] sm:$0xff]
        %v2444 = vld [vmem:[%s740 + $0x1e50] sm:$0xff]
        %v2445 = vld [vmem:[%s740 + $0x1e58] sm:$0xff]
        %v2446 = vld [vmem:[%s740 + $0x1e60] sm:$0xff]
        %v2447 = vld [vmem:[%s740 + $0x1e68] sm:$0xff]
        %v2448 = vld [vmem:[%s740 + $0x1e70] sm:$0xff]
        %v2449 = vld [vmem:[%s740 + $0x1e78] sm:$0xff]
        %v2450 = vld [vmem:[%s740 + $0x1e80] sm:$0xff]
        %v2451 = vld [vmem:[%s740 + $0x1e88] sm:$0xff]
        %v2452 = vld [vmem:[%s740 + $0x1e90] sm:$0xff]
        %v2453 = vld [vmem:[%s740 + $0x1e98] sm:$0xff]
        %v2454 = vld [vmem:[%s740 + $0x1ea0] sm:$0xff]
        %v2455 = vld [vmem:[%s740 + $0x1ea8] sm:$0xff]
        %v2456 = vld [vmem:[%s740 + $0x1eb0] sm:$0xff]
        %v2457 = vld [vmem:[%s740 + $0x1eb8] sm:$0xff]
        %v2458 = vld [vmem:[%s740 + $0x1ec0] sm:$0xff]
        %v2459 = vld [vmem:[%s740 + $0x1ec8] sm:$0xff]
        %v2460 = vld [vmem:[%s740 + $0x1ed0] sm:$0xff]
        %v2461 = vld [vmem:[%s740 + $0x1ed8] sm:$0xff]
        %v2462 = vld [vmem:[%s740 + $0x1ee0] sm:$0xff]
        %v2463 = vld [vmem:[%s740 + $0x1ee8] sm:$0xff]
        %v2464 = vld [vmem:[%s740 + $0x1ef0] sm:$0xff]
        %v2465 = vld [vmem:[%s740 + $0x1ef8] sm:$0xff]
        %v2466 = vld [vmem:[%s740 + $0x1f00] sm:$0xff]
        %v2467 = vld [vmem:[%s740 + $0x1f08] sm:$0xff]
        %v2468 = vld [vmem:[%s740 + $0x1f10] sm:$0xff]
        %v2469 = vld [vmem:[%s740 + $0x1f18] sm:$0xff]
        %v2470 = vld [vmem:[%s740 + $0x1f20] sm:$0xff]
        %v2471 = vld [vmem:[%s740 + $0x1f28] sm:$0xff]
        %v2472 = vld [vmem:[%s740 + $0x1f30] sm:$0xff]
        %v2473 = vld [vmem:[%s740 + $0x1f38] sm:$0xff]
        %v2474 = vld [vmem:[%s740 + $0x1f40] sm:$0xff]
        %v2475 = vld [vmem:[%s740 + $0x1f48] sm:$0xff]
        %v2476 = vld [vmem:[%s740 + $0x1f50] sm:$0xff]
        %v2477 = vld [vmem:[%s740 + $0x1f58] sm:$0xff]
        %v2478 = vld [vmem:[%s740 + $0x1f60] sm:$0xff]
        %v2479 = vld [vmem:[%s740 + $0x1f68] sm:$0xff]
        %v2480 = vld [vmem:[%s740 + $0x1f70] sm:$0xff]
        %v2481 = vld [vmem:[%s740 + $0x1f78] sm:$0xff]
        %v2482 = vld [vmem:[%s740 + $0x1f80] sm:$0xff]
        %v2483 = vld [vmem:[%s740 + $0x1f88] sm:$0xff]
        %v2484 = vld [vmem:[%s740 + $0x1f90] sm:$0xff]
        %v2485 = vld [vmem:[%s740 + $0x1f98] sm:$0xff]
        %v2486 = vld [vmem:[%s740 + $0x1fa0] sm:$0xff]
        %v2487 = vld [vmem:[%s740 + $0x1fa8] sm:$0xff]
        %v2488 = vld [vmem:[%s740 + $0x1fb0] sm:$0xff]
        %v2489 = vld [vmem:[%s740 + $0x1fb8] sm:$0xff]
        %v2490 = vld [vmem:[%s740 + $0x1fc0] sm:$0xff]
        %v2491 = vld [vmem:[%s740 + $0x1fc8] sm:$0xff]
        %v2492 = vld [vmem:[%s740 + $0x1fd0] sm:$0xff]
        %v2493 = vld [vmem:[%s740 + $0x1fd8] sm:$0xff]
        %v2494 = vld [vmem:[%s740 + $0x1fe0] sm:$0xff]
        %v2495 = vld [vmem:[%s740 + $0x1fe8] sm:$0xff]
        %v2496 = vld [vmem:[%s740 + $0x1ff0] sm:$0xff]
        %v2497 = vld [vmem:[%s740 + $0x1ff8] sm:$0xff]
        %v2498 = vld [vmem:[%s740 + $0x2000] sm:$0xff]
        %v2499 = vld [vmem:[%s740 + $0x2008] sm:$0xff]
        %v2500 = vld [vmem:[%s740 + $0x2010] sm:$0xff]
        %v2501 = vld [vmem:[%s740 + $0x2018] sm:$0xff]
        %v2502 = vld [vmem:[%s740 + $0x2020] sm:$0xff]
        %v2503 = vld [vmem:[%s740 + $0x2028] sm:$0xff]
        %v2504 = vld [vmem:[%s740 + $0x2030] sm:$0xff]
        %v2505 = vld [vmem:[%s740 + $0x2038] sm:$0xff]
        %v2506 = vld [vmem:[%s740 + $0x2040] sm:$0xff]
        %v2507 = vld [vmem:[%s740 + $0x2048] sm:$0xff]
        %v2508 = vld [vmem:[%s740 + $0x2050] sm:$0xff]
        %v2509 = vld [vmem:[%s740 + $0x2058] sm:$0xff]
        %v2510 = vld [vmem:[%s740 + $0x2060] sm:$0xff]
        %v2511 = vld [vmem:[%s740 + $0x2068] sm:$0xff]
        %v2512 = vld [vmem:[%s740 + $0x2070] sm:$0xff]
        %v2513 = vld [vmem:[%s740 + $0x2078] sm:$0xff]
        %v2514 = vld [vmem:[%s740 + $0x2080] sm:$0xff]
        %v2515 = vld [vmem:[%s740 + $0x2088] sm:$0xff]
        %v2516 = vld [vmem:[%s740 + $0x2090] sm:$0xff]
        %v2517 = vld [vmem:[%s740 + $0x2098] sm:$0xff]
        %v2518 = vld [vmem:[%s740 + $0x20a0] sm:$0xff]
        %v2519 = vld [vmem:[%s740 + $0x20a8] sm:$0xff]
        %v2520 = vld [vmem:[%s740 + $0x20b0] sm:$0xff]
        %v2521 = vld [vmem:[%s740 + $0x20b8] sm:$0xff]
        %v2522 = vld [vmem:[%s740 + $0x20c0] sm:$0xff]
        %v2523 = vld [vmem:[%s740 + $0x20c8] sm:$0xff]
        %v2524 = vld [vmem:[%s740 + $0x20d0] sm:$0xff]
        %v2525 = vld [vmem:[%s740 + $0x20d8] sm:$0xff]
        %v2526 = vld [vmem:[%s740 + $0x20e0] sm:$0xff]
        %v2527 = vld [vmem:[%s740 + $0x20e8] sm:$0xff]
        %v2528 = vld [vmem:[%s740 + $0x20f0] sm:$0xff]
        %v2529 = vld [vmem:[%s740 + $0x20f8] sm:$0xff]
        %v2530 = vld [vmem:[%s740 + $0x2100] sm:$0xff]
        %v2531 = vld [vmem:[%s740 + $0x2108] sm:$0xff]
        %v2532 = vld [vmem:[%s740 + $0x2110] sm:$0xff]
        %v2533 = vld [vmem:[%s740 + $0x2118] sm:$0xff]
        %v2534 = vld [vmem:[%s740 + $0x2120] sm:$0xff]
        %v2535 = vld [vmem:[%s740 + $0x2128] sm:$0xff]
        %v2536 = vld [vmem:[%s740 + $0x2130] sm:$0xff]
        %v2537 = vld [vmem:[%s740 + $0x2138] sm:$0xff]
        %v2538 = vld [vmem:[%s740 + $0x2140] sm:$0xff]
        %v2539 = vld [vmem:[%s740 + $0x2148] sm:$0xff]
        %v2540 = vld [vmem:[%s740 + $0x2150] sm:$0xff]
        %v2541 = vld [vmem:[%s740 + $0x2158] sm:$0xff]
        %v2542 = vld [vmem:[%s740 + $0x2160] sm:$0xff]
        %v2543 = vld [vmem:[%s740 + $0x2168] sm:$0xff]
        %v2544 = vld [vmem:[%s740 + $0x2170] sm:$0xff]
        %v2545 = vld [vmem:[%s740 + $0x2178] sm:$0xff]
        %v2546 = vld [vmem:[%s740 + $0x2180] sm:$0xff]
        %v2547 = vld [vmem:[%s740 + $0x2188] sm:$0xff]
        %v2548 = vld [vmem:[%s740 + $0x2190] sm:$0xff]
        %v2549 = vld [vmem:[%s740 + $0x2198] sm:$0xff]
        %v2550 = vld [vmem:[%s740 + $0x21a0] sm:$0xff]
        %v2551 = vld [vmem:[%s740 + $0x21a8] sm:$0xff]
        %v2552 = vld [vmem:[%s740 + $0x21b0] sm:$0xff]
        %v2553 = vld [vmem:[%s740 + $0x21b8] sm:$0xff]
        %v2554 = vld [vmem:[%s740 + $0x21c0] sm:$0xff]
        %v2555 = vld [vmem:[%s740 + $0x21c8] sm:$0xff]
        %v2556 = vld [vmem:[%s740 + $0x21d0] sm:$0xff]
        %v2557 = vld [vmem:[%s740 + $0x21d8] sm:$0xff]
        %v2558 = vld [vmem:[%s740 + $0x21e0] sm:$0xff]
        %v2559 = vld [vmem:[%s740 + $0x21e8] sm:$0xff]
        %v2560 = vld [vmem:[%s740 + $0x21f0] sm:$0xff]
        %v2561 = vld [vmem:[%s740 + $0x21f8] sm:$0xff]
        %v2562 = vld [vmem:[%s740 + $0x2200] sm:$0xff]
        %v2563 = vld [vmem:[%s740 + $0x2208] sm:$0xff]
        %v2564 = vld [vmem:[%s740 + $0x2210] sm:$0xff]
        %v2565 = vld [vmem:[%s740 + $0x2218] sm:$0xff]
        %v2566 = vld [vmem:[%s740 + $0x2220] sm:$0xff]
        %v2567 = vld [vmem:[%s740 + $0x2228] sm:$0xff]
        %v2568 = vld [vmem:[%s740 + $0x2230] sm:$0xff]
        %v2569 = vld [vmem:[%s740 + $0x2238] sm:$0xff]
        %v2570 = vld [vmem:[%s740 + $0x2240] sm:$0xff]
        %v2571 = vld [vmem:[%s740 + $0x2248] sm:$0xff]
        %v2572 = vld [vmem:[%s740 + $0x2250] sm:$0xff]
        %v2573 = vld [vmem:[%s740 + $0x2258] sm:$0xff]
        %v2574 = vld [vmem:[%s740 + $0x2260] sm:$0xff]
        %v2575 = vld [vmem:[%s740 + $0x2268] sm:$0xff]
        %v2576 = vld [vmem:[%s740 + $0x2270] sm:$0xff]
        %v2577 = vld [vmem:[%s740 + $0x2278] sm:$0xff]
        %v2578 = vld [vmem:[%s740 + $0x2280] sm:$0xff]
        %v2579 = vld [vmem:[%s740 + $0x2288] sm:$0xff]
        %v2580 = vld [vmem:[%s740 + $0x2290] sm:$0xff]
        %v2581 = vld [vmem:[%s740 + $0x2298] sm:$0xff]
        %v2582 = vld [vmem:[%s740 + $0x22a0] sm:$0xff]
        %v2583 = vld [vmem:[%s740 + $0x22a8] sm:$0xff]
        %v2584 = vld [vmem:[%s740 + $0x22b0] sm:$0xff]
        %v2585 = vld [vmem:[%s740 + $0x22b8] sm:$0xff]
        %v2586 = vld [vmem:[%s740 + $0x22c0] sm:$0xff]
        %v2587 = vld [vmem:[%s740 + $0x22c8] sm:$0xff]
        %v2588 = vld [vmem:[%s740 + $0x22d0] sm:$0xff]
        %v2589 = vld [vmem:[%s740 + $0x22d8] sm:$0xff]
        %v2590 = vld [vmem:[%s740 + $0x22e0] sm:$0xff]
        %v2591 = vld [vmem:[%s740 + $0x22e8] sm:$0xff]
        %v2592 = vld [vmem:[%s740 + $0x22f0] sm:$0xff]
        %v2593 = vld [vmem:[%s740 + $0x22f8] sm:$0xff]
        %v2594 = vld [vmem:[%s740 + $0x2300] sm:$0xff]
        %v2595 = vld [vmem:[%s740 + $0x2308] sm:$0xff]
        %v2596 = vld [vmem:[%s740 + $0x2310] sm:$0xff]
        %v2597 = vld [vmem:[%s740 + $0x2318] sm:$0xff]
        %v2598 = vld [vmem:[%s740 + $0x2320] sm:$0xff]
        %v2599 = vld [vmem:[%s740 + $0x2328] sm:$0xff]
        %v2600 = vld [vmem:[%s740 + $0x2330] sm:$0xff]
        %v2601 = vld [vmem:[%s740 + $0x2338] sm:$0xff]
        %v2602 = vld [vmem:[%s740 + $0x2340] sm:$0xff]
        %v2603 = vld [vmem:[%s740 + $0x2348] sm:$0xff]
        %v2604 = vld [vmem:[%s740 + $0x2350] sm:$0xff]
        %v2605 = vld [vmem:[%s740 + $0x2358] sm:$0xff]
        %v2606 = vld [vmem:[%s740 + $0x2360] sm:$0xff]
        %v2607 = vld [vmem:[%s740 + $0x2368] sm:$0xff]
        %v2608 = vld [vmem:[%s740 + $0x2370] sm:$0xff]
        %v2609 = vld [vmem:[%s740 + $0x2378] sm:$0xff]
        %v2610 = vld [vmem:[%s740 + $0x2380] sm:$0xff]
        %v2611 = vld [vmem:[%s740 + $0x2388] sm:$0xff]
        %v2612 = vld [vmem:[%s740 + $0x2390] sm:$0xff]
        %v2613 = vld [vmem:[%s740 + $0x2398] sm:$0xff]
        %v2614 = vld [vmem:[%s740 + $0x23a0] sm:$0xff]
        %v2615 = vld [vmem:[%s740 + $0x23a8] sm:$0xff]
        %v2616 = vld [vmem:[%s740 + $0x23b0] sm:$0xff]
        %v2617 = vld [vmem:[%s740 + $0x23b8] sm:$0xff]
        %v2618 = vld [vmem:[%s740 + $0x23c0] sm:$0xff]
        %v2619 = vld [vmem:[%s740 + $0x23c8] sm:$0xff]
        %v2620 = vld [vmem:[%s740 + $0x23d0] sm:$0xff]
        %v2621 = vld [vmem:[%s740 + $0x23d8] sm:$0xff]
        %v2622 = vld [vmem:[%s740 + $0x23e0] sm:$0xff]
        %v2623 = vld [vmem:[%s740 + $0x23e8] sm:$0xff]
        %v2624 = vld [vmem:[%s740 + $0x23f0] sm:$0xff]
        %v2625 = vld [vmem:[%s740 + $0x23f8] sm:$0xff]
        %v2626 = vld [vmem:[%s740 + $0x2400] sm:$0xff]
        %v2627 = vld [vmem:[%s740 + $0x2408] sm:$0xff]
        %v2628 = vld [vmem:[%s740 + $0x2410] sm:$0xff]
        %v2629 = vld [vmem:[%s740 + $0x2418] sm:$0xff]
        %v2630 = vld [vmem:[%s740 + $0x2420] sm:$0xff]
        %v2631 = vld [vmem:[%s740 + $0x2428] sm:$0xff]
        %v2632 = vld [vmem:[%s740 + $0x2430] sm:$0xff]
        %v2633 = vld [vmem:[%s740 + $0x2438] sm:$0xff]
        %v2634 = vld [vmem:[%s740 + $0x2440] sm:$0xff]
        %v2635 = vld [vmem:[%s740 + $0x2448] sm:$0xff]
        %v2636 = vld [vmem:[%s740 + $0x2450] sm:$0xff]
        %v2637 = vld [vmem:[%s740 + $0x2458] sm:$0xff]
        %v2638 = vld [vmem:[%s740 + $0x2460] sm:$0xff]
        %v2639 = vld [vmem:[%s740 + $0x2468] sm:$0xff]
        %v2640 = vld [vmem:[%s740 + $0x2470] sm:$0xff]
        %v2641 = vld [vmem:[%s740 + $0x2478] sm:$0xff]
        %v2642 = vld [vmem:[%s740 + $0x2480] sm:$0xff]
        %v2643 = vld [vmem:[%s740 + $0x2488] sm:$0xff]
        %v2644 = vld [vmem:[%s740 + $0x2490] sm:$0xff]
        %v2645 = vld [vmem:[%s740 + $0x2498] sm:$0xff]
        %v2646 = vld [vmem:[%s740 + $0x24a0] sm:$0xff]
        %v2647 = vld [vmem:[%s740 + $0x24a8] sm:$0xff]
        %v2648 = vld [vmem:[%s740 + $0x24b0] sm:$0xff]
        %v2649 = vld [vmem:[%s740 + $0x24b8] sm:$0xff]
        %v2650 = vld [vmem:[%s740 + $0x24c0] sm:$0xff]
        %v2651 = vld [vmem:[%s740 + $0x24c8] sm:$0xff]
        %v2652 = vld [vmem:[%s740 + $0x24d0] sm:$0xff]
        %v2653 = vld [vmem:[%s740 + $0x24d8] sm:$0xff]
        %v2654 = vld [vmem:[%s740 + $0x24e0] sm:$0xff]
        %v2655 = vld [vmem:[%s740 + $0x24e8] sm:$0xff]
        %v2656 = vld [vmem:[%s740 + $0x24f0] sm:$0xff]
        %v2657 = vld [vmem:[%s740 + $0x24f8] sm:$0xff]
        %v2658 = vld [vmem:[%s740 + $0x2500] sm:$0xff]
        %v2659 = vld [vmem:[%s740 + $0x2508] sm:$0xff]
        %v2660 = vld [vmem:[%s740 + $0x2510] sm:$0xff]
        %v2661 = vld [vmem:[%s740 + $0x2518] sm:$0xff]
        %v2662 = vld [vmem:[%s740 + $0x2520] sm:$0xff]
        %v2663 = vld [vmem:[%s740 + $0x2528] sm:$0xff]
        %v2664 = vld [vmem:[%s740 + $0x2530] sm:$0xff]
        %v2665 = vld [vmem:[%s740 + $0x2538] sm:$0xff]
        %v2666 = vld [vmem:[%s740 + $0x2540] sm:$0xff]
        %v2667 = vld [vmem:[%s740 + $0x2548] sm:$0xff]
        %v2668 = vld [vmem:[%s740 + $0x2550] sm:$0xff]
        %v2669 = vld [vmem:[%s740 + $0x2558] sm:$0xff]
        %v2670 = vld [vmem:[%s740 + $0x2560] sm:$0xff]
        %v2671 = vld [vmem:[%s740 + $0x2568] sm:$0xff]
        %v2672 = vld [vmem:[%s740 + $0x2570] sm:$0xff]
        %v2673 = vld [vmem:[%s740 + $0x2578] sm:$0xff]
        %v2674 = vld [vmem:[%s740 + $0x2580] sm:$0xff]
        %v2675 = vld [vmem:[%s740 + $0x2588] sm:$0xff]
        %v2676 = vld [vmem:[%s740 + $0x2590] sm:$0xff]
        %v2677 = vld [vmem:[%s740 + $0x2598] sm:$0xff]
        %v2678 = vld [vmem:[%s740 + $0x25a0] sm:$0xff]
        %v2679 = vld [vmem:[%s740 + $0x25a8] sm:$0xff]
        %v2680 = vld [vmem:[%s740 + $0x25b0] sm:$0xff]
        %v2681 = vld [vmem:[%s740 + $0x25b8] sm:$0xff]
        %v2682 = vld [vmem:[%s740 + $0x25c0] sm:$0xff]
        %v2683 = vld [vmem:[%s740 + $0x25c8] sm:$0xff]
        %v2684 = vld [vmem:[%s740 + $0x25d0] sm:$0xff]
        %v2685 = vld [vmem:[%s740 + $0x25d8] sm:$0xff]
        %v2686 = vld [vmem:[%s740 + $0x25e0] sm:$0xff]
        %v2687 = vld [vmem:[%s740 + $0x25e8] sm:$0xff]
        %v2688 = vld [vmem:[%s740 + $0x25f0] sm:$0xff]
        %v2689 = vld [vmem:[%s740 + $0x25f8] sm:$0xff]
        %v2690 = vld [vmem:[%s740 + $0x2600] sm:$0xff]
        %v2691 = vld [vmem:[%s740 + $0x2608] sm:$0xff]
        %v2692 = vld [vmem:[%s740 + $0x2610] sm:$0xff]
        %v2693 = vld [vmem:[%s740 + $0x2618] sm:$0xff]
        %v2694 = vld [vmem:[%s740 + $0x2620] sm:$0xff]
        %v2695 = vld [vmem:[%s740 + $0x2628] sm:$0xff]
        %v2696 = vld [vmem:[%s740 + $0x2630] sm:$0xff]
        %v2697 = vld [vmem:[%s740 + $0x2638] sm:$0xff]
        %v2698 = vld [vmem:[%s740 + $0x2640] sm:$0xff]
        %v2699 = vld [vmem:[%s740 + $0x2648] sm:$0xff]
        %v2700 = vld [vmem:[%s740 + $0x2650] sm:$0xff]
        %v2701 = vld [vmem:[%s740 + $0x2658] sm:$0xff]
        %v2702 = vld [vmem:[%s740 + $0x2660] sm:$0xff]
        %v2703 = vld [vmem:[%s740 + $0x2668] sm:$0xff]
        %v2704 = vld [vmem:[%s740 + $0x2670] sm:$0xff]
        %v2705 = vld [vmem:[%s740 + $0x2678] sm:$0xff]
        %v2706 = vld [vmem:[%s740 + $0x2680] sm:$0xff]
        %v2707 = vld [vmem:[%s740 + $0x2688] sm:$0xff]
        %v2708 = vld [vmem:[%s740 + $0x2690] sm:$0xff]
        %v2709 = vld [vmem:[%s740 + $0x2698] sm:$0xff]
        %v2710 = vld [vmem:[%s740 + $0x26a0] sm:$0xff]
        %v2711 = vld [vmem:[%s740 + $0x26a8] sm:$0xff]
        %v2712 = vld [vmem:[%s740 + $0x26b0] sm:$0xff]
        %v2713 = vld [vmem:[%s740 + $0x26b8] sm:$0xff]
        %v2714 = vld [vmem:[%s740 + $0x26c0] sm:$0xff]
        %v2715 = vld [vmem:[%s740 + $0x26c8] sm:$0xff]
        %v2716 = vld [vmem:[%s740 + $0x26d0] sm:$0xff]
        %v2717 = vld [vmem:[%s740 + $0x26d8] sm:$0xff]
        %v2718 = vld [vmem:[%s740 + $0x26e0] sm:$0xff]
        %v2719 = vld [vmem:[%s740 + $0x26e8] sm:$0xff]
        %v2720 = vld [vmem:[%s740 + $0x26f0] sm:$0xff]
        %v2721 = vld [vmem:[%s740 + $0x26f8] sm:$0xff]
        %v2722 = vld [vmem:[%s740 + $0x2700] sm:$0xff]
        %v2723 = vld [vmem:[%s740 + $0x2708] sm:$0xff]
        %v2724 = vld [vmem:[%s740 + $0x2710] sm:$0xff]
        %v2725 = vld [vmem:[%s740 + $0x2718] sm:$0xff]
        %v2726 = vld [vmem:[%s740 + $0x2720] sm:$0xff]
        %v2727 = vld [vmem:[%s740 + $0x2728] sm:$0xff]
        %v2728 = vld [vmem:[%s740 + $0x2730] sm:$0xff]
        %v2729 = vld [vmem:[%s740 + $0x2738] sm:$0xff]
        %v2730 = vld [vmem:[%s740 + $0x2740] sm:$0xff]
        %v2731 = vld [vmem:[%s740 + $0x2748] sm:$0xff]
        %v2732 = vld [vmem:[%s740 + $0x2750] sm:$0xff]
        %v2733 = vld [vmem:[%s740 + $0x2758] sm:$0xff]
        %v2734 = vld [vmem:[%s740 + $0x2760] sm:$0xff]
        %v2735 = vld [vmem:[%s740 + $0x2768] sm:$0xff]
        %v2736 = vld [vmem:[%s740 + $0x2770] sm:$0xff]
        %v2737 = vld [vmem:[%s740 + $0x2778] sm:$0xff]
        %v2738 = vld [vmem:[%s740 + $0x2780] sm:$0xff]
        %v2739 = vld [vmem:[%s740 + $0x2788] sm:$0xff]
        %v2740 = vld [vmem:[%s740 + $0x2790] sm:$0xff]
        %v2741 = vld [vmem:[%s740 + $0x2798] sm:$0xff]
        %v2742 = vld [vmem:[%s740 + $0x27a0] sm:$0xff]
        %v2743 = vld [vmem:[%s740 + $0x27a8] sm:$0xff]
        %v2744 = vld [vmem:[%s740 + $0x27b0] sm:$0xff]
        %v2745 = vld [vmem:[%s740 + $0x27b8] sm:$0xff]
        %v2746 = vld [vmem:[%s740 + $0x27c0] sm:$0xff]
        %v2747 = vld [vmem:[%s740 + $0x27c8] sm:$0xff]
        %v2748 = vld [vmem:[%s740 + $0x27d0] sm:$0xff]
        %v2749 = vld [vmem:[%s740 + $0x27d8] sm:$0xff]
        %v2750 = vld [vmem:[%s740 + $0x27e0] sm:$0xff]
        %v2751 = vld [vmem:[%s740 + $0x27e8] sm:$0xff]
        %v2752 = vld [vmem:[%s740 + $0x27f0] sm:$0xff]
        %v2753 = vld [vmem:[%s740 + $0x27f8] sm:$0xff]
        %v2754 = vld [vmem:[%s740 + $0x2800] sm:$0xff]
        %v2755 = vld [vmem:[%s740 + $0x2808] sm:$0xff]
        %v2756 = vld [vmem:[%s740 + $0x2810] sm:$0xff]
        %v2757 = vld [vmem:[%s740 + $0x2818] sm:$0xff]
        %v2758 = vld [vmem:[%s740 + $0x2820] sm:$0xff]
        %v2759 = vld [vmem:[%s740 + $0x2828] sm:$0xff]
        %v2760 = vld [vmem:[%s740 + $0x2830] sm:$0xff]
        %v2761 = vld [vmem:[%s740 + $0x2838] sm:$0xff]
        %v2762 = vld [vmem:[%s740 + $0x2840] sm:$0xff]
        %v2763 = vld [vmem:[%s740 + $0x2848] sm:$0xff]
        %v2764 = vld [vmem:[%s740 + $0x2850] sm:$0xff]
        %v2765 = vld [vmem:[%s740 + $0x2858] sm:$0xff]
        %v2766 = vld [vmem:[%s740 + $0x2860] sm:$0xff]
        %v2767 = vld [vmem:[%s740 + $0x2868] sm:$0xff]
        %v2768 = vld [vmem:[%s740 + $0x2870] sm:$0xff]
        %v2769 = vld [vmem:[%s740 + $0x2878] sm:$0xff]
        %v2770 = vld [vmem:[%s740 + $0x2880] sm:$0xff]
        %v2771 = vld [vmem:[%s740 + $0x2888] sm:$0xff]
        %v2772 = vld [vmem:[%s740 + $0x2890] sm:$0xff]
        %v2773 = vld [vmem:[%s740 + $0x2898] sm:$0xff]
        %v2774 = vld [vmem:[%s740 + $0x28a0] sm:$0xff]
        %v2775 = vld [vmem:[%s740 + $0x28a8] sm:$0xff]
        %v2776 = vld [vmem:[%s740 + $0x28b0] sm:$0xff]
        %v2777 = vld [vmem:[%s740 + $0x28b8] sm:$0xff]
        %v2778 = vld [vmem:[%s740 + $0x28c0] sm:$0xff]
        %v2779 = vld [vmem:[%s740 + $0x28c8] sm:$0xff]
        %v2780 = vld [vmem:[%s740 + $0x28d0] sm:$0xff]
        %v2781 = vld [vmem:[%s740 + $0x28d8] sm:$0xff]
        %v2782 = vld [vmem:[%s740 + $0x28e0] sm:$0xff]
        %v2783 = vld [vmem:[%s740 + $0x28e8] sm:$0xff]
        %v2784 = vld [vmem:[%s740 + $0x28f0] sm:$0xff]
        %v2785 = vld [vmem:[%s740 + $0x28f8] sm:$0xff]
        %v2786 = vld [vmem:[%s740 + $0x2900] sm:$0xff]
        %v2787 = vld [vmem:[%s740 + $0x2908] sm:$0xff]
        %v2788 = vld [vmem:[%s740 + $0x2910] sm:$0xff]
        %v2789 = vld [vmem:[%s740 + $0x2918] sm:$0xff]
        %v2790 = vld [vmem:[%s740 + $0x2920] sm:$0xff]
        %v2791 = vld [vmem:[%s740 + $0x2928] sm:$0xff]
        %v2792 = vld [vmem:[%s740 + $0x2930] sm:$0xff]
        %v2793 = vld [vmem:[%s740 + $0x2938] sm:$0xff]
        %v2794 = vld [vmem:[%s740 + $0x2940] sm:$0xff]
        %v2795 = vld [vmem:[%s740 + $0x2948] sm:$0xff]
        %v2796 = vld [vmem:[%s740 + $0x2950] sm:$0xff]
        %v2797 = vld [vmem:[%s740 + $0x2958] sm:$0xff]
        %v2798 = vld [vmem:[%s740 + $0x2960] sm:$0xff]
        %v2799 = vld [vmem:[%s740 + $0x2968] sm:$0xff]
        %v2800 = vld [vmem:[%s740 + $0x2970] sm:$0xff]
        %v2801 = vld [vmem:[%s740 + $0x2978] sm:$0xff]
        %v2802 = vld [vmem:[%s740 + $0x2980] sm:$0xff]
        %v2803 = vld [vmem:[%s740 + $0x2988] sm:$0xff]
        %v2804 = vld [vmem:[%s740 + $0x2990] sm:$0xff]
        %v2805 = vld [vmem:[%s740 + $0x2998] sm:$0xff]
        %v2806 = vld [vmem:[%s740 + $0x29a0] sm:$0xff]
        %v2807 = vld [vmem:[%s740 + $0x29a8] sm:$0xff]
        %v2808 = vld [vmem:[%s740 + $0x29b0] sm:$0xff]
        %v2809 = vld [vmem:[%s740 + $0x29b8] sm:$0xff]
        %v2810 = vld [vmem:[%s740 + $0x29c0] sm:$0xff]
        %v2811 = vld [vmem:[%s740 + $0x29c8] sm:$0xff]
        %v2812 = vld [vmem:[%s740 + $0x29d0] sm:$0xff]
        %v2813 = vld [vmem:[%s740 + $0x29d8] sm:$0xff]
        %v2814 = vld [vmem:[%s740 + $0x29e0] sm:$0xff]
        %v2815 = vld [vmem:[%s740 + $0x29e8] sm:$0xff]
        %v2816 = vld [vmem:[%s740 + $0x29f0] sm:$0xff]
        %v2817 = vld [vmem:[%s740 + $0x29f8] sm:$0xff]
        %v2818 = vld [vmem:[%s740 + $0x2a00] sm:$0xff]
        %v2819 = vld [vmem:[%s740 + $0x2a08] sm:$0xff]
        %v2820 = vld [vmem:[%s740 + $0x2a10] sm:$0xff]
        %v2821 = vld [vmem:[%s740 + $0x2a18] sm:$0xff]
        %v2822 = vld [vmem:[%s740 + $0x2a20] sm:$0xff]
        %v2823 = vld [vmem:[%s740 + $0x2a28] sm:$0xff]
        %v2824 = vld [vmem:[%s740 + $0x2a30] sm:$0xff]
        %v2825 = vld [vmem:[%s740 + $0x2a38] sm:$0xff]
        %v2826 = vld [vmem:[%s740 + $0x2a40] sm:$0xff]
        %v2827 = vld [vmem:[%s740 + $0x2a48] sm:$0xff]
        %v2828 = vld [vmem:[%s740 + $0x2a50] sm:$0xff]
        %v2829 = vld [vmem:[%s740 + $0x2a58] sm:$0xff]
        %v2830 = vld [vmem:[%s740 + $0x2a60] sm:$0xff]
        %v2831 = vld [vmem:[%s740 + $0x2a68] sm:$0xff]
        %v2832 = vld [vmem:[%s740 + $0x2a70] sm:$0xff]
        %v2833 = vld [vmem:[%s740 + $0x2a78] sm:$0xff]
        %v2834 = vld [vmem:[%s740 + $0x2a80] sm:$0xff]
        %v2835 = vld [vmem:[%s740 + $0x2a88] sm:$0xff]
        %v2836 = vld [vmem:[%s740 + $0x2a90] sm:$0xff]
        %v2837 = vld [vmem:[%s740 + $0x2a98] sm:$0xff]
        %v2838 = vld [vmem:[%s740 + $0x2aa0] sm:$0xff]
        %v2839 = vld [vmem:[%s740 + $0x2aa8] sm:$0xff]
        %v2840 = vld [vmem:[%s740 + $0x2ab0] sm:$0xff]
        %v2841 = vld [vmem:[%s740 + $0x2ab8] sm:$0xff]
        %v2842 = vld [vmem:[%s740 + $0x2ac0] sm:$0xff]
        %v2843 = vld [vmem:[%s740 + $0x2ac8] sm:$0xff]
        %v2844 = vld [vmem:[%s740 + $0x2ad0] sm:$0xff]
        %v2845 = vld [vmem:[%s740 + $0x2ad8] sm:$0xff]
        %v2846 = vld [vmem:[%s740 + $0x2ae0] sm:$0xff]
        %v2847 = vld [vmem:[%s740 + $0x2ae8] sm:$0xff]
        %v2848 = vld [vmem:[%s740 + $0x2af0] sm:$0xff]
        %v2849 = vld [vmem:[%s740 + $0x2af8] sm:$0xff]
        %v2850 = vld [vmem:[%s740 + $0x2b00] sm:$0xff]
        %v2851 = vld [vmem:[%s740 + $0x2b08] sm:$0xff]
        %v2852 = vld [vmem:[%s740 + $0x2b10] sm:$0xff]
        %v2853 = vld [vmem:[%s740 + $0x2b18] sm:$0xff]
        %v2854 = vld [vmem:[%s740 + $0x2b20] sm:$0xff]
        %v2855 = vld [vmem:[%s740 + $0x2b28] sm:$0xff]
        %v2856 = vld [vmem:[%s740 + $0x2b30] sm:$0xff]
        %v2857 = vld [vmem:[%s740 + $0x2b38] sm:$0xff]
        %v2858 = vld [vmem:[%s740 + $0x2b40] sm:$0xff]
        %v2859 = vld [vmem:[%s740 + $0x2b48] sm:$0xff]
        %v2860 = vld [vmem:[%s740 + $0x2b50] sm:$0xff]
        %v2861 = vld [vmem:[%s740 + $0x2b58] sm:$0xff]
        %v2862 = vld [vmem:[%s740 + $0x2b60] sm:$0xff]
        %v2863 = vld [vmem:[%s740 + $0x2b68] sm:$0xff]
        %v2864 = vld [vmem:[%s740 + $0x2b70] sm:$0xff]
        %v2865 = vld [vmem:[%s740 + $0x2b78] sm:$0xff]
        %v2866 = vld [vmem:[%s740 + $0x2b80] sm:$0xff]
        %v2867 = vld [vmem:[%s740 + $0x2b88] sm:$0xff]
        %v2868 = vld [vmem:[%s740 + $0x2b90] sm:$0xff]
        %v2869 = vld [vmem:[%s740 + $0x2b98] sm:$0xff]
        %v2870 = vld [vmem:[%s740 + $0x2ba0] sm:$0xff]
        %v2871 = vld [vmem:[%s740 + $0x2ba8] sm:$0xff]
        %v2872 = vld [vmem:[%s740 + $0x2bb0] sm:$0xff]
        %v2873 = vld [vmem:[%s740 + $0x2bb8] sm:$0xff]
        %v2874 = vld [vmem:[%s740 + $0x2bc0] sm:$0xff]
        %v2875 = vld [vmem:[%s740 + $0x2bc8] sm:$0xff]
        %v2876 = vld [vmem:[%s740 + $0x2bd0] sm:$0xff]
        %v2877 = vld [vmem:[%s740 + $0x2bd8] sm:$0xff]
        %v2878 = vld [vmem:[%s740 + $0x2be0] sm:$0xff]
        %v2879 = vld [vmem:[%s740 + $0x2be8] sm:$0xff]
        %v2880 = vld [vmem:[%s740 + $0x2bf0] sm:$0xff]
        %v2881 = vld [vmem:[%s740 + $0x2bf8] sm:$0xff]
        %v2882 = vld [vmem:[%s740 + $0x2c00] sm:$0xff]
        %v2883 = vld [vmem:[%s740 + $0x2c08] sm:$0xff]
        %v2884 = vld [vmem:[%s740 + $0x2c10] sm:$0xff]
        %v2885 = vld [vmem:[%s740 + $0x2c18] sm:$0xff]
        %v2886 = vld [vmem:[%s740 + $0x2c20] sm:$0xff]
        %v2887 = vld [vmem:[%s740 + $0x2c28] sm:$0xff]
        %v2888 = vld [vmem:[%s740 + $0x2c30] sm:$0xff]
        %v2889 = vld [vmem:[%s740 + $0x2c38] sm:$0xff]
        %v2890 = vld [vmem:[%s740 + $0x2c40] sm:$0xff]
        %v2891 = vld [vmem:[%s740 + $0x2c48] sm:$0xff]
        %v2892 = vld [vmem:[%s740 + $0x2c50] sm:$0xff]
        %v2893 = vld [vmem:[%s740 + $0x2c58] sm:$0xff]
        %v2894 = vld [vmem:[%s740 + $0x2c60] sm:$0xff]
        %v2895 = vld [vmem:[%s740 + $0x2c68] sm:$0xff]
        %v2896 = vld [vmem:[%s740 + $0x2c70] sm:$0xff]
        %v2897 = vld [vmem:[%s740 + $0x2c78] sm:$0xff]
        %v2898 = vld [vmem:[%s740 + $0x2c80] sm:$0xff]
        %v2899 = vld [vmem:[%s740 + $0x2c88] sm:$0xff]
        %v2900 = vld [vmem:[%s740 + $0x2c90] sm:$0xff]
        %v2901 = vld [vmem:[%s740 + $0x2c98] sm:$0xff]
        %v2902 = vld [vmem:[%s740 + $0x2ca0] sm:$0xff]
        %v2903 = vld [vmem:[%s740 + $0x2ca8] sm:$0xff]
        %v2904 = vld [vmem:[%s740 + $0x2cb0] sm:$0xff]
        %v2905 = vld [vmem:[%s740 + $0x2cb8] sm:$0xff]
        %v2906 = vld [vmem:[%s740 + $0x2cc0] sm:$0xff]
        %v2907 = vld [vmem:[%s740 + $0x2cc8] sm:$0xff]
        %v2908 = vld [vmem:[%s740 + $0x2cd0] sm:$0xff]
        %v2909 = vld [vmem:[%s740 + $0x2cd8] sm:$0xff]
        %v2910 = vld [vmem:[%s740 + $0x2ce0] sm:$0xff]
        %v2911 = vld [vmem:[%s740 + $0x2ce8] sm:$0xff]
        %v2912 = vld [vmem:[%s740 + $0x2cf0] sm:$0xff]
        %v2913 = vld [vmem:[%s740 + $0x2cf8] sm:$0xff]
        %v2914 = vld [vmem:[%s740 + $0x2d00] sm:$0xff]
        %v2915 = vld [vmem:[%s740 + $0x2d08] sm:$0xff]
        %v2916 = vld [vmem:[%s740 + $0x2d10] sm:$0xff]
        %v2917 = vld [vmem:[%s740 + $0x2d18] sm:$0xff]
        %v2918 = vld [vmem:[%s740 + $0x2d20] sm:$0xff]
        %v2919 = vld [vmem:[%s740 + $0x2d28] sm:$0xff]
        %v2920 = vld [vmem:[%s740 + $0x2d30] sm:$0xff]
        %v2921 = vld [vmem:[%s740 + $0x2d38] sm:$0xff]
        %v2922 = vld [vmem:[%s740 + $0x2d40] sm:$0xff]
        %v2923 = vld [vmem:[%s740 + $0x2d48] sm:$0xff]
        %v2924 = vld [vmem:[%s740 + $0x2d50] sm:$0xff]
        %v2925 = vld [vmem:[%s740 + $0x2d58] sm:$0xff]
        %v2926 = vld [vmem:[%s740 + $0x2d60] sm:$0xff]
        %v2927 = vld [vmem:[%s740 + $0x2d68] sm:$0xff]
        %v2928 = vld [vmem:[%s740 + $0x2d70] sm:$0xff]
        %v2929 = vld [vmem:[%s740 + $0x2d78] sm:$0xff]
        %v2930 = vld [vmem:[%s740 + $0x2d80] sm:$0xff]
        %v2931 = vld [vmem:[%s740 + $0x2d88] sm:$0xff]
        %v2932 = vld [vmem:[%s740 + $0x2d90] sm:$0xff]
        %v2933 = vld [vmem:[%s740 + $0x2d98] sm:$0xff]
        %v2934 = vld [vmem:[%s740 + $0x2da0] sm:$0xff]
        %v2935 = vld [vmem:[%s740 + $0x2da8] sm:$0xff]
        %v2936 = vld [vmem:[%s740 + $0x2db0] sm:$0xff]
        %v2937 = vld [vmem:[%s740 + $0x2db8] sm:$0xff]
        %v2938 = vld [vmem:[%s740 + $0x2dc0] sm:$0xff]
        %v2939 = vld [vmem:[%s740 + $0x2dc8] sm:$0xff]
        %v2940 = vld [vmem:[%s740 + $0x2dd0] sm:$0xff]
        %v2941 = vld [vmem:[%s740 + $0x2dd8] sm:$0xff]
        %v2942 = vld [vmem:[%s740 + $0x2de0] sm:$0xff]
        %v2943 = vld [vmem:[%s740 + $0x2de8] sm:$0xff]
        %v2944 = vld [vmem:[%s740 + $0x2df0] sm:$0xff]
        %v2945 = vld [vmem:[%s740 + $0x2df8] sm:$0xff]
        %v2946 = vld [vmem:[%s740 + $0x2e00] sm:$0xff]
        %v2947 = vld [vmem:[%s740 + $0x2e08] sm:$0xff]
        %v2948 = vld [vmem:[%s740 + $0x2e10] sm:$0xff]
        %v2949 = vld [vmem:[%s740 + $0x2e18] sm:$0xff]
        %v2950 = vld [vmem:[%s740 + $0x2e20] sm:$0xff]
        %v2951 = vld [vmem:[%s740 + $0x2e28] sm:$0xff]
        %v2952 = vld [vmem:[%s740 + $0x2e30] sm:$0xff]
        %v2953 = vld [vmem:[%s740 + $0x2e38] sm:$0xff]
        %v2954 = vld [vmem:[%s740 + $0x2e40] sm:$0xff]
        %v2955 = vld [vmem:[%s740 + $0x2e48] sm:$0xff]
        %v2956 = vld [vmem:[%s740 + $0x2e50] sm:$0xff]
        %v2957 = vld [vmem:[%s740 + $0x2e58] sm:$0xff]
        %v2958 = vld [vmem:[%s740 + $0x2e60] sm:$0xff]
        %v2959 = vld [vmem:[%s740 + $0x2e68] sm:$0xff]
        %v2960 = vld [vmem:[%s740 + $0x2e70] sm:$0xff]
        %v2961 = vld [vmem:[%s740 + $0x2e78] sm:$0xff]
        %v2962 = vld [vmem:[%s740 + $0x2e80] sm:$0xff]
        %v2963 = vld [vmem:[%s740 + $0x2e88] sm:$0xff]
        %v2964 = vld [vmem:[%s740 + $0x2e90] sm:$0xff]
        %v2965 = vld [vmem:[%s740 + $0x2e98] sm:$0xff]
        %v2966 = vld [vmem:[%s740 + $0x2ea0] sm:$0xff]
        %v2967 = vld [vmem:[%s740 + $0x2ea8] sm:$0xff]
        %v2968 = vld [vmem:[%s740 + $0x2eb0] sm:$0xff]
        %v2969 = vld [vmem:[%s740 + $0x2eb8] sm:$0xff]
        %v2970 = vld [vmem:[%s740 + $0x2ec0] sm:$0xff]
        %v2971 = vld [vmem:[%s740 + $0x2ec8] sm:$0xff]
        %v2972 = vld [vmem:[%s740 + $0x2ed0] sm:$0xff]
        %v2973 = vld [vmem:[%s740 + $0x2ed8] sm:$0xff]
        %v2974 = vld [vmem:[%s740 + $0x2ee0] sm:$0xff]
        %v2975 = vld [vmem:[%s740 + $0x2ee8] sm:$0xff]
        %v2976 = vld [vmem:[%s740 + $0x2ef0] sm:$0xff]
        %v2977 = vld [vmem:[%s740 + $0x2ef8] sm:$0xff]
        %v2978 = vld [vmem:[%s740 + $0x2f00] sm:$0xff]
        %v2979 = vld [vmem:[%s740 + $0x2f08] sm:$0xff]
        %v2980 = vld [vmem:[%s740 + $0x2f10] sm:$0xff]
        %v2981 = vld [vmem:[%s740 + $0x2f18] sm:$0xff]
        %v2982 = vld [vmem:[%s740 + $0x2f20] sm:$0xff]
        %v2983 = vld [vmem:[%s740 + $0x2f28] sm:$0xff]
        %v2984 = vld [vmem:[%s740 + $0x2f30] sm:$0xff]
        %v2985 = vld [vmem:[%s740 + $0x2f38] sm:$0xff]
        %v2986 = vld [vmem:[%s740 + $0x2f40] sm:$0xff]
        %v2987 = vld [vmem:[%s740 + $0x2f48] sm:$0xff]
        %v2988 = vld [vmem:[%s740 + $0x2f50] sm:$0xff]
        %v2989 = vld [vmem:[%s740 + $0x2f58] sm:$0xff]
        %v2990 = vld [vmem:[%s740 + $0x2f60] sm:$0xff]
        %v2991 = vld [vmem:[%s740 + $0x2f68] sm:$0xff]
        %v2992 = vld [vmem:[%s740 + $0x2f70] sm:$0xff]
        %v2993 = vld [vmem:[%s740 + $0x2f78] sm:$0xff]
        %v2994 = vld [vmem:[%s740 + $0x2f80] sm:$0xff]
        %v2995 = vld [vmem:[%s740 + $0x2f88] sm:$0xff]
        %v2996 = vld [vmem:[%s740 + $0x2f90] sm:$0xff]
        %v2997 = vld [vmem:[%s740 + $0x2f98] sm:$0xff]
        %v2998 = vld [vmem:[%s740 + $0x2fa0] sm:$0xff]
        %v2999 = vld [vmem:[%s740 + $0x2fa8] sm:$0xff]
        %v3000 = vld [vmem:[%s740 + $0x2fb0] sm:$0xff]
        %v3001 = vld [vmem:[%s740 + $0x2fb8] sm:$0xff]
        %v3002 = vld [vmem:[%s740 + $0x2fc0] sm:$0xff]
        %v3003 = vld [vmem:[%s740 + $0x2fc8] sm:$0xff]
        %v3004 = vld [vmem:[%s740 + $0x2fd0] sm:$0xff]
        %v3005 = vld [vmem:[%s740 + $0x2fd8] sm:$0xff]
        %v3006 = vld [vmem:[%s740 + $0x2fe0] sm:$0xff]
        %v3007 = vld [vmem:[%s740 + $0x2fe8] sm:$0xff]
        %v3008 = vld [vmem:[%s740 + $0x2ff0] sm:$0xff]
        %v3009 = vld [vmem:[%s740 + $0x2ff8] sm:$0xff]
        %v3010 = vld [vmem:[%s740 + $0x3000] sm:$0xff]
        %v3011 = vld [vmem:[%s740 + $0x3008] sm:$0xff]
        %v3012 = vld [vmem:[%s740 + $0x3010] sm:$0xff]
        %v3013 = vld [vmem:[%s740 + $0x3018] sm:$0xff]
        %v3014 = vld [vmem:[%s740 + $0x3020] sm:$0xff]
        %v3015 = vld [vmem:[%s740 + $0x3028] sm:$0xff]
        %v3016 = vld [vmem:[%s740 + $0x3030] sm:$0xff]
        %v3017 = vld [vmem:[%s740 + $0x3038] sm:$0xff]
        %v3018 = vld [vmem:[%s740 + $0x3040] sm:$0xff]
        %v3019 = vld [vmem:[%s740 + $0x3048] sm:$0xff]
        %v3020 = vld [vmem:[%s740 + $0x3050] sm:$0xff]
        %v3021 = vld [vmem:[%s740 + $0x3058] sm:$0xff]
        %v3022 = vld [vmem:[%s740 + $0x3060] sm:$0xff]
        %v3023 = vld [vmem:[%s740 + $0x3068] sm:$0xff]
        %v3024 = vld [vmem:[%s740 + $0x3070] sm:$0xff]
        %v3025 = vld [vmem:[%s740 + $0x3078] sm:$0xff]
        %v3026 = vld [vmem:[%s740 + $0x3080] sm:$0xff]
        %v3027 = vld [vmem:[%s740 + $0x3088] sm:$0xff]
        %v3028 = vld [vmem:[%s740 + $0x3090] sm:$0xff]
        %v3029 = vld [vmem:[%s740 + $0x3098] sm:$0xff]
        %v3030 = vld [vmem:[%s740 + $0x30a0] sm:$0xff]
        %v3031 = vld [vmem:[%s740 + $0x30a8] sm:$0xff]
        %v3032 = vld [vmem:[%s740 + $0x30b0] sm:$0xff]
        %v3033 = vld [vmem:[%s740 + $0x30b8] sm:$0xff]
        %v3034 = vld [vmem:[%s740 + $0x30c0] sm:$0xff]
        %v3035 = vld [vmem:[%s740 + $0x30c8] sm:$0xff]
        %v3036 = vld [vmem:[%s740 + $0x30d0] sm:$0xff]
        %v3037 = vld [vmem:[%s740 + $0x30d8] sm:$0xff]
        %v3038 = vld [vmem:[%s740 + $0x30e0] sm:$0xff]
        %v3039 = vld [vmem:[%s740 + $0x30e8] sm:$0xff]
        %v3040 = vld [vmem:[%s740 + $0x30f0] sm:$0xff]
        %v3041 = vld [vmem:[%s740 + $0x30f8] sm:$0xff]
        %v3042 = vld [vmem:[%s740 + $0x3100] sm:$0xff]
        %v3043 = vld [vmem:[%s740 + $0x3108] sm:$0xff]
        %v3044 = vld [vmem:[%s740 + $0x3110] sm:$0xff]
        %v3045 = vld [vmem:[%s740 + $0x3118] sm:$0xff]
        %v3046 = vld [vmem:[%s740 + $0x3120] sm:$0xff]
        %v3047 = vld [vmem:[%s740 + $0x3128] sm:$0xff]
        %v3048 = vld [vmem:[%s740 + $0x3130] sm:$0xff]
        %v3049 = vld [vmem:[%s740 + $0x3138] sm:$0xff]
        %v3050 = vld [vmem:[%s740 + $0x3140] sm:$0xff]
        %v3051 = vld [vmem:[%s740 + $0x3148] sm:$0xff]
        %v3052 = vld [vmem:[%s740 + $0x3150] sm:$0xff]
        %v3053 = vld [vmem:[%s740 + $0x3158] sm:$0xff]
        %v3054 = vld [vmem:[%s740 + $0x3160] sm:$0xff]
        %v3055 = vld [vmem:[%s740 + $0x3168] sm:$0xff]
        %v3056 = vld [vmem:[%s740 + $0x3170] sm:$0xff]
        %v3057 = vld [vmem:[%s740 + $0x3178] sm:$0xff]
        %v3058 = vld [vmem:[%s740 + $0x3180] sm:$0xff]
        %v3059 = vld [vmem:[%s740 + $0x3188] sm:$0xff]
        %v3060 = vld [vmem:[%s740 + $0x3190] sm:$0xff]
        %v3061 = vld [vmem:[%s740 + $0x3198] sm:$0xff]
        %v3062 = vld [vmem:[%s740 + $0x31a0] sm:$0xff]
        %v3063 = vld [vmem:[%s740 + $0x31a8] sm:$0xff]
        %v3064 = vld [vmem:[%s740 + $0x31b0] sm:$0xff]
        %v3065 = vld [vmem:[%s740 + $0x31b8] sm:$0xff]
        %v3066 = vld [vmem:[%s740 + $0x31c0] sm:$0xff]
        %v3067 = vld [vmem:[%s740 + $0x31c8] sm:$0xff]
        %v3068 = vld [vmem:[%s740 + $0x31d0] sm:$0xff]
        %v3069 = vld [vmem:[%s740 + $0x31d8] sm:$0xff]
        %v3070 = vld [vmem:[%s740 + $0x31e0] sm:$0xff]
        %v3071 = vld [vmem:[%s740 + $0x31e8] sm:$0xff]
        %v3072 = vld [vmem:[%s740 + $0x31f0] sm:$0xff]
        %v3073 = vld [vmem:[%s740 + $0x31f8] sm:$0xff]
        %v3074 = vld [vmem:[%s740 + $0x3200] sm:$0xff]
        %v3075 = vld [vmem:[%s740 + $0x3208] sm:$0xff]
        %v3076 = vld [vmem:[%s740 + $0x3210] sm:$0xff]
        %v3077 = vld [vmem:[%s740 + $0x3218] sm:$0xff]
        %v3078 = vld [vmem:[%s740 + $0x3220] sm:$0xff]
        %v3079 = vld [vmem:[%s740 + $0x3228] sm:$0xff]
        %v3080 = vld [vmem:[%s740 + $0x3230] sm:$0xff]
        %v3081 = vld [vmem:[%s740 + $0x3238] sm:$0xff]
        %v3082 = vld [vmem:[%s740 + $0x3240] sm:$0xff]
        %v3083 = vld [vmem:[%s740 + $0x3248] sm:$0xff]
        %v3084 = vld [vmem:[%s740 + $0x3250] sm:$0xff]
        %v3085 = vld [vmem:[%s740 + $0x3258] sm:$0xff]
        %v3086 = vld [vmem:[%s740 + $0x3260] sm:$0xff]
        %v3087 = vld [vmem:[%s740 + $0x3268] sm:$0xff]
        %v3088 = vld [vmem:[%s740 + $0x3270] sm:$0xff]
        %v3089 = vld [vmem:[%s740 + $0x3278] sm:$0xff]
        %v3090 = vld [vmem:[%s740 + $0x3280] sm:$0xff]
        %v3091 = vld [vmem:[%s740 + $0x3288] sm:$0xff]
        %v3092 = vld [vmem:[%s740 + $0x3290] sm:$0xff]
        %v3093 = vld [vmem:[%s740 + $0x3298] sm:$0xff]
        %v3094 = vld [vmem:[%s740 + $0x32a0] sm:$0xff]
        %v3095 = vld [vmem:[%s740 + $0x32a8] sm:$0xff]
        %v3096 = vld [vmem:[%s740 + $0x32b0] sm:$0xff]
        %v3097 = vld [vmem:[%s740 + $0x32b8] sm:$0xff]
        %v3098 = vld [vmem:[%s740 + $0x32c0] sm:$0xff]
        %v3099 = vld [vmem:[%s740 + $0x32c8] sm:$0xff]
        %v3100 = vld [vmem:[%s740 + $0x32d0] sm:$0xff]
        %v3101 = vld [vmem:[%s740 + $0x32d8] sm:$0xff]
        %v3102 = vld [vmem:[%s740 + $0x32e0] sm:$0xff]
        %v3103 = vld [vmem:[%s740 + $0x32e8] sm:$0xff]
        %v3104 = vld [vmem:[%s740 + $0x32f0] sm:$0xff]
        %v3105 = vld [vmem:[%s740 + $0x32f8] sm:$0xff]
        %v3106 = vld [vmem:[%s740 + $0x3300] sm:$0xff]
        %v3107 = vld [vmem:[%s740 + $0x3308] sm:$0xff]
        %v3108 = vld [vmem:[%s740 + $0x3310] sm:$0xff]
        %v3109 = vld [vmem:[%s740 + $0x3318] sm:$0xff]
        %v3110 = vld [vmem:[%s740 + $0x3320] sm:$0xff]
        %v3111 = vld [vmem:[%s740 + $0x3328] sm:$0xff]
        %v3112 = vld [vmem:[%s740 + $0x3330] sm:$0xff]
        %v3113 = vld [vmem:[%s740 + $0x3338] sm:$0xff]
        %v3114 = vld [vmem:[%s740 + $0x3340] sm:$0xff]
        %v3115 = vld [vmem:[%s740 + $0x3348] sm:$0xff]
        %v3116 = vld [vmem:[%s740 + $0x3350] sm:$0xff]
        %v3117 = vld [vmem:[%s740 + $0x3358] sm:$0xff]
        %v3118 = vld [vmem:[%s740 + $0x3360] sm:$0xff]
        %v3119 = vld [vmem:[%s740 + $0x3368] sm:$0xff]
        %v3120 = vld [vmem:[%s740 + $0x3370] sm:$0xff]
        %v3121 = vld [vmem:[%s740 + $0x3378] sm:$0xff]
        %v3122 = vld [vmem:[%s740 + $0x3380] sm:$0xff]
        %v3123 = vld [vmem:[%s740 + $0x3388] sm:$0xff]
        %v3124 = vld [vmem:[%s740 + $0x3390] sm:$0xff]
        %v3125 = vld [vmem:[%s740 + $0x3398] sm:$0xff]
        %v3126 = vld [vmem:[%s740 + $0x33a0] sm:$0xff]
        %v3127 = vld [vmem:[%s740 + $0x33a8] sm:$0xff]
        %v3128 = vld [vmem:[%s740 + $0x33b0] sm:$0xff]
        %v3129 = vld [vmem:[%s740 + $0x33b8] sm:$0xff]
        %v3130 = vld [vmem:[%s740 + $0x33c0] sm:$0xff]
        %v3131 = vld [vmem:[%s740 + $0x33c8] sm:$0xff]
        %v3132 = vld [vmem:[%s740 + $0x33d0] sm:$0xff]
        %v3133 = vld [vmem:[%s740 + $0x33d8] sm:$0xff]
        %v3134 = vld [vmem:[%s740 + $0x33e0] sm:$0xff]
        %v3135 = vld [vmem:[%s740 + $0x33e8] sm:$0xff]
        %v3136 = vld [vmem:[%s740 + $0x33f0] sm:$0xff]
        %v3137 = vld [vmem:[%s740 + $0x33f8] sm:$0xff]
        %v3138 = vld [vmem:[%s740 + $0x3400] sm:$0xff]
        %v3139 = vld [vmem:[%s740 + $0x3408] sm:$0xff]
        %v3140 = vld [vmem:[%s740 + $0x3410] sm:$0xff]
        %v3141 = vld [vmem:[%s740 + $0x3418] sm:$0xff]
        %v3142 = vld [vmem:[%s740 + $0x3420] sm:$0xff]
        %v3143 = vld [vmem:[%s740 + $0x3428] sm:$0xff]
        %v3144 = vld [vmem:[%s740 + $0x3430] sm:$0xff]
        %v3145 = vld [vmem:[%s740 + $0x3438] sm:$0xff]
        %v3146 = vld [vmem:[%s740 + $0x3440] sm:$0xff]
        %v3147 = vld [vmem:[%s740 + $0x3448] sm:$0xff]
        %v3148 = vld [vmem:[%s740 + $0x3450] sm:$0xff]
        %v3149 = vld [vmem:[%s740 + $0x3458] sm:$0xff]
        %v3150 = vld [vmem:[%s740 + $0x3460] sm:$0xff]
        %v3151 = vld [vmem:[%s740 + $0x3468] sm:$0xff]
        %v3152 = vld [vmem:[%s740 + $0x3470] sm:$0xff]
        %v3153 = vld [vmem:[%s740 + $0x3478] sm:$0xff]
        %v3154 = vld [vmem:[%s740 + $0x3480] sm:$0xff]
        %v3155 = vld [vmem:[%s740 + $0x3488] sm:$0xff]
        %v3156 = vld [vmem:[%s740 + $0x3490] sm:$0xff]
        %v3157 = vld [vmem:[%s740 + $0x3498] sm:$0xff]
        %v3158 = vld [vmem:[%s740 + $0x34a0] sm:$0xff]
        %v3159 = vld [vmem:[%s740 + $0x34a8] sm:$0xff]
        %v3160 = vld [vmem:[%s740 + $0x34b0] sm:$0xff]
        %v3161 = vld [vmem:[%s740 + $0x34b8] sm:$0xff]
        %v3162 = vld [vmem:[%s740 + $0x34c0] sm:$0xff]
        %v3163 = vld [vmem:[%s740 + $0x34c8] sm:$0xff]
        %v3164 = vld [vmem:[%s740 + $0x34d0] sm:$0xff]
        %v3165 = vld [vmem:[%s740 + $0x34d8] sm:$0xff]
        %v3166 = vld [vmem:[%s740 + $0x34e0] sm:$0xff]
        %v3167 = vld [vmem:[%s740 + $0x34e8] sm:$0xff]
        %v3168 = vld [vmem:[%s740 + $0x34f0] sm:$0xff]
        %v3169 = vld [vmem:[%s740 + $0x34f8] sm:$0xff]
        %v3170 = vld [vmem:[%s740 + $0x3500] sm:$0xff]
        %v3171 = vld [vmem:[%s740 + $0x3508] sm:$0xff]
        %v3172 = vld [vmem:[%s740 + $0x3510] sm:$0xff]
        %v3173 = vld [vmem:[%s740 + $0x3518] sm:$0xff]
        %v3174 = vld [vmem:[%s740 + $0x3520] sm:$0xff]
        %v3175 = vld [vmem:[%s740 + $0x3528] sm:$0xff]
        %v3176 = vld [vmem:[%s740 + $0x3530] sm:$0xff]
        %v3177 = vld [vmem:[%s740 + $0x3538] sm:$0xff]
        %v3178 = vld [vmem:[%s740 + $0x3540] sm:$0xff]
        %v3179 = vld [vmem:[%s740 + $0x3548] sm:$0xff]
        %v3180 = vld [vmem:[%s740 + $0x3550] sm:$0xff]
        %v3181 = vld [vmem:[%s740 + $0x3558] sm:$0xff]
        %v3182 = vld [vmem:[%s740 + $0x3560] sm:$0xff]
        %v3183 = vld [vmem:[%s740 + $0x3568] sm:$0xff]
        %v3184 = vld [vmem:[%s740 + $0x3570] sm:$0xff]
        %v3185 = vld [vmem:[%s740 + $0x3578] sm:$0xff]
        %v3186 = vld [vmem:[%s740 + $0x3580] sm:$0xff]
        %v3187 = vld [vmem:[%s740 + $0x3588] sm:$0xff]
        %v3188 = vld [vmem:[%s740 + $0x3590] sm:$0xff]
        %v3189 = vld [vmem:[%s740 + $0x3598] sm:$0xff]
        %v3190 = vld [vmem:[%s740 + $0x35a0] sm:$0xff]
        %v3191 = vld [vmem:[%s740 + $0x35a8] sm:$0xff]
        %v3192 = vld [vmem:[%s740 + $0x35b0] sm:$0xff]
        %v3193 = vld [vmem:[%s740 + $0x35b8] sm:$0xff]
        %v3194 = vld [vmem:[%s740 + $0x35c0] sm:$0xff]
        %v3195 = vld [vmem:[%s740 + $0x35c8] sm:$0xff]
        %v3196 = vld [vmem:[%s740 + $0x35d0] sm:$0xff]
        %v3197 = vld [vmem:[%s740 + $0x35d8] sm:$0xff]
        %v3198 = vld [vmem:[%s740 + $0x35e0] sm:$0xff]
        %v3199 = vld [vmem:[%s740 + $0x35e8] sm:$0xff]
        %v3200 = vld [vmem:[%s740 + $0x35f0] sm:$0xff]
        %v3201 = vld [vmem:[%s740 + $0x35f8] sm:$0xff]
        %v3202 = vld [vmem:[%s740 + $0x3600] sm:$0xff]
        %v3203 = vld [vmem:[%s740 + $0x3608] sm:$0xff]
        %v3204 = vld [vmem:[%s740 + $0x3610] sm:$0xff]
        %v3205 = vld [vmem:[%s740 + $0x3618] sm:$0xff]
        %v3206 = vld [vmem:[%s740 + $0x3620] sm:$0xff]
        %v3207 = vld [vmem:[%s740 + $0x3628] sm:$0xff]
        %v3208 = vld [vmem:[%s740 + $0x3630] sm:$0xff]
        %v3209 = vld [vmem:[%s740 + $0x3638] sm:$0xff]
        %v3210 = vld [vmem:[%s740 + $0x3640] sm:$0xff]
        %v3211 = vld [vmem:[%s740 + $0x3648] sm:$0xff]
        %v3212 = vld [vmem:[%s740 + $0x3650] sm:$0xff]
        %v3213 = vld [vmem:[%s740 + $0x3658] sm:$0xff]
        %v3214 = vld [vmem:[%s740 + $0x3660] sm:$0xff]
        %v3215 = vld [vmem:[%s740 + $0x3668] sm:$0xff]
        %v3216 = vld [vmem:[%s740 + $0x3670] sm:$0xff]
        %v3217 = vld [vmem:[%s740 + $0x3678] sm:$0xff]
        %v3218 = vld [vmem:[%s740 + $0x3680] sm:$0xff]
        %v3219 = vld [vmem:[%s740 + $0x3688] sm:$0xff]
        %v3220 = vld [vmem:[%s740 + $0x3690] sm:$0xff]
        %v3221 = vld [vmem:[%s740 + $0x3698] sm:$0xff]
        %v3222 = vld [vmem:[%s740 + $0x36a0] sm:$0xff]
        %v3223 = vld [vmem:[%s740 + $0x36a8] sm:$0xff]
        %v3224 = vld [vmem:[%s740 + $0x36b0] sm:$0xff]
        %v3225 = vld [vmem:[%s740 + $0x36b8] sm:$0xff]
        %v3226 = vld [vmem:[%s740 + $0x36c0] sm:$0xff]
        %v3227 = vld [vmem:[%s740 + $0x36c8] sm:$0xff]
        %v3228 = vld [vmem:[%s740 + $0x36d0] sm:$0xff]
        %v3229 = vld [vmem:[%s740 + $0x36d8] sm:$0xff]
        %v3230 = vld [vmem:[%s740 + $0x36e0] sm:$0xff]
        %v3231 = vld [vmem:[%s740 + $0x36e8] sm:$0xff]
        %v3232 = vld [vmem:[%s740 + $0x36f0] sm:$0xff]
        %v3233 = vld [vmem:[%s740 + $0x36f8] sm:$0xff]
        %v3234 = vld [vmem:[%s740 + $0x3700] sm:$0xff]
        %v3235 = vld [vmem:[%s740 + $0x3708] sm:$0xff]
        %v3236 = vld [vmem:[%s740 + $0x3710] sm:$0xff]
        %v3237 = vld [vmem:[%s740 + $0x3718] sm:$0xff]
        %v3238 = vld [vmem:[%s740 + $0x3720] sm:$0xff]
        %v3239 = vld [vmem:[%s740 + $0x3728] sm:$0xff]
        %v3240 = vld [vmem:[%s740 + $0x3730] sm:$0xff]
        %v3241 = vld [vmem:[%s740 + $0x3738] sm:$0xff]
        %v3242 = vld [vmem:[%s740 + $0x3740] sm:$0xff]
        %v3243 = vld [vmem:[%s740 + $0x3748] sm:$0xff]
        %v3244 = vld [vmem:[%s740 + $0x3750] sm:$0xff]
        %v3245 = vld [vmem:[%s740 + $0x3758] sm:$0xff]
        %v3246 = vld [vmem:[%s740 + $0x3760] sm:$0xff]
        %v3247 = vld [vmem:[%s740 + $0x3768] sm:$0xff]
        %v3248 = vld [vmem:[%s740 + $0x3770] sm:$0xff]
        %v3249 = vld [vmem:[%s740 + $0x3778] sm:$0xff]
        %v3250 = vld [vmem:[%s740 + $0x3780] sm:$0xff]
        %v3251 = vld [vmem:[%s740 + $0x3788] sm:$0xff]
        %v3252 = vld [vmem:[%s740 + $0x3790] sm:$0xff]
        %v3253 = vld [vmem:[%s740 + $0x3798] sm:$0xff]
        %v3254 = vld [vmem:[%s740 + $0x37a0] sm:$0xff]
        %v3255 = vld [vmem:[%s740 + $0x37a8] sm:$0xff]
        %v3256 = vld [vmem:[%s740 + $0x37b0] sm:$0xff]
        %v3257 = vld [vmem:[%s740 + $0x37b8] sm:$0xff]
        %v3258 = vld [vmem:[%s740 + $0x37c0] sm:$0xff]
        %v3259 = vld [vmem:[%s740 + $0x37c8] sm:$0xff]
        %v3260 = vld [vmem:[%s740 + $0x37d0] sm:$0xff]
        %v3261 = vld [vmem:[%s740 + $0x37d8] sm:$0xff]
        %v3262 = vld [vmem:[%s740 + $0x37e0] sm:$0xff]
        %v3263 = vld [vmem:[%s740 + $0x37e8] sm:$0xff]
        %v3264 = vld [vmem:[%s740 + $0x37f0] sm:$0xff]
        %v3265 = vld [vmem:[%s740 + $0x37f8] sm:$0xff]
        %v3266 = vld [vmem:[%s740 + $0x3800] sm:$0xff]
        %v3267 = vld [vmem:[%s740 + $0x3808] sm:$0xff]
        %v3268 = vld [vmem:[%s740 + $0x3810] sm:$0xff]
        %v3269 = vld [vmem:[%s740 + $0x3818] sm:$0xff]
        %v3270 = vld [vmem:[%s740 + $0x3820] sm:$0xff]
        %v3271 = vld [vmem:[%s740 + $0x3828] sm:$0xff]
        %v3272 = vld [vmem:[%s740 + $0x3830] sm:$0xff]
        %v3273 = vld [vmem:[%s740 + $0x3838] sm:$0xff]
        %v3274 = vld [vmem:[%s740 + $0x3840] sm:$0xff]
        %v3275 = vld [vmem:[%s740 + $0x3848] sm:$0xff]
        %v3276 = vld [vmem:[%s740 + $0x3850] sm:$0xff]
        %v3277 = vld [vmem:[%s740 + $0x3858] sm:$0xff]
        %v3278 = vld [vmem:[%s740 + $0x3860] sm:$0xff]
        %v3279 = vld [vmem:[%s740 + $0x3868] sm:$0xff]
        %v3280 = vld [vmem:[%s740 + $0x3870] sm:$0xff]
        %v3281 = vld [vmem:[%s740 + $0x3878] sm:$0xff]
        %v3282 = vld [vmem:[%s740 + $0x3880] sm:$0xff]
        %v3283 = vld [vmem:[%s740 + $0x3888] sm:$0xff]
        %v3284 = vld [vmem:[%s740 + $0x3890] sm:$0xff]
        %v3285 = vld [vmem:[%s740 + $0x3898] sm:$0xff]
        %v3286 = vld [vmem:[%s740 + $0x38a0] sm:$0xff]
        %v3287 = vld [vmem:[%s740 + $0x38a8] sm:$0xff]
        %v3288 = vld [vmem:[%s740 + $0x38b0] sm:$0xff]
        %v3289 = vld [vmem:[%s740 + $0x38b8] sm:$0xff]
        %v3290 = vld [vmem:[%s740 + $0x38c0] sm:$0xff]
        %v3291 = vld [vmem:[%s740 + $0x38c8] sm:$0xff]
        %v3292 = vld [vmem:[%s740 + $0x38d0] sm:$0xff]
        %v3293 = vld [vmem:[%s740 + $0x38d8] sm:$0xff]
        %v3294 = vld [vmem:[%s740 + $0x38e0] sm:$0xff]
        %v3295 = vld [vmem:[%s740 + $0x38e8] sm:$0xff]
        %v3296 = vld [vmem:[%s740 + $0x38f0] sm:$0xff]
        %v3297 = vld [vmem:[%s740 + $0x38f8] sm:$0xff]
        %v3298 = vld [vmem:[%s740 + $0x3900] sm:$0xff]
        %v3299 = vld [vmem:[%s740 + $0x3908] sm:$0xff]
        %v3300 = vld [vmem:[%s740 + $0x3910] sm:$0xff]
        %v3301 = vld [vmem:[%s740 + $0x3918] sm:$0xff]
        %v3302 = vld [vmem:[%s740 + $0x3920] sm:$0xff]
        %v3303 = vld [vmem:[%s740 + $0x3928] sm:$0xff]
        %v3304 = vld [vmem:[%s740 + $0x3930] sm:$0xff]
        %v3305 = vld [vmem:[%s740 + $0x3938] sm:$0xff]
        %v3306 = vld [vmem:[%s740 + $0x3940] sm:$0xff]
        %v3307 = vld [vmem:[%s740 + $0x3948] sm:$0xff]
        %v3308 = vld [vmem:[%s740 + $0x3950] sm:$0xff]
        %v3309 = vld [vmem:[%s740 + $0x3958] sm:$0xff]
        %v3310 = vld [vmem:[%s740 + $0x3960] sm:$0xff]
        %v3311 = vld [vmem:[%s740 + $0x3968] sm:$0xff]
        %v3312 = vld [vmem:[%s740 + $0x3970] sm:$0xff]
        %v3313 = vld [vmem:[%s740 + $0x3978] sm:$0xff]
        %v3314 = vld [vmem:[%s740 + $0x3980] sm:$0xff]
        %v3315 = vld [vmem:[%s740 + $0x3988] sm:$0xff]
        %v3316 = vld [vmem:[%s740 + $0x3990] sm:$0xff]
        %v3317 = vld [vmem:[%s740 + $0x3998] sm:$0xff]
        %v3318 = vld [vmem:[%s740 + $0x39a0] sm:$0xff]
        %v3319 = vld [vmem:[%s740 + $0x39a8] sm:$0xff]
        %v3320 = vld [vmem:[%s740 + $0x39b0] sm:$0xff]
        %v3321 = vld [vmem:[%s740 + $0x39b8] sm:$0xff]
        %v3322 = vld [vmem:[%s740 + $0x39c0] sm:$0xff]
        %v3323 = vld [vmem:[%s740 + $0x39c8] sm:$0xff]
        %v3324 = vld [vmem:[%s740 + $0x39d0] sm:$0xff]
        %v3325 = vld [vmem:[%s740 + $0x39d8] sm:$0xff]
        %v3326 = vld [vmem:[%s740 + $0x39e0] sm:$0xff]
        %v3327 = vld [vmem:[%s740 + $0x39e8] sm:$0xff]
        %v3328 = vld [vmem:[%s740 + $0x39f0] sm:$0xff]
        %v3329 = vld [vmem:[%s740 + $0x39f8] sm:$0xff]
        %v3330 = vld [vmem:[%s740 + $0x3a00] sm:$0xff]
        %v3331 = vld [vmem:[%s740 + $0x3a08] sm:$0xff]
        %v3332 = vld [vmem:[%s740 + $0x3a10] sm:$0xff]
        %v3333 = vld [vmem:[%s740 + $0x3a18] sm:$0xff]
        %v3334 = vld [vmem:[%s740 + $0x3a20] sm:$0xff]
        %v3335 = vld [vmem:[%s740 + $0x3a28] sm:$0xff]
        %v3336 = vld [vmem:[%s740 + $0x3a30] sm:$0xff]
        %v3337 = vld [vmem:[%s740 + $0x3a38] sm:$0xff]
        %v3338 = vld [vmem:[%s740 + $0x3a40] sm:$0xff]
        %v3339 = vld [vmem:[%s740 + $0x3a48] sm:$0xff]
        %v3340 = vld [vmem:[%s740 + $0x3a50] sm:$0xff]
        %v3341 = vld [vmem:[%s740 + $0x3a58] sm:$0xff]
        %v3342 = vld [vmem:[%s740 + $0x3a60] sm:$0xff]
        %v3343 = vld [vmem:[%s740 + $0x3a68] sm:$0xff]
        %v3344 = vld [vmem:[%s740 + $0x3a70] sm:$0xff]
        %v3345 = vld [vmem:[%s740 + $0x3a78] sm:$0xff]
        %v3346 = vld [vmem:[%s740 + $0x3a80] sm:$0xff]
        %v3347 = vld [vmem:[%s740 + $0x3a88] sm:$0xff]
        %v3348 = vld [vmem:[%s740 + $0x3a90] sm:$0xff]
        %v3349 = vld [vmem:[%s740 + $0x3a98] sm:$0xff]
        %v3350 = vld [vmem:[%s740 + $0x3aa0] sm:$0xff]
        %v3351 = vld [vmem:[%s740 + $0x3aa8] sm:$0xff]
        %v3352 = vld [vmem:[%s740 + $0x3ab0] sm:$0xff]
        %v3353 = vld [vmem:[%s740 + $0x3ab8] sm:$0xff]
        %v3354 = vld [vmem:[%s740 + $0x3ac0] sm:$0xff]
        %v3355 = vld [vmem:[%s740 + $0x3ac8] sm:$0xff]
        %v3356 = vld [vmem:[%s740 + $0x3ad0] sm:$0xff]
        %v3357 = vld [vmem:[%s740 + $0x3ad8] sm:$0xff]
        %v3358 = vld [vmem:[%s740 + $0x3ae0] sm:$0xff]
        %v3359 = vld [vmem:[%s740 + $0x3ae8] sm:$0xff]
        %v3360 = vld [vmem:[%s740 + $0x3af0] sm:$0xff]
        %v3361 = vld [vmem:[%s740 + $0x3af8] sm:$0xff]
        %v3362 = vld [vmem:[%s740 + $0x3b00] sm:$0xff]
        %v3363 = vld [vmem:[%s740 + $0x3b08] sm:$0xff]
        %v3364 = vld [vmem:[%s740 + $0x3b10] sm:$0xff]
        %v3365 = vld [vmem:[%s740 + $0x3b18] sm:$0xff]
        %v3366 = vld [vmem:[%s740 + $0x3b20] sm:$0xff]
        %v3367 = vld [vmem:[%s740 + $0x3b28] sm:$0xff]
        %v3368 = vld [vmem:[%s740 + $0x3b30] sm:$0xff]
        %v3369 = vld [vmem:[%s740 + $0x3b38] sm:$0xff]
        %v3370 = vld [vmem:[%s740 + $0x3b40] sm:$0xff]
        %v3371 = vld [vmem:[%s740 + $0x3b48] sm:$0xff]
        %v3372 = vld [vmem:[%s740 + $0x3b50] sm:$0xff]
        %v3373 = vld [vmem:[%s740 + $0x3b58] sm:$0xff]
        %v3374 = vld [vmem:[%s740 + $0x3b60] sm:$0xff]
        %v3375 = vld [vmem:[%s740 + $0x3b68] sm:$0xff]
        %v3376 = vld [vmem:[%s740 + $0x3b70] sm:$0xff]
        %v3377 = vld [vmem:[%s740 + $0x3b78] sm:$0xff]
        %v3378 = vld [vmem:[%s740 + $0x3b80] sm:$0xff]
        %v3379 = vld [vmem:[%s740 + $0x3b88] sm:$0xff]
        %v3380 = vld [vmem:[%s740 + $0x3b90] sm:$0xff]
        %v3381 = vld [vmem:[%s740 + $0x3b98] sm:$0xff]
        %v3382 = vld [vmem:[%s740 + $0x3ba0] sm:$0xff]
        %v3383 = vld [vmem:[%s740 + $0x3ba8] sm:$0xff]
        %v3384 = vld [vmem:[%s740 + $0x3bb0] sm:$0xff]
        %v3385 = vld [vmem:[%s740 + $0x3bb8] sm:$0xff]
        %v3386 = vld [vmem:[%s740 + $0x3bc0] sm:$0xff]
        %v3387 = vld [vmem:[%s740 + $0x3bc8] sm:$0xff]
        %v3388 = vld [vmem:[%s740 + $0x3bd0] sm:$0xff]
        %v3389 = vld [vmem:[%s740 + $0x3bd8] sm:$0xff]
        %v3390 = vld [vmem:[%s740 + $0x3be0] sm:$0xff]
        %v3391 = vld [vmem:[%s740 + $0x3be8] sm:$0xff]
        %v3392 = vld [vmem:[%s740 + $0x3bf0] sm:$0xff]
        %v3393 = vld [vmem:[%s740 + $0x3bf8] sm:$0xff]
        %v3394 = vld [vmem:[%s740 + $0x3c00] sm:$0xff]
        %v3395 = vld [vmem:[%s740 + $0x3c08] sm:$0xff]
        %v3396 = vld [vmem:[%s740 + $0x3c10] sm:$0xff]
        %v3397 = vld [vmem:[%s740 + $0x3c18] sm:$0xff]
        %v3398 = vld [vmem:[%s740 + $0x3c20] sm:$0xff]
        %v3399 = vld [vmem:[%s740 + $0x3c28] sm:$0xff]
        %v3400 = vld [vmem:[%s740 + $0x3c30] sm:$0xff]
        %v3401 = vld [vmem:[%s740 + $0x3c38] sm:$0xff]
        %v3402 = vld [vmem:[%s740 + $0x3c40] sm:$0xff]
        %v3403 = vld [vmem:[%s740 + $0x3c48] sm:$0xff]
        %v3404 = vld [vmem:[%s740 + $0x3c50] sm:$0xff]
        %v3405 = vld [vmem:[%s740 + $0x3c58] sm:$0xff]
        %v3406 = vld [vmem:[%s740 + $0x3c60] sm:$0xff]
        %v3407 = vld [vmem:[%s740 + $0x3c68] sm:$0xff]
        %v3408 = vld [vmem:[%s740 + $0x3c70] sm:$0xff]
        %v3409 = vld [vmem:[%s740 + $0x3c78] sm:$0xff]
        %v3410 = vld [vmem:[%s740 + $0x3c80] sm:$0xff]
        %v3411 = vld [vmem:[%s740 + $0x3c88] sm:$0xff]
        %v3412 = vld [vmem:[%s740 + $0x3c90] sm:$0xff]
        %v3413 = vld [vmem:[%s740 + $0x3c98] sm:$0xff]
        %v3414 = vld [vmem:[%s740 + $0x3ca0] sm:$0xff]
        %v3415 = vld [vmem:[%s740 + $0x3ca8] sm:$0xff]
        %v3416 = vld [vmem:[%s740 + $0x3cb0] sm:$0xff]
        %v3417 = vld [vmem:[%s740 + $0x3cb8] sm:$0xff]
        %v3418 = vld [vmem:[%s740 + $0x3cc0] sm:$0xff]
        %v3419 = vld [vmem:[%s740 + $0x3cc8] sm:$0xff]
        %v3420 = vld [vmem:[%s740 + $0x3cd0] sm:$0xff]
        %v3421 = vld [vmem:[%s740 + $0x3cd8] sm:$0xff]
        %v3422 = vld [vmem:[%s740 + $0x3ce0] sm:$0xff]
        %v3423 = vld [vmem:[%s740 + $0x3ce8] sm:$0xff]
        %v3424 = vld [vmem:[%s740 + $0x3cf0] sm:$0xff]
        %v3425 = vld [vmem:[%s740 + $0x3cf8] sm:$0xff]
        %v3426 = vld [vmem:[%s740 + $0x3d00] sm:$0xff]
        %v3427 = vld [vmem:[%s740 + $0x3d08] sm:$0xff]
        %v3428 = vld [vmem:[%s740 + $0x3d10] sm:$0xff]
        %v3429 = vld [vmem:[%s740 + $0x3d18] sm:$0xff]
        %v3430 = vld [vmem:[%s740 + $0x3d20] sm:$0xff]
        %v3431 = vld [vmem:[%s740 + $0x3d28] sm:$0xff]
        %v3432 = vld [vmem:[%s740 + $0x3d30] sm:$0xff]
        %v3433 = vld [vmem:[%s740 + $0x3d38] sm:$0xff]
        %v3434 = vld [vmem:[%s740 + $0x3d40] sm:$0xff]
        %v3435 = vld [vmem:[%s740 + $0x3d48] sm:$0xff]
        %v3436 = vld [vmem:[%s740 + $0x3d50] sm:$0xff]
        %v3437 = vld [vmem:[%s740 + $0x3d58] sm:$0xff]
        %v3438 = vld [vmem:[%s740 + $0x3d60] sm:$0xff]
        %v3439 = vld [vmem:[%s740 + $0x3d68] sm:$0xff]
        %v3440 = vld [vmem:[%s740 + $0x3d70] sm:$0xff]
        %v3441 = vld [vmem:[%s740 + $0x3d78] sm:$0xff]
        %v3442 = vld [vmem:[%s740 + $0x3d80] sm:$0xff]
        %v3443 = vld [vmem:[%s740 + $0x3d88] sm:$0xff]
        %v3444 = vld [vmem:[%s740 + $0x3d90] sm:$0xff]
        %v3445 = vld [vmem:[%s740 + $0x3d98] sm:$0xff]
        %v3446 = vld [vmem:[%s740 + $0x3da0] sm:$0xff]
        %v3447 = vld [vmem:[%s740 + $0x3da8] sm:$0xff]
        %v3448 = vld [vmem:[%s740 + $0x3db0] sm:$0xff]
        %v3449 = vld [vmem:[%s740 + $0x3db8] sm:$0xff]
        %v3450 = vld [vmem:[%s740 + $0x3dc0] sm:$0xff]
        %v3451 = vld [vmem:[%s740 + $0x3dc8] sm:$0xff]
        %v3452 = vld [vmem:[%s740 + $0x3dd0] sm:$0xff]
        %v3453 = vld [vmem:[%s740 + $0x3dd8] sm:$0xff]
        %v3454 = vld [vmem:[%s740 + $0x3de0] sm:$0xff]
        %v3455 = vld [vmem:[%s740 + $0x3de8] sm:$0xff]
        %v3456 = vld [vmem:[%s740 + $0x3df0] sm:$0xff]
        %v3457 = vld [vmem:[%s740 + $0x3df8] sm:$0xff]
        %v3458 = vld [vmem:[%s740 + $0x3e00] sm:$0xff]
        %v3459 = vld [vmem:[%s740 + $0x3e08] sm:$0xff]
        %v3460 = vld [vmem:[%s740 + $0x3e10] sm:$0xff]
        %v3461 = vld [vmem:[%s740 + $0x3e18] sm:$0xff]
        %v3462 = vld [vmem:[%s740 + $0x3e20] sm:$0xff]
        %v3463 = vld [vmem:[%s740 + $0x3e28] sm:$0xff]
        %v3464 = vld [vmem:[%s740 + $0x3e30] sm:$0xff]
        %v3465 = vld [vmem:[%s740 + $0x3e38] sm:$0xff]
        %v3466 = vld [vmem:[%s740 + $0x3e40] sm:$0xff]
        %v3467 = vld [vmem:[%s740 + $0x3e48] sm:$0xff]
        %v3468 = vld [vmem:[%s740 + $0x3e50] sm:$0xff]
        %v3469 = vld [vmem:[%s740 + $0x3e58] sm:$0xff]
        %v3470 = vld [vmem:[%s740 + $0x3e60] sm:$0xff]
        %v3471 = vld [vmem:[%s740 + $0x3e68] sm:$0xff]
        %v3472 = vld [vmem:[%s740 + $0x3e70] sm:$0xff]
        %v3473 = vld [vmem:[%s740 + $0x3e78] sm:$0xff]
        %v3474 = vld [vmem:[%s740 + $0x3e80] sm:$0xff]
        %v3475 = vld [vmem:[%s740 + $0x3e88] sm:$0xff]
        %v3476 = vld [vmem:[%s740 + $0x3e90] sm:$0xff]
        %v3477 = vld [vmem:[%s740 + $0x3e98] sm:$0xff]
        %v3478 = vld [vmem:[%s740 + $0x3ea0] sm:$0xff]
        %v3479 = vld [vmem:[%s740 + $0x3ea8] sm:$0xff]
        %v3480 = vld [vmem:[%s740 + $0x3eb0] sm:$0xff]
        %v3481 = vld [vmem:[%s740 + $0x3eb8] sm:$0xff]
        %v3482 = vld [vmem:[%s740 + $0x3ec0] sm:$0xff]
        %v3483 = vld [vmem:[%s740 + $0x3ec8] sm:$0xff]
        %v3484 = vld [vmem:[%s740 + $0x3ed0] sm:$0xff]
        %v3485 = vld [vmem:[%s740 + $0x3ed8] sm:$0xff]
        %v3486 = vld [vmem:[%s740 + $0x3ee0] sm:$0xff]
        %v3487 = vld [vmem:[%s740 + $0x3ee8] sm:$0xff]
        %v3488 = vld [vmem:[%s740 + $0x3ef0] sm:$0xff]
        %v3489 = vld [vmem:[%s740 + $0x3ef8] sm:$0xff]
        %v3490 = vld [vmem:[%s740 + $0x3f00] sm:$0xff]
        %v3491 = vld [vmem:[%s740 + $0x3f08] sm:$0xff]
        %v3492 = vld [vmem:[%s740 + $0x3f10] sm:$0xff]
        %v3493 = vld [vmem:[%s740 + $0x3f18] sm:$0xff]
        %v3494 = vld [vmem:[%s740 + $0x3f20] sm:$0xff]
        %v3495 = vld [vmem:[%s740 + $0x3f28] sm:$0xff]
        %v3496 = vld [vmem:[%s740 + $0x3f30] sm:$0xff]
        %v3497 = vld [vmem:[%s740 + $0x3f38] sm:$0xff]
        %v3498 = vld [vmem:[%s740 + $0x3f40] sm:$0xff]
        %v3499 = vld [vmem:[%s740 + $0x3f48] sm:$0xff]
        %v3500 = vld [vmem:[%s740 + $0x3f50] sm:$0xff]
        %v3501 = vld [vmem:[%s740 + $0x3f58] sm:$0xff]
        %v3502 = vld [vmem:[%s740 + $0x3f60] sm:$0xff]
        %v3503 = vld [vmem:[%s740 + $0x3f68] sm:$0xff]
        %v3504 = vld [vmem:[%s740 + $0x3f70] sm:$0xff]
        %v3505 = vld [vmem:[%s740 + $0x3f78] sm:$0xff]
        %v3506 = vld [vmem:[%s740 + $0x3f80] sm:$0xff]
        %v3507 = vld [vmem:[%s740 + $0x3f88] sm:$0xff]
        %v3508 = vld [vmem:[%s740 + $0x3f90] sm:$0xff]
        %v3509 = vld [vmem:[%s740 + $0x3f98] sm:$0xff]
        %v3510 = vld [vmem:[%s740 + $0x3fa0] sm:$0xff]
        %v3511 = vld [vmem:[%s740 + $0x3fa8] sm:$0xff]
        %v3512 = vld [vmem:[%s740 + $0x3fb0] sm:$0xff]
        %v3513 = vld [vmem:[%s740 + $0x3fb8] sm:$0xff]
        %v3514 = vld [vmem:[%s740 + $0x3fc0] sm:$0xff]
        %v3515 = vld [vmem:[%s740 + $0x3fc8] sm:$0xff]
        %v3516 = vld [vmem:[%s740 + $0x3fd0] sm:$0xff]
        %v3517 = vld [vmem:[%s740 + $0x3fd8] sm:$0xff]
        %v3518 = vld [vmem:[%s740 + $0x3fe0] sm:$0xff]
        %v3519 = vld [vmem:[%s740 + $0x3fe8] sm:$0xff]
        %v3520 = vld [vmem:[%s740 + $0x3ff0] sm:$0xff]
        %v3521 = vld [vmem:[%s740 + $0x3ff8] sm:$0xff]
        %v3522 = vld [vmem:[%s750] sm:$0xff]
        %v3523 = vld [vmem:[%s750 + $0x8] sm:$0xff]
        %v3526 = vperm.slane %v3522, 0
        %v3527 = vperm.slane %v3522, 1
        %v3528 = vperm.slane %v3522, 2
        %v3529 = vperm.slane %v3522, 3
        %v3530 = vperm.slane %v3522, 4
        %v3531 = vperm.slane %v3522, 5
        %v3532 = vperm.slane %v3522, 6
        %v3533 = vperm.slane %v3522, 7
        %v3534 = vperm.slane %v3523, 0
        %v3535 = vperm.slane %v3523, 1
        %v3536 = vperm.slane %v3523, 2
        %v3537 = vperm.slane %v3523, 3
        %v3538 = vperm.slane %v3523, 4
        %v3539 = vperm.slane %v3523, 5
        %v3540 = vperm.slane %v3523, 6
        %v3541 = vperm.slane %v3523, 7
        %3558 = vmatpush.msra.mxu0 %v1714
        %3559 = vmatpush.msra.mxu0 %v1698
        %3560 = vmatpush.msra.mxu0 %v1682
        %3561 = vmatpush.msra.mxu0 %v1666
        %3562 = vmatpush.msra.mxu0 %v1650
        %3563 = vmatpush.msra.mxu0 %v1634
        %3564 = vmatpush.msra.mxu0 %v1618
        %3565 = vmatpush.msra.mxu0 %v1602
        %3566 = vmatpush.msra.mxu0 %v1586
        %3567 = vmatpush.msra.mxu0 %v1570
        %3568 = vmatpush.msra.mxu0 %v1554
        %3569 = vmatpush.msra.mxu0 %v1538
        %3570 = vmatpush.msra.mxu0 %v1522
        %3571 = vmatpush.msra.mxu0 %v1506
        %3572 = vmatpush.msra.mxu0 %v1490
        %3573 = vmatpush.msra.mxu0 %v1474
        %3574 = vmatmul.f32.gmra.mxu0 %v1466
        %v3575 = vpop.f32.mrf.mxu0
        %v3576 = vadd.f32 %v3526, %v3575
        %3577 = vdwg.mxu0
        %3578 = vmatpush.msra.mxu0 %v1970
        %3579 = vmatpush.msra.mxu0 %v1954
        %3580 = vmatpush.msra.mxu0 %v1938
        %3581 = vmatpush.msra.mxu0 %v1922
        %3582 = vmatpush.msra.mxu0 %v1906
        %3583 = vmatpush.msra.mxu0 %v1890
        %3584 = vmatpush.msra.mxu0 %v1874
        %3585 = vmatpush.msra.mxu0 %v1858
        %3586 = vmatpush.msra.mxu0 %v1842
        %3587 = vmatpush.msra.mxu0 %v1826
        %3588 = vmatpush.msra.mxu0 %v1810
        %3589 = vmatpush.msra.mxu0 %v1794
        %3590 = vmatpush.msra.mxu0 %v1778
        %3591 = vmatpush.msra.mxu0 %v1762
        %3592 = vmatpush.msra.mxu0 %v1746
        %3593 = vmatpush.msra.mxu0 %v1730
        %3594 = vmatmul.f32.gmra.mxu0 %v1467
        %v3595 = vpop.f32.mrf.mxu0
        %v3596 = vadd.f32 %v3576, %v3595
        %3597 = vdwg.mxu0
        %3598 = vmatpush.msra.mxu0 %v2226
        %3599 = vmatpush.msra.mxu0 %v2210
        %3600 = vmatpush.msra.mxu0 %v2194
        %3601 = vmatpush.msra.mxu0 %v2178
        %3602 = vmatpush.msra.mxu0 %v2162
        %3603 = vmatpush.msra.mxu0 %v2146
        %3604 = vmatpush.msra.mxu0 %v2130
        %3605 = vmatpush.msra.mxu0 %v2114
        %3606 = vmatpush.msra.mxu0 %v2098
        %3607 = vmatpush.msra.mxu0 %v2082
        %3608 = vmatpush.msra.mxu0 %v2066
        %3609 = vmatpush.msra.mxu0 %v2050
        %3610 = vmatpush.msra.mxu0 %v2034
        %3611 = vmatpush.msra.mxu0 %v2018
        %3612 = vmatpush.msra.mxu0 %v2002
        %3613 = vmatpush.msra.mxu0 %v1986
        %3614 = vmatmul.f32.gmra.mxu0 %v1468
        %v3615 = vpop.f32.mrf.mxu0
        %v3616 = vadd.f32 %v3596, %v3615
        %3617 = vdwg.mxu0
        %3618 = vmatpush.msra.mxu0 %v2482
        %3619 = vmatpush.msra.mxu0 %v2466
        %3620 = vmatpush.msra.mxu0 %v2450
        %3621 = vmatpush.msra.mxu0 %v2434
        %3622 = vmatpush.msra.mxu0 %v2418
        %3623 = vmatpush.msra.mxu0 %v2402
        %3624 = vmatpush.msra.mxu0 %v2386
        %3625 = vmatpush.msra.mxu0 %v2370
        %3626 = vmatpush.msra.mxu0 %v2354
        %3627 = vmatpush.msra.mxu0 %v2338
        %3628 = vmatpush.msra.mxu0 %v2322
        %3629 = vmatpush.msra.mxu0 %v2306
        %3630 = vmatpush.msra.mxu0 %v2290
        %3631 = vmatpush.msra.mxu0 %v2274
        %3632 = vmatpush.msra.mxu0 %v2258
        %3633 = vmatpush.msra.mxu0 %v2242
        %3634 = vmatmul.f32.gmra.mxu0 %v1469
        %v3635 = vpop.f32.mrf.mxu0
        %v3636 = vadd.f32 %v3616, %v3635
        %3637 = vdwg.mxu0
        %3638 = vmatpush.msra.mxu0 %v2738
        %3639 = vmatpush.msra.mxu0 %v2722
        %3640 = vmatpush.msra.mxu0 %v2706
        %3641 = vmatpush.msra.mxu0 %v2690
        %3642 = vmatpush.msra.mxu0 %v2674
        %3643 = vmatpush.msra.mxu0 %v2658
        %3644 = vmatpush.msra.mxu0 %v2642
        %3645 = vmatpush.msra.mxu0 %v2626
        %3646 = vmatpush.msra.mxu0 %v2610
        %3647 = vmatpush.msra.mxu0 %v2594
        %3648 = vmatpush.msra.mxu0 %v2578
        %3649 = vmatpush.msra.mxu0 %v2562
        %3650 = vmatpush.msra.mxu0 %v2546
        %3651 = vmatpush.msra.mxu0 %v2530
        %3652 = vmatpush.msra.mxu0 %v2514
        %3653 = vmatpush.msra.mxu0 %v2498
        %3654 = vmatmul.f32.gmra.mxu0 %v1470
        %v3655 = vpop.f32.mrf.mxu0
        %v3656 = vadd.f32 %v3636, %v3655
        %3657 = vdwg.mxu0
        %3658 = vmatpush.msra.mxu0 %v2994
        %3659 = vmatpush.msra.mxu0 %v2978
        %3660 = vmatpush.msra.mxu0 %v2962
        %3661 = vmatpush.msra.mxu0 %v2946
        %3662 = vmatpush.msra.mxu0 %v2930
        %3663 = vmatpush.msra.mxu0 %v2914
        %3664 = vmatpush.msra.mxu0 %v2898
        %3665 = vmatpush.msra.mxu0 %v2882
        %3666 = vmatpush.msra.mxu0 %v2866
        %3667 = vmatpush.msra.mxu0 %v2850
        %3668 = vmatpush.msra.mxu0 %v2834
        %3669 = vmatpush.msra.mxu0 %v2818
        %3670 = vmatpush.msra.mxu0 %v2802
        %3671 = vmatpush.msra.mxu0 %v2786
        %3672 = vmatpush.msra.mxu0 %v2770
        %3673 = vmatpush.msra.mxu0 %v2754
        %3674 = vmatmul.f32.gmra.mxu0 %v1471
        %v3675 = vpop.f32.mrf.mxu0
        %v3676 = vadd.f32 %v3656, %v3675
        %3677 = vdwg.mxu0
        %3678 = vmatpush.msra.mxu0 %v3250
        %3679 = vmatpush.msra.mxu0 %v3234
        %3680 = vmatpush.msra.mxu0 %v3218
        %3681 = vmatpush.msra.mxu0 %v3202
        %3682 = vmatpush.msra.mxu0 %v3186
        %3683 = vmatpush.msra.mxu0 %v3170
        %3684 = vmatpush.msra.mxu0 %v3154
        %3685 = vmatpush.msra.mxu0 %v3138
        %3686 = vmatpush.msra.mxu0 %v3122
        %3687 = vmatpush.msra.mxu0 %v3106
        %3688 = vmatpush.msra.mxu0 %v3090
        %3689 = vmatpush.msra.mxu0 %v3074
        %3690 = vmatpush.msra.mxu0 %v3058
        %3691 = vmatpush.msra.mxu0 %v3042
        %3692 = vmatpush.msra.mxu0 %v3026
        %3693 = vmatpush.msra.mxu0 %v3010
        %3694 = vmatmul.f32.gmra.mxu0 %v1472
        %v3695 = vpop.f32.mrf.mxu0
        %v3696 = vadd.f32 %v3676, %v3695
        %3697 = vdwg.mxu0
        %3698 = vmatpush.msra.mxu0 %v3506
        %3699 = vmatpush.msra.mxu0 %v3490
        %3700 = vmatpush.msra.mxu0 %v3474
        %3701 = vmatpush.msra.mxu0 %v3458
        %3702 = vmatpush.msra.mxu0 %v3442
        %3703 = vmatpush.msra.mxu0 %v3426
        %3704 = vmatpush.msra.mxu0 %v3410
        %3705 = vmatpush.msra.mxu0 %v3394
        %3706 = vmatpush.msra.mxu0 %v3378
        %3707 = vmatpush.msra.mxu0 %v3362
        %3708 = vmatpush.msra.mxu0 %v3346
        %3709 = vmatpush.msra.mxu0 %v3330
        %3710 = vmatpush.msra.mxu0 %v3314
        %3711 = vmatpush.msra.mxu0 %v3298
        %3712 = vmatpush.msra.mxu0 %v3282
        %3713 = vmatpush.msra.mxu0 %v3266
        %3714 = vmatmul.f32.gmra.mxu0 %v1473
        %v3715 = vpop.f32.mrf.mxu0
        %v3716 = vadd.f32 %v3696, %v3715
        %3717 = vdwg.mxu0
        %3718 = vmatpush.msra.mxu0 %v1715
        %3719 = vmatpush.msra.mxu0 %v1699
        %3720 = vmatpush.msra.mxu0 %v1683
        %3721 = vmatpush.msra.mxu0 %v1667
        %3722 = vmatpush.msra.mxu0 %v1651
        %3723 = vmatpush.msra.mxu0 %v1635
        %3724 = vmatpush.msra.mxu0 %v1619
        %3725 = vmatpush.msra.mxu0 %v1603
        %3726 = vmatpush.msra.mxu0 %v1587
        %3727 = vmatpush.msra.mxu0 %v1571
        %3728 = vmatpush.msra.mxu0 %v1555
        %3729 = vmatpush.msra.mxu0 %v1539
        %3730 = vmatpush.msra.mxu0 %v1523
        %3731 = vmatpush.msra.mxu0 %v1507
        %3732 = vmatpush.msra.mxu0 %v1491
        %3733 = vmatpush.msra.mxu0 %v1475
        %3734 = vmatmul.f32.gmra.mxu0 %v1466
        %v3735 = vpop.f32.mrf.mxu0
        %v3736 = vadd.f32 %v3527, %v3735
        %3737 = vdwg.mxu0
        %3738 = vmatpush.msra.mxu0 %v1971
        %3739 = vmatpush.msra.mxu0 %v1955
        %3740 = vmatpush.msra.mxu0 %v1939
        %3741 = vmatpush.msra.mxu0 %v1923
        %3742 = vmatpush.msra.mxu0 %v1907
        %3743 = vmatpush.msra.mxu0 %v1891
        %3744 = vmatpush.msra.mxu0 %v1875
        %3745 = vmatpush.msra.mxu0 %v1859
        %3746 = vmatpush.msra.mxu0 %v1843
        %3747 = vmatpush.msra.mxu0 %v1827
        %3748 = vmatpush.msra.mxu0 %v1811
        %3749 = vmatpush.msra.mxu0 %v1795
        %3750 = vmatpush.msra.mxu0 %v1779
        %3751 = vmatpush.msra.mxu0 %v1763
        %3752 = vmatpush.msra.mxu0 %v1747
        %3753 = vmatpush.msra.mxu0 %v1731
        %3754 = vmatmul.f32.gmra.mxu0 %v1467
        %v3755 = vpop.f32.mrf.mxu0
        %v3756 = vadd.f32 %v3736, %v3755
        %3757 = vdwg.mxu0
        %3758 = vmatpush.msra.mxu0 %v2227
        %3759 = vmatpush.msra.mxu0 %v2211
        %3760 = vmatpush.msra.mxu0 %v2195
        %3761 = vmatpush.msra.mxu0 %v2179
        %3762 = vmatpush.msra.mxu0 %v2163
        %3763 = vmatpush.msra.mxu0 %v2147
        %3764 = vmatpush.msra.mxu0 %v2131
        %3765 = vmatpush.msra.mxu0 %v2115
        %3766 = vmatpush.msra.mxu0 %v2099
        %3767 = vmatpush.msra.mxu0 %v2083
        %3768 = vmatpush.msra.mxu0 %v2067
        %3769 = vmatpush.msra.mxu0 %v2051
        %3770 = vmatpush.msra.mxu0 %v2035
        %3771 = vmatpush.msra.mxu0 %v2019
        %3772 = vmatpush.msra.mxu0 %v2003
        %3773 = vmatpush.msra.mxu0 %v1987
        %3774 = vmatmul.f32.gmra.mxu0 %v1468
        %v3775 = vpop.f32.mrf.mxu0
        %v3776 = vadd.f32 %v3756, %v3775
        %3777 = vdwg.mxu0
        %3778 = vmatpush.msra.mxu0 %v2483
        %3779 = vmatpush.msra.mxu0 %v2467
        %3780 = vmatpush.msra.mxu0 %v2451
        %3781 = vmatpush.msra.mxu0 %v2435
        %3782 = vmatpush.msra.mxu0 %v2419
        %3783 = vmatpush.msra.mxu0 %v2403
        %3784 = vmatpush.msra.mxu0 %v2387
        %3785 = vmatpush.msra.mxu0 %v2371
        %3786 = vmatpush.msra.mxu0 %v2355
        %3787 = vmatpush.msra.mxu0 %v2339
        %3788 = vmatpush.msra.mxu0 %v2323
        %3789 = vmatpush.msra.mxu0 %v2307
        %3790 = vmatpush.msra.mxu0 %v2291
        %3791 = vmatpush.msra.mxu0 %v2275
        %3792 = vmatpush.msra.mxu0 %v2259
        %3793 = vmatpush.msra.mxu0 %v2243
        %3794 = vmatmul.f32.gmra.mxu0 %v1469
        %v3795 = vpop.f32.mrf.mxu0
        %v3796 = vadd.f32 %v3776, %v3795
        %3797 = vdwg.mxu0
        %3798 = vmatpush.msra.mxu0 %v2739
        %3799 = vmatpush.msra.mxu0 %v2723
        %3800 = vmatpush.msra.mxu0 %v2707
        %3801 = vmatpush.msra.mxu0 %v2691
        %3802 = vmatpush.msra.mxu0 %v2675
        %3803 = vmatpush.msra.mxu0 %v2659
        %3804 = vmatpush.msra.mxu0 %v2643
        %3805 = vmatpush.msra.mxu0 %v2627
        %3806 = vmatpush.msra.mxu0 %v2611
        %3807 = vmatpush.msra.mxu0 %v2595
        %3808 = vmatpush.msra.mxu0 %v2579
        %3809 = vmatpush.msra.mxu0 %v2563
        %3810 = vmatpush.msra.mxu0 %v2547
        %3811 = vmatpush.msra.mxu0 %v2531
        %3812 = vmatpush.msra.mxu0 %v2515
        %3813 = vmatpush.msra.mxu0 %v2499
        %3814 = vmatmul.f32.gmra.mxu0 %v1470
        %v3815 = vpop.f32.mrf.mxu0
        %v3816 = vadd.f32 %v3796, %v3815
        %3817 = vdwg.mxu0
        %3818 = vmatpush.msra.mxu0 %v2995
        %3819 = vmatpush.msra.mxu0 %v2979
        %3820 = vmatpush.msra.mxu0 %v2963
        %3821 = vmatpush.msra.mxu0 %v2947
        %3822 = vmatpush.msra.mxu0 %v2931
        %3823 = vmatpush.msra.mxu0 %v2915
        %3824 = vmatpush.msra.mxu0 %v2899
        %3825 = vmatpush.msra.mxu0 %v2883
        %3826 = vmatpush.msra.mxu0 %v2867
        %3827 = vmatpush.msra.mxu0 %v2851
        %3828 = vmatpush.msra.mxu0 %v2835
        %3829 = vmatpush.msra.mxu0 %v2819
        %3830 = vmatpush.msra.mxu0 %v2803
        %3831 = vmatpush.msra.mxu0 %v2787
        %3832 = vmatpush.msra.mxu0 %v2771
        %3833 = vmatpush.msra.mxu0 %v2755
        %3834 = vmatmul.f32.gmra.mxu0 %v1471
        %v3835 = vpop.f32.mrf.mxu0
        %v3836 = vadd.f32 %v3816, %v3835
        %3837 = vdwg.mxu0
        %3838 = vmatpush.msra.mxu0 %v3251
        %3839 = vmatpush.msra.mxu0 %v3235
        %3840 = vmatpush.msra.mxu0 %v3219
        %3841 = vmatpush.msra.mxu0 %v3203
        %3842 = vmatpush.msra.mxu0 %v3187
        %3843 = vmatpush.msra.mxu0 %v3171
        %3844 = vmatpush.msra.mxu0 %v3155
        %3845 = vmatpush.msra.mxu0 %v3139
        %3846 = vmatpush.msra.mxu0 %v3123
        %3847 = vmatpush.msra.mxu0 %v3107
        %3848 = vmatpush.msra.mxu0 %v3091
        %3849 = vmatpush.msra.mxu0 %v3075
        %3850 = vmatpush.msra.mxu0 %v3059
        %3851 = vmatpush.msra.mxu0 %v3043
        %3852 = vmatpush.msra.mxu0 %v3027
        %3853 = vmatpush.msra.mxu0 %v3011
        %3854 = vmatmul.f32.gmra.mxu0 %v1472
        %v3855 = vpop.f32.mrf.mxu0
        %v3856 = vadd.f32 %v3836, %v3855
        %3857 = vdwg.mxu0
        %3858 = vmatpush.msra.mxu0 %v3507
        %3859 = vmatpush.msra.mxu0 %v3491
        %3860 = vmatpush.msra.mxu0 %v3475
        %3861 = vmatpush.msra.mxu0 %v3459
        %3862 = vmatpush.msra.mxu0 %v3443
        %3863 = vmatpush.msra.mxu0 %v3427
        %3864 = vmatpush.msra.mxu0 %v3411
        %3865 = vmatpush.msra.mxu0 %v3395
        %3866 = vmatpush.msra.mxu0 %v3379
        %3867 = vmatpush.msra.mxu0 %v3363
        %3868 = vmatpush.msra.mxu0 %v3347
        %3869 = vmatpush.msra.mxu0 %v3331
        %3870 = vmatpush.msra.mxu0 %v3315
        %3871 = vmatpush.msra.mxu0 %v3299
        %3872 = vmatpush.msra.mxu0 %v3283
        %3873 = vmatpush.msra.mxu0 %v3267
        %3874 = vmatmul.f32.gmra.mxu0 %v1473
        %v3875 = vpop.f32.mrf.mxu0
        %v3876 = vadd.f32 %v3856, %v3875
        %3877 = vdwg.mxu0
        %3878 = vmatpush.msra.mxu0 %v1716
        %3879 = vmatpush.msra.mxu0 %v1700
        %3880 = vmatpush.msra.mxu0 %v1684
        %3881 = vmatpush.msra.mxu0 %v1668
        %3882 = vmatpush.msra.mxu0 %v1652
        %3883 = vmatpush.msra.mxu0 %v1636
        %3884 = vmatpush.msra.mxu0 %v1620
        %3885 = vmatpush.msra.mxu0 %v1604
        %3886 = vmatpush.msra.mxu0 %v1588
        %3887 = vmatpush.msra.mxu0 %v1572
        %3888 = vmatpush.msra.mxu0 %v1556
        %3889 = vmatpush.msra.mxu0 %v1540
        %3890 = vmatpush.msra.mxu0 %v1524
        %3891 = vmatpush.msra.mxu0 %v1508
        %3892 = vmatpush.msra.mxu0 %v1492
        %3893 = vmatpush.msra.mxu0 %v1476
        %3894 = vmatmul.f32.gmra.mxu0 %v1466
        %v3895 = vpop.f32.mrf.mxu0
        %v3896 = vadd.f32 %v3528, %v3895
        %3897 = vdwg.mxu0
        %3898 = vmatpush.msra.mxu0 %v1972
        %3899 = vmatpush.msra.mxu0 %v1956
        %3900 = vmatpush.msra.mxu0 %v1940
        %3901 = vmatpush.msra.mxu0 %v1924
        %3902 = vmatpush.msra.mxu0 %v1908
        %3903 = vmatpush.msra.mxu0 %v1892
        %3904 = vmatpush.msra.mxu0 %v1876
        %3905 = vmatpush.msra.mxu0 %v1860
        %3906 = vmatpush.msra.mxu0 %v1844
        %3907 = vmatpush.msra.mxu0 %v1828
        %3908 = vmatpush.msra.mxu0 %v1812
        %3909 = vmatpush.msra.mxu0 %v1796
        %3910 = vmatpush.msra.mxu0 %v1780
        %3911 = vmatpush.msra.mxu0 %v1764
        %3912 = vmatpush.msra.mxu0 %v1748
        %3913 = vmatpush.msra.mxu0 %v1732
        %3914 = vmatmul.f32.gmra.mxu0 %v1467
        %v3915 = vpop.f32.mrf.mxu0
        %v3916 = vadd.f32 %v3896, %v3915
        %3917 = vdwg.mxu0
        %3918 = vmatpush.msra.mxu0 %v2228
        %3919 = vmatpush.msra.mxu0 %v2212
        %3920 = vmatpush.msra.mxu0 %v2196
        %3921 = vmatpush.msra.mxu0 %v2180
        %3922 = vmatpush.msra.mxu0 %v2164
        %3923 = vmatpush.msra.mxu0 %v2148
        %3924 = vmatpush.msra.mxu0 %v2132
        %3925 = vmatpush.msra.mxu0 %v2116
        %3926 = vmatpush.msra.mxu0 %v2100
        %3927 = vmatpush.msra.mxu0 %v2084
        %3928 = vmatpush.msra.mxu0 %v2068
        %3929 = vmatpush.msra.mxu0 %v2052
        %3930 = vmatpush.msra.mxu0 %v2036
        %3931 = vmatpush.msra.mxu0 %v2020
        %3932 = vmatpush.msra.mxu0 %v2004
        %3933 = vmatpush.msra.mxu0 %v1988
        %3934 = vmatmul.f32.gmra.mxu0 %v1468
        %v3935 = vpop.f32.mrf.mxu0
        %v3936 = vadd.f32 %v3916, %v3935
        %3937 = vdwg.mxu0
        %3938 = vmatpush.msra.mxu0 %v2484
        %3939 = vmatpush.msra.mxu0 %v2468
        %3940 = vmatpush.msra.mxu0 %v2452
        %3941 = vmatpush.msra.mxu0 %v2436
        %3942 = vmatpush.msra.mxu0 %v2420
        %3943 = vmatpush.msra.mxu0 %v2404
        %3944 = vmatpush.msra.mxu0 %v2388
        %3945 = vmatpush.msra.mxu0 %v2372
        %3946 = vmatpush.msra.mxu0 %v2356
        %3947 = vmatpush.msra.mxu0 %v2340
        %3948 = vmatpush.msra.mxu0 %v2324
        %3949 = vmatpush.msra.mxu0 %v2308
        %3950 = vmatpush.msra.mxu0 %v2292
        %3951 = vmatpush.msra.mxu0 %v2276
        %3952 = vmatpush.msra.mxu0 %v2260
        %3953 = vmatpush.msra.mxu0 %v2244
        %3954 = vmatmul.f32.gmra.mxu0 %v1469
        %v3955 = vpop.f32.mrf.mxu0
        %v3956 = vadd.f32 %v3936, %v3955
        %3957 = vdwg.mxu0
        %3958 = vmatpush.msra.mxu0 %v2740
        %3959 = vmatpush.msra.mxu0 %v2724
        %3960 = vmatpush.msra.mxu0 %v2708
        %3961 = vmatpush.msra.mxu0 %v2692
        %3962 = vmatpush.msra.mxu0 %v2676
        %3963 = vmatpush.msra.mxu0 %v2660
        %3964 = vmatpush.msra.mxu0 %v2644
        %3965 = vmatpush.msra.mxu0 %v2628
        %3966 = vmatpush.msra.mxu0 %v2612
        %3967 = vmatpush.msra.mxu0 %v2596
        %3968 = vmatpush.msra.mxu0 %v2580
        %3969 = vmatpush.msra.mxu0 %v2564
        %3970 = vmatpush.msra.mxu0 %v2548
        %3971 = vmatpush.msra.mxu0 %v2532
        %3972 = vmatpush.msra.mxu0 %v2516
        %3973 = vmatpush.msra.mxu0 %v2500
        %3974 = vmatmul.f32.gmra.mxu0 %v1470
        %v3975 = vpop.f32.mrf.mxu0
        %v3976 = vadd.f32 %v3956, %v3975
        %3977 = vdwg.mxu0
        %3978 = vmatpush.msra.mxu0 %v2996
        %3979 = vmatpush.msra.mxu0 %v2980
        %3980 = vmatpush.msra.mxu0 %v2964
        %3981 = vmatpush.msra.mxu0 %v2948
        %3982 = vmatpush.msra.mxu0 %v2932
        %3983 = vmatpush.msra.mxu0 %v2916
        %3984 = vmatpush.msra.mxu0 %v2900
        %3985 = vmatpush.msra.mxu0 %v2884
        %3986 = vmatpush.msra.mxu0 %v2868
        %3987 = vmatpush.msra.mxu0 %v2852
        %3988 = vmatpush.msra.mxu0 %v2836
        %3989 = vmatpush.msra.mxu0 %v2820
        %3990 = vmatpush.msra.mxu0 %v2804
        %3991 = vmatpush.msra.mxu0 %v2788
        %3992 = vmatpush.msra.mxu0 %v2772
        %3993 = vmatpush.msra.mxu0 %v2756
        %3994 = vmatmul.f32.gmra.mxu0 %v1471
        %v3995 = vpop.f32.mrf.mxu0
        %v3996 = vadd.f32 %v3976, %v3995
        %3997 = vdwg.mxu0
        %3998 = vmatpush.msra.mxu0 %v3252
        %3999 = vmatpush.msra.mxu0 %v3236
        %4000 = vmatpush.msra.mxu0 %v3220
        %4001 = vmatpush.msra.mxu0 %v3204
        %4002 = vmatpush.msra.mxu0 %v3188
        %4003 = vmatpush.msra.mxu0 %v3172
        %4004 = vmatpush.msra.mxu0 %v3156
        %4005 = vmatpush.msra.mxu0 %v3140
        %4006 = vmatpush.msra.mxu0 %v3124
        %4007 = vmatpush.msra.mxu0 %v3108
        %4008 = vmatpush.msra.mxu0 %v3092
        %4009 = vmatpush.msra.mxu0 %v3076
        %4010 = vmatpush.msra.mxu0 %v3060
        %4011 = vmatpush.msra.mxu0 %v3044
        %4012 = vmatpush.msra.mxu0 %v3028
        %4013 = vmatpush.msra.mxu0 %v3012
        %4014 = vmatmul.f32.gmra.mxu0 %v1472
        %v4015 = vpop.f32.mrf.mxu0
        %v4016 = vadd.f32 %v3996, %v4015
        %4017 = vdwg.mxu0
        %4018 = vmatpush.msra.mxu0 %v3508
        %4019 = vmatpush.msra.mxu0 %v3492
        %4020 = vmatpush.msra.mxu0 %v3476
        %4021 = vmatpush.msra.mxu0 %v3460
        %4022 = vmatpush.msra.mxu0 %v3444
        %4023 = vmatpush.msra.mxu0 %v3428
        %4024 = vmatpush.msra.mxu0 %v3412
        %4025 = vmatpush.msra.mxu0 %v3396
        %4026 = vmatpush.msra.mxu0 %v3380
        %4027 = vmatpush.msra.mxu0 %v3364
        %4028 = vmatpush.msra.mxu0 %v3348
        %4029 = vmatpush.msra.mxu0 %v3332
        %4030 = vmatpush.msra.mxu0 %v3316
        %4031 = vmatpush.msra.mxu0 %v3300
        %4032 = vmatpush.msra.mxu0 %v3284
        %4033 = vmatpush.msra.mxu0 %v3268
        %4034 = vmatmul.f32.gmra.mxu0 %v1473
        %v4035 = vpop.f32.mrf.mxu0
        %v4036 = vadd.f32 %v4016, %v4035
        %4037 = vdwg.mxu0
        %4038 = vmatpush.msra.mxu0 %v1717
        %4039 = vmatpush.msra.mxu0 %v1701
        %4040 = vmatpush.msra.mxu0 %v1685
        %4041 = vmatpush.msra.mxu0 %v1669
        %4042 = vmatpush.msra.mxu0 %v1653
        %4043 = vmatpush.msra.mxu0 %v1637
        %4044 = vmatpush.msra.mxu0 %v1621
        %4045 = vmatpush.msra.mxu0 %v1605
        %4046 = vmatpush.msra.mxu0 %v1589
        %4047 = vmatpush.msra.mxu0 %v1573
        %4048 = vmatpush.msra.mxu0 %v1557
        %4049 = vmatpush.msra.mxu0 %v1541
        %4050 = vmatpush.msra.mxu0 %v1525
        %4051 = vmatpush.msra.mxu0 %v1509
        %4052 = vmatpush.msra.mxu0 %v1493
        %4053 = vmatpush.msra.mxu0 %v1477
        %4054 = vmatmul.f32.gmra.mxu0 %v1466
        %v4055 = vpop.f32.mrf.mxu0
        %v4056 = vadd.f32 %v3529, %v4055
        %4057 = vdwg.mxu0
        %4058 = vmatpush.msra.mxu0 %v1973
        %4059 = vmatpush.msra.mxu0 %v1957
        %4060 = vmatpush.msra.mxu0 %v1941
        %4061 = vmatpush.msra.mxu0 %v1925
        %4062 = vmatpush.msra.mxu0 %v1909
        %4063 = vmatpush.msra.mxu0 %v1893
        %4064 = vmatpush.msra.mxu0 %v1877
        %4065 = vmatpush.msra.mxu0 %v1861
        %4066 = vmatpush.msra.mxu0 %v1845
        %4067 = vmatpush.msra.mxu0 %v1829
        %4068 = vmatpush.msra.mxu0 %v1813
        %4069 = vmatpush.msra.mxu0 %v1797
        %4070 = vmatpush.msra.mxu0 %v1781
        %4071 = vmatpush.msra.mxu0 %v1765
        %4072 = vmatpush.msra.mxu0 %v1749
        %4073 = vmatpush.msra.mxu0 %v1733
        %4074 = vmatmul.f32.gmra.mxu0 %v1467
        %v4075 = vpop.f32.mrf.mxu0
        %v4076 = vadd.f32 %v4056, %v4075
        %4077 = vdwg.mxu0
        %4078 = vmatpush.msra.mxu0 %v2229
        %4079 = vmatpush.msra.mxu0 %v2213
        %4080 = vmatpush.msra.mxu0 %v2197
        %4081 = vmatpush.msra.mxu0 %v2181
        %4082 = vmatpush.msra.mxu0 %v2165
        %4083 = vmatpush.msra.mxu0 %v2149
        %4084 = vmatpush.msra.mxu0 %v2133
        %4085 = vmatpush.msra.mxu0 %v2117
        %4086 = vmatpush.msra.mxu0 %v2101
        %4087 = vmatpush.msra.mxu0 %v2085
        %4088 = vmatpush.msra.mxu0 %v2069
        %4089 = vmatpush.msra.mxu0 %v2053
        %4090 = vmatpush.msra.mxu0 %v2037
        %4091 = vmatpush.msra.mxu0 %v2021
        %4092 = vmatpush.msra.mxu0 %v2005
        %4093 = vmatpush.msra.mxu0 %v1989
        %4094 = vmatmul.f32.gmra.mxu0 %v1468
        %v4095 = vpop.f32.mrf.mxu0
        %v4096 = vadd.f32 %v4076, %v4095
        %4097 = vdwg.mxu0
        %4098 = vmatpush.msra.mxu0 %v2485
        %4099 = vmatpush.msra.mxu0 %v2469
        %4100 = vmatpush.msra.mxu0 %v2453
        %4101 = vmatpush.msra.mxu0 %v2437
        %4102 = vmatpush.msra.mxu0 %v2421
        %4103 = vmatpush.msra.mxu0 %v2405
        %4104 = vmatpush.msra.mxu0 %v2389
        %4105 = vmatpush.msra.mxu0 %v2373
        %4106 = vmatpush.msra.mxu0 %v2357
        %4107 = vmatpush.msra.mxu0 %v2341
        %4108 = vmatpush.msra.mxu0 %v2325
        %4109 = vmatpush.msra.mxu0 %v2309
        %4110 = vmatpush.msra.mxu0 %v2293
        %4111 = vmatpush.msra.mxu0 %v2277
        %4112 = vmatpush.msra.mxu0 %v2261
        %4113 = vmatpush.msra.mxu0 %v2245
        %4114 = vmatmul.f32.gmra.mxu0 %v1469
        %v4115 = vpop.f32.mrf.mxu0
        %v4116 = vadd.f32 %v4096, %v4115
        %4117 = vdwg.mxu0
        %4118 = vmatpush.msra.mxu0 %v2741
        %4119 = vmatpush.msra.mxu0 %v2725
        %4120 = vmatpush.msra.mxu0 %v2709
        %4121 = vmatpush.msra.mxu0 %v2693
        %4122 = vmatpush.msra.mxu0 %v2677
        %4123 = vmatpush.msra.mxu0 %v2661
        %4124 = vmatpush.msra.mxu0 %v2645
        %4125 = vmatpush.msra.mxu0 %v2629
        %4126 = vmatpush.msra.mxu0 %v2613
        %4127 = vmatpush.msra.mxu0 %v2597
        %4128 = vmatpush.msra.mxu0 %v2581
        %4129 = vmatpush.msra.mxu0 %v2565
        %4130 = vmatpush.msra.mxu0 %v2549
        %4131 = vmatpush.msra.mxu0 %v2533
        %4132 = vmatpush.msra.mxu0 %v2517
        %4133 = vmatpush.msra.mxu0 %v2501
        %4134 = vmatmul.f32.gmra.mxu0 %v1470
        %v4135 = vpop.f32.mrf.mxu0
        %v4136 = vadd.f32 %v4116, %v4135
        %4137 = vdwg.mxu0
        %4138 = vmatpush.msra.mxu0 %v2997
        %4139 = vmatpush.msra.mxu0 %v2981
        %4140 = vmatpush.msra.mxu0 %v2965
        %4141 = vmatpush.msra.mxu0 %v2949
        %4142 = vmatpush.msra.mxu0 %v2933
        %4143 = vmatpush.msra.mxu0 %v2917
        %4144 = vmatpush.msra.mxu0 %v2901
        %4145 = vmatpush.msra.mxu0 %v2885
        %4146 = vmatpush.msra.mxu0 %v2869
        %4147 = vmatpush.msra.mxu0 %v2853
        %4148 = vmatpush.msra.mxu0 %v2837
        %4149 = vmatpush.msra.mxu0 %v2821
        %4150 = vmatpush.msra.mxu0 %v2805
        %4151 = vmatpush.msra.mxu0 %v2789
        %4152 = vmatpush.msra.mxu0 %v2773
        %4153 = vmatpush.msra.mxu0 %v2757
        %4154 = vmatmul.f32.gmra.mxu0 %v1471
        %v4155 = vpop.f32.mrf.mxu0
        %v4156 = vadd.f32 %v4136, %v4155
        %4157 = vdwg.mxu0
        %4158 = vmatpush.msra.mxu0 %v3253
        %4159 = vmatpush.msra.mxu0 %v3237
        %4160 = vmatpush.msra.mxu0 %v3221
        %4161 = vmatpush.msra.mxu0 %v3205
        %4162 = vmatpush.msra.mxu0 %v3189
        %4163 = vmatpush.msra.mxu0 %v3173
        %4164 = vmatpush.msra.mxu0 %v3157
        %4165 = vmatpush.msra.mxu0 %v3141
        %4166 = vmatpush.msra.mxu0 %v3125
        %4167 = vmatpush.msra.mxu0 %v3109
        %4168 = vmatpush.msra.mxu0 %v3093
        %4169 = vmatpush.msra.mxu0 %v3077
        %4170 = vmatpush.msra.mxu0 %v3061
        %4171 = vmatpush.msra.mxu0 %v3045
        %4172 = vmatpush.msra.mxu0 %v3029
        %4173 = vmatpush.msra.mxu0 %v3013
        %4174 = vmatmul.f32.gmra.mxu0 %v1472
        %v4175 = vpop.f32.mrf.mxu0
        %v4176 = vadd.f32 %v4156, %v4175
        %4177 = vdwg.mxu0
        %4178 = vmatpush.msra.mxu0 %v3509
        %4179 = vmatpush.msra.mxu0 %v3493
        %4180 = vmatpush.msra.mxu0 %v3477
        %4181 = vmatpush.msra.mxu0 %v3461
        %4182 = vmatpush.msra.mxu0 %v3445
        %4183 = vmatpush.msra.mxu0 %v3429
        %4184 = vmatpush.msra.mxu0 %v3413
        %4185 = vmatpush.msra.mxu0 %v3397
        %4186 = vmatpush.msra.mxu0 %v3381
        %4187 = vmatpush.msra.mxu0 %v3365
        %4188 = vmatpush.msra.mxu0 %v3349
        %4189 = vmatpush.msra.mxu0 %v3333
        %4190 = vmatpush.msra.mxu0 %v3317
        %4191 = vmatpush.msra.mxu0 %v3301
        %4192 = vmatpush.msra.mxu0 %v3285
        %4193 = vmatpush.msra.mxu0 %v3269
        %4194 = vmatmul.f32.gmra.mxu0 %v1473
        %v4195 = vpop.f32.mrf.mxu0
        %v4196 = vadd.f32 %v4176, %v4195
        %4197 = vdwg.mxu0
        %4198 = vmatpush.msra.mxu0 %v1718
        %4199 = vmatpush.msra.mxu0 %v1702
        %4200 = vmatpush.msra.mxu0 %v1686
        %4201 = vmatpush.msra.mxu0 %v1670
        %4202 = vmatpush.msra.mxu0 %v1654
        %4203 = vmatpush.msra.mxu0 %v1638
        %4204 = vmatpush.msra.mxu0 %v1622
        %4205 = vmatpush.msra.mxu0 %v1606
        %4206 = vmatpush.msra.mxu0 %v1590
        %4207 = vmatpush.msra.mxu0 %v1574
        %4208 = vmatpush.msra.mxu0 %v1558
        %4209 = vmatpush.msra.mxu0 %v1542
        %4210 = vmatpush.msra.mxu0 %v1526
        %4211 = vmatpush.msra.mxu0 %v1510
        %4212 = vmatpush.msra.mxu0 %v1494
        %4213 = vmatpush.msra.mxu0 %v1478
        %4214 = vmatmul.f32.gmra.mxu0 %v1466
        %v4215 = vpop.f32.mrf.mxu0
        %v4216 = vadd.f32 %v3530, %v4215
        %4217 = vdwg.mxu0
        %4218 = vmatpush.msra.mxu0 %v1974
        %4219 = vmatpush.msra.mxu0 %v1958
        %4220 = vmatpush.msra.mxu0 %v1942
        %4221 = vmatpush.msra.mxu0 %v1926
        %4222 = vmatpush.msra.mxu0 %v1910
        %4223 = vmatpush.msra.mxu0 %v1894
        %4224 = vmatpush.msra.mxu0 %v1878
        %4225 = vmatpush.msra.mxu0 %v1862
        %4226 = vmatpush.msra.mxu0 %v1846
        %4227 = vmatpush.msra.mxu0 %v1830
        %4228 = vmatpush.msra.mxu0 %v1814
        %4229 = vmatpush.msra.mxu0 %v1798
        %4230 = vmatpush.msra.mxu0 %v1782
        %4231 = vmatpush.msra.mxu0 %v1766
        %4232 = vmatpush.msra.mxu0 %v1750
        %4233 = vmatpush.msra.mxu0 %v1734
        %4234 = vmatmul.f32.gmra.mxu0 %v1467
        %v4235 = vpop.f32.mrf.mxu0
        %v4236 = vadd.f32 %v4216, %v4235
        %4237 = vdwg.mxu0
        %4238 = vmatpush.msra.mxu0 %v2230
        %4239 = vmatpush.msra.mxu0 %v2214
        %4240 = vmatpush.msra.mxu0 %v2198
        %4241 = vmatpush.msra.mxu0 %v2182
        %4242 = vmatpush.msra.mxu0 %v2166
        %4243 = vmatpush.msra.mxu0 %v2150
        %4244 = vmatpush.msra.mxu0 %v2134
        %4245 = vmatpush.msra.mxu0 %v2118
        %4246 = vmatpush.msra.mxu0 %v2102
        %4247 = vmatpush.msra.mxu0 %v2086
        %4248 = vmatpush.msra.mxu0 %v2070
        %4249 = vmatpush.msra.mxu0 %v2054
        %4250 = vmatpush.msra.mxu0 %v2038
        %4251 = vmatpush.msra.mxu0 %v2022
        %4252 = vmatpush.msra.mxu0 %v2006
        %4253 = vmatpush.msra.mxu0 %v1990
        %4254 = vmatmul.f32.gmra.mxu0 %v1468
        %v4255 = vpop.f32.mrf.mxu0
        %v4256 = vadd.f32 %v4236, %v4255
        %4257 = vdwg.mxu0
        %4258 = vmatpush.msra.mxu0 %v2486
        %4259 = vmatpush.msra.mxu0 %v2470
        %4260 = vmatpush.msra.mxu0 %v2454
        %4261 = vmatpush.msra.mxu0 %v2438
        %4262 = vmatpush.msra.mxu0 %v2422
        %4263 = vmatpush.msra.mxu0 %v2406
        %4264 = vmatpush.msra.mxu0 %v2390
        %4265 = vmatpush.msra.mxu0 %v2374
        %4266 = vmatpush.msra.mxu0 %v2358
        %4267 = vmatpush.msra.mxu0 %v2342
        %4268 = vmatpush.msra.mxu0 %v2326
        %4269 = vmatpush.msra.mxu0 %v2310
        %4270 = vmatpush.msra.mxu0 %v2294
        %4271 = vmatpush.msra.mxu0 %v2278
        %4272 = vmatpush.msra.mxu0 %v2262
        %4273 = vmatpush.msra.mxu0 %v2246
        %4274 = vmatmul.f32.gmra.mxu0 %v1469
        %v4275 = vpop.f32.mrf.mxu0
        %v4276 = vadd.f32 %v4256, %v4275
        %4277 = vdwg.mxu0
        %4278 = vmatpush.msra.mxu0 %v2742
        %4279 = vmatpush.msra.mxu0 %v2726
        %4280 = vmatpush.msra.mxu0 %v2710
        %4281 = vmatpush.msra.mxu0 %v2694
        %4282 = vmatpush.msra.mxu0 %v2678
        %4283 = vmatpush.msra.mxu0 %v2662
        %4284 = vmatpush.msra.mxu0 %v2646
        %4285 = vmatpush.msra.mxu0 %v2630
        %4286 = vmatpush.msra.mxu0 %v2614
        %4287 = vmatpush.msra.mxu0 %v2598
        %4288 = vmatpush.msra.mxu0 %v2582
        %4289 = vmatpush.msra.mxu0 %v2566
        %4290 = vmatpush.msra.mxu0 %v2550
        %4291 = vmatpush.msra.mxu0 %v2534
        %4292 = vmatpush.msra.mxu0 %v2518
        %4293 = vmatpush.msra.mxu0 %v2502
        %4294 = vmatmul.f32.gmra.mxu0 %v1470
        %v4295 = vpop.f32.mrf.mxu0
        %v4296 = vadd.f32 %v4276, %v4295
        %4297 = vdwg.mxu0
        %4298 = vmatpush.msra.mxu0 %v2998
        %4299 = vmatpush.msra.mxu0 %v2982
        %4300 = vmatpush.msra.mxu0 %v2966
        %4301 = vmatpush.msra.mxu0 %v2950
        %4302 = vmatpush.msra.mxu0 %v2934
        %4303 = vmatpush.msra.mxu0 %v2918
        %4304 = vmatpush.msra.mxu0 %v2902
        %4305 = vmatpush.msra.mxu0 %v2886
        %4306 = vmatpush.msra.mxu0 %v2870
        %4307 = vmatpush.msra.mxu0 %v2854
        %4308 = vmatpush.msra.mxu0 %v2838
        %4309 = vmatpush.msra.mxu0 %v2822
        %4310 = vmatpush.msra.mxu0 %v2806
        %4311 = vmatpush.msra.mxu0 %v2790
        %4312 = vmatpush.msra.mxu0 %v2774
        %4313 = vmatpush.msra.mxu0 %v2758
        %4314 = vmatmul.f32.gmra.mxu0 %v1471
        %v4315 = vpop.f32.mrf.mxu0
        %v4316 = vadd.f32 %v4296, %v4315
        %4317 = vdwg.mxu0
        %4318 = vmatpush.msra.mxu0 %v3254
        %4319 = vmatpush.msra.mxu0 %v3238
        %4320 = vmatpush.msra.mxu0 %v3222
        %4321 = vmatpush.msra.mxu0 %v3206
        %4322 = vmatpush.msra.mxu0 %v3190
        %4323 = vmatpush.msra.mxu0 %v3174
        %4324 = vmatpush.msra.mxu0 %v3158
        %4325 = vmatpush.msra.mxu0 %v3142
        %4326 = vmatpush.msra.mxu0 %v3126
        %4327 = vmatpush.msra.mxu0 %v3110
        %4328 = vmatpush.msra.mxu0 %v3094
        %4329 = vmatpush.msra.mxu0 %v3078
        %4330 = vmatpush.msra.mxu0 %v3062
        %4331 = vmatpush.msra.mxu0 %v3046
        %4332 = vmatpush.msra.mxu0 %v3030
        %4333 = vmatpush.msra.mxu0 %v3014
        %4334 = vmatmul.f32.gmra.mxu0 %v1472
        %v4335 = vpop.f32.mrf.mxu0
        %v4336 = vadd.f32 %v4316, %v4335
        %4337 = vdwg.mxu0
        %4338 = vmatpush.msra.mxu0 %v3510
        %4339 = vmatpush.msra.mxu0 %v3494
        %4340 = vmatpush.msra.mxu0 %v3478
        %4341 = vmatpush.msra.mxu0 %v3462
        %4342 = vmatpush.msra.mxu0 %v3446
        %4343 = vmatpush.msra.mxu0 %v3430
        %4344 = vmatpush.msra.mxu0 %v3414
        %4345 = vmatpush.msra.mxu0 %v3398
        %4346 = vmatpush.msra.mxu0 %v3382
        %4347 = vmatpush.msra.mxu0 %v3366
        %4348 = vmatpush.msra.mxu0 %v3350
        %4349 = vmatpush.msra.mxu0 %v3334
        %4350 = vmatpush.msra.mxu0 %v3318
        %4351 = vmatpush.msra.mxu0 %v3302
        %4352 = vmatpush.msra.mxu0 %v3286
        %4353 = vmatpush.msra.mxu0 %v3270
        %4354 = vmatmul.f32.gmra.mxu0 %v1473
        %v4355 = vpop.f32.mrf.mxu0
        %v4356 = vadd.f32 %v4336, %v4355
        %4357 = vdwg.mxu0
        %4358 = vmatpush.msra.mxu0 %v1719
        %4359 = vmatpush.msra.mxu0 %v1703
        %4360 = vmatpush.msra.mxu0 %v1687
        %4361 = vmatpush.msra.mxu0 %v1671
        %4362 = vmatpush.msra.mxu0 %v1655
        %4363 = vmatpush.msra.mxu0 %v1639
        %4364 = vmatpush.msra.mxu0 %v1623
        %4365 = vmatpush.msra.mxu0 %v1607
        %4366 = vmatpush.msra.mxu0 %v1591
        %4367 = vmatpush.msra.mxu0 %v1575
        %4368 = vmatpush.msra.mxu0 %v1559
        %4369 = vmatpush.msra.mxu0 %v1543
        %4370 = vmatpush.msra.mxu0 %v1527
        %4371 = vmatpush.msra.mxu0 %v1511
        %4372 = vmatpush.msra.mxu0 %v1495
        %4373 = vmatpush.msra.mxu0 %v1479
        %4374 = vmatmul.f32.gmra.mxu0 %v1466
        %v4375 = vpop.f32.mrf.mxu0
        %v4376 = vadd.f32 %v3531, %v4375
        %4377 = vdwg.mxu0
        %4378 = vmatpush.msra.mxu0 %v1975
        %4379 = vmatpush.msra.mxu0 %v1959
        %4380 = vmatpush.msra.mxu0 %v1943
        %4381 = vmatpush.msra.mxu0 %v1927
        %4382 = vmatpush.msra.mxu0 %v1911
        %4383 = vmatpush.msra.mxu0 %v1895
        %4384 = vmatpush.msra.mxu0 %v1879
        %4385 = vmatpush.msra.mxu0 %v1863
        %4386 = vmatpush.msra.mxu0 %v1847
        %4387 = vmatpush.msra.mxu0 %v1831
        %4388 = vmatpush.msra.mxu0 %v1815
        %4389 = vmatpush.msra.mxu0 %v1799
        %4390 = vmatpush.msra.mxu0 %v1783
        %4391 = vmatpush.msra.mxu0 %v1767
        %4392 = vmatpush.msra.mxu0 %v1751
        %4393 = vmatpush.msra.mxu0 %v1735
        %4394 = vmatmul.f32.gmra.mxu0 %v1467
        %v4395 = vpop.f32.mrf.mxu0
        %v4396 = vadd.f32 %v4376, %v4395
        %4397 = vdwg.mxu0
        %4398 = vmatpush.msra.mxu0 %v2231
        %4399 = vmatpush.msra.mxu0 %v2215
        %4400 = vmatpush.msra.mxu0 %v2199
        %4401 = vmatpush.msra.mxu0 %v2183
        %4402 = vmatpush.msra.mxu0 %v2167
        %4403 = vmatpush.msra.mxu0 %v2151
        %4404 = vmatpush.msra.mxu0 %v2135
        %4405 = vmatpush.msra.mxu0 %v2119
        %4406 = vmatpush.msra.mxu0 %v2103
        %4407 = vmatpush.msra.mxu0 %v2087
        %4408 = vmatpush.msra.mxu0 %v2071
        %4409 = vmatpush.msra.mxu0 %v2055
        %4410 = vmatpush.msra.mxu0 %v2039
        %4411 = vmatpush.msra.mxu0 %v2023
        %4412 = vmatpush.msra.mxu0 %v2007
        %4413 = vmatpush.msra.mxu0 %v1991
        %4414 = vmatmul.f32.gmra.mxu0 %v1468
        %v4415 = vpop.f32.mrf.mxu0
        %v4416 = vadd.f32 %v4396, %v4415
        %4417 = vdwg.mxu0
        %4418 = vmatpush.msra.mxu0 %v2487
        %4419 = vmatpush.msra.mxu0 %v2471
        %4420 = vmatpush.msra.mxu0 %v2455
        %4421 = vmatpush.msra.mxu0 %v2439
        %4422 = vmatpush.msra.mxu0 %v2423
        %4423 = vmatpush.msra.mxu0 %v2407
        %4424 = vmatpush.msra.mxu0 %v2391
        %4425 = vmatpush.msra.mxu0 %v2375
        %4426 = vmatpush.msra.mxu0 %v2359
        %4427 = vmatpush.msra.mxu0 %v2343
        %4428 = vmatpush.msra.mxu0 %v2327
        %4429 = vmatpush.msra.mxu0 %v2311
        %4430 = vmatpush.msra.mxu0 %v2295
        %4431 = vmatpush.msra.mxu0 %v2279
        %4432 = vmatpush.msra.mxu0 %v2263
        %4433 = vmatpush.msra.mxu0 %v2247
        %4434 = vmatmul.f32.gmra.mxu0 %v1469
        %v4435 = vpop.f32.mrf.mxu0
        %v4436 = vadd.f32 %v4416, %v4435
        %4437 = vdwg.mxu0
        %4438 = vmatpush.msra.mxu0 %v2743
        %4439 = vmatpush.msra.mxu0 %v2727
        %4440 = vmatpush.msra.mxu0 %v2711
        %4441 = vmatpush.msra.mxu0 %v2695
        %4442 = vmatpush.msra.mxu0 %v2679
        %4443 = vmatpush.msra.mxu0 %v2663
        %4444 = vmatpush.msra.mxu0 %v2647
        %4445 = vmatpush.msra.mxu0 %v2631
        %4446 = vmatpush.msra.mxu0 %v2615
        %4447 = vmatpush.msra.mxu0 %v2599
        %4448 = vmatpush.msra.mxu0 %v2583
        %4449 = vmatpush.msra.mxu0 %v2567
        %4450 = vmatpush.msra.mxu0 %v2551
        %4451 = vmatpush.msra.mxu0 %v2535
        %4452 = vmatpush.msra.mxu0 %v2519
        %4453 = vmatpush.msra.mxu0 %v2503
        %4454 = vmatmul.f32.gmra.mxu0 %v1470
        %v4455 = vpop.f32.mrf.mxu0
        %v4456 = vadd.f32 %v4436, %v4455
        %4457 = vdwg.mxu0
        %4458 = vmatpush.msra.mxu0 %v2999
        %4459 = vmatpush.msra.mxu0 %v2983
        %4460 = vmatpush.msra.mxu0 %v2967
        %4461 = vmatpush.msra.mxu0 %v2951
        %4462 = vmatpush.msra.mxu0 %v2935
        %4463 = vmatpush.msra.mxu0 %v2919
        %4464 = vmatpush.msra.mxu0 %v2903
        %4465 = vmatpush.msra.mxu0 %v2887
        %4466 = vmatpush.msra.mxu0 %v2871
        %4467 = vmatpush.msra.mxu0 %v2855
        %4468 = vmatpush.msra.mxu0 %v2839
        %4469 = vmatpush.msra.mxu0 %v2823
        %4470 = vmatpush.msra.mxu0 %v2807
        %4471 = vmatpush.msra.mxu0 %v2791
        %4472 = vmatpush.msra.mxu0 %v2775
        %4473 = vmatpush.msra.mxu0 %v2759
        %4474 = vmatmul.f32.gmra.mxu0 %v1471
        %v4475 = vpop.f32.mrf.mxu0
        %v4476 = vadd.f32 %v4456, %v4475
        %4477 = vdwg.mxu0
        %4478 = vmatpush.msra.mxu0 %v3255
        %4479 = vmatpush.msra.mxu0 %v3239
        %4480 = vmatpush.msra.mxu0 %v3223
        %4481 = vmatpush.msra.mxu0 %v3207
        %4482 = vmatpush.msra.mxu0 %v3191
        %4483 = vmatpush.msra.mxu0 %v3175
        %4484 = vmatpush.msra.mxu0 %v3159
        %4485 = vmatpush.msra.mxu0 %v3143
        %4486 = vmatpush.msra.mxu0 %v3127
        %4487 = vmatpush.msra.mxu0 %v3111
        %4488 = vmatpush.msra.mxu0 %v3095
        %4489 = vmatpush.msra.mxu0 %v3079
        %4490 = vmatpush.msra.mxu0 %v3063
        %4491 = vmatpush.msra.mxu0 %v3047
        %4492 = vmatpush.msra.mxu0 %v3031
        %4493 = vmatpush.msra.mxu0 %v3015
        %4494 = vmatmul.f32.gmra.mxu0 %v1472
        %v4495 = vpop.f32.mrf.mxu0
        %v4496 = vadd.f32 %v4476, %v4495
        %4497 = vdwg.mxu0
        %4498 = vmatpush.msra.mxu0 %v3511
        %4499 = vmatpush.msra.mxu0 %v3495
        %4500 = vmatpush.msra.mxu0 %v3479
        %4501 = vmatpush.msra.mxu0 %v3463
        %4502 = vmatpush.msra.mxu0 %v3447
        %4503 = vmatpush.msra.mxu0 %v3431
        %4504 = vmatpush.msra.mxu0 %v3415
        %4505 = vmatpush.msra.mxu0 %v3399
        %4506 = vmatpush.msra.mxu0 %v3383
        %4507 = vmatpush.msra.mxu0 %v3367
        %4508 = vmatpush.msra.mxu0 %v3351
        %4509 = vmatpush.msra.mxu0 %v3335
        %4510 = vmatpush.msra.mxu0 %v3319
        %4511 = vmatpush.msra.mxu0 %v3303
        %4512 = vmatpush.msra.mxu0 %v3287
        %4513 = vmatpush.msra.mxu0 %v3271
        %4514 = vmatmul.f32.gmra.mxu0 %v1473
        %v4515 = vpop.f32.mrf.mxu0
        %v4516 = vadd.f32 %v4496, %v4515
        %4517 = vdwg.mxu0
        %4518 = vmatpush.msra.mxu0 %v1720
        %4519 = vmatpush.msra.mxu0 %v1704
        %4520 = vmatpush.msra.mxu0 %v1688
        %4521 = vmatpush.msra.mxu0 %v1672
        %4522 = vmatpush.msra.mxu0 %v1656
        %4523 = vmatpush.msra.mxu0 %v1640
        %4524 = vmatpush.msra.mxu0 %v1624
        %4525 = vmatpush.msra.mxu0 %v1608
        %4526 = vmatpush.msra.mxu0 %v1592
        %4527 = vmatpush.msra.mxu0 %v1576
        %4528 = vmatpush.msra.mxu0 %v1560
        %4529 = vmatpush.msra.mxu0 %v1544
        %4530 = vmatpush.msra.mxu0 %v1528
        %4531 = vmatpush.msra.mxu0 %v1512
        %4532 = vmatpush.msra.mxu0 %v1496
        %4533 = vmatpush.msra.mxu0 %v1480
        %4534 = vmatmul.f32.gmra.mxu0 %v1466
        %v4535 = vpop.f32.mrf.mxu0
        %v4536 = vadd.f32 %v3532, %v4535
        %4537 = vdwg.mxu0
        %4538 = vmatpush.msra.mxu0 %v1976
        %4539 = vmatpush.msra.mxu0 %v1960
        %4540 = vmatpush.msra.mxu0 %v1944
        %4541 = vmatpush.msra.mxu0 %v1928
        %4542 = vmatpush.msra.mxu0 %v1912
        %4543 = vmatpush.msra.mxu0 %v1896
        %4544 = vmatpush.msra.mxu0 %v1880
        %4545 = vmatpush.msra.mxu0 %v1864
        %4546 = vmatpush.msra.mxu0 %v1848
        %4547 = vmatpush.msra.mxu0 %v1832
        %4548 = vmatpush.msra.mxu0 %v1816
        %4549 = vmatpush.msra.mxu0 %v1800
        %4550 = vmatpush.msra.mxu0 %v1784
        %4551 = vmatpush.msra.mxu0 %v1768
        %4552 = vmatpush.msra.mxu0 %v1752
        %4553 = vmatpush.msra.mxu0 %v1736
        %4554 = vmatmul.f32.gmra.mxu0 %v1467
        %v4555 = vpop.f32.mrf.mxu0
        %v4556 = vadd.f32 %v4536, %v4555
        %4557 = vdwg.mxu0
        %4558 = vmatpush.msra.mxu0 %v2232
        %4559 = vmatpush.msra.mxu0 %v2216
        %4560 = vmatpush.msra.mxu0 %v2200
        %4561 = vmatpush.msra.mxu0 %v2184
        %4562 = vmatpush.msra.mxu0 %v2168
        %4563 = vmatpush.msra.mxu0 %v2152
        %4564 = vmatpush.msra.mxu0 %v2136
        %4565 = vmatpush.msra.mxu0 %v2120
        %4566 = vmatpush.msra.mxu0 %v2104
        %4567 = vmatpush.msra.mxu0 %v2088
        %4568 = vmatpush.msra.mxu0 %v2072
        %4569 = vmatpush.msra.mxu0 %v2056
        %4570 = vmatpush.msra.mxu0 %v2040
        %4571 = vmatpush.msra.mxu0 %v2024
        %4572 = vmatpush.msra.mxu0 %v2008
        %4573 = vmatpush.msra.mxu0 %v1992
        %4574 = vmatmul.f32.gmra.mxu0 %v1468
        %v4575 = vpop.f32.mrf.mxu0
        %v4576 = vadd.f32 %v4556, %v4575
        %4577 = vdwg.mxu0
        %4578 = vmatpush.msra.mxu0 %v2488
        %4579 = vmatpush.msra.mxu0 %v2472
        %4580 = vmatpush.msra.mxu0 %v2456
        %4581 = vmatpush.msra.mxu0 %v2440
        %4582 = vmatpush.msra.mxu0 %v2424
        %4583 = vmatpush.msra.mxu0 %v2408
        %4584 = vmatpush.msra.mxu0 %v2392
        %4585 = vmatpush.msra.mxu0 %v2376
        %4586 = vmatpush.msra.mxu0 %v2360
        %4587 = vmatpush.msra.mxu0 %v2344
        %4588 = vmatpush.msra.mxu0 %v2328
        %4589 = vmatpush.msra.mxu0 %v2312
        %4590 = vmatpush.msra.mxu0 %v2296
        %4591 = vmatpush.msra.mxu0 %v2280
        %4592 = vmatpush.msra.mxu0 %v2264
        %4593 = vmatpush.msra.mxu0 %v2248
        %4594 = vmatmul.f32.gmra.mxu0 %v1469
        %v4595 = vpop.f32.mrf.mxu0
        %v4596 = vadd.f32 %v4576, %v4595
        %4597 = vdwg.mxu0
        %4598 = vmatpush.msra.mxu0 %v2744
        %4599 = vmatpush.msra.mxu0 %v2728
        %4600 = vmatpush.msra.mxu0 %v2712
        %4601 = vmatpush.msra.mxu0 %v2696
        %4602 = vmatpush.msra.mxu0 %v2680
        %4603 = vmatpush.msra.mxu0 %v2664
        %4604 = vmatpush.msra.mxu0 %v2648
        %4605 = vmatpush.msra.mxu0 %v2632
        %4606 = vmatpush.msra.mxu0 %v2616
        %4607 = vmatpush.msra.mxu0 %v2600
        %4608 = vmatpush.msra.mxu0 %v2584
        %4609 = vmatpush.msra.mxu0 %v2568
        %4610 = vmatpush.msra.mxu0 %v2552
        %4611 = vmatpush.msra.mxu0 %v2536
        %4612 = vmatpush.msra.mxu0 %v2520
        %4613 = vmatpush.msra.mxu0 %v2504
        %4614 = vmatmul.f32.gmra.mxu0 %v1470
        %v4615 = vpop.f32.mrf.mxu0
        %v4616 = vadd.f32 %v4596, %v4615
        %4617 = vdwg.mxu0
        %4618 = vmatpush.msra.mxu0 %v3000
        %4619 = vmatpush.msra.mxu0 %v2984
        %4620 = vmatpush.msra.mxu0 %v2968
        %4621 = vmatpush.msra.mxu0 %v2952
        %4622 = vmatpush.msra.mxu0 %v2936
        %4623 = vmatpush.msra.mxu0 %v2920
        %4624 = vmatpush.msra.mxu0 %v2904
        %4625 = vmatpush.msra.mxu0 %v2888
        %4626 = vmatpush.msra.mxu0 %v2872
        %4627 = vmatpush.msra.mxu0 %v2856
        %4628 = vmatpush.msra.mxu0 %v2840
        %4629 = vmatpush.msra.mxu0 %v2824
        %4630 = vmatpush.msra.mxu0 %v2808
        %4631 = vmatpush.msra.mxu0 %v2792
        %4632 = vmatpush.msra.mxu0 %v2776
        %4633 = vmatpush.msra.mxu0 %v2760
        %4634 = vmatmul.f32.gmra.mxu0 %v1471
        %v4635 = vpop.f32.mrf.mxu0
        %v4636 = vadd.f32 %v4616, %v4635
        %4637 = vdwg.mxu0
        %4638 = vmatpush.msra.mxu0 %v3256
        %4639 = vmatpush.msra.mxu0 %v3240
        %4640 = vmatpush.msra.mxu0 %v3224
        %4641 = vmatpush.msra.mxu0 %v3208
        %4642 = vmatpush.msra.mxu0 %v3192
        %4643 = vmatpush.msra.mxu0 %v3176
        %4644 = vmatpush.msra.mxu0 %v3160
        %4645 = vmatpush.msra.mxu0 %v3144
        %4646 = vmatpush.msra.mxu0 %v3128
        %4647 = vmatpush.msra.mxu0 %v3112
        %4648 = vmatpush.msra.mxu0 %v3096
        %4649 = vmatpush.msra.mxu0 %v3080
        %4650 = vmatpush.msra.mxu0 %v3064
        %4651 = vmatpush.msra.mxu0 %v3048
        %4652 = vmatpush.msra.mxu0 %v3032
        %4653 = vmatpush.msra.mxu0 %v3016
        %4654 = vmatmul.f32.gmra.mxu0 %v1472
        %v4655 = vpop.f32.mrf.mxu0
        %v4656 = vadd.f32 %v4636, %v4655
        %4657 = vdwg.mxu0
        %4658 = vmatpush.msra.mxu0 %v3512
        %4659 = vmatpush.msra.mxu0 %v3496
        %4660 = vmatpush.msra.mxu0 %v3480
        %4661 = vmatpush.msra.mxu0 %v3464
        %4662 = vmatpush.msra.mxu0 %v3448
        %4663 = vmatpush.msra.mxu0 %v3432
        %4664 = vmatpush.msra.mxu0 %v3416
        %4665 = vmatpush.msra.mxu0 %v3400
        %4666 = vmatpush.msra.mxu0 %v3384
        %4667 = vmatpush.msra.mxu0 %v3368
        %4668 = vmatpush.msra.mxu0 %v3352
        %4669 = vmatpush.msra.mxu0 %v3336
        %4670 = vmatpush.msra.mxu0 %v3320
        %4671 = vmatpush.msra.mxu0 %v3304
        %4672 = vmatpush.msra.mxu0 %v3288
        %4673 = vmatpush.msra.mxu0 %v3272
        %4674 = vmatmul.f32.gmra.mxu0 %v1473
        %v4675 = vpop.f32.mrf.mxu0
        %v4676 = vadd.f32 %v4656, %v4675
        %4677 = vdwg.mxu0
        %4678 = vmatpush.msra.mxu0 %v1721
        %4679 = vmatpush.msra.mxu0 %v1705
        %4680 = vmatpush.msra.mxu0 %v1689
        %4681 = vmatpush.msra.mxu0 %v1673
        %4682 = vmatpush.msra.mxu0 %v1657
        %4683 = vmatpush.msra.mxu0 %v1641
        %4684 = vmatpush.msra.mxu0 %v1625
        %4685 = vmatpush.msra.mxu0 %v1609
        %4686 = vmatpush.msra.mxu0 %v1593
        %4687 = vmatpush.msra.mxu0 %v1577
        %4688 = vmatpush.msra.mxu0 %v1561
        %4689 = vmatpush.msra.mxu0 %v1545
        %4690 = vmatpush.msra.mxu0 %v1529
        %4691 = vmatpush.msra.mxu0 %v1513
        %4692 = vmatpush.msra.mxu0 %v1497
        %4693 = vmatpush.msra.mxu0 %v1481
        %4694 = vmatmul.f32.gmra.mxu0 %v1466
        %v4695 = vpop.f32.mrf.mxu0
        %v4696 = vadd.f32 %v3533, %v4695
        %4697 = vdwg.mxu0
        %4698 = vmatpush.msra.mxu0 %v1977
        %4699 = vmatpush.msra.mxu0 %v1961
        %4700 = vmatpush.msra.mxu0 %v1945
        %4701 = vmatpush.msra.mxu0 %v1929
        %4702 = vmatpush.msra.mxu0 %v1913
        %4703 = vmatpush.msra.mxu0 %v1897
        %4704 = vmatpush.msra.mxu0 %v1881
        %4705 = vmatpush.msra.mxu0 %v1865
        %4706 = vmatpush.msra.mxu0 %v1849
        %4707 = vmatpush.msra.mxu0 %v1833
        %4708 = vmatpush.msra.mxu0 %v1817
        %4709 = vmatpush.msra.mxu0 %v1801
        %4710 = vmatpush.msra.mxu0 %v1785
        %4711 = vmatpush.msra.mxu0 %v1769
        %4712 = vmatpush.msra.mxu0 %v1753
        %4713 = vmatpush.msra.mxu0 %v1737
        %4714 = vmatmul.f32.gmra.mxu0 %v1467
        %v4715 = vpop.f32.mrf.mxu0
        %v4716 = vadd.f32 %v4696, %v4715
        %4717 = vdwg.mxu0
        %4718 = vmatpush.msra.mxu0 %v2233
        %4719 = vmatpush.msra.mxu0 %v2217
        %4720 = vmatpush.msra.mxu0 %v2201
        %4721 = vmatpush.msra.mxu0 %v2185
        %4722 = vmatpush.msra.mxu0 %v2169
        %4723 = vmatpush.msra.mxu0 %v2153
        %4724 = vmatpush.msra.mxu0 %v2137
        %4725 = vmatpush.msra.mxu0 %v2121
        %4726 = vmatpush.msra.mxu0 %v2105
        %4727 = vmatpush.msra.mxu0 %v2089
        %4728 = vmatpush.msra.mxu0 %v2073
        %4729 = vmatpush.msra.mxu0 %v2057
        %4730 = vmatpush.msra.mxu0 %v2041
        %4731 = vmatpush.msra.mxu0 %v2025
        %4732 = vmatpush.msra.mxu0 %v2009
        %4733 = vmatpush.msra.mxu0 %v1993
        %4734 = vmatmul.f32.gmra.mxu0 %v1468
        %v4735 = vpop.f32.mrf.mxu0
        %v4736 = vadd.f32 %v4716, %v4735
        %4737 = vdwg.mxu0
        %4738 = vmatpush.msra.mxu0 %v2489
        %4739 = vmatpush.msra.mxu0 %v2473
        %4740 = vmatpush.msra.mxu0 %v2457
        %4741 = vmatpush.msra.mxu0 %v2441
        %4742 = vmatpush.msra.mxu0 %v2425
        %4743 = vmatpush.msra.mxu0 %v2409
        %4744 = vmatpush.msra.mxu0 %v2393
        %4745 = vmatpush.msra.mxu0 %v2377
        %4746 = vmatpush.msra.mxu0 %v2361
        %4747 = vmatpush.msra.mxu0 %v2345
        %4748 = vmatpush.msra.mxu0 %v2329
        %4749 = vmatpush.msra.mxu0 %v2313
        %4750 = vmatpush.msra.mxu0 %v2297
        %4751 = vmatpush.msra.mxu0 %v2281
        %4752 = vmatpush.msra.mxu0 %v2265
        %4753 = vmatpush.msra.mxu0 %v2249
        %4754 = vmatmul.f32.gmra.mxu0 %v1469
        %v4755 = vpop.f32.mrf.mxu0
        %v4756 = vadd.f32 %v4736, %v4755
        %4757 = vdwg.mxu0
        %4758 = vmatpush.msra.mxu0 %v2745
        %4759 = vmatpush.msra.mxu0 %v2729
        %4760 = vmatpush.msra.mxu0 %v2713
        %4761 = vmatpush.msra.mxu0 %v2697
        %4762 = vmatpush.msra.mxu0 %v2681
        %4763 = vmatpush.msra.mxu0 %v2665
        %4764 = vmatpush.msra.mxu0 %v2649
        %4765 = vmatpush.msra.mxu0 %v2633
        %4766 = vmatpush.msra.mxu0 %v2617
        %4767 = vmatpush.msra.mxu0 %v2601
        %4768 = vmatpush.msra.mxu0 %v2585
        %4769 = vmatpush.msra.mxu0 %v2569
        %4770 = vmatpush.msra.mxu0 %v2553
        %4771 = vmatpush.msra.mxu0 %v2537
        %4772 = vmatpush.msra.mxu0 %v2521
        %4773 = vmatpush.msra.mxu0 %v2505
        %4774 = vmatmul.f32.gmra.mxu0 %v1470
        %v4775 = vpop.f32.mrf.mxu0
        %v4776 = vadd.f32 %v4756, %v4775
        %4777 = vdwg.mxu0
        %4778 = vmatpush.msra.mxu0 %v3001
        %4779 = vmatpush.msra.mxu0 %v2985
        %4780 = vmatpush.msra.mxu0 %v2969
        %4781 = vmatpush.msra.mxu0 %v2953
        %4782 = vmatpush.msra.mxu0 %v2937
        %4783 = vmatpush.msra.mxu0 %v2921
        %4784 = vmatpush.msra.mxu0 %v2905
        %4785 = vmatpush.msra.mxu0 %v2889
        %4786 = vmatpush.msra.mxu0 %v2873
        %4787 = vmatpush.msra.mxu0 %v2857
        %4788 = vmatpush.msra.mxu0 %v2841
        %4789 = vmatpush.msra.mxu0 %v2825
        %4790 = vmatpush.msra.mxu0 %v2809
        %4791 = vmatpush.msra.mxu0 %v2793
        %4792 = vmatpush.msra.mxu0 %v2777
        %4793 = vmatpush.msra.mxu0 %v2761
        %4794 = vmatmul.f32.gmra.mxu0 %v1471
        %v4795 = vpop.f32.mrf.mxu0
        %v4796 = vadd.f32 %v4776, %v4795
        %4797 = vdwg.mxu0
        %4798 = vmatpush.msra.mxu0 %v3257
        %4799 = vmatpush.msra.mxu0 %v3241
        %4800 = vmatpush.msra.mxu0 %v3225
        %4801 = vmatpush.msra.mxu0 %v3209
        %4802 = vmatpush.msra.mxu0 %v3193
        %4803 = vmatpush.msra.mxu0 %v3177
        %4804 = vmatpush.msra.mxu0 %v3161
        %4805 = vmatpush.msra.mxu0 %v3145
        %4806 = vmatpush.msra.mxu0 %v3129
        %4807 = vmatpush.msra.mxu0 %v3113
        %4808 = vmatpush.msra.mxu0 %v3097
        %4809 = vmatpush.msra.mxu0 %v3081
        %4810 = vmatpush.msra.mxu0 %v3065
        %4811 = vmatpush.msra.mxu0 %v3049
        %4812 = vmatpush.msra.mxu0 %v3033
        %4813 = vmatpush.msra.mxu0 %v3017
        %4814 = vmatmul.f32.gmra.mxu0 %v1472
        %v4815 = vpop.f32.mrf.mxu0
        %v4816 = vadd.f32 %v4796, %v4815
        %4817 = vdwg.mxu0
        %4818 = vmatpush.msra.mxu0 %v3513
        %4819 = vmatpush.msra.mxu0 %v3497
        %4820 = vmatpush.msra.mxu0 %v3481
        %4821 = vmatpush.msra.mxu0 %v3465
        %4822 = vmatpush.msra.mxu0 %v3449
        %4823 = vmatpush.msra.mxu0 %v3433
        %4824 = vmatpush.msra.mxu0 %v3417
        %4825 = vmatpush.msra.mxu0 %v3401
        %4826 = vmatpush.msra.mxu0 %v3385
        %4827 = vmatpush.msra.mxu0 %v3369
        %4828 = vmatpush.msra.mxu0 %v3353
        %4829 = vmatpush.msra.mxu0 %v3337
        %4830 = vmatpush.msra.mxu0 %v3321
        %4831 = vmatpush.msra.mxu0 %v3305
        %4832 = vmatpush.msra.mxu0 %v3289
        %4833 = vmatpush.msra.mxu0 %v3273
        %4834 = vmatmul.f32.gmra.mxu0 %v1473
        %v4835 = vpop.f32.mrf.mxu0
        %v4836 = vadd.f32 %v4816, %v4835
        %4837 = vdwg.mxu0
        %4838 = vmatpush.msra.mxu0 %v1722
        %4839 = vmatpush.msra.mxu0 %v1706
        %4840 = vmatpush.msra.mxu0 %v1690
        %4841 = vmatpush.msra.mxu0 %v1674
        %4842 = vmatpush.msra.mxu0 %v1658
        %4843 = vmatpush.msra.mxu0 %v1642
        %4844 = vmatpush.msra.mxu0 %v1626
        %4845 = vmatpush.msra.mxu0 %v1610
        %4846 = vmatpush.msra.mxu0 %v1594
        %4847 = vmatpush.msra.mxu0 %v1578
        %4848 = vmatpush.msra.mxu0 %v1562
        %4849 = vmatpush.msra.mxu0 %v1546
        %4850 = vmatpush.msra.mxu0 %v1530
        %4851 = vmatpush.msra.mxu0 %v1514
        %4852 = vmatpush.msra.mxu0 %v1498
        %4853 = vmatpush.msra.mxu0 %v1482
        %4854 = vmatmul.f32.gmra.mxu0 %v1466
        %v4855 = vpop.f32.mrf.mxu0
        %v4856 = vadd.f32 %v3534, %v4855
        %4857 = vdwg.mxu0
        %4858 = vmatpush.msra.mxu0 %v1978
        %4859 = vmatpush.msra.mxu0 %v1962
        %4860 = vmatpush.msra.mxu0 %v1946
        %4861 = vmatpush.msra.mxu0 %v1930
        %4862 = vmatpush.msra.mxu0 %v1914
        %4863 = vmatpush.msra.mxu0 %v1898
        %4864 = vmatpush.msra.mxu0 %v1882
        %4865 = vmatpush.msra.mxu0 %v1866
        %4866 = vmatpush.msra.mxu0 %v1850
        %4867 = vmatpush.msra.mxu0 %v1834
        %4868 = vmatpush.msra.mxu0 %v1818
        %4869 = vmatpush.msra.mxu0 %v1802
        %4870 = vmatpush.msra.mxu0 %v1786
        %4871 = vmatpush.msra.mxu0 %v1770
        %4872 = vmatpush.msra.mxu0 %v1754
        %4873 = vmatpush.msra.mxu0 %v1738
        %4874 = vmatmul.f32.gmra.mxu0 %v1467
        %v4875 = vpop.f32.mrf.mxu0
        %v4876 = vadd.f32 %v4856, %v4875
        %4877 = vdwg.mxu0
        %4878 = vmatpush.msra.mxu0 %v2234
        %4879 = vmatpush.msra.mxu0 %v2218
        %4880 = vmatpush.msra.mxu0 %v2202
        %4881 = vmatpush.msra.mxu0 %v2186
        %4882 = vmatpush.msra.mxu0 %v2170
        %4883 = vmatpush.msra.mxu0 %v2154
        %4884 = vmatpush.msra.mxu0 %v2138
        %4885 = vmatpush.msra.mxu0 %v2122
        %4886 = vmatpush.msra.mxu0 %v2106
        %4887 = vmatpush.msra.mxu0 %v2090
        %4888 = vmatpush.msra.mxu0 %v2074
        %4889 = vmatpush.msra.mxu0 %v2058
        %4890 = vmatpush.msra.mxu0 %v2042
        %4891 = vmatpush.msra.mxu0 %v2026
        %4892 = vmatpush.msra.mxu0 %v2010
        %4893 = vmatpush.msra.mxu0 %v1994
        %4894 = vmatmul.f32.gmra.mxu0 %v1468
        %v4895 = vpop.f32.mrf.mxu0
        %v4896 = vadd.f32 %v4876, %v4895
        %4897 = vdwg.mxu0
        %4898 = vmatpush.msra.mxu0 %v2490
        %4899 = vmatpush.msra.mxu0 %v2474
        %4900 = vmatpush.msra.mxu0 %v2458
        %4901 = vmatpush.msra.mxu0 %v2442
        %4902 = vmatpush.msra.mxu0 %v2426
        %4903 = vmatpush.msra.mxu0 %v2410
        %4904 = vmatpush.msra.mxu0 %v2394
        %4905 = vmatpush.msra.mxu0 %v2378
        %4906 = vmatpush.msra.mxu0 %v2362
        %4907 = vmatpush.msra.mxu0 %v2346
        %4908 = vmatpush.msra.mxu0 %v2330
        %4909 = vmatpush.msra.mxu0 %v2314
        %4910 = vmatpush.msra.mxu0 %v2298
        %4911 = vmatpush.msra.mxu0 %v2282
        %4912 = vmatpush.msra.mxu0 %v2266
        %4913 = vmatpush.msra.mxu0 %v2250
        %4914 = vmatmul.f32.gmra.mxu0 %v1469
        %v4915 = vpop.f32.mrf.mxu0
        %v4916 = vadd.f32 %v4896, %v4915
        %4917 = vdwg.mxu0
        %4918 = vmatpush.msra.mxu0 %v2746
        %4919 = vmatpush.msra.mxu0 %v2730
        %4920 = vmatpush.msra.mxu0 %v2714
        %4921 = vmatpush.msra.mxu0 %v2698
        %4922 = vmatpush.msra.mxu0 %v2682
        %4923 = vmatpush.msra.mxu0 %v2666
        %4924 = vmatpush.msra.mxu0 %v2650
        %4925 = vmatpush.msra.mxu0 %v2634
        %4926 = vmatpush.msra.mxu0 %v2618
        %4927 = vmatpush.msra.mxu0 %v2602
        %4928 = vmatpush.msra.mxu0 %v2586
        %4929 = vmatpush.msra.mxu0 %v2570
        %4930 = vmatpush.msra.mxu0 %v2554
        %4931 = vmatpush.msra.mxu0 %v2538
        %4932 = vmatpush.msra.mxu0 %v2522
        %4933 = vmatpush.msra.mxu0 %v2506
        %4934 = vmatmul.f32.gmra.mxu0 %v1470
        %v4935 = vpop.f32.mrf.mxu0
        %v4936 = vadd.f32 %v4916, %v4935
        %4937 = vdwg.mxu0
        %4938 = vmatpush.msra.mxu0 %v3002
        %4939 = vmatpush.msra.mxu0 %v2986
        %4940 = vmatpush.msra.mxu0 %v2970
        %4941 = vmatpush.msra.mxu0 %v2954
        %4942 = vmatpush.msra.mxu0 %v2938
        %4943 = vmatpush.msra.mxu0 %v2922
        %4944 = vmatpush.msra.mxu0 %v2906
        %4945 = vmatpush.msra.mxu0 %v2890
        %4946 = vmatpush.msra.mxu0 %v2874
        %4947 = vmatpush.msra.mxu0 %v2858
        %4948 = vmatpush.msra.mxu0 %v2842
        %4949 = vmatpush.msra.mxu0 %v2826
        %4950 = vmatpush.msra.mxu0 %v2810
        %4951 = vmatpush.msra.mxu0 %v2794
        %4952 = vmatpush.msra.mxu0 %v2778
        %4953 = vmatpush.msra.mxu0 %v2762
        %4954 = vmatmul.f32.gmra.mxu0 %v1471
        %v4955 = vpop.f32.mrf.mxu0
        %v4956 = vadd.f32 %v4936, %v4955
        %4957 = vdwg.mxu0
        %4958 = vmatpush.msra.mxu0 %v3258
        %4959 = vmatpush.msra.mxu0 %v3242
        %4960 = vmatpush.msra.mxu0 %v3226
        %4961 = vmatpush.msra.mxu0 %v3210
        %4962 = vmatpush.msra.mxu0 %v3194
        %4963 = vmatpush.msra.mxu0 %v3178
        %4964 = vmatpush.msra.mxu0 %v3162
        %4965 = vmatpush.msra.mxu0 %v3146
        %4966 = vmatpush.msra.mxu0 %v3130
        %4967 = vmatpush.msra.mxu0 %v3114
        %4968 = vmatpush.msra.mxu0 %v3098
        %4969 = vmatpush.msra.mxu0 %v3082
        %4970 = vmatpush.msra.mxu0 %v3066
        %4971 = vmatpush.msra.mxu0 %v3050
        %4972 = vmatpush.msra.mxu0 %v3034
        %4973 = vmatpush.msra.mxu0 %v3018
        %4974 = vmatmul.f32.gmra.mxu0 %v1472
        %v4975 = vpop.f32.mrf.mxu0
        %v4976 = vadd.f32 %v4956, %v4975
        %4977 = vdwg.mxu0
        %4978 = vmatpush.msra.mxu0 %v3514
        %4979 = vmatpush.msra.mxu0 %v3498
        %4980 = vmatpush.msra.mxu0 %v3482
        %4981 = vmatpush.msra.mxu0 %v3466
        %4982 = vmatpush.msra.mxu0 %v3450
        %4983 = vmatpush.msra.mxu0 %v3434
        %4984 = vmatpush.msra.mxu0 %v3418
        %4985 = vmatpush.msra.mxu0 %v3402
        %4986 = vmatpush.msra.mxu0 %v3386
        %4987 = vmatpush.msra.mxu0 %v3370
        %4988 = vmatpush.msra.mxu0 %v3354
        %4989 = vmatpush.msra.mxu0 %v3338
        %4990 = vmatpush.msra.mxu0 %v3322
        %4991 = vmatpush.msra.mxu0 %v3306
        %4992 = vmatpush.msra.mxu0 %v3290
        %4993 = vmatpush.msra.mxu0 %v3274
        %4994 = vmatmul.f32.gmra.mxu0 %v1473
        %v4995 = vpop.f32.mrf.mxu0
        %v4996 = vadd.f32 %v4976, %v4995
        %4997 = vdwg.mxu0
        %4998 = vmatpush.msra.mxu0 %v1723
        %4999 = vmatpush.msra.mxu0 %v1707
        %5000 = vmatpush.msra.mxu0 %v1691
        %5001 = vmatpush.msra.mxu0 %v1675
        %5002 = vmatpush.msra.mxu0 %v1659
        %5003 = vmatpush.msra.mxu0 %v1643
        %5004 = vmatpush.msra.mxu0 %v1627
        %5005 = vmatpush.msra.mxu0 %v1611
        %5006 = vmatpush.msra.mxu0 %v1595
        %5007 = vmatpush.msra.mxu0 %v1579
        %5008 = vmatpush.msra.mxu0 %v1563
        %5009 = vmatpush.msra.mxu0 %v1547
        %5010 = vmatpush.msra.mxu0 %v1531
        %5011 = vmatpush.msra.mxu0 %v1515
        %5012 = vmatpush.msra.mxu0 %v1499
        %5013 = vmatpush.msra.mxu0 %v1483
        %5014 = vmatmul.f32.gmra.mxu0 %v1466
        %v5015 = vpop.f32.mrf.mxu0
        %v5016 = vadd.f32 %v3535, %v5015
        %5017 = vdwg.mxu0
        %5018 = vmatpush.msra.mxu0 %v1979
        %5019 = vmatpush.msra.mxu0 %v1963
        %5020 = vmatpush.msra.mxu0 %v1947
        %5021 = vmatpush.msra.mxu0 %v1931
        %5022 = vmatpush.msra.mxu0 %v1915
        %5023 = vmatpush.msra.mxu0 %v1899
        %5024 = vmatpush.msra.mxu0 %v1883
        %5025 = vmatpush.msra.mxu0 %v1867
        %5026 = vmatpush.msra.mxu0 %v1851
        %5027 = vmatpush.msra.mxu0 %v1835
        %5028 = vmatpush.msra.mxu0 %v1819
        %5029 = vmatpush.msra.mxu0 %v1803
        %5030 = vmatpush.msra.mxu0 %v1787
        %5031 = vmatpush.msra.mxu0 %v1771
        %5032 = vmatpush.msra.mxu0 %v1755
        %5033 = vmatpush.msra.mxu0 %v1739
        %5034 = vmatmul.f32.gmra.mxu0 %v1467
        %v5035 = vpop.f32.mrf.mxu0
        %v5036 = vadd.f32 %v5016, %v5035
        %5037 = vdwg.mxu0
        %5038 = vmatpush.msra.mxu0 %v2235
        %5039 = vmatpush.msra.mxu0 %v2219
        %5040 = vmatpush.msra.mxu0 %v2203
        %5041 = vmatpush.msra.mxu0 %v2187
        %5042 = vmatpush.msra.mxu0 %v2171
        %5043 = vmatpush.msra.mxu0 %v2155
        %5044 = vmatpush.msra.mxu0 %v2139
        %5045 = vmatpush.msra.mxu0 %v2123
        %5046 = vmatpush.msra.mxu0 %v2107
        %5047 = vmatpush.msra.mxu0 %v2091
        %5048 = vmatpush.msra.mxu0 %v2075
        %5049 = vmatpush.msra.mxu0 %v2059
        %5050 = vmatpush.msra.mxu0 %v2043
        %5051 = vmatpush.msra.mxu0 %v2027
        %5052 = vmatpush.msra.mxu0 %v2011
        %5053 = vmatpush.msra.mxu0 %v1995
        %5054 = vmatmul.f32.gmra.mxu0 %v1468
        %v5055 = vpop.f32.mrf.mxu0
        %v5056 = vadd.f32 %v5036, %v5055
        %5057 = vdwg.mxu0
        %5058 = vmatpush.msra.mxu0 %v2491
        %5059 = vmatpush.msra.mxu0 %v2475
        %5060 = vmatpush.msra.mxu0 %v2459
        %5061 = vmatpush.msra.mxu0 %v2443
        %5062 = vmatpush.msra.mxu0 %v2427
        %5063 = vmatpush.msra.mxu0 %v2411
        %5064 = vmatpush.msra.mxu0 %v2395
        %5065 = vmatpush.msra.mxu0 %v2379
        %5066 = vmatpush.msra.mxu0 %v2363
        %5067 = vmatpush.msra.mxu0 %v2347
        %5068 = vmatpush.msra.mxu0 %v2331
        %5069 = vmatpush.msra.mxu0 %v2315
        %5070 = vmatpush.msra.mxu0 %v2299
        %5071 = vmatpush.msra.mxu0 %v2283
        %5072 = vmatpush.msra.mxu0 %v2267
        %5073 = vmatpush.msra.mxu0 %v2251
        %5074 = vmatmul.f32.gmra.mxu0 %v1469
        %v5075 = vpop.f32.mrf.mxu0
        %v5076 = vadd.f32 %v5056, %v5075
        %5077 = vdwg.mxu0
        %5078 = vmatpush.msra.mxu0 %v2747
        %5079 = vmatpush.msra.mxu0 %v2731
        %5080 = vmatpush.msra.mxu0 %v2715
        %5081 = vmatpush.msra.mxu0 %v2699
        %5082 = vmatpush.msra.mxu0 %v2683
        %5083 = vmatpush.msra.mxu0 %v2667
        %5084 = vmatpush.msra.mxu0 %v2651
        %5085 = vmatpush.msra.mxu0 %v2635
        %5086 = vmatpush.msra.mxu0 %v2619
        %5087 = vmatpush.msra.mxu0 %v2603
        %5088 = vmatpush.msra.mxu0 %v2587
        %5089 = vmatpush.msra.mxu0 %v2571
        %5090 = vmatpush.msra.mxu0 %v2555
        %5091 = vmatpush.msra.mxu0 %v2539
        %5092 = vmatpush.msra.mxu0 %v2523
        %5093 = vmatpush.msra.mxu0 %v2507
        %5094 = vmatmul.f32.gmra.mxu0 %v1470
        %v5095 = vpop.f32.mrf.mxu0
        %v5096 = vadd.f32 %v5076, %v5095
        %5097 = vdwg.mxu0
        %5098 = vmatpush.msra.mxu0 %v3003
        %5099 = vmatpush.msra.mxu0 %v2987
        %5100 = vmatpush.msra.mxu0 %v2971
        %5101 = vmatpush.msra.mxu0 %v2955
        %5102 = vmatpush.msra.mxu0 %v2939
        %5103 = vmatpush.msra.mxu0 %v2923
        %5104 = vmatpush.msra.mxu0 %v2907
        %5105 = vmatpush.msra.mxu0 %v2891
        %5106 = vmatpush.msra.mxu0 %v2875
        %5107 = vmatpush.msra.mxu0 %v2859
        %5108 = vmatpush.msra.mxu0 %v2843
        %5109 = vmatpush.msra.mxu0 %v2827
        %5110 = vmatpush.msra.mxu0 %v2811
        %5111 = vmatpush.msra.mxu0 %v2795
        %5112 = vmatpush.msra.mxu0 %v2779
        %5113 = vmatpush.msra.mxu0 %v2763
        %5114 = vmatmul.f32.gmra.mxu0 %v1471
        %v5115 = vpop.f32.mrf.mxu0
        %v5116 = vadd.f32 %v5096, %v5115
        %5117 = vdwg.mxu0
        %5118 = vmatpush.msra.mxu0 %v3259
        %5119 = vmatpush.msra.mxu0 %v3243
        %5120 = vmatpush.msra.mxu0 %v3227
        %5121 = vmatpush.msra.mxu0 %v3211
        %5122 = vmatpush.msra.mxu0 %v3195
        %5123 = vmatpush.msra.mxu0 %v3179
        %5124 = vmatpush.msra.mxu0 %v3163
        %5125 = vmatpush.msra.mxu0 %v3147
        %5126 = vmatpush.msra.mxu0 %v3131
        %5127 = vmatpush.msra.mxu0 %v3115
        %5128 = vmatpush.msra.mxu0 %v3099
        %5129 = vmatpush.msra.mxu0 %v3083
        %5130 = vmatpush.msra.mxu0 %v3067
        %5131 = vmatpush.msra.mxu0 %v3051
        %5132 = vmatpush.msra.mxu0 %v3035
        %5133 = vmatpush.msra.mxu0 %v3019
        %5134 = vmatmul.f32.gmra.mxu0 %v1472
        %v5135 = vpop.f32.mrf.mxu0
        %v5136 = vadd.f32 %v5116, %v5135
        %5137 = vdwg.mxu0
        %5138 = vmatpush.msra.mxu0 %v3515
        %5139 = vmatpush.msra.mxu0 %v3499
        %5140 = vmatpush.msra.mxu0 %v3483
        %5141 = vmatpush.msra.mxu0 %v3467
        %5142 = vmatpush.msra.mxu0 %v3451
        %5143 = vmatpush.msra.mxu0 %v3435
        %5144 = vmatpush.msra.mxu0 %v3419
        %5145 = vmatpush.msra.mxu0 %v3403
        %5146 = vmatpush.msra.mxu0 %v3387
        %5147 = vmatpush.msra.mxu0 %v3371
        %5148 = vmatpush.msra.mxu0 %v3355
        %5149 = vmatpush.msra.mxu0 %v3339
        %5150 = vmatpush.msra.mxu0 %v3323
        %5151 = vmatpush.msra.mxu0 %v3307
        %5152 = vmatpush.msra.mxu0 %v3291
        %5153 = vmatpush.msra.mxu0 %v3275
        %5154 = vmatmul.f32.gmra.mxu0 %v1473
        %v5155 = vpop.f32.mrf.mxu0
        %v5156 = vadd.f32 %v5136, %v5155
        %5157 = vdwg.mxu0
        %5158 = vmatpush.msra.mxu0 %v1724
        %5159 = vmatpush.msra.mxu0 %v1708
        %5160 = vmatpush.msra.mxu0 %v1692
        %5161 = vmatpush.msra.mxu0 %v1676
        %5162 = vmatpush.msra.mxu0 %v1660
        %5163 = vmatpush.msra.mxu0 %v1644
        %5164 = vmatpush.msra.mxu0 %v1628
        %5165 = vmatpush.msra.mxu0 %v1612
        %5166 = vmatpush.msra.mxu0 %v1596
        %5167 = vmatpush.msra.mxu0 %v1580
        %5168 = vmatpush.msra.mxu0 %v1564
        %5169 = vmatpush.msra.mxu0 %v1548
        %5170 = vmatpush.msra.mxu0 %v1532
        %5171 = vmatpush.msra.mxu0 %v1516
        %5172 = vmatpush.msra.mxu0 %v1500
        %5173 = vmatpush.msra.mxu0 %v1484
        %5174 = vmatmul.f32.gmra.mxu0 %v1466
        %v5175 = vpop.f32.mrf.mxu0
        %v5176 = vadd.f32 %v3536, %v5175
        %5177 = vdwg.mxu0
        %5178 = vmatpush.msra.mxu0 %v1980
        %5179 = vmatpush.msra.mxu0 %v1964
        %5180 = vmatpush.msra.mxu0 %v1948
        %5181 = vmatpush.msra.mxu0 %v1932
        %5182 = vmatpush.msra.mxu0 %v1916
        %5183 = vmatpush.msra.mxu0 %v1900
        %5184 = vmatpush.msra.mxu0 %v1884
        %5185 = vmatpush.msra.mxu0 %v1868
        %5186 = vmatpush.msra.mxu0 %v1852
        %5187 = vmatpush.msra.mxu0 %v1836
        %5188 = vmatpush.msra.mxu0 %v1820
        %5189 = vmatpush.msra.mxu0 %v1804
        %5190 = vmatpush.msra.mxu0 %v1788
        %5191 = vmatpush.msra.mxu0 %v1772
        %5192 = vmatpush.msra.mxu0 %v1756
        %5193 = vmatpush.msra.mxu0 %v1740
        %5194 = vmatmul.f32.gmra.mxu0 %v1467
        %v5195 = vpop.f32.mrf.mxu0
        %v5196 = vadd.f32 %v5176, %v5195
        %5197 = vdwg.mxu0
        %5198 = vmatpush.msra.mxu0 %v2236
        %5199 = vmatpush.msra.mxu0 %v2220
        %5200 = vmatpush.msra.mxu0 %v2204
        %5201 = vmatpush.msra.mxu0 %v2188
        %5202 = vmatpush.msra.mxu0 %v2172
        %5203 = vmatpush.msra.mxu0 %v2156
        %5204 = vmatpush.msra.mxu0 %v2140
        %5205 = vmatpush.msra.mxu0 %v2124
        %5206 = vmatpush.msra.mxu0 %v2108
        %5207 = vmatpush.msra.mxu0 %v2092
        %5208 = vmatpush.msra.mxu0 %v2076
        %5209 = vmatpush.msra.mxu0 %v2060
        %5210 = vmatpush.msra.mxu0 %v2044
        %5211 = vmatpush.msra.mxu0 %v2028
        %5212 = vmatpush.msra.mxu0 %v2012
        %5213 = vmatpush.msra.mxu0 %v1996
        %5214 = vmatmul.f32.gmra.mxu0 %v1468
        %v5215 = vpop.f32.mrf.mxu0
        %v5216 = vadd.f32 %v5196, %v5215
        %5217 = vdwg.mxu0
        %5218 = vmatpush.msra.mxu0 %v2492
        %5219 = vmatpush.msra.mxu0 %v2476
        %5220 = vmatpush.msra.mxu0 %v2460
        %5221 = vmatpush.msra.mxu0 %v2444
        %5222 = vmatpush.msra.mxu0 %v2428
        %5223 = vmatpush.msra.mxu0 %v2412
        %5224 = vmatpush.msra.mxu0 %v2396
        %5225 = vmatpush.msra.mxu0 %v2380
        %5226 = vmatpush.msra.mxu0 %v2364
        %5227 = vmatpush.msra.mxu0 %v2348
        %5228 = vmatpush.msra.mxu0 %v2332
        %5229 = vmatpush.msra.mxu0 %v2316
        %5230 = vmatpush.msra.mxu0 %v2300
        %5231 = vmatpush.msra.mxu0 %v2284
        %5232 = vmatpush.msra.mxu0 %v2268
        %5233 = vmatpush.msra.mxu0 %v2252
        %5234 = vmatmul.f32.gmra.mxu0 %v1469
        %v5235 = vpop.f32.mrf.mxu0
        %v5236 = vadd.f32 %v5216, %v5235
        %5237 = vdwg.mxu0
        %5238 = vmatpush.msra.mxu0 %v2748
        %5239 = vmatpush.msra.mxu0 %v2732
        %5240 = vmatpush.msra.mxu0 %v2716
        %5241 = vmatpush.msra.mxu0 %v2700
        %5242 = vmatpush.msra.mxu0 %v2684
        %5243 = vmatpush.msra.mxu0 %v2668
        %5244 = vmatpush.msra.mxu0 %v2652
        %5245 = vmatpush.msra.mxu0 %v2636
        %5246 = vmatpush.msra.mxu0 %v2620
        %5247 = vmatpush.msra.mxu0 %v2604
        %5248 = vmatpush.msra.mxu0 %v2588
        %5249 = vmatpush.msra.mxu0 %v2572
        %5250 = vmatpush.msra.mxu0 %v2556
        %5251 = vmatpush.msra.mxu0 %v2540
        %5252 = vmatpush.msra.mxu0 %v2524
        %5253 = vmatpush.msra.mxu0 %v2508
        %5254 = vmatmul.f32.gmra.mxu0 %v1470
        %v5255 = vpop.f32.mrf.mxu0
        %v5256 = vadd.f32 %v5236, %v5255
        %5257 = vdwg.mxu0
        %5258 = vmatpush.msra.mxu0 %v3004
        %5259 = vmatpush.msra.mxu0 %v2988
        %5260 = vmatpush.msra.mxu0 %v2972
        %5261 = vmatpush.msra.mxu0 %v2956
        %5262 = vmatpush.msra.mxu0 %v2940
        %5263 = vmatpush.msra.mxu0 %v2924
        %5264 = vmatpush.msra.mxu0 %v2908
        %5265 = vmatpush.msra.mxu0 %v2892
        %5266 = vmatpush.msra.mxu0 %v2876
        %5267 = vmatpush.msra.mxu0 %v2860
        %5268 = vmatpush.msra.mxu0 %v2844
        %5269 = vmatpush.msra.mxu0 %v2828
        %5270 = vmatpush.msra.mxu0 %v2812
        %5271 = vmatpush.msra.mxu0 %v2796
        %5272 = vmatpush.msra.mxu0 %v2780
        %5273 = vmatpush.msra.mxu0 %v2764
        %5274 = vmatmul.f32.gmra.mxu0 %v1471
        %v5275 = vpop.f32.mrf.mxu0
        %v5276 = vadd.f32 %v5256, %v5275
        %5277 = vdwg.mxu0
        %5278 = vmatpush.msra.mxu0 %v3260
        %5279 = vmatpush.msra.mxu0 %v3244
        %5280 = vmatpush.msra.mxu0 %v3228
        %5281 = vmatpush.msra.mxu0 %v3212
        %5282 = vmatpush.msra.mxu0 %v3196
        %5283 = vmatpush.msra.mxu0 %v3180
        %5284 = vmatpush.msra.mxu0 %v3164
        %5285 = vmatpush.msra.mxu0 %v3148
        %5286 = vmatpush.msra.mxu0 %v3132
        %5287 = vmatpush.msra.mxu0 %v3116
        %5288 = vmatpush.msra.mxu0 %v3100
        %5289 = vmatpush.msra.mxu0 %v3084
        %5290 = vmatpush.msra.mxu0 %v3068
        %5291 = vmatpush.msra.mxu0 %v3052
        %5292 = vmatpush.msra.mxu0 %v3036
        %5293 = vmatpush.msra.mxu0 %v3020
        %5294 = vmatmul.f32.gmra.mxu0 %v1472
        %v5295 = vpop.f32.mrf.mxu0
        %v5296 = vadd.f32 %v5276, %v5295
        %5297 = vdwg.mxu0
        %5298 = vmatpush.msra.mxu0 %v3516
        %5299 = vmatpush.msra.mxu0 %v3500
        %5300 = vmatpush.msra.mxu0 %v3484
        %5301 = vmatpush.msra.mxu0 %v3468
        %5302 = vmatpush.msra.mxu0 %v3452
        %5303 = vmatpush.msra.mxu0 %v3436
        %5304 = vmatpush.msra.mxu0 %v3420
        %5305 = vmatpush.msra.mxu0 %v3404
        %5306 = vmatpush.msra.mxu0 %v3388
        %5307 = vmatpush.msra.mxu0 %v3372
        %5308 = vmatpush.msra.mxu0 %v3356
        %5309 = vmatpush.msra.mxu0 %v3340
        %5310 = vmatpush.msra.mxu0 %v3324
        %5311 = vmatpush.msra.mxu0 %v3308
        %5312 = vmatpush.msra.mxu0 %v3292
        %5313 = vmatpush.msra.mxu0 %v3276
        %5314 = vmatmul.f32.gmra.mxu0 %v1473
        %v5315 = vpop.f32.mrf.mxu0
        %v5316 = vadd.f32 %v5296, %v5315
        %5317 = vdwg.mxu0
        %5318 = vmatpush.msra.mxu0 %v1725
        %5319 = vmatpush.msra.mxu0 %v1709
        %5320 = vmatpush.msra.mxu0 %v1693
        %5321 = vmatpush.msra.mxu0 %v1677
        %5322 = vmatpush.msra.mxu0 %v1661
        %5323 = vmatpush.msra.mxu0 %v1645
        %5324 = vmatpush.msra.mxu0 %v1629
        %5325 = vmatpush.msra.mxu0 %v1613
        %5326 = vmatpush.msra.mxu0 %v1597
        %5327 = vmatpush.msra.mxu0 %v1581
        %5328 = vmatpush.msra.mxu0 %v1565
        %5329 = vmatpush.msra.mxu0 %v1549
        %5330 = vmatpush.msra.mxu0 %v1533
        %5331 = vmatpush.msra.mxu0 %v1517
        %5332 = vmatpush.msra.mxu0 %v1501
        %5333 = vmatpush.msra.mxu0 %v1485
        %5334 = vmatmul.f32.gmra.mxu0 %v1466
        %v5335 = vpop.f32.mrf.mxu0
        %v5336 = vadd.f32 %v3537, %v5335
        %5337 = vdwg.mxu0
        %5338 = vmatpush.msra.mxu0 %v1981
        %5339 = vmatpush.msra.mxu0 %v1965
        %5340 = vmatpush.msra.mxu0 %v1949
        %5341 = vmatpush.msra.mxu0 %v1933
        %5342 = vmatpush.msra.mxu0 %v1917
        %5343 = vmatpush.msra.mxu0 %v1901
        %5344 = vmatpush.msra.mxu0 %v1885
        %5345 = vmatpush.msra.mxu0 %v1869
        %5346 = vmatpush.msra.mxu0 %v1853
        %5347 = vmatpush.msra.mxu0 %v1837
        %5348 = vmatpush.msra.mxu0 %v1821
        %5349 = vmatpush.msra.mxu0 %v1805
        %5350 = vmatpush.msra.mxu0 %v1789
        %5351 = vmatpush.msra.mxu0 %v1773
        %5352 = vmatpush.msra.mxu0 %v1757
        %5353 = vmatpush.msra.mxu0 %v1741
        %5354 = vmatmul.f32.gmra.mxu0 %v1467
        %v5355 = vpop.f32.mrf.mxu0
        %v5356 = vadd.f32 %v5336, %v5355
        %5357 = vdwg.mxu0
        %5358 = vmatpush.msra.mxu0 %v2237
        %5359 = vmatpush.msra.mxu0 %v2221
        %5360 = vmatpush.msra.mxu0 %v2205
        %5361 = vmatpush.msra.mxu0 %v2189
        %5362 = vmatpush.msra.mxu0 %v2173
        %5363 = vmatpush.msra.mxu0 %v2157
        %5364 = vmatpush.msra.mxu0 %v2141
        %5365 = vmatpush.msra.mxu0 %v2125
        %5366 = vmatpush.msra.mxu0 %v2109
        %5367 = vmatpush.msra.mxu0 %v2093
        %5368 = vmatpush.msra.mxu0 %v2077
        %5369 = vmatpush.msra.mxu0 %v2061
        %5370 = vmatpush.msra.mxu0 %v2045
        %5371 = vmatpush.msra.mxu0 %v2029
        %5372 = vmatpush.msra.mxu0 %v2013
        %5373 = vmatpush.msra.mxu0 %v1997
        %5374 = vmatmul.f32.gmra.mxu0 %v1468
        %v5375 = vpop.f32.mrf.mxu0
        %v5376 = vadd.f32 %v5356, %v5375
        %5377 = vdwg.mxu0
        %5378 = vmatpush.msra.mxu0 %v2493
        %5379 = vmatpush.msra.mxu0 %v2477
        %5380 = vmatpush.msra.mxu0 %v2461
        %5381 = vmatpush.msra.mxu0 %v2445
        %5382 = vmatpush.msra.mxu0 %v2429
        %5383 = vmatpush.msra.mxu0 %v2413
        %5384 = vmatpush.msra.mxu0 %v2397
        %5385 = vmatpush.msra.mxu0 %v2381
        %5386 = vmatpush.msra.mxu0 %v2365
        %5387 = vmatpush.msra.mxu0 %v2349
        %5388 = vmatpush.msra.mxu0 %v2333
        %5389 = vmatpush.msra.mxu0 %v2317
        %5390 = vmatpush.msra.mxu0 %v2301
        %5391 = vmatpush.msra.mxu0 %v2285
        %5392 = vmatpush.msra.mxu0 %v2269
        %5393 = vmatpush.msra.mxu0 %v2253
        %5394 = vmatmul.f32.gmra.mxu0 %v1469
        %v5395 = vpop.f32.mrf.mxu0
        %v5396 = vadd.f32 %v5376, %v5395
        %5397 = vdwg.mxu0
        %5398 = vmatpush.msra.mxu0 %v2749
        %5399 = vmatpush.msra.mxu0 %v2733
        %5400 = vmatpush.msra.mxu0 %v2717
        %5401 = vmatpush.msra.mxu0 %v2701
        %5402 = vmatpush.msra.mxu0 %v2685
        %5403 = vmatpush.msra.mxu0 %v2669
        %5404 = vmatpush.msra.mxu0 %v2653
        %5405 = vmatpush.msra.mxu0 %v2637
        %5406 = vmatpush.msra.mxu0 %v2621
        %5407 = vmatpush.msra.mxu0 %v2605
        %5408 = vmatpush.msra.mxu0 %v2589
        %5409 = vmatpush.msra.mxu0 %v2573
        %5410 = vmatpush.msra.mxu0 %v2557
        %5411 = vmatpush.msra.mxu0 %v2541
        %5412 = vmatpush.msra.mxu0 %v2525
        %5413 = vmatpush.msra.mxu0 %v2509
        %5414 = vmatmul.f32.gmra.mxu0 %v1470
        %v5415 = vpop.f32.mrf.mxu0
        %v5416 = vadd.f32 %v5396, %v5415
        %5417 = vdwg.mxu0
        %5418 = vmatpush.msra.mxu0 %v3005
        %5419 = vmatpush.msra.mxu0 %v2989
        %5420 = vmatpush.msra.mxu0 %v2973
        %5421 = vmatpush.msra.mxu0 %v2957
        %5422 = vmatpush.msra.mxu0 %v2941
        %5423 = vmatpush.msra.mxu0 %v2925
        %5424 = vmatpush.msra.mxu0 %v2909
        %5425 = vmatpush.msra.mxu0 %v2893
        %5426 = vmatpush.msra.mxu0 %v2877
        %5427 = vmatpush.msra.mxu0 %v2861
        %5428 = vmatpush.msra.mxu0 %v2845
        %5429 = vmatpush.msra.mxu0 %v2829
        %5430 = vmatpush.msra.mxu0 %v2813
        %5431 = vmatpush.msra.mxu0 %v2797
        %5432 = vmatpush.msra.mxu0 %v2781
        %5433 = vmatpush.msra.mxu0 %v2765
        %5434 = vmatmul.f32.gmra.mxu0 %v1471
        %v5435 = vpop.f32.mrf.mxu0
        %v5436 = vadd.f32 %v5416, %v5435
        %5437 = vdwg.mxu0
        %5438 = vmatpush.msra.mxu0 %v3261
        %5439 = vmatpush.msra.mxu0 %v3245
        %5440 = vmatpush.msra.mxu0 %v3229
        %5441 = vmatpush.msra.mxu0 %v3213
        %5442 = vmatpush.msra.mxu0 %v3197
        %5443 = vmatpush.msra.mxu0 %v3181
        %5444 = vmatpush.msra.mxu0 %v3165
        %5445 = vmatpush.msra.mxu0 %v3149
        %5446 = vmatpush.msra.mxu0 %v3133
        %5447 = vmatpush.msra.mxu0 %v3117
        %5448 = vmatpush.msra.mxu0 %v3101
        %5449 = vmatpush.msra.mxu0 %v3085
        %5450 = vmatpush.msra.mxu0 %v3069
        %5451 = vmatpush.msra.mxu0 %v3053
        %5452 = vmatpush.msra.mxu0 %v3037
        %5453 = vmatpush.msra.mxu0 %v3021
        %5454 = vmatmul.f32.gmra.mxu0 %v1472
        %v5455 = vpop.f32.mrf.mxu0
        %v5456 = vadd.f32 %v5436, %v5455
        %5457 = vdwg.mxu0
        %5458 = vmatpush.msra.mxu0 %v3517
        %5459 = vmatpush.msra.mxu0 %v3501
        %5460 = vmatpush.msra.mxu0 %v3485
        %5461 = vmatpush.msra.mxu0 %v3469
        %5462 = vmatpush.msra.mxu0 %v3453
        %5463 = vmatpush.msra.mxu0 %v3437
        %5464 = vmatpush.msra.mxu0 %v3421
        %5465 = vmatpush.msra.mxu0 %v3405
        %5466 = vmatpush.msra.mxu0 %v3389
        %5467 = vmatpush.msra.mxu0 %v3373
        %5468 = vmatpush.msra.mxu0 %v3357
        %5469 = vmatpush.msra.mxu0 %v3341
        %5470 = vmatpush.msra.mxu0 %v3325
        %5471 = vmatpush.msra.mxu0 %v3309
        %5472 = vmatpush.msra.mxu0 %v3293
        %5473 = vmatpush.msra.mxu0 %v3277
        %5474 = vmatmul.f32.gmra.mxu0 %v1473
        %v5475 = vpop.f32.mrf.mxu0
        %v5476 = vadd.f32 %v5456, %v5475
        %5477 = vdwg.mxu0
        %5478 = vmatpush.msra.mxu0 %v1726
        %5479 = vmatpush.msra.mxu0 %v1710
        %5480 = vmatpush.msra.mxu0 %v1694
        %5481 = vmatpush.msra.mxu0 %v1678
        %5482 = vmatpush.msra.mxu0 %v1662
        %5483 = vmatpush.msra.mxu0 %v1646
        %5484 = vmatpush.msra.mxu0 %v1630
        %5485 = vmatpush.msra.mxu0 %v1614
        %5486 = vmatpush.msra.mxu0 %v1598
        %5487 = vmatpush.msra.mxu0 %v1582
        %5488 = vmatpush.msra.mxu0 %v1566
        %5489 = vmatpush.msra.mxu0 %v1550
        %5490 = vmatpush.msra.mxu0 %v1534
        %5491 = vmatpush.msra.mxu0 %v1518
        %5492 = vmatpush.msra.mxu0 %v1502
        %5493 = vmatpush.msra.mxu0 %v1486
        %5494 = vmatmul.f32.gmra.mxu0 %v1466
        %v5495 = vpop.f32.mrf.mxu0
        %v5496 = vadd.f32 %v3538, %v5495
        %5497 = vdwg.mxu0
        %5498 = vmatpush.msra.mxu0 %v1982
        %5499 = vmatpush.msra.mxu0 %v1966
        %5500 = vmatpush.msra.mxu0 %v1950
        %5501 = vmatpush.msra.mxu0 %v1934
        %5502 = vmatpush.msra.mxu0 %v1918
        %5503 = vmatpush.msra.mxu0 %v1902
        %5504 = vmatpush.msra.mxu0 %v1886
        %5505 = vmatpush.msra.mxu0 %v1870
        %5506 = vmatpush.msra.mxu0 %v1854
        %5507 = vmatpush.msra.mxu0 %v1838
        %5508 = vmatpush.msra.mxu0 %v1822
        %5509 = vmatpush.msra.mxu0 %v1806
        %5510 = vmatpush.msra.mxu0 %v1790
        %5511 = vmatpush.msra.mxu0 %v1774
        %5512 = vmatpush.msra.mxu0 %v1758
        %5513 = vmatpush.msra.mxu0 %v1742
        %5514 = vmatmul.f32.gmra.mxu0 %v1467
        %v5515 = vpop.f32.mrf.mxu0
        %v5516 = vadd.f32 %v5496, %v5515
        %5517 = vdwg.mxu0
        %5518 = vmatpush.msra.mxu0 %v2238
        %5519 = vmatpush.msra.mxu0 %v2222
        %5520 = vmatpush.msra.mxu0 %v2206
        %5521 = vmatpush.msra.mxu0 %v2190
        %5522 = vmatpush.msra.mxu0 %v2174
        %5523 = vmatpush.msra.mxu0 %v2158
        %5524 = vmatpush.msra.mxu0 %v2142
        %5525 = vmatpush.msra.mxu0 %v2126
        %5526 = vmatpush.msra.mxu0 %v2110
        %5527 = vmatpush.msra.mxu0 %v2094
        %5528 = vmatpush.msra.mxu0 %v2078
        %5529 = vmatpush.msra.mxu0 %v2062
        %5530 = vmatpush.msra.mxu0 %v2046
        %5531 = vmatpush.msra.mxu0 %v2030
        %5532 = vmatpush.msra.mxu0 %v2014
        %5533 = vmatpush.msra.mxu0 %v1998
        %5534 = vmatmul.f32.gmra.mxu0 %v1468
        %v5535 = vpop.f32.mrf.mxu0
        %v5536 = vadd.f32 %v5516, %v5535
        %5537 = vdwg.mxu0
        %5538 = vmatpush.msra.mxu0 %v2494
        %5539 = vmatpush.msra.mxu0 %v2478
        %5540 = vmatpush.msra.mxu0 %v2462
        %5541 = vmatpush.msra.mxu0 %v2446
        %5542 = vmatpush.msra.mxu0 %v2430
        %5543 = vmatpush.msra.mxu0 %v2414
        %5544 = vmatpush.msra.mxu0 %v2398
        %5545 = vmatpush.msra.mxu0 %v2382
        %5546 = vmatpush.msra.mxu0 %v2366
        %5547 = vmatpush.msra.mxu0 %v2350
        %5548 = vmatpush.msra.mxu0 %v2334
        %5549 = vmatpush.msra.mxu0 %v2318
        %5550 = vmatpush.msra.mxu0 %v2302
        %5551 = vmatpush.msra.mxu0 %v2286
        %5552 = vmatpush.msra.mxu0 %v2270
        %5553 = vmatpush.msra.mxu0 %v2254
        %5554 = vmatmul.f32.gmra.mxu0 %v1469
        %v5555 = vpop.f32.mrf.mxu0
        %v5556 = vadd.f32 %v5536, %v5555
        %5557 = vdwg.mxu0
        %5558 = vmatpush.msra.mxu0 %v2750
        %5559 = vmatpush.msra.mxu0 %v2734
        %5560 = vmatpush.msra.mxu0 %v2718
        %5561 = vmatpush.msra.mxu0 %v2702
        %5562 = vmatpush.msra.mxu0 %v2686
        %5563 = vmatpush.msra.mxu0 %v2670
        %5564 = vmatpush.msra.mxu0 %v2654
        %5565 = vmatpush.msra.mxu0 %v2638
        %5566 = vmatpush.msra.mxu0 %v2622
        %5567 = vmatpush.msra.mxu0 %v2606
        %5568 = vmatpush.msra.mxu0 %v2590
        %5569 = vmatpush.msra.mxu0 %v2574
        %5570 = vmatpush.msra.mxu0 %v2558
        %5571 = vmatpush.msra.mxu0 %v2542
        %5572 = vmatpush.msra.mxu0 %v2526
        %5573 = vmatpush.msra.mxu0 %v2510
        %5574 = vmatmul.f32.gmra.mxu0 %v1470
        %v5575 = vpop.f32.mrf.mxu0
        %v5576 = vadd.f32 %v5556, %v5575
        %5577 = vdwg.mxu0
        %5578 = vmatpush.msra.mxu0 %v3006
        %5579 = vmatpush.msra.mxu0 %v2990
        %5580 = vmatpush.msra.mxu0 %v2974
        %5581 = vmatpush.msra.mxu0 %v2958
        %5582 = vmatpush.msra.mxu0 %v2942
        %5583 = vmatpush.msra.mxu0 %v2926
        %5584 = vmatpush.msra.mxu0 %v2910
        %5585 = vmatpush.msra.mxu0 %v2894
        %5586 = vmatpush.msra.mxu0 %v2878
        %5587 = vmatpush.msra.mxu0 %v2862
        %5588 = vmatpush.msra.mxu0 %v2846
        %5589 = vmatpush.msra.mxu0 %v2830
        %5590 = vmatpush.msra.mxu0 %v2814
        %5591 = vmatpush.msra.mxu0 %v2798
        %5592 = vmatpush.msra.mxu0 %v2782
        %5593 = vmatpush.msra.mxu0 %v2766
        %5594 = vmatmul.f32.gmra.mxu0 %v1471
        %v5595 = vpop.f32.mrf.mxu0
        %v5596 = vadd.f32 %v5576, %v5595
        %5597 = vdwg.mxu0
        %5598 = vmatpush.msra.mxu0 %v3262
        %5599 = vmatpush.msra.mxu0 %v3246
        %5600 = vmatpush.msra.mxu0 %v3230
        %5601 = vmatpush.msra.mxu0 %v3214
        %5602 = vmatpush.msra.mxu0 %v3198
        %5603 = vmatpush.msra.mxu0 %v3182
        %5604 = vmatpush.msra.mxu0 %v3166
        %5605 = vmatpush.msra.mxu0 %v3150
        %5606 = vmatpush.msra.mxu0 %v3134
        %5607 = vmatpush.msra.mxu0 %v3118
        %5608 = vmatpush.msra.mxu0 %v3102
        %5609 = vmatpush.msra.mxu0 %v3086
        %5610 = vmatpush.msra.mxu0 %v3070
        %5611 = vmatpush.msra.mxu0 %v3054
        %5612 = vmatpush.msra.mxu0 %v3038
        %5613 = vmatpush.msra.mxu0 %v3022
        %5614 = vmatmul.f32.gmra.mxu0 %v1472
        %v5615 = vpop.f32.mrf.mxu0
        %v5616 = vadd.f32 %v5596, %v5615
        %5617 = vdwg.mxu0
        %5618 = vmatpush.msra.mxu0 %v3518
        %5619 = vmatpush.msra.mxu0 %v3502
        %5620 = vmatpush.msra.mxu0 %v3486
        %5621 = vmatpush.msra.mxu0 %v3470
        %5622 = vmatpush.msra.mxu0 %v3454
        %5623 = vmatpush.msra.mxu0 %v3438
        %5624 = vmatpush.msra.mxu0 %v3422
        %5625 = vmatpush.msra.mxu0 %v3406
        %5626 = vmatpush.msra.mxu0 %v3390
        %5627 = vmatpush.msra.mxu0 %v3374
        %5628 = vmatpush.msra.mxu0 %v3358
        %5629 = vmatpush.msra.mxu0 %v3342
        %5630 = vmatpush.msra.mxu0 %v3326
        %5631 = vmatpush.msra.mxu0 %v3310
        %5632 = vmatpush.msra.mxu0 %v3294
        %5633 = vmatpush.msra.mxu0 %v3278
        %5634 = vmatmul.f32.gmra.mxu0 %v1473
        %v5635 = vpop.f32.mrf.mxu0
        %v5636 = vadd.f32 %v5616, %v5635
        %5637 = vdwg.mxu0
        %5638 = vmatpush.msra.mxu0 %v1727
        %5639 = vmatpush.msra.mxu0 %v1711
        %5640 = vmatpush.msra.mxu0 %v1695
        %5641 = vmatpush.msra.mxu0 %v1679
        %5642 = vmatpush.msra.mxu0 %v1663
        %5643 = vmatpush.msra.mxu0 %v1647
        %5644 = vmatpush.msra.mxu0 %v1631
        %5645 = vmatpush.msra.mxu0 %v1615
        %5646 = vmatpush.msra.mxu0 %v1599
        %5647 = vmatpush.msra.mxu0 %v1583
        %5648 = vmatpush.msra.mxu0 %v1567
        %5649 = vmatpush.msra.mxu0 %v1551
        %5650 = vmatpush.msra.mxu0 %v1535
        %5651 = vmatpush.msra.mxu0 %v1519
        %5652 = vmatpush.msra.mxu0 %v1503
        %5653 = vmatpush.msra.mxu0 %v1487
        %5654 = vmatmul.f32.gmra.mxu0 %v1466
        %v5655 = vpop.f32.mrf.mxu0
        %v5656 = vadd.f32 %v3539, %v5655
        %5657 = vdwg.mxu0
        %5658 = vmatpush.msra.mxu0 %v1983
        %5659 = vmatpush.msra.mxu0 %v1967
        %5660 = vmatpush.msra.mxu0 %v1951
        %5661 = vmatpush.msra.mxu0 %v1935
        %5662 = vmatpush.msra.mxu0 %v1919
        %5663 = vmatpush.msra.mxu0 %v1903
        %5664 = vmatpush.msra.mxu0 %v1887
        %5665 = vmatpush.msra.mxu0 %v1871
        %5666 = vmatpush.msra.mxu0 %v1855
        %5667 = vmatpush.msra.mxu0 %v1839
        %5668 = vmatpush.msra.mxu0 %v1823
        %5669 = vmatpush.msra.mxu0 %v1807
        %5670 = vmatpush.msra.mxu0 %v1791
        %5671 = vmatpush.msra.mxu0 %v1775
        %5672 = vmatpush.msra.mxu0 %v1759
        %5673 = vmatpush.msra.mxu0 %v1743
        %5674 = vmatmul.f32.gmra.mxu0 %v1467
        %v5675 = vpop.f32.mrf.mxu0
        %v5676 = vadd.f32 %v5656, %v5675
        %5677 = vdwg.mxu0
        %5678 = vmatpush.msra.mxu0 %v2239
        %5679 = vmatpush.msra.mxu0 %v2223
        %5680 = vmatpush.msra.mxu0 %v2207
        %5681 = vmatpush.msra.mxu0 %v2191
        %5682 = vmatpush.msra.mxu0 %v2175
        %5683 = vmatpush.msra.mxu0 %v2159
        %5684 = vmatpush.msra.mxu0 %v2143
        %5685 = vmatpush.msra.mxu0 %v2127
        %5686 = vmatpush.msra.mxu0 %v2111
        %5687 = vmatpush.msra.mxu0 %v2095
        %5688 = vmatpush.msra.mxu0 %v2079
        %5689 = vmatpush.msra.mxu0 %v2063
        %5690 = vmatpush.msra.mxu0 %v2047
        %5691 = vmatpush.msra.mxu0 %v2031
        %5692 = vmatpush.msra.mxu0 %v2015
        %5693 = vmatpush.msra.mxu0 %v1999
        %5694 = vmatmul.f32.gmra.mxu0 %v1468
        %v5695 = vpop.f32.mrf.mxu0
        %v5696 = vadd.f32 %v5676, %v5695
        %5697 = vdwg.mxu0
        %5698 = vmatpush.msra.mxu0 %v2495
        %5699 = vmatpush.msra.mxu0 %v2479
        %5700 = vmatpush.msra.mxu0 %v2463
        %5701 = vmatpush.msra.mxu0 %v2447
        %5702 = vmatpush.msra.mxu0 %v2431
        %5703 = vmatpush.msra.mxu0 %v2415
        %5704 = vmatpush.msra.mxu0 %v2399
        %5705 = vmatpush.msra.mxu0 %v2383
        %5706 = vmatpush.msra.mxu0 %v2367
        %5707 = vmatpush.msra.mxu0 %v2351
        %5708 = vmatpush.msra.mxu0 %v2335
        %5709 = vmatpush.msra.mxu0 %v2319
        %5710 = vmatpush.msra.mxu0 %v2303
        %5711 = vmatpush.msra.mxu0 %v2287
        %5712 = vmatpush.msra.mxu0 %v2271
        %5713 = vmatpush.msra.mxu0 %v2255
        %5714 = vmatmul.f32.gmra.mxu0 %v1469
        %v5715 = vpop.f32.mrf.mxu0
        %v5716 = vadd.f32 %v5696, %v5715
        %5717 = vdwg.mxu0
        %5718 = vmatpush.msra.mxu0 %v2751
        %5719 = vmatpush.msra.mxu0 %v2735
        %5720 = vmatpush.msra.mxu0 %v2719
        %5721 = vmatpush.msra.mxu0 %v2703
        %5722 = vmatpush.msra.mxu0 %v2687
        %5723 = vmatpush.msra.mxu0 %v2671
        %5724 = vmatpush.msra.mxu0 %v2655
        %5725 = vmatpush.msra.mxu0 %v2639
        %5726 = vmatpush.msra.mxu0 %v2623
        %5727 = vmatpush.msra.mxu0 %v2607
        %5728 = vmatpush.msra.mxu0 %v2591
        %5729 = vmatpush.msra.mxu0 %v2575
        %5730 = vmatpush.msra.mxu0 %v2559
        %5731 = vmatpush.msra.mxu0 %v2543
        %5732 = vmatpush.msra.mxu0 %v2527
        %5733 = vmatpush.msra.mxu0 %v2511
        %5734 = vmatmul.f32.gmra.mxu0 %v1470
        %v5735 = vpop.f32.mrf.mxu0
        %v5736 = vadd.f32 %v5716, %v5735
        %5737 = vdwg.mxu0
        %5738 = vmatpush.msra.mxu0 %v3007
        %5739 = vmatpush.msra.mxu0 %v2991
        %5740 = vmatpush.msra.mxu0 %v2975
        %5741 = vmatpush.msra.mxu0 %v2959
        %5742 = vmatpush.msra.mxu0 %v2943
        %5743 = vmatpush.msra.mxu0 %v2927
        %5744 = vmatpush.msra.mxu0 %v2911
        %5745 = vmatpush.msra.mxu0 %v2895
        %5746 = vmatpush.msra.mxu0 %v2879
        %5747 = vmatpush.msra.mxu0 %v2863
        %5748 = vmatpush.msra.mxu0 %v2847
        %5749 = vmatpush.msra.mxu0 %v2831
        %5750 = vmatpush.msra.mxu0 %v2815
        %5751 = vmatpush.msra.mxu0 %v2799
        %5752 = vmatpush.msra.mxu0 %v2783
        %5753 = vmatpush.msra.mxu0 %v2767
        %5754 = vmatmul.f32.gmra.mxu0 %v1471
        %v5755 = vpop.f32.mrf.mxu0
        %v5756 = vadd.f32 %v5736, %v5755
        %5757 = vdwg.mxu0
        %5758 = vmatpush.msra.mxu0 %v3263
        %5759 = vmatpush.msra.mxu0 %v3247
        %5760 = vmatpush.msra.mxu0 %v3231
        %5761 = vmatpush.msra.mxu0 %v3215
        %5762 = vmatpush.msra.mxu0 %v3199
        %5763 = vmatpush.msra.mxu0 %v3183
        %5764 = vmatpush.msra.mxu0 %v3167
        %5765 = vmatpush.msra.mxu0 %v3151
        %5766 = vmatpush.msra.mxu0 %v3135
        %5767 = vmatpush.msra.mxu0 %v3119
        %5768 = vmatpush.msra.mxu0 %v3103
        %5769 = vmatpush.msra.mxu0 %v3087
        %5770 = vmatpush.msra.mxu0 %v3071
        %5771 = vmatpush.msra.mxu0 %v3055
        %5772 = vmatpush.msra.mxu0 %v3039
        %5773 = vmatpush.msra.mxu0 %v3023
        %5774 = vmatmul.f32.gmra.mxu0 %v1472
        %v5775 = vpop.f32.mrf.mxu0
        %v5776 = vadd.f32 %v5756, %v5775
        %5777 = vdwg.mxu0
        %5778 = vmatpush.msra.mxu0 %v3519
        %5779 = vmatpush.msra.mxu0 %v3503
        %5780 = vmatpush.msra.mxu0 %v3487
        %5781 = vmatpush.msra.mxu0 %v3471
        %5782 = vmatpush.msra.mxu0 %v3455
        %5783 = vmatpush.msra.mxu0 %v3439
        %5784 = vmatpush.msra.mxu0 %v3423
        %5785 = vmatpush.msra.mxu0 %v3407
        %5786 = vmatpush.msra.mxu0 %v3391
        %5787 = vmatpush.msra.mxu0 %v3375
        %5788 = vmatpush.msra.mxu0 %v3359
        %5789 = vmatpush.msra.mxu0 %v3343
        %5790 = vmatpush.msra.mxu0 %v3327
        %5791 = vmatpush.msra.mxu0 %v3311
        %5792 = vmatpush.msra.mxu0 %v3295
        %5793 = vmatpush.msra.mxu0 %v3279
        %5794 = vmatmul.f32.gmra.mxu0 %v1473
        %v5795 = vpop.f32.mrf.mxu0
        %v5796 = vadd.f32 %v5776, %v5795
        %5797 = vdwg.mxu0
        %5798 = vmatpush.msra.mxu0 %v1728
        %5799 = vmatpush.msra.mxu0 %v1712
        %5800 = vmatpush.msra.mxu0 %v1696
        %5801 = vmatpush.msra.mxu0 %v1680
        %5802 = vmatpush.msra.mxu0 %v1664
        %5803 = vmatpush.msra.mxu0 %v1648
        %5804 = vmatpush.msra.mxu0 %v1632
        %5805 = vmatpush.msra.mxu0 %v1616
        %5806 = vmatpush.msra.mxu0 %v1600
        %5807 = vmatpush.msra.mxu0 %v1584
        %5808 = vmatpush.msra.mxu0 %v1568
        %5809 = vmatpush.msra.mxu0 %v1552
        %5810 = vmatpush.msra.mxu0 %v1536
        %5811 = vmatpush.msra.mxu0 %v1520
        %5812 = vmatpush.msra.mxu0 %v1504
        %5813 = vmatpush.msra.mxu0 %v1488
        %5814 = vmatmul.f32.gmra.mxu0 %v1466
        %v5815 = vpop.f32.mrf.mxu0
        %v5816 = vadd.f32 %v3540, %v5815
        %5817 = vdwg.mxu0
        %5818 = vmatpush.msra.mxu0 %v1984
        %5819 = vmatpush.msra.mxu0 %v1968
        %5820 = vmatpush.msra.mxu0 %v1952
        %5821 = vmatpush.msra.mxu0 %v1936
        %5822 = vmatpush.msra.mxu0 %v1920
        %5823 = vmatpush.msra.mxu0 %v1904
        %5824 = vmatpush.msra.mxu0 %v1888
        %5825 = vmatpush.msra.mxu0 %v1872
        %5826 = vmatpush.msra.mxu0 %v1856
        %5827 = vmatpush.msra.mxu0 %v1840
        %5828 = vmatpush.msra.mxu0 %v1824
        %5829 = vmatpush.msra.mxu0 %v1808
        %5830 = vmatpush.msra.mxu0 %v1792
        %5831 = vmatpush.msra.mxu0 %v1776
        %5832 = vmatpush.msra.mxu0 %v1760
        %5833 = vmatpush.msra.mxu0 %v1744
        %5834 = vmatmul.f32.gmra.mxu0 %v1467
        %v5835 = vpop.f32.mrf.mxu0
        %v5836 = vadd.f32 %v5816, %v5835
        %5837 = vdwg.mxu0
        %5838 = vmatpush.msra.mxu0 %v2240
        %5839 = vmatpush.msra.mxu0 %v2224
        %5840 = vmatpush.msra.mxu0 %v2208
        %5841 = vmatpush.msra.mxu0 %v2192
        %5842 = vmatpush.msra.mxu0 %v2176
        %5843 = vmatpush.msra.mxu0 %v2160
        %5844 = vmatpush.msra.mxu0 %v2144
        %5845 = vmatpush.msra.mxu0 %v2128
        %5846 = vmatpush.msra.mxu0 %v2112
        %5847 = vmatpush.msra.mxu0 %v2096
        %5848 = vmatpush.msra.mxu0 %v2080
        %5849 = vmatpush.msra.mxu0 %v2064
        %5850 = vmatpush.msra.mxu0 %v2048
        %5851 = vmatpush.msra.mxu0 %v2032
        %5852 = vmatpush.msra.mxu0 %v2016
        %5853 = vmatpush.msra.mxu0 %v2000
        %5854 = vmatmul.f32.gmra.mxu0 %v1468
        %v5855 = vpop.f32.mrf.mxu0
        %v5856 = vadd.f32 %v5836, %v5855
        %5857 = vdwg.mxu0
        %5858 = vmatpush.msra.mxu0 %v2496
        %5859 = vmatpush.msra.mxu0 %v2480
        %5860 = vmatpush.msra.mxu0 %v2464
        %5861 = vmatpush.msra.mxu0 %v2448
        %5862 = vmatpush.msra.mxu0 %v2432
        %5863 = vmatpush.msra.mxu0 %v2416
        %5864 = vmatpush.msra.mxu0 %v2400
        %5865 = vmatpush.msra.mxu0 %v2384
        %5866 = vmatpush.msra.mxu0 %v2368
        %5867 = vmatpush.msra.mxu0 %v2352
        %5868 = vmatpush.msra.mxu0 %v2336
        %5869 = vmatpush.msra.mxu0 %v2320
        %5870 = vmatpush.msra.mxu0 %v2304
        %5871 = vmatpush.msra.mxu0 %v2288
        %5872 = vmatpush.msra.mxu0 %v2272
        %5873 = vmatpush.msra.mxu0 %v2256
        %5874 = vmatmul.f32.gmra.mxu0 %v1469
        %v5875 = vpop.f32.mrf.mxu0
        %v5876 = vadd.f32 %v5856, %v5875
        %5877 = vdwg.mxu0
        %5878 = vmatpush.msra.mxu0 %v2752
        %5879 = vmatpush.msra.mxu0 %v2736
        %5880 = vmatpush.msra.mxu0 %v2720
        %5881 = vmatpush.msra.mxu0 %v2704
        %5882 = vmatpush.msra.mxu0 %v2688
        %5883 = vmatpush.msra.mxu0 %v2672
        %5884 = vmatpush.msra.mxu0 %v2656
        %5885 = vmatpush.msra.mxu0 %v2640
        %5886 = vmatpush.msra.mxu0 %v2624
        %5887 = vmatpush.msra.mxu0 %v2608
        %5888 = vmatpush.msra.mxu0 %v2592
        %5889 = vmatpush.msra.mxu0 %v2576
        %5890 = vmatpush.msra.mxu0 %v2560
        %5891 = vmatpush.msra.mxu0 %v2544
        %5892 = vmatpush.msra.mxu0 %v2528
        %5893 = vmatpush.msra.mxu0 %v2512
        %5894 = vmatmul.f32.gmra.mxu0 %v1470
        %v5895 = vpop.f32.mrf.mxu0
        %v5896 = vadd.f32 %v5876, %v5895
        %5897 = vdwg.mxu0
        %5898 = vmatpush.msra.mxu0 %v3008
        %5899 = vmatpush.msra.mxu0 %v2992
        %5900 = vmatpush.msra.mxu0 %v2976
        %5901 = vmatpush.msra.mxu0 %v2960
        %5902 = vmatpush.msra.mxu0 %v2944
        %5903 = vmatpush.msra.mxu0 %v2928
        %5904 = vmatpush.msra.mxu0 %v2912
        %5905 = vmatpush.msra.mxu0 %v2896
        %5906 = vmatpush.msra.mxu0 %v2880
        %5907 = vmatpush.msra.mxu0 %v2864
        %5908 = vmatpush.msra.mxu0 %v2848
        %5909 = vmatpush.msra.mxu0 %v2832
        %5910 = vmatpush.msra.mxu0 %v2816
        %5911 = vmatpush.msra.mxu0 %v2800
        %5912 = vmatpush.msra.mxu0 %v2784
        %5913 = vmatpush.msra.mxu0 %v2768
        %5914 = vmatmul.f32.gmra.mxu0 %v1471
        %v5915 = vpop.f32.mrf.mxu0
        %v5916 = vadd.f32 %v5896, %v5915
        %5917 = vdwg.mxu0
        %5918 = vmatpush.msra.mxu0 %v3264
        %5919 = vmatpush.msra.mxu0 %v3248
        %5920 = vmatpush.msra.mxu0 %v3232
        %5921 = vmatpush.msra.mxu0 %v3216
        %5922 = vmatpush.msra.mxu0 %v3200
        %5923 = vmatpush.msra.mxu0 %v3184
        %5924 = vmatpush.msra.mxu0 %v3168
        %5925 = vmatpush.msra.mxu0 %v3152
        %5926 = vmatpush.msra.mxu0 %v3136
        %5927 = vmatpush.msra.mxu0 %v3120
        %5928 = vmatpush.msra.mxu0 %v3104
        %5929 = vmatpush.msra.mxu0 %v3088
        %5930 = vmatpush.msra.mxu0 %v3072
        %5931 = vmatpush.msra.mxu0 %v3056
        %5932 = vmatpush.msra.mxu0 %v3040
        %5933 = vmatpush.msra.mxu0 %v3024
        %5934 = vmatmul.f32.gmra.mxu0 %v1472
        %v5935 = vpop.f32.mrf.mxu0
        %v5936 = vadd.f32 %v5916, %v5935
        %5937 = vdwg.mxu0
        %5938 = vmatpush.msra.mxu0 %v3520
        %5939 = vmatpush.msra.mxu0 %v3504
        %5940 = vmatpush.msra.mxu0 %v3488
        %5941 = vmatpush.msra.mxu0 %v3472
        %5942 = vmatpush.msra.mxu0 %v3456
        %5943 = vmatpush.msra.mxu0 %v3440
        %5944 = vmatpush.msra.mxu0 %v3424
        %5945 = vmatpush.msra.mxu0 %v3408
        %5946 = vmatpush.msra.mxu0 %v3392
        %5947 = vmatpush.msra.mxu0 %v3376
        %5948 = vmatpush.msra.mxu0 %v3360
        %5949 = vmatpush.msra.mxu0 %v3344
        %5950 = vmatpush.msra.mxu0 %v3328
        %5951 = vmatpush.msra.mxu0 %v3312
        %5952 = vmatpush.msra.mxu0 %v3296
        %5953 = vmatpush.msra.mxu0 %v3280
        %5954 = vmatmul.f32.gmra.mxu0 %v1473
        %v5955 = vpop.f32.mrf.mxu0
        %v5956 = vadd.f32 %v5936, %v5955
        %5957 = vdwg.mxu0
        %5958 = vmatpush.msra.mxu0 %v1729
        %5959 = vmatpush.msra.mxu0 %v1713
        %5960 = vmatpush.msra.mxu0 %v1697
        %5961 = vmatpush.msra.mxu0 %v1681
        %5962 = vmatpush.msra.mxu0 %v1665
        %5963 = vmatpush.msra.mxu0 %v1649
        %5964 = vmatpush.msra.mxu0 %v1633
        %5965 = vmatpush.msra.mxu0 %v1617
        %5966 = vmatpush.msra.mxu0 %v1601
        %5967 = vmatpush.msra.mxu0 %v1585
        %5968 = vmatpush.msra.mxu0 %v1569
        %5969 = vmatpush.msra.mxu0 %v1553
        %5970 = vmatpush.msra.mxu0 %v1537
        %5971 = vmatpush.msra.mxu0 %v1521
        %5972 = vmatpush.msra.mxu0 %v1505
        %5973 = vmatpush.msra.mxu0 %v1489
        %5974 = vmatmul.f32.gmra.mxu0 %v1466
        %v5975 = vpop.f32.mrf.mxu0
        %v5976 = vadd.f32 %v3541, %v5975
        %5977 = vdwg.mxu0
        %5978 = vmatpush.msra.mxu0 %v1985
        %5979 = vmatpush.msra.mxu0 %v1969
        %5980 = vmatpush.msra.mxu0 %v1953
        %5981 = vmatpush.msra.mxu0 %v1937
        %5982 = vmatpush.msra.mxu0 %v1921
        %5983 = vmatpush.msra.mxu0 %v1905
        %5984 = vmatpush.msra.mxu0 %v1889
        %5985 = vmatpush.msra.mxu0 %v1873
        %5986 = vmatpush.msra.mxu0 %v1857
        %5987 = vmatpush.msra.mxu0 %v1841
        %5988 = vmatpush.msra.mxu0 %v1825
        %5989 = vmatpush.msra.mxu0 %v1809
        %5990 = vmatpush.msra.mxu0 %v1793
        %5991 = vmatpush.msra.mxu0 %v1777
        %5992 = vmatpush.msra.mxu0 %v1761
        %5993 = vmatpush.msra.mxu0 %v1745
        %5994 = vmatmul.f32.gmra.mxu0 %v1467
        %v5995 = vpop.f32.mrf.mxu0
        %v5996 = vadd.f32 %v5976, %v5995
        %5997 = vdwg.mxu0
        %5998 = vmatpush.msra.mxu0 %v2241
        %5999 = vmatpush.msra.mxu0 %v2225
        %6000 = vmatpush.msra.mxu0 %v2209
        %6001 = vmatpush.msra.mxu0 %v2193
        %6002 = vmatpush.msra.mxu0 %v2177
        %6003 = vmatpush.msra.mxu0 %v2161
        %6004 = vmatpush.msra.mxu0 %v2145
        %6005 = vmatpush.msra.mxu0 %v2129
        %6006 = vmatpush.msra.mxu0 %v2113
        %6007 = vmatpush.msra.mxu0 %v2097
        %6008 = vmatpush.msra.mxu0 %v2081
        %6009 = vmatpush.msra.mxu0 %v2065
        %6010 = vmatpush.msra.mxu0 %v2049
        %6011 = vmatpush.msra.mxu0 %v2033
        %6012 = vmatpush.msra.mxu0 %v2017
        %6013 = vmatpush.msra.mxu0 %v2001
        %6014 = vmatmul.f32.gmra.mxu0 %v1468
        %v6015 = vpop.f32.mrf.mxu0
        %v6016 = vadd.f32 %v5996, %v6015
        %6017 = vdwg.mxu0
        %6018 = vmatpush.msra.mxu0 %v2497
        %6019 = vmatpush.msra.mxu0 %v2481
        %6020 = vmatpush.msra.mxu0 %v2465
        %6021 = vmatpush.msra.mxu0 %v2449
        %6022 = vmatpush.msra.mxu0 %v2433
        %6023 = vmatpush.msra.mxu0 %v2417
        %6024 = vmatpush.msra.mxu0 %v2401
        %6025 = vmatpush.msra.mxu0 %v2385
        %6026 = vmatpush.msra.mxu0 %v2369
        %6027 = vmatpush.msra.mxu0 %v2353
        %6028 = vmatpush.msra.mxu0 %v2337
        %6029 = vmatpush.msra.mxu0 %v2321
        %6030 = vmatpush.msra.mxu0 %v2305
        %6031 = vmatpush.msra.mxu0 %v2289
        %6032 = vmatpush.msra.mxu0 %v2273
        %6033 = vmatpush.msra.mxu0 %v2257
        %6034 = vmatmul.f32.gmra.mxu0 %v1469
        %v6035 = vpop.f32.mrf.mxu0
        %v6036 = vadd.f32 %v6016, %v6035
        %6037 = vdwg.mxu0
        %6038 = vmatpush.msra.mxu0 %v2753
        %6039 = vmatpush.msra.mxu0 %v2737
        %6040 = vmatpush.msra.mxu0 %v2721
        %6041 = vmatpush.msra.mxu0 %v2705
        %6042 = vmatpush.msra.mxu0 %v2689
        %6043 = vmatpush.msra.mxu0 %v2673
        %6044 = vmatpush.msra.mxu0 %v2657
        %6045 = vmatpush.msra.mxu0 %v2641
        %6046 = vmatpush.msra.mxu0 %v2625
        %6047 = vmatpush.msra.mxu0 %v2609
        %6048 = vmatpush.msra.mxu0 %v2593
        %6049 = vmatpush.msra.mxu0 %v2577
        %6050 = vmatpush.msra.mxu0 %v2561
        %6051 = vmatpush.msra.mxu0 %v2545
        %6052 = vmatpush.msra.mxu0 %v2529
        %6053 = vmatpush.msra.mxu0 %v2513
        %6054 = vmatmul.f32.gmra.mxu0 %v1470
        %v6055 = vpop.f32.mrf.mxu0
        %v6056 = vadd.f32 %v6036, %v6055
        %6057 = vdwg.mxu0
        %6058 = vmatpush.msra.mxu0 %v3009
        %6059 = vmatpush.msra.mxu0 %v2993
        %6060 = vmatpush.msra.mxu0 %v2977
        %6061 = vmatpush.msra.mxu0 %v2961
        %6062 = vmatpush.msra.mxu0 %v2945
        %6063 = vmatpush.msra.mxu0 %v2929
        %6064 = vmatpush.msra.mxu0 %v2913
        %6065 = vmatpush.msra.mxu0 %v2897
        %6066 = vmatpush.msra.mxu0 %v2881
        %6067 = vmatpush.msra.mxu0 %v2865
        %6068 = vmatpush.msra.mxu0 %v2849
        %6069 = vmatpush.msra.mxu0 %v2833
        %6070 = vmatpush.msra.mxu0 %v2817
        %6071 = vmatpush.msra.mxu0 %v2801
        %6072 = vmatpush.msra.mxu0 %v2785
        %6073 = vmatpush.msra.mxu0 %v2769
        %6074 = vmatmul.f32.gmra.mxu0 %v1471
        %v6075 = vpop.f32.mrf.mxu0
        %v6076 = vadd.f32 %v6056, %v6075
        %6077 = vdwg.mxu0
        %6078 = vmatpush.msra.mxu0 %v3265
        %6079 = vmatpush.msra.mxu0 %v3249
        %6080 = vmatpush.msra.mxu0 %v3233
        %6081 = vmatpush.msra.mxu0 %v3217
        %6082 = vmatpush.msra.mxu0 %v3201
        %6083 = vmatpush.msra.mxu0 %v3185
        %6084 = vmatpush.msra.mxu0 %v3169
        %6085 = vmatpush.msra.mxu0 %v3153
        %6086 = vmatpush.msra.mxu0 %v3137
        %6087 = vmatpush.msra.mxu0 %v3121
        %6088 = vmatpush.msra.mxu0 %v3105
        %6089 = vmatpush.msra.mxu0 %v3089
        %6090 = vmatpush.msra.mxu0 %v3073
        %6091 = vmatpush.msra.mxu0 %v3057
        %6092 = vmatpush.msra.mxu0 %v3041
        %6093 = vmatpush.msra.mxu0 %v3025
        %6094 = vmatmul.f32.gmra.mxu0 %v1472
        %v6095 = vpop.f32.mrf.mxu0
        %v6096 = vadd.f32 %v6076, %v6095
        %6097 = vdwg.mxu0
        %6098 = vmatpush.msra.mxu0 %v3521
        %6099 = vmatpush.msra.mxu0 %v3505
        %6100 = vmatpush.msra.mxu0 %v3489
        %6101 = vmatpush.msra.mxu0 %v3473
        %6102 = vmatpush.msra.mxu0 %v3457
        %6103 = vmatpush.msra.mxu0 %v3441
        %6104 = vmatpush.msra.mxu0 %v3425
        %6105 = vmatpush.msra.mxu0 %v3409
        %6106 = vmatpush.msra.mxu0 %v3393
        %6107 = vmatpush.msra.mxu0 %v3377
        %6108 = vmatpush.msra.mxu0 %v3361
        %6109 = vmatpush.msra.mxu0 %v3345
        %6110 = vmatpush.msra.mxu0 %v3329
        %6111 = vmatpush.msra.mxu0 %v3313
        %6112 = vmatpush.msra.mxu0 %v3297
        %6113 = vmatpush.msra.mxu0 %v3281
        %6114 = vmatmul.f32.gmra.mxu0 %v1473
        %v6115 = vpop.f32.mrf.mxu0
        %v6116 = vadd.f32 %v6096, %v6115
        %6117 = vdwg.mxu0
        %v6118 = vmax.f32 %v3716, 0.0
        %v6119 = vmax.f32 %v3876, 0.0
        %v6120 = vmax.f32 %v4036, 0.0
        %v6121 = vmax.f32 %v4196, 0.0
        %v6122 = vmax.f32 %v4356, 0.0
        %v6123 = vmax.f32 %v4516, 0.0
        %v6124 = vmax.f32 %v4676, 0.0
        %v6125 = vmax.f32 %v4836, 0.0
        %v6126 = vmax.f32 %v4996, 0.0
        %v6127 = vmax.f32 %v5156, 0.0
        %v6128 = vmax.f32 %v5316, 0.0
        %v6129 = vmax.f32 %v5476, 0.0
        %v6130 = vmax.f32 %v5636, 0.0
        %v6131 = vmax.f32 %v5796, 0.0
        %v6132 = vmax.f32 %v5956, 0.0
        %v6133 = vmax.f32 %v6116, 0.0
        %v6134 = vld [vmem:[%s760] sm:$0xff]
        %v6135 = vld [vmem:[%s760 + $0x8] sm:$0xff]
        %v6136 = vld [vmem:[%s760 + $0x10] sm:$0xff]
        %v6137 = vld [vmem:[%s760 + $0x18] sm:$0xff]
        %v6138 = vld [vmem:[%s760 + $0x20] sm:$0xff]
        %v6139 = vld [vmem:[%s760 + $0x28] sm:$0xff]
        %v6140 = vld [vmem:[%s760 + $0x30] sm:$0xff]
        %v6141 = vld [vmem:[%s760 + $0x38] sm:$0xff]
        %v6142 = vld [vmem:[%s760 + $0x40] sm:$0xff]
        %v6143 = vld [vmem:[%s760 + $0x48] sm:$0xff]
        %v6144 = vld [vmem:[%s760 + $0x50] sm:$0xff]
        %v6145 = vld [vmem:[%s760 + $0x58] sm:$0xff]
        %v6146 = vld [vmem:[%s760 + $0x60] sm:$0xff]
        %v6147 = vld [vmem:[%s760 + $0x68] sm:$0xff]
        %v6148 = vld [vmem:[%s760 + $0x70] sm:$0xff]
        %v6149 = vld [vmem:[%s760 + $0x78] sm:$0xff]
        %v6150 = vld [vmem:[%s760 + $0x80] sm:$0xff]
        %v6151 = vld [vmem:[%s760 + $0x88] sm:$0xff]
        %v6152 = vld [vmem:[%s760 + $0x90] sm:$0xff]
        %v6153 = vld [vmem:[%s760 + $0x98] sm:$0xff]
        %v6154 = vld [vmem:[%s760 + $0xa0] sm:$0xff]
        %v6155 = vld [vmem:[%s760 + $0xa8] sm:$0xff]
        %v6156 = vld [vmem:[%s760 + $0xb0] sm:$0xff]
        %v6157 = vld [vmem:[%s760 + $0xb8] sm:$0xff]
        %v6158 = vld [vmem:[%s760 + $0xc0] sm:$0xff]
        %v6159 = vld [vmem:[%s760 + $0xc8] sm:$0xff]
        %v6160 = vld [vmem:[%s760 + $0xd0] sm:$0xff]
        %v6161 = vld [vmem:[%s760 + $0xd8] sm:$0xff]
        %v6162 = vld [vmem:[%s760 + $0xe0] sm:$0xff]
        %v6163 = vld [vmem:[%s760 + $0xe8] sm:$0xff]
        %v6164 = vld [vmem:[%s760 + $0xf0] sm:$0xff]
        %v6165 = vld [vmem:[%s760 + $0xf8] sm:$0xff]
        %v6166 = vld [vmem:[%s760 + $0x100] sm:$0xff]
        %v6167 = vld [vmem:[%s760 + $0x108] sm:$0xff]
        %v6168 = vld [vmem:[%s760 + $0x110] sm:$0xff]
        %v6169 = vld [vmem:[%s760 + $0x118] sm:$0xff]
        %v6170 = vld [vmem:[%s760 + $0x120] sm:$0xff]
        %v6171 = vld [vmem:[%s760 + $0x128] sm:$0xff]
        %v6172 = vld [vmem:[%s760 + $0x130] sm:$0xff]
        %v6173 = vld [vmem:[%s760 + $0x138] sm:$0xff]
        %v6174 = vld [vmem:[%s760 + $0x140] sm:$0xff]
        %v6175 = vld [vmem:[%s760 + $0x148] sm:$0xff]
        %v6176 = vld [vmem:[%s760 + $0x150] sm:$0xff]
        %v6177 = vld [vmem:[%s760 + $0x158] sm:$0xff]
        %v6178 = vld [vmem:[%s760 + $0x160] sm:$0xff]
        %v6179 = vld [vmem:[%s760 + $0x168] sm:$0xff]
        %v6180 = vld [vmem:[%s760 + $0x170] sm:$0xff]
        %v6181 = vld [vmem:[%s760 + $0x178] sm:$0xff]
        %v6182 = vld [vmem:[%s760 + $0x180] sm:$0xff]
        %v6183 = vld [vmem:[%s760 + $0x188] sm:$0xff]
        %v6184 = vld [vmem:[%s760 + $0x190] sm:$0xff]
        %v6185 = vld [vmem:[%s760 + $0x198] sm:$0xff]
        %v6186 = vld [vmem:[%s760 + $0x1a0] sm:$0xff]
        %v6187 = vld [vmem:[%s760 + $0x1a8] sm:$0xff]
        %v6188 = vld [vmem:[%s760 + $0x1b0] sm:$0xff]
        %v6189 = vld [vmem:[%s760 + $0x1b8] sm:$0xff]
        %v6190 = vld [vmem:[%s760 + $0x1c0] sm:$0xff]
        %v6191 = vld [vmem:[%s760 + $0x1c8] sm:$0xff]
        %v6192 = vld [vmem:[%s760 + $0x1d0] sm:$0xff]
        %v6193 = vld [vmem:[%s760 + $0x1d8] sm:$0xff]
        %v6194 = vld [vmem:[%s760 + $0x1e0] sm:$0xff]
        %v6195 = vld [vmem:[%s760 + $0x1e8] sm:$0xff]
        %v6196 = vld [vmem:[%s760 + $0x1f0] sm:$0xff]
        %v6197 = vld [vmem:[%s760 + $0x1f8] sm:$0xff]
        %v6198 = vld [vmem:[%s760 + $0x200] sm:$0xff]
        %v6199 = vld [vmem:[%s760 + $0x208] sm:$0xff]
        %v6200 = vld [vmem:[%s760 + $0x210] sm:$0xff]
        %v6201 = vld [vmem:[%s760 + $0x218] sm:$0xff]
        %v6202 = vld [vmem:[%s760 + $0x220] sm:$0xff]
        %v6203 = vld [vmem:[%s760 + $0x228] sm:$0xff]
        %v6204 = vld [vmem:[%s760 + $0x230] sm:$0xff]
        %v6205 = vld [vmem:[%s760 + $0x238] sm:$0xff]
        %v6206 = vld [vmem:[%s760 + $0x240] sm:$0xff]
        %v6207 = vld [vmem:[%s760 + $0x248] sm:$0xff]
        %v6208 = vld [vmem:[%s760 + $0x250] sm:$0xff]
        %v6209 = vld [vmem:[%s760 + $0x258] sm:$0xff]
        %v6210 = vld [vmem:[%s760 + $0x260] sm:$0xff]
        %v6211 = vld [vmem:[%s760 + $0x268] sm:$0xff]
        %v6212 = vld [vmem:[%s760 + $0x270] sm:$0xff]
        %v6213 = vld [vmem:[%s760 + $0x278] sm:$0xff]
        %v6214 = vld [vmem:[%s760 + $0x280] sm:$0xff]
        %v6215 = vld [vmem:[%s760 + $0x288] sm:$0xff]
        %v6216 = vld [vmem:[%s760 + $0x290] sm:$0xff]
        %v6217 = vld [vmem:[%s760 + $0x298] sm:$0xff]
        %v6218 = vld [vmem:[%s760 + $0x2a0] sm:$0xff]
        %v6219 = vld [vmem:[%s760 + $0x2a8] sm:$0xff]
        %v6220 = vld [vmem:[%s760 + $0x2b0] sm:$0xff]
        %v6221 = vld [vmem:[%s760 + $0x2b8] sm:$0xff]
        %v6222 = vld [vmem:[%s760 + $0x2c0] sm:$0xff]
        %v6223 = vld [vmem:[%s760 + $0x2c8] sm:$0xff]
        %v6224 = vld [vmem:[%s760 + $0x2d0] sm:$0xff]
        %v6225 = vld [vmem:[%s760 + $0x2d8] sm:$0xff]
        %v6226 = vld [vmem:[%s760 + $0x2e0] sm:$0xff]
        %v6227 = vld [vmem:[%s760 + $0x2e8] sm:$0xff]
        %v6228 = vld [vmem:[%s760 + $0x2f0] sm:$0xff]
        %v6229 = vld [vmem:[%s760 + $0x2f8] sm:$0xff]
        %v6230 = vld [vmem:[%s760 + $0x300] sm:$0xff]
        %v6231 = vld [vmem:[%s760 + $0x308] sm:$0xff]
        %v6232 = vld [vmem:[%s760 + $0x310] sm:$0xff]
        %v6233 = vld [vmem:[%s760 + $0x318] sm:$0xff]
        %v6234 = vld [vmem:[%s760 + $0x320] sm:$0xff]
        %v6235 = vld [vmem:[%s760 + $0x328] sm:$0xff]
        %v6236 = vld [vmem:[%s760 + $0x330] sm:$0xff]
        %v6237 = vld [vmem:[%s760 + $0x338] sm:$0xff]
        %v6238 = vld [vmem:[%s760 + $0x340] sm:$0xff]
        %v6239 = vld [vmem:[%s760 + $0x348] sm:$0xff]
        %v6240 = vld [vmem:[%s760 + $0x350] sm:$0xff]
        %v6241 = vld [vmem:[%s760 + $0x358] sm:$0xff]
        %v6242 = vld [vmem:[%s760 + $0x360] sm:$0xff]
        %v6243 = vld [vmem:[%s760 + $0x368] sm:$0xff]
        %v6244 = vld [vmem:[%s760 + $0x370] sm:$0xff]
        %v6245 = vld [vmem:[%s760 + $0x378] sm:$0xff]
        %v6246 = vld [vmem:[%s760 + $0x380] sm:$0xff]
        %v6247 = vld [vmem:[%s760 + $0x388] sm:$0xff]
        %v6248 = vld [vmem:[%s760 + $0x390] sm:$0xff]
        %v6249 = vld [vmem:[%s760 + $0x398] sm:$0xff]
        %v6250 = vld [vmem:[%s760 + $0x3a0] sm:$0xff]
        %v6251 = vld [vmem:[%s760 + $0x3a8] sm:$0xff]
        %v6252 = vld [vmem:[%s760 + $0x3b0] sm:$0xff]
        %v6253 = vld [vmem:[%s760 + $0x3b8] sm:$0xff]
        %v6254 = vld [vmem:[%s760 + $0x3c0] sm:$0xff]
        %v6255 = vld [vmem:[%s760 + $0x3c8] sm:$0xff]
        %v6256 = vld [vmem:[%s760 + $0x3d0] sm:$0xff]
        %v6257 = vld [vmem:[%s760 + $0x3d8] sm:$0xff]
        %v6258 = vld [vmem:[%s760 + $0x3e0] sm:$0xff]
        %v6259 = vld [vmem:[%s760 + $0x3e8] sm:$0xff]
        %v6260 = vld [vmem:[%s760 + $0x3f0] sm:$0xff]
        %v6261 = vld [vmem:[%s760 + $0x3f8] sm:$0xff]
        %v6262 = vld [vmem:[%s760 + $0x400] sm:$0xff]
        %v6263 = vld [vmem:[%s760 + $0x408] sm:$0xff]
        %v6264 = vld [vmem:[%s760 + $0x410] sm:$0xff]
        %v6265 = vld [vmem:[%s760 + $0x418] sm:$0xff]
        %v6266 = vld [vmem:[%s760 + $0x420] sm:$0xff]
        %v6267 = vld [vmem:[%s760 + $0x428] sm:$0xff]
        %v6268 = vld [vmem:[%s760 + $0x430] sm:$0xff]
        %v6269 = vld [vmem:[%s760 + $0x438] sm:$0xff]
        %v6270 = vld [vmem:[%s760 + $0x440] sm:$0xff]
        %v6271 = vld [vmem:[%s760 + $0x448] sm:$0xff]
        %v6272 = vld [vmem:[%s760 + $0x450] sm:$0xff]
        %v6273 = vld [vmem:[%s760 + $0x458] sm:$0xff]
        %v6274 = vld [vmem:[%s760 + $0x460] sm:$0xff]
        %v6275 = vld [vmem:[%s760 + $0x468] sm:$0xff]
        %v6276 = vld [vmem:[%s760 + $0x470] sm:$0xff]
        %v6277 = vld [vmem:[%s760 + $0x478] sm:$0xff]
        %v6278 = vld [vmem:[%s760 + $0x480] sm:$0xff]
        %v6279 = vld [vmem:[%s760 + $0x488] sm:$0xff]
        %v6280 = vld [vmem:[%s760 + $0x490] sm:$0xff]
        %v6281 = vld [vmem:[%s760 + $0x498] sm:$0xff]
        %v6282 = vld [vmem:[%s760 + $0x4a0] sm:$0xff]
        %v6283 = vld [vmem:[%s760 + $0x4a8] sm:$0xff]
        %v6284 = vld [vmem:[%s760 + $0x4b0] sm:$0xff]
        %v6285 = vld [vmem:[%s760 + $0x4b8] sm:$0xff]
        %v6286 = vld [vmem:[%s760 + $0x4c0] sm:$0xff]
        %v6287 = vld [vmem:[%s760 + $0x4c8] sm:$0xff]
        %v6288 = vld [vmem:[%s760 + $0x4d0] sm:$0xff]
        %v6289 = vld [vmem:[%s760 + $0x4d8] sm:$0xff]
        %v6290 = vld [vmem:[%s760 + $0x4e0] sm:$0xff]
        %v6291 = vld [vmem:[%s760 + $0x4e8] sm:$0xff]
        %v6292 = vld [vmem:[%s760 + $0x4f0] sm:$0xff]
        %v6293 = vld [vmem:[%s760 + $0x4f8] sm:$0xff]
        %v6294 = vld [vmem:[%s760 + $0x500] sm:$0xff]
        %v6295 = vld [vmem:[%s760 + $0x508] sm:$0xff]
        %v6296 = vld [vmem:[%s760 + $0x510] sm:$0xff]
        %v6297 = vld [vmem:[%s760 + $0x518] sm:$0xff]
        %v6298 = vld [vmem:[%s760 + $0x520] sm:$0xff]
        %v6299 = vld [vmem:[%s760 + $0x528] sm:$0xff]
        %v6300 = vld [vmem:[%s760 + $0x530] sm:$0xff]
        %v6301 = vld [vmem:[%s760 + $0x538] sm:$0xff]
        %v6302 = vld [vmem:[%s760 + $0x540] sm:$0xff]
        %v6303 = vld [vmem:[%s760 + $0x548] sm:$0xff]
        %v6304 = vld [vmem:[%s760 + $0x550] sm:$0xff]
        %v6305 = vld [vmem:[%s760 + $0x558] sm:$0xff]
        %v6306 = vld [vmem:[%s760 + $0x560] sm:$0xff]
        %v6307 = vld [vmem:[%s760 + $0x568] sm:$0xff]
        %v6308 = vld [vmem:[%s760 + $0x570] sm:$0xff]
        %v6309 = vld [vmem:[%s760 + $0x578] sm:$0xff]
        %v6310 = vld [vmem:[%s760 + $0x580] sm:$0xff]
        %v6311 = vld [vmem:[%s760 + $0x588] sm:$0xff]
        %v6312 = vld [vmem:[%s760 + $0x590] sm:$0xff]
        %v6313 = vld [vmem:[%s760 + $0x598] sm:$0xff]
        %v6314 = vld [vmem:[%s760 + $0x5a0] sm:$0xff]
        %v6315 = vld [vmem:[%s760 + $0x5a8] sm:$0xff]
        %v6316 = vld [vmem:[%s760 + $0x5b0] sm:$0xff]
        %v6317 = vld [vmem:[%s760 + $0x5b8] sm:$0xff]
        %v6318 = vld [vmem:[%s760 + $0x5c0] sm:$0xff]
        %v6319 = vld [vmem:[%s760 + $0x5c8] sm:$0xff]
        %v6320 = vld [vmem:[%s760 + $0x5d0] sm:$0xff]
        %v6321 = vld [vmem:[%s760 + $0x5d8] sm:$0xff]
        %v6322 = vld [vmem:[%s760 + $0x5e0] sm:$0xff]
        %v6323 = vld [vmem:[%s760 + $0x5e8] sm:$0xff]
        %v6324 = vld [vmem:[%s760 + $0x5f0] sm:$0xff]
        %v6325 = vld [vmem:[%s760 + $0x5f8] sm:$0xff]
        %v6326 = vld [vmem:[%s760 + $0x600] sm:$0xff]
        %v6327 = vld [vmem:[%s760 + $0x608] sm:$0xff]
        %v6328 = vld [vmem:[%s760 + $0x610] sm:$0xff]
        %v6329 = vld [vmem:[%s760 + $0x618] sm:$0xff]
        %v6330 = vld [vmem:[%s760 + $0x620] sm:$0xff]
        %v6331 = vld [vmem:[%s760 + $0x628] sm:$0xff]
        %v6332 = vld [vmem:[%s760 + $0x630] sm:$0xff]
        %v6333 = vld [vmem:[%s760 + $0x638] sm:$0xff]
        %v6334 = vld [vmem:[%s760 + $0x640] sm:$0xff]
        %v6335 = vld [vmem:[%s760 + $0x648] sm:$0xff]
        %v6336 = vld [vmem:[%s760 + $0x650] sm:$0xff]
        %v6337 = vld [vmem:[%s760 + $0x658] sm:$0xff]
        %v6338 = vld [vmem:[%s760 + $0x660] sm:$0xff]
        %v6339 = vld [vmem:[%s760 + $0x668] sm:$0xff]
        %v6340 = vld [vmem:[%s760 + $0x670] sm:$0xff]
        %v6341 = vld [vmem:[%s760 + $0x678] sm:$0xff]
        %v6342 = vld [vmem:[%s760 + $0x680] sm:$0xff]
        %v6343 = vld [vmem:[%s760 + $0x688] sm:$0xff]
        %v6344 = vld [vmem:[%s760 + $0x690] sm:$0xff]
        %v6345 = vld [vmem:[%s760 + $0x698] sm:$0xff]
        %v6346 = vld [vmem:[%s760 + $0x6a0] sm:$0xff]
        %v6347 = vld [vmem:[%s760 + $0x6a8] sm:$0xff]
        %v6348 = vld [vmem:[%s760 + $0x6b0] sm:$0xff]
        %v6349 = vld [vmem:[%s760 + $0x6b8] sm:$0xff]
        %v6350 = vld [vmem:[%s760 + $0x6c0] sm:$0xff]
        %v6351 = vld [vmem:[%s760 + $0x6c8] sm:$0xff]
        %v6352 = vld [vmem:[%s760 + $0x6d0] sm:$0xff]
        %v6353 = vld [vmem:[%s760 + $0x6d8] sm:$0xff]
        %v6354 = vld [vmem:[%s760 + $0x6e0] sm:$0xff]
        %v6355 = vld [vmem:[%s760 + $0x6e8] sm:$0xff]
        %v6356 = vld [vmem:[%s760 + $0x6f0] sm:$0xff]
        %v6357 = vld [vmem:[%s760 + $0x6f8] sm:$0xff]
        %v6358 = vld [vmem:[%s760 + $0x700] sm:$0xff]
        %v6359 = vld [vmem:[%s760 + $0x708] sm:$0xff]
        %v6360 = vld [vmem:[%s760 + $0x710] sm:$0xff]
        %v6361 = vld [vmem:[%s760 + $0x718] sm:$0xff]
        %v6362 = vld [vmem:[%s760 + $0x720] sm:$0xff]
        %v6363 = vld [vmem:[%s760 + $0x728] sm:$0xff]
        %v6364 = vld [vmem:[%s760 + $0x730] sm:$0xff]
        %v6365 = vld [vmem:[%s760 + $0x738] sm:$0xff]
        %v6366 = vld [vmem:[%s760 + $0x740] sm:$0xff]
        %v6367 = vld [vmem:[%s760 + $0x748] sm:$0xff]
        %v6368 = vld [vmem:[%s760 + $0x750] sm:$0xff]
        %v6369 = vld [vmem:[%s760 + $0x758] sm:$0xff]
        %v6370 = vld [vmem:[%s760 + $0x760] sm:$0xff]
        %v6371 = vld [vmem:[%s760 + $0x768] sm:$0xff]
        %v6372 = vld [vmem:[%s760 + $0x770] sm:$0xff]
        %v6373 = vld [vmem:[%s760 + $0x778] sm:$0xff]
        %v6374 = vld [vmem:[%s760 + $0x780] sm:$0xff]
        %v6375 = vld [vmem:[%s760 + $0x788] sm:$0xff]
        %v6376 = vld [vmem:[%s760 + $0x790] sm:$0xff]
        %v6377 = vld [vmem:[%s760 + $0x798] sm:$0xff]
        %v6378 = vld [vmem:[%s760 + $0x7a0] sm:$0xff]
        %v6379 = vld [vmem:[%s760 + $0x7a8] sm:$0xff]
        %v6380 = vld [vmem:[%s760 + $0x7b0] sm:$0xff]
        %v6381 = vld [vmem:[%s760 + $0x7b8] sm:$0xff]
        %v6382 = vld [vmem:[%s760 + $0x7c0] sm:$0xff]
        %v6383 = vld [vmem:[%s760 + $0x7c8] sm:$0xff]
        %v6384 = vld [vmem:[%s760 + $0x7d0] sm:$0xff]
        %v6385 = vld [vmem:[%s760 + $0x7d8] sm:$0xff]
        %v6386 = vld [vmem:[%s760 + $0x7e0] sm:$0xff]
        %v6387 = vld [vmem:[%s760 + $0x7e8] sm:$0xff]
        %v6388 = vld [vmem:[%s760 + $0x7f0] sm:$0xff]
        %v6389 = vld [vmem:[%s760 + $0x7f8] sm:$0xff]
        %v6390 = vld [vmem:[%s760 + $0x800] sm:$0xff]
        %v6391 = vld [vmem:[%s760 + $0x808] sm:$0xff]
        %v6392 = vld [vmem:[%s760 + $0x810] sm:$0xff]
        %v6393 = vld [vmem:[%s760 + $0x818] sm:$0xff]
        %v6394 = vld [vmem:[%s760 + $0x820] sm:$0xff]
        %v6395 = vld [vmem:[%s760 + $0x828] sm:$0xff]
        %v6396 = vld [vmem:[%s760 + $0x830] sm:$0xff]
        %v6397 = vld [vmem:[%s760 + $0x838] sm:$0xff]
        %v6398 = vld [vmem:[%s760 + $0x840] sm:$0xff]
        %v6399 = vld [vmem:[%s760 + $0x848] sm:$0xff]
        %v6400 = vld [vmem:[%s760 + $0x850] sm:$0xff]
        %v6401 = vld [vmem:[%s760 + $0x858] sm:$0xff]
        %v6402 = vld [vmem:[%s760 + $0x860] sm:$0xff]
        %v6403 = vld [vmem:[%s760 + $0x868] sm:$0xff]
        %v6404 = vld [vmem:[%s760 + $0x870] sm:$0xff]
        %v6405 = vld [vmem:[%s760 + $0x878] sm:$0xff]
        %v6406 = vld [vmem:[%s760 + $0x880] sm:$0xff]
        %v6407 = vld [vmem:[%s760 + $0x888] sm:$0xff]
        %v6408 = vld [vmem:[%s760 + $0x890] sm:$0xff]
        %v6409 = vld [vmem:[%s760 + $0x898] sm:$0xff]
        %v6410 = vld [vmem:[%s760 + $0x8a0] sm:$0xff]
        %v6411 = vld [vmem:[%s760 + $0x8a8] sm:$0xff]
        %v6412 = vld [vmem:[%s760 + $0x8b0] sm:$0xff]
        %v6413 = vld [vmem:[%s760 + $0x8b8] sm:$0xff]
        %v6414 = vld [vmem:[%s760 + $0x8c0] sm:$0xff]
        %v6415 = vld [vmem:[%s760 + $0x8c8] sm:$0xff]
        %v6416 = vld [vmem:[%s760 + $0x8d0] sm:$0xff]
        %v6417 = vld [vmem:[%s760 + $0x8d8] sm:$0xff]
        %v6418 = vld [vmem:[%s760 + $0x8e0] sm:$0xff]
        %v6419 = vld [vmem:[%s760 + $0x8e8] sm:$0xff]
        %v6420 = vld [vmem:[%s760 + $0x8f0] sm:$0xff]
        %v6421 = vld [vmem:[%s760 + $0x8f8] sm:$0xff]
        %v6422 = vld [vmem:[%s760 + $0x900] sm:$0xff]
        %v6423 = vld [vmem:[%s760 + $0x908] sm:$0xff]
        %v6424 = vld [vmem:[%s760 + $0x910] sm:$0xff]
        %v6425 = vld [vmem:[%s760 + $0x918] sm:$0xff]
        %v6426 = vld [vmem:[%s760 + $0x920] sm:$0xff]
        %v6427 = vld [vmem:[%s760 + $0x928] sm:$0xff]
        %v6428 = vld [vmem:[%s760 + $0x930] sm:$0xff]
        %v6429 = vld [vmem:[%s760 + $0x938] sm:$0xff]
        %v6430 = vld [vmem:[%s760 + $0x940] sm:$0xff]
        %v6431 = vld [vmem:[%s760 + $0x948] sm:$0xff]
        %v6432 = vld [vmem:[%s760 + $0x950] sm:$0xff]
        %v6433 = vld [vmem:[%s760 + $0x958] sm:$0xff]
        %v6434 = vld [vmem:[%s760 + $0x960] sm:$0xff]
        %v6435 = vld [vmem:[%s760 + $0x968] sm:$0xff]
        %v6436 = vld [vmem:[%s760 + $0x970] sm:$0xff]
        %v6437 = vld [vmem:[%s760 + $0x978] sm:$0xff]
        %v6438 = vld [vmem:[%s760 + $0x980] sm:$0xff]
        %v6439 = vld [vmem:[%s760 + $0x988] sm:$0xff]
        %v6440 = vld [vmem:[%s760 + $0x990] sm:$0xff]
        %v6441 = vld [vmem:[%s760 + $0x998] sm:$0xff]
        %v6442 = vld [vmem:[%s760 + $0x9a0] sm:$0xff]
        %v6443 = vld [vmem:[%s760 + $0x9a8] sm:$0xff]
        %v6444 = vld [vmem:[%s760 + $0x9b0] sm:$0xff]
        %v6445 = vld [vmem:[%s760 + $0x9b8] sm:$0xff]
        %v6446 = vld [vmem:[%s760 + $0x9c0] sm:$0xff]
        %v6447 = vld [vmem:[%s760 + $0x9c8] sm:$0xff]
        %v6448 = vld [vmem:[%s760 + $0x9d0] sm:$0xff]
        %v6449 = vld [vmem:[%s760 + $0x9d8] sm:$0xff]
        %v6450 = vld [vmem:[%s760 + $0x9e0] sm:$0xff]
        %v6451 = vld [vmem:[%s760 + $0x9e8] sm:$0xff]
        %v6452 = vld [vmem:[%s760 + $0x9f0] sm:$0xff]
        %v6453 = vld [vmem:[%s760 + $0x9f8] sm:$0xff]
        %v6454 = vld [vmem:[%s760 + $0xa00] sm:$0xff]
        %v6455 = vld [vmem:[%s760 + $0xa08] sm:$0xff]
        %v6456 = vld [vmem:[%s760 + $0xa10] sm:$0xff]
        %v6457 = vld [vmem:[%s760 + $0xa18] sm:$0xff]
        %v6458 = vld [vmem:[%s760 + $0xa20] sm:$0xff]
        %v6459 = vld [vmem:[%s760 + $0xa28] sm:$0xff]
        %v6460 = vld [vmem:[%s760 + $0xa30] sm:$0xff]
        %v6461 = vld [vmem:[%s760 + $0xa38] sm:$0xff]
        %v6462 = vld [vmem:[%s760 + $0xa40] sm:$0xff]
        %v6463 = vld [vmem:[%s760 + $0xa48] sm:$0xff]
        %v6464 = vld [vmem:[%s760 + $0xa50] sm:$0xff]
        %v6465 = vld [vmem:[%s760 + $0xa58] sm:$0xff]
        %v6466 = vld [vmem:[%s760 + $0xa60] sm:$0xff]
        %v6467 = vld [vmem:[%s760 + $0xa68] sm:$0xff]
        %v6468 = vld [vmem:[%s760 + $0xa70] sm:$0xff]
        %v6469 = vld [vmem:[%s760 + $0xa78] sm:$0xff]
        %v6470 = vld [vmem:[%s760 + $0xa80] sm:$0xff]
        %v6471 = vld [vmem:[%s760 + $0xa88] sm:$0xff]
        %v6472 = vld [vmem:[%s760 + $0xa90] sm:$0xff]
        %v6473 = vld [vmem:[%s760 + $0xa98] sm:$0xff]
        %v6474 = vld [vmem:[%s760 + $0xaa0] sm:$0xff]
        %v6475 = vld [vmem:[%s760 + $0xaa8] sm:$0xff]
        %v6476 = vld [vmem:[%s760 + $0xab0] sm:$0xff]
        %v6477 = vld [vmem:[%s760 + $0xab8] sm:$0xff]
        %v6478 = vld [vmem:[%s760 + $0xac0] sm:$0xff]
        %v6479 = vld [vmem:[%s760 + $0xac8] sm:$0xff]
        %v6480 = vld [vmem:[%s760 + $0xad0] sm:$0xff]
        %v6481 = vld [vmem:[%s760 + $0xad8] sm:$0xff]
        %v6482 = vld [vmem:[%s760 + $0xae0] sm:$0xff]
        %v6483 = vld [vmem:[%s760 + $0xae8] sm:$0xff]
        %v6484 = vld [vmem:[%s760 + $0xaf0] sm:$0xff]
        %v6485 = vld [vmem:[%s760 + $0xaf8] sm:$0xff]
        %v6486 = vld [vmem:[%s760 + $0xb00] sm:$0xff]
        %v6487 = vld [vmem:[%s760 + $0xb08] sm:$0xff]
        %v6488 = vld [vmem:[%s760 + $0xb10] sm:$0xff]
        %v6489 = vld [vmem:[%s760 + $0xb18] sm:$0xff]
        %v6490 = vld [vmem:[%s760 + $0xb20] sm:$0xff]
        %v6491 = vld [vmem:[%s760 + $0xb28] sm:$0xff]
        %v6492 = vld [vmem:[%s760 + $0xb30] sm:$0xff]
        %v6493 = vld [vmem:[%s760 + $0xb38] sm:$0xff]
        %v6494 = vld [vmem:[%s760 + $0xb40] sm:$0xff]
        %v6495 = vld [vmem:[%s760 + $0xb48] sm:$0xff]
        %v6496 = vld [vmem:[%s760 + $0xb50] sm:$0xff]
        %v6497 = vld [vmem:[%s760 + $0xb58] sm:$0xff]
        %v6498 = vld [vmem:[%s760 + $0xb60] sm:$0xff]
        %v6499 = vld [vmem:[%s760 + $0xb68] sm:$0xff]
        %v6500 = vld [vmem:[%s760 + $0xb70] sm:$0xff]
        %v6501 = vld [vmem:[%s760 + $0xb78] sm:$0xff]
        %v6502 = vld [vmem:[%s760 + $0xb80] sm:$0xff]
        %v6503 = vld [vmem:[%s760 + $0xb88] sm:$0xff]
        %v6504 = vld [vmem:[%s760 + $0xb90] sm:$0xff]
        %v6505 = vld [vmem:[%s760 + $0xb98] sm:$0xff]
        %v6506 = vld [vmem:[%s760 + $0xba0] sm:$0xff]
        %v6507 = vld [vmem:[%s760 + $0xba8] sm:$0xff]
        %v6508 = vld [vmem:[%s760 + $0xbb0] sm:$0xff]
        %v6509 = vld [vmem:[%s760 + $0xbb8] sm:$0xff]
        %v6510 = vld [vmem:[%s760 + $0xbc0] sm:$0xff]
        %v6511 = vld [vmem:[%s760 + $0xbc8] sm:$0xff]
        %v6512 = vld [vmem:[%s760 + $0xbd0] sm:$0xff]
        %v6513 = vld [vmem:[%s760 + $0xbd8] sm:$0xff]
        %v6514 = vld [vmem:[%s760 + $0xbe0] sm:$0xff]
        %v6515 = vld [vmem:[%s760 + $0xbe8] sm:$0xff]
        %v6516 = vld [vmem:[%s760 + $0xbf0] sm:$0xff]
        %v6517 = vld [vmem:[%s760 + $0xbf8] sm:$0xff]
        %v6518 = vld [vmem:[%s760 + $0xc00] sm:$0xff]
        %v6519 = vld [vmem:[%s760 + $0xc08] sm:$0xff]
        %v6520 = vld [vmem:[%s760 + $0xc10] sm:$0xff]
        %v6521 = vld [vmem:[%s760 + $0xc18] sm:$0xff]
        %v6522 = vld [vmem:[%s760 + $0xc20] sm:$0xff]
        %v6523 = vld [vmem:[%s760 + $0xc28] sm:$0xff]
        %v6524 = vld [vmem:[%s760 + $0xc30] sm:$0xff]
        %v6525 = vld [vmem:[%s760 + $0xc38] sm:$0xff]
        %v6526 = vld [vmem:[%s760 + $0xc40] sm:$0xff]
        %v6527 = vld [vmem:[%s760 + $0xc48] sm:$0xff]
        %v6528 = vld [vmem:[%s760 + $0xc50] sm:$0xff]
        %v6529 = vld [vmem:[%s760 + $0xc58] sm:$0xff]
        %v6530 = vld [vmem:[%s760 + $0xc60] sm:$0xff]
        %v6531 = vld [vmem:[%s760 + $0xc68] sm:$0xff]
        %v6532 = vld [vmem:[%s760 + $0xc70] sm:$0xff]
        %v6533 = vld [vmem:[%s760 + $0xc78] sm:$0xff]
        %v6534 = vld [vmem:[%s760 + $0xc80] sm:$0xff]
        %v6535 = vld [vmem:[%s760 + $0xc88] sm:$0xff]
        %v6536 = vld [vmem:[%s760 + $0xc90] sm:$0xff]
        %v6537 = vld [vmem:[%s760 + $0xc98] sm:$0xff]
        %v6538 = vld [vmem:[%s760 + $0xca0] sm:$0xff]
        %v6539 = vld [vmem:[%s760 + $0xca8] sm:$0xff]
        %v6540 = vld [vmem:[%s760 + $0xcb0] sm:$0xff]
        %v6541 = vld [vmem:[%s760 + $0xcb8] sm:$0xff]
        %v6542 = vld [vmem:[%s760 + $0xcc0] sm:$0xff]
        %v6543 = vld [vmem:[%s760 + $0xcc8] sm:$0xff]
        %v6544 = vld [vmem:[%s760 + $0xcd0] sm:$0xff]
        %v6545 = vld [vmem:[%s760 + $0xcd8] sm:$0xff]
        %v6546 = vld [vmem:[%s760 + $0xce0] sm:$0xff]
        %v6547 = vld [vmem:[%s760 + $0xce8] sm:$0xff]
        %v6548 = vld [vmem:[%s760 + $0xcf0] sm:$0xff]
        %v6549 = vld [vmem:[%s760 + $0xcf8] sm:$0xff]
        %v6550 = vld [vmem:[%s760 + $0xd00] sm:$0xff]
        %v6551 = vld [vmem:[%s760 + $0xd08] sm:$0xff]
        %v6552 = vld [vmem:[%s760 + $0xd10] sm:$0xff]
        %v6553 = vld [vmem:[%s760 + $0xd18] sm:$0xff]
        %v6554 = vld [vmem:[%s760 + $0xd20] sm:$0xff]
        %v6555 = vld [vmem:[%s760 + $0xd28] sm:$0xff]
        %v6556 = vld [vmem:[%s760 + $0xd30] sm:$0xff]
        %v6557 = vld [vmem:[%s760 + $0xd38] sm:$0xff]
        %v6558 = vld [vmem:[%s760 + $0xd40] sm:$0xff]
        %v6559 = vld [vmem:[%s760 + $0xd48] sm:$0xff]
        %v6560 = vld [vmem:[%s760 + $0xd50] sm:$0xff]
        %v6561 = vld [vmem:[%s760 + $0xd58] sm:$0xff]
        %v6562 = vld [vmem:[%s760 + $0xd60] sm:$0xff]
        %v6563 = vld [vmem:[%s760 + $0xd68] sm:$0xff]
        %v6564 = vld [vmem:[%s760 + $0xd70] sm:$0xff]
        %v6565 = vld [vmem:[%s760 + $0xd78] sm:$0xff]
        %v6566 = vld [vmem:[%s760 + $0xd80] sm:$0xff]
        %v6567 = vld [vmem:[%s760 + $0xd88] sm:$0xff]
        %v6568 = vld [vmem:[%s760 + $0xd90] sm:$0xff]
        %v6569 = vld [vmem:[%s760 + $0xd98] sm:$0xff]
        %v6570 = vld [vmem:[%s760 + $0xda0] sm:$0xff]
        %v6571 = vld [vmem:[%s760 + $0xda8] sm:$0xff]
        %v6572 = vld [vmem:[%s760 + $0xdb0] sm:$0xff]
        %v6573 = vld [vmem:[%s760 + $0xdb8] sm:$0xff]
        %v6574 = vld [vmem:[%s760 + $0xdc0] sm:$0xff]
        %v6575 = vld [vmem:[%s760 + $0xdc8] sm:$0xff]
        %v6576 = vld [vmem:[%s760 + $0xdd0] sm:$0xff]
        %v6577 = vld [vmem:[%s760 + $0xdd8] sm:$0xff]
        %v6578 = vld [vmem:[%s760 + $0xde0] sm:$0xff]
        %v6579 = vld [vmem:[%s760 + $0xde8] sm:$0xff]
        %v6580 = vld [vmem:[%s760 + $0xdf0] sm:$0xff]
        %v6581 = vld [vmem:[%s760 + $0xdf8] sm:$0xff]
        %v6582 = vld [vmem:[%s760 + $0xe00] sm:$0xff]
        %v6583 = vld [vmem:[%s760 + $0xe08] sm:$0xff]
        %v6584 = vld [vmem:[%s760 + $0xe10] sm:$0xff]
        %v6585 = vld [vmem:[%s760 + $0xe18] sm:$0xff]
        %v6586 = vld [vmem:[%s760 + $0xe20] sm:$0xff]
        %v6587 = vld [vmem:[%s760 + $0xe28] sm:$0xff]
        %v6588 = vld [vmem:[%s760 + $0xe30] sm:$0xff]
        %v6589 = vld [vmem:[%s760 + $0xe38] sm:$0xff]
        %v6590 = vld [vmem:[%s760 + $0xe40] sm:$0xff]
        %v6591 = vld [vmem:[%s760 + $0xe48] sm:$0xff]
        %v6592 = vld [vmem:[%s760 + $0xe50] sm:$0xff]
        %v6593 = vld [vmem:[%s760 + $0xe58] sm:$0xff]
        %v6594 = vld [vmem:[%s760 + $0xe60] sm:$0xff]
        %v6595 = vld [vmem:[%s760 + $0xe68] sm:$0xff]
        %v6596 = vld [vmem:[%s760 + $0xe70] sm:$0xff]
        %v6597 = vld [vmem:[%s760 + $0xe78] sm:$0xff]
        %v6598 = vld [vmem:[%s760 + $0xe80] sm:$0xff]
        %v6599 = vld [vmem:[%s760 + $0xe88] sm:$0xff]
        %v6600 = vld [vmem:[%s760 + $0xe90] sm:$0xff]
        %v6601 = vld [vmem:[%s760 + $0xe98] sm:$0xff]
        %v6602 = vld [vmem:[%s760 + $0xea0] sm:$0xff]
        %v6603 = vld [vmem:[%s760 + $0xea8] sm:$0xff]
        %v6604 = vld [vmem:[%s760 + $0xeb0] sm:$0xff]
        %v6605 = vld [vmem:[%s760 + $0xeb8] sm:$0xff]
        %v6606 = vld [vmem:[%s760 + $0xec0] sm:$0xff]
        %v6607 = vld [vmem:[%s760 + $0xec8] sm:$0xff]
        %v6608 = vld [vmem:[%s760 + $0xed0] sm:$0xff]
        %v6609 = vld [vmem:[%s760 + $0xed8] sm:$0xff]
        %v6610 = vld [vmem:[%s760 + $0xee0] sm:$0xff]
        %v6611 = vld [vmem:[%s760 + $0xee8] sm:$0xff]
        %v6612 = vld [vmem:[%s760 + $0xef0] sm:$0xff]
        %v6613 = vld [vmem:[%s760 + $0xef8] sm:$0xff]
        %v6614 = vld [vmem:[%s760 + $0xf00] sm:$0xff]
        %v6615 = vld [vmem:[%s760 + $0xf08] sm:$0xff]
        %v6616 = vld [vmem:[%s760 + $0xf10] sm:$0xff]
        %v6617 = vld [vmem:[%s760 + $0xf18] sm:$0xff]
        %v6618 = vld [vmem:[%s760 + $0xf20] sm:$0xff]
        %v6619 = vld [vmem:[%s760 + $0xf28] sm:$0xff]
        %v6620 = vld [vmem:[%s760 + $0xf30] sm:$0xff]
        %v6621 = vld [vmem:[%s760 + $0xf38] sm:$0xff]
        %v6622 = vld [vmem:[%s760 + $0xf40] sm:$0xff]
        %v6623 = vld [vmem:[%s760 + $0xf48] sm:$0xff]
        %v6624 = vld [vmem:[%s760 + $0xf50] sm:$0xff]
        %v6625 = vld [vmem:[%s760 + $0xf58] sm:$0xff]
        %v6626 = vld [vmem:[%s760 + $0xf60] sm:$0xff]
        %v6627 = vld [vmem:[%s760 + $0xf68] sm:$0xff]
        %v6628 = vld [vmem:[%s760 + $0xf70] sm:$0xff]
        %v6629 = vld [vmem:[%s760 + $0xf78] sm:$0xff]
        %v6630 = vld [vmem:[%s760 + $0xf80] sm:$0xff]
        %v6631 = vld [vmem:[%s760 + $0xf88] sm:$0xff]
        %v6632 = vld [vmem:[%s760 + $0xf90] sm:$0xff]
        %v6633 = vld [vmem:[%s760 + $0xf98] sm:$0xff]
        %v6634 = vld [vmem:[%s760 + $0xfa0] sm:$0xff]
        %v6635 = vld [vmem:[%s760 + $0xfa8] sm:$0xff]
        %v6636 = vld [vmem:[%s760 + $0xfb0] sm:$0xff]
        %v6637 = vld [vmem:[%s760 + $0xfb8] sm:$0xff]
        %v6638 = vld [vmem:[%s760 + $0xfc0] sm:$0xff]
        %v6639 = vld [vmem:[%s760 + $0xfc8] sm:$0xff]
        %v6640 = vld [vmem:[%s760 + $0xfd0] sm:$0xff]
        %v6641 = vld [vmem:[%s760 + $0xfd8] sm:$0xff]
        %v6642 = vld [vmem:[%s760 + $0xfe0] sm:$0xff]
        %v6643 = vld [vmem:[%s760 + $0xfe8] sm:$0xff]
        %v6644 = vld [vmem:[%s760 + $0xff0] sm:$0xff]
        %v6645 = vld [vmem:[%s760 + $0xff8] sm:$0xff]
        %v6646 = vld [vmem:[#allocation2] sm:$0x3]
        %v6647 = vld [vmem:[%s770] sm:$0xff]
        %v6648 = vld [vmem:[%s770 + $0x8] sm:$0xff]
        %vm6649 = vcmask 64512
        %v6651 = vsel %vm6649, %v6646, 0
        %6653 = vmatpush.msra.mxu0 0.0
        %6654 = vmatpush.msra.mxu0 0.0
        %6655 = vmatpush.msra.mxu0 0.0
        %6656 = vmatpush.msra.mxu0 0.0
        %6657 = vmatpush.msra.mxu0 0.0
        %6658 = vmatpush.msra.mxu0 0.0
        %6659 = vmatpush.msra.mxu0 0.0
        %6660 = vmatpush.msra.mxu0 0.0
        %6661 = vmatpush.msra.mxu0 0.0
        %6662 = vmatpush.msra.mxu0 0.0
        %6663 = vmatpush.msra.mxu0 0.0
        %6664 = vmatpush.msra.mxu0 0.0
        %6665 = vmatpush.msra.mxu0 0.0
        %6666 = vmatpush.msra.mxu0 0.0
        %6667 = vmatpush.msra.mxu0 0.0
        %6668 = vmatpush.msra.mxu0 %v6647
        %6669 = vmatmul.f32.gmra.mxu0 %v6651
        %v6670 = vpop.f32.mrf.mxu0
        %v6671 = vadd.f32 0.0, %v6670
        %6672 = vdwg.mxu0
        %6673 = vmatpush.msra.mxu0 0.0
        %6674 = vmatpush.msra.mxu0 0.0
        %6675 = vmatpush.msra.mxu0 0.0
        %6676 = vmatpush.msra.mxu0 0.0
        %6677 = vmatpush.msra.mxu0 0.0
        %6678 = vmatpush.msra.mxu0 0.0
        %6679 = vmatpush.msra.mxu0 0.0
        %6680 = vmatpush.msra.mxu0 0.0
        %6681 = vmatpush.msra.mxu0 0.0
        %6682 = vmatpush.msra.mxu0 0.0
        %6683 = vmatpush.msra.mxu0 0.0
        %6684 = vmatpush.msra.mxu0 0.0
        %6685 = vmatpush.msra.mxu0 0.0
        %6686 = vmatpush.msra.mxu0 0.0
        %6687 = vmatpush.msra.mxu0 0.0
        %6688 = vmatpush.msra.mxu0 %v6648
        %6689 = vmatmul.f32.gmra.mxu0 %v6651
        %v6690 = vpop.f32.mrf.mxu0
        %v6691 = vadd.f32 0.0, %v6690
        %6692 = vdwg.mxu0
        %6693 = vmatpush.msra.mxu0 %v6164
        %6694 = vmatpush.msra.mxu0 %v6162
        %6695 = vmatpush.msra.mxu0 %v6160
        %6696 = vmatpush.msra.mxu0 %v6158
        %6697 = vmatpush.msra.mxu0 %v6156
        %6698 = vmatpush.msra.mxu0 %v6154
        %6699 = vmatpush.msra.mxu0 %v6152
        %6700 = vmatpush.msra.mxu0 %v6150
        %6701 = vmatpush.msra.mxu0 %v6148
        %6702 = vmatpush.msra.mxu0 %v6146
        %6703 = vmatpush.msra.mxu0 %v6144
        %6704 = vmatpush.msra.mxu0 %v6142
        %6705 = vmatpush.msra.mxu0 %v6140
        %6706 = vmatpush.msra.mxu0 %v6138
        %6707 = vmatpush.msra.mxu0 %v6136
        %6708 = vmatpush.msra.mxu0 %v6134
        %6709 = vmatmul.f32.gmra.mxu0 %v6118
        %v6710 = vpop.f32.mrf.mxu0
        %v6711 = vadd.f32 %v6671, %v6710
        %6712 = vdwg.mxu0
        %6713 = vmatpush.msra.mxu0 %v6196
        %6714 = vmatpush.msra.mxu0 %v6194
        %6715 = vmatpush.msra.mxu0 %v6192
        %6716 = vmatpush.msra.mxu0 %v6190
        %6717 = vmatpush.msra.mxu0 %v6188
        %6718 = vmatpush.msra.mxu0 %v6186
        %6719 = vmatpush.msra.mxu0 %v6184
        %6720 = vmatpush.msra.mxu0 %v6182
        %6721 = vmatpush.msra.mxu0 %v6180
        %6722 = vmatpush.msra.mxu0 %v6178
        %6723 = vmatpush.msra.mxu0 %v6176
        %6724 = vmatpush.msra.mxu0 %v6174
        %6725 = vmatpush.msra.mxu0 %v6172
        %6726 = vmatpush.msra.mxu0 %v6170
        %6727 = vmatpush.msra.mxu0 %v6168
        %6728 = vmatpush.msra.mxu0 %v6166
        %6729 = vmatmul.f32.gmra.mxu0 %v6119
        %v6730 = vpop.f32.mrf.mxu0
        %v6731 = vadd.f32 %v6711, %v6730
        %6732 = vdwg.mxu0
        %6733 = vmatpush.msra.mxu0 %v6228
        %6734 = vmatpush.msra.mxu0 %v6226
        %6735 = vmatpush.msra.mxu0 %v6224
        %6736 = vmatpush.msra.mxu0 %v6222
        %6737 = vmatpush.msra.mxu0 %v6220
        %6738 = vmatpush.msra.mxu0 %v6218
        %6739 = vmatpush.msra.mxu0 %v6216
        %6740 = vmatpush.msra.mxu0 %v6214
        %6741 = vmatpush.msra.mxu0 %v6212
        %6742 = vmatpush.msra.mxu0 %v6210
        %6743 = vmatpush.msra.mxu0 %v6208
        %6744 = vmatpush.msra.mxu0 %v6206
        %6745 = vmatpush.msra.mxu0 %v6204
        %6746 = vmatpush.msra.mxu0 %v6202
        %6747 = vmatpush.msra.mxu0 %v6200
        %6748 = vmatpush.msra.mxu0 %v6198
        %6749 = vmatmul.f32.gmra.mxu0 %v6120
        %v6750 = vpop.f32.mrf.mxu0
        %v6751 = vadd.f32 %v6731, %v6750
        %6752 = vdwg.mxu0
        %6753 = vmatpush.msra.mxu0 %v6260
        %6754 = vmatpush.msra.mxu0 %v6258
        %6755 = vmatpush.msra.mxu0 %v6256
        %6756 = vmatpush.msra.mxu0 %v6254
        %6757 = vmatpush.msra.mxu0 %v6252
        %6758 = vmatpush.msra.mxu0 %v6250
        %6759 = vmatpush.msra.mxu0 %v6248
        %6760 = vmatpush.msra.mxu0 %v6246
        %6761 = vmatpush.msra.mxu0 %v6244
        %6762 = vmatpush.msra.mxu0 %v6242
        %6763 = vmatpush.msra.mxu0 %v6240
        %6764 = vmatpush.msra.mxu0 %v6238
        %6765 = vmatpush.msra.mxu0 %v6236
        %6766 = vmatpush.msra.mxu0 %v6234
        %6767 = vmatpush.msra.mxu0 %v6232
        %6768 = vmatpush.msra.mxu0 %v6230
        %6769 = vmatmul.f32.gmra.mxu0 %v6121
        %v6770 = vpop.f32.mrf.mxu0
        %v6771 = vadd.f32 %v6751, %v6770
        %6772 = vdwg.mxu0
        %6773 = vmatpush.msra.mxu0 %v6292
        %6774 = vmatpush.msra.mxu0 %v6290
        %6775 = vmatpush.msra.mxu0 %v6288
        %6776 = vmatpush.msra.mxu0 %v6286
        %6777 = vmatpush.msra.mxu0 %v6284
        %6778 = vmatpush.msra.mxu0 %v6282
        %6779 = vmatpush.msra.mxu0 %v6280
        %6780 = vmatpush.msra.mxu0 %v6278
        %6781 = vmatpush.msra.mxu0 %v6276
        %6782 = vmatpush.msra.mxu0 %v6274
        %6783 = vmatpush.msra.mxu0 %v6272
        %6784 = vmatpush.msra.mxu0 %v6270
        %6785 = vmatpush.msra.mxu0 %v6268
        %6786 = vmatpush.msra.mxu0 %v6266
        %6787 = vmatpush.msra.mxu0 %v6264
        %6788 = vmatpush.msra.mxu0 %v6262
        %6789 = vmatmul.f32.gmra.mxu0 %v6122
        %v6790 = vpop.f32.mrf.mxu0
        %v6791 = vadd.f32 %v6771, %v6790
        %6792 = vdwg.mxu0
        %6793 = vmatpush.msra.mxu0 %v6324
        %6794 = vmatpush.msra.mxu0 %v6322
        %6795 = vmatpush.msra.mxu0 %v6320
        %6796 = vmatpush.msra.mxu0 %v6318
        %6797 = vmatpush.msra.mxu0 %v6316
        %6798 = vmatpush.msra.mxu0 %v6314
        %6799 = vmatpush.msra.mxu0 %v6312
        %6800 = vmatpush.msra.mxu0 %v6310
        %6801 = vmatpush.msra.mxu0 %v6308
        %6802 = vmatpush.msra.mxu0 %v6306
        %6803 = vmatpush.msra.mxu0 %v6304
        %6804 = vmatpush.msra.mxu0 %v6302
        %6805 = vmatpush.msra.mxu0 %v6300
        %6806 = vmatpush.msra.mxu0 %v6298
        %6807 = vmatpush.msra.mxu0 %v6296
        %6808 = vmatpush.msra.mxu0 %v6294
        %6809 = vmatmul.f32.gmra.mxu0 %v6123
        %v6810 = vpop.f32.mrf.mxu0
        %v6811 = vadd.f32 %v6791, %v6810
        %6812 = vdwg.mxu0
        %6813 = vmatpush.msra.mxu0 %v6356
        %6814 = vmatpush.msra.mxu0 %v6354
        %6815 = vmatpush.msra.mxu0 %v6352
        %6816 = vmatpush.msra.mxu0 %v6350
        %6817 = vmatpush.msra.mxu0 %v6348
        %6818 = vmatpush.msra.mxu0 %v6346
        %6819 = vmatpush.msra.mxu0 %v6344
        %6820 = vmatpush.msra.mxu0 %v6342
        %6821 = vmatpush.msra.mxu0 %v6340
        %6822 = vmatpush.msra.mxu0 %v6338
        %6823 = vmatpush.msra.mxu0 %v6336
        %6824 = vmatpush.msra.mxu0 %v6334
        %6825 = vmatpush.msra.mxu0 %v6332
        %6826 = vmatpush.msra.mxu0 %v6330
        %6827 = vmatpush.msra.mxu0 %v6328
        %6828 = vmatpush.msra.mxu0 %v6326
        %6829 = vmatmul.f32.gmra.mxu0 %v6124
        %v6830 = vpop.f32.mrf.mxu0
        %v6831 = vadd.f32 %v6811, %v6830
        %6832 = vdwg.mxu0
        %6833 = vmatpush.msra.mxu0 %v6388
        %6834 = vmatpush.msra.mxu0 %v6386
        %6835 = vmatpush.msra.mxu0 %v6384
        %6836 = vmatpush.msra.mxu0 %v6382
        %6837 = vmatpush.msra.mxu0 %v6380
        %6838 = vmatpush.msra.mxu0 %v6378
        %6839 = vmatpush.msra.mxu0 %v6376
        %6840 = vmatpush.msra.mxu0 %v6374
        %6841 = vmatpush.msra.mxu0 %v6372
        %6842 = vmatpush.msra.mxu0 %v6370
        %6843 = vmatpush.msra.mxu0 %v6368
        %6844 = vmatpush.msra.mxu0 %v6366
        %6845 = vmatpush.msra.mxu0 %v6364
        %6846 = vmatpush.msra.mxu0 %v6362
        %6847 = vmatpush.msra.mxu0 %v6360
        %6848 = vmatpush.msra.mxu0 %v6358
        %6849 = vmatmul.f32.gmra.mxu0 %v6125
        %v6850 = vpop.f32.mrf.mxu0
        %v6851 = vadd.f32 %v6831, %v6850
        %6852 = vdwg.mxu0
        %6853 = vmatpush.msra.mxu0 %v6420
        %6854 = vmatpush.msra.mxu0 %v6418
        %6855 = vmatpush.msra.mxu0 %v6416
        %6856 = vmatpush.msra.mxu0 %v6414
        %6857 = vmatpush.msra.mxu0 %v6412
        %6858 = vmatpush.msra.mxu0 %v6410
        %6859 = vmatpush.msra.mxu0 %v6408
        %6860 = vmatpush.msra.mxu0 %v6406
        %6861 = vmatpush.msra.mxu0 %v6404
        %6862 = vmatpush.msra.mxu0 %v6402
        %6863 = vmatpush.msra.mxu0 %v6400
        %6864 = vmatpush.msra.mxu0 %v6398
        %6865 = vmatpush.msra.mxu0 %v6396
        %6866 = vmatpush.msra.mxu0 %v6394
        %6867 = vmatpush.msra.mxu0 %v6392
        %6868 = vmatpush.msra.mxu0 %v6390
        %6869 = vmatmul.f32.gmra.mxu0 %v6126
        %v6870 = vpop.f32.mrf.mxu0
        %v6871 = vadd.f32 %v6851, %v6870
        %6872 = vdwg.mxu0
        %6873 = vmatpush.msra.mxu0 %v6452
        %6874 = vmatpush.msra.mxu0 %v6450
        %6875 = vmatpush.msra.mxu0 %v6448
        %6876 = vmatpush.msra.mxu0 %v6446
        %6877 = vmatpush.msra.mxu0 %v6444
        %6878 = vmatpush.msra.mxu0 %v6442
        %6879 = vmatpush.msra.mxu0 %v6440
        %6880 = vmatpush.msra.mxu0 %v6438
        %6881 = vmatpush.msra.mxu0 %v6436
        %6882 = vmatpush.msra.mxu0 %v6434
        %6883 = vmatpush.msra.mxu0 %v6432
        %6884 = vmatpush.msra.mxu0 %v6430
        %6885 = vmatpush.msra.mxu0 %v6428
        %6886 = vmatpush.msra.mxu0 %v6426
        %6887 = vmatpush.msra.mxu0 %v6424
        %6888 = vmatpush.msra.mxu0 %v6422
        %6889 = vmatmul.f32.gmra.mxu0 %v6127
        %v6890 = vpop.f32.mrf.mxu0
        %v6891 = vadd.f32 %v6871, %v6890
        %6892 = vdwg.mxu0
        %6893 = vmatpush.msra.mxu0 %v6484
        %6894 = vmatpush.msra.mxu0 %v6482
        %6895 = vmatpush.msra.mxu0 %v6480
        %6896 = vmatpush.msra.mxu0 %v6478
        %6897 = vmatpush.msra.mxu0 %v6476
        %6898 = vmatpush.msra.mxu0 %v6474
        %6899 = vmatpush.msra.mxu0 %v6472
        %6900 = vmatpush.msra.mxu0 %v6470
        %6901 = vmatpush.msra.mxu0 %v6468
        %6902 = vmatpush.msra.mxu0 %v6466
        %6903 = vmatpush.msra.mxu0 %v6464
        %6904 = vmatpush.msra.mxu0 %v6462
        %6905 = vmatpush.msra.mxu0 %v6460
        %6906 = vmatpush.msra.mxu0 %v6458
        %6907 = vmatpush.msra.mxu0 %v6456
        %6908 = vmatpush.msra.mxu0 %v6454
        %6909 = vmatmul.f32.gmra.mxu0 %v6128
        %v6910 = vpop.f32.mrf.mxu0
        %v6911 = vadd.f32 %v6891, %v6910
        %6912 = vdwg.mxu0
        %6913 = vmatpush.msra.mxu0 %v6516
        %6914 = vmatpush.msra.mxu0 %v6514
        %6915 = vmatpush.msra.mxu0 %v6512
        %6916 = vmatpush.msra.mxu0 %v6510
        %6917 = vmatpush.msra.mxu0 %v6508
        %6918 = vmatpush.msra.mxu0 %v6506
        %6919 = vmatpush.msra.mxu0 %v6504
        %6920 = vmatpush.msra.mxu0 %v6502
        %6921 = vmatpush.msra.mxu0 %v6500
        %6922 = vmatpush.msra.mxu0 %v6498
        %6923 = vmatpush.msra.mxu0 %v6496
        %6924 = vmatpush.msra.mxu0 %v6494
        %6925 = vmatpush.msra.mxu0 %v6492
        %6926 = vmatpush.msra.mxu0 %v6490
        %6927 = vmatpush.msra.mxu0 %v6488
        %6928 = vmatpush.msra.mxu0 %v6486
        %6929 = vmatmul.f32.gmra.mxu0 %v6129
        %v6930 = vpop.f32.mrf.mxu0
        %v6931 = vadd.f32 %v6911, %v6930
        %6932 = vdwg.mxu0
        %6933 = vmatpush.msra.mxu0 %v6548
        %6934 = vmatpush.msra.mxu0 %v6546
        %6935 = vmatpush.msra.mxu0 %v6544
        %6936 = vmatpush.msra.mxu0 %v6542
        %6937 = vmatpush.msra.mxu0 %v6540
        %6938 = vmatpush.msra.mxu0 %v6538
        %6939 = vmatpush.msra.mxu0 %v6536
        %6940 = vmatpush.msra.mxu0 %v6534
        %6941 = vmatpush.msra.mxu0 %v6532
        %6942 = vmatpush.msra.mxu0 %v6530
        %6943 = vmatpush.msra.mxu0 %v6528
        %6944 = vmatpush.msra.mxu0 %v6526
        %6945 = vmatpush.msra.mxu0 %v6524
        %6946 = vmatpush.msra.mxu0 %v6522
        %6947 = vmatpush.msra.mxu0 %v6520
        %6948 = vmatpush.msra.mxu0 %v6518
        %6949 = vmatmul.f32.gmra.mxu0 %v6130
        %v6950 = vpop.f32.mrf.mxu0
        %v6951 = vadd.f32 %v6931, %v6950
        %6952 = vdwg.mxu0
        %6953 = vmatpush.msra.mxu0 %v6580
        %6954 = vmatpush.msra.mxu0 %v6578
        %6955 = vmatpush.msra.mxu0 %v6576
        %6956 = vmatpush.msra.mxu0 %v6574
        %6957 = vmatpush.msra.mxu0 %v6572
        %6958 = vmatpush.msra.mxu0 %v6570
        %6959 = vmatpush.msra.mxu0 %v6568
        %6960 = vmatpush.msra.mxu0 %v6566
        %6961 = vmatpush.msra.mxu0 %v6564
        %6962 = vmatpush.msra.mxu0 %v6562
        %6963 = vmatpush.msra.mxu0 %v6560
        %6964 = vmatpush.msra.mxu0 %v6558
        %6965 = vmatpush.msra.mxu0 %v6556
        %6966 = vmatpush.msra.mxu0 %v6554
        %6967 = vmatpush.msra.mxu0 %v6552
        %6968 = vmatpush.msra.mxu0 %v6550
        %6969 = vmatmul.f32.gmra.mxu0 %v6131
        %v6970 = vpop.f32.mrf.mxu0
        %v6971 = vadd.f32 %v6951, %v6970
        %6972 = vdwg.mxu0
        %6973 = vmatpush.msra.mxu0 %v6612
        %6974 = vmatpush.msra.mxu0 %v6610
        %6975 = vmatpush.msra.mxu0 %v6608
        %6976 = vmatpush.msra.mxu0 %v6606
        %6977 = vmatpush.msra.mxu0 %v6604
        %6978 = vmatpush.msra.mxu0 %v6602
        %6979 = vmatpush.msra.mxu0 %v6600
        %6980 = vmatpush.msra.mxu0 %v6598
        %6981 = vmatpush.msra.mxu0 %v6596
        %6982 = vmatpush.msra.mxu0 %v6594
        %6983 = vmatpush.msra.mxu0 %v6592
        %6984 = vmatpush.msra.mxu0 %v6590
        %6985 = vmatpush.msra.mxu0 %v6588
        %6986 = vmatpush.msra.mxu0 %v6586
        %6987 = vmatpush.msra.mxu0 %v6584
        %6988 = vmatpush.msra.mxu0 %v6582
        %6989 = vmatmul.f32.gmra.mxu0 %v6132
        %v6990 = vpop.f32.mrf.mxu0
        %v6991 = vadd.f32 %v6971, %v6990
        %6992 = vdwg.mxu0
        %6993 = vmatpush.msra.mxu0 %v6644
        %6994 = vmatpush.msra.mxu0 %v6642
        %6995 = vmatpush.msra.mxu0 %v6640
        %6996 = vmatpush.msra.mxu0 %v6638
        %6997 = vmatpush.msra.mxu0 %v6636
        %6998 = vmatpush.msra.mxu0 %v6634
        %6999 = vmatpush.msra.mxu0 %v6632
        %7000 = vmatpush.msra.mxu0 %v6630
        %7001 = vmatpush.msra.mxu0 %v6628
        %7002 = vmatpush.msra.mxu0 %v6626
        %7003 = vmatpush.msra.mxu0 %v6624
        %7004 = vmatpush.msra.mxu0 %v6622
        %7005 = vmatpush.msra.mxu0 %v6620
        %7006 = vmatpush.msra.mxu0 %v6618
        %7007 = vmatpush.msra.mxu0 %v6616
        %7008 = vmatpush.msra.mxu0 %v6614
        %7009 = vmatmul.f32.gmra.mxu0 %v6133
        %v7010 = vpop.f32.mrf.mxu0
        %v7011 = vadd.f32 %v6991, %v7010
        %7012 = vdwg.mxu0
        %7013 = vmatpush.msra.mxu0 %v6165
        %7014 = vmatpush.msra.mxu0 %v6163
        %7015 = vmatpush.msra.mxu0 %v6161
        %7016 = vmatpush.msra.mxu0 %v6159
        %7017 = vmatpush.msra.mxu0 %v6157
        %7018 = vmatpush.msra.mxu0 %v6155
        %7019 = vmatpush.msra.mxu0 %v6153
        %7020 = vmatpush.msra.mxu0 %v6151
        %7021 = vmatpush.msra.mxu0 %v6149
        %7022 = vmatpush.msra.mxu0 %v6147
        %7023 = vmatpush.msra.mxu0 %v6145
        %7024 = vmatpush.msra.mxu0 %v6143
        %7025 = vmatpush.msra.mxu0 %v6141
        %7026 = vmatpush.msra.mxu0 %v6139
        %7027 = vmatpush.msra.mxu0 %v6137
        %7028 = vmatpush.msra.mxu0 %v6135
        %7029 = vmatmul.f32.gmra.mxu0 %v6118
        %v7030 = vpop.f32.mrf.mxu0
        %v7031 = vadd.f32 %v6691, %v7030
        %7032 = vdwg.mxu0
        %7033 = vmatpush.msra.mxu0 %v6197
        %7034 = vmatpush.msra.mxu0 %v6195
        %7035 = vmatpush.msra.mxu0 %v6193
        %7036 = vmatpush.msra.mxu0 %v6191
        %7037 = vmatpush.msra.mxu0 %v6189
        %7038 = vmatpush.msra.mxu0 %v6187
        %7039 = vmatpush.msra.mxu0 %v6185
        %7040 = vmatpush.msra.mxu0 %v6183
        %7041 = vmatpush.msra.mxu0 %v6181
        %7042 = vmatpush.msra.mxu0 %v6179
        %7043 = vmatpush.msra.mxu0 %v6177
        %7044 = vmatpush.msra.mxu0 %v6175
        %7045 = vmatpush.msra.mxu0 %v6173
        %7046 = vmatpush.msra.mxu0 %v6171
        %7047 = vmatpush.msra.mxu0 %v6169
        %7048 = vmatpush.msra.mxu0 %v6167
        %7049 = vmatmul.f32.gmra.mxu0 %v6119
        %v7050 = vpop.f32.mrf.mxu0
        %v7051 = vadd.f32 %v7031, %v7050
        %7052 = vdwg.mxu0
        %7053 = vmatpush.msra.mxu0 %v6229
        %7054 = vmatpush.msra.mxu0 %v6227
        %7055 = vmatpush.msra.mxu0 %v6225
        %7056 = vmatpush.msra.mxu0 %v6223
        %7057 = vmatpush.msra.mxu0 %v6221
        %7058 = vmatpush.msra.mxu0 %v6219
        %7059 = vmatpush.msra.mxu0 %v6217
        %7060 = vmatpush.msra.mxu0 %v6215
        %7061 = vmatpush.msra.mxu0 %v6213
        %7062 = vmatpush.msra.mxu0 %v6211
        %7063 = vmatpush.msra.mxu0 %v6209
        %7064 = vmatpush.msra.mxu0 %v6207
        %7065 = vmatpush.msra.mxu0 %v6205
        %7066 = vmatpush.msra.mxu0 %v6203
        %7067 = vmatpush.msra.mxu0 %v6201
        %7068 = vmatpush.msra.mxu0 %v6199
        %7069 = vmatmul.f32.gmra.mxu0 %v6120
        %v7070 = vpop.f32.mrf.mxu0
        %v7071 = vadd.f32 %v7051, %v7070
        %7072 = vdwg.mxu0
        %7073 = vmatpush.msra.mxu0 %v6261
        %7074 = vmatpush.msra.mxu0 %v6259
        %7075 = vmatpush.msra.mxu0 %v6257
        %7076 = vmatpush.msra.mxu0 %v6255
        %7077 = vmatpush.msra.mxu0 %v6253
        %7078 = vmatpush.msra.mxu0 %v6251
        %7079 = vmatpush.msra.mxu0 %v6249
        %7080 = vmatpush.msra.mxu0 %v6247
        %7081 = vmatpush.msra.mxu0 %v6245
        %7082 = vmatpush.msra.mxu0 %v6243
        %7083 = vmatpush.msra.mxu0 %v6241
        %7084 = vmatpush.msra.mxu0 %v6239
        %7085 = vmatpush.msra.mxu0 %v6237
        %7086 = vmatpush.msra.mxu0 %v6235
        %7087 = vmatpush.msra.mxu0 %v6233
        %7088 = vmatpush.msra.mxu0 %v6231
        %7089 = vmatmul.f32.gmra.mxu0 %v6121
        %v7090 = vpop.f32.mrf.mxu0
        %v7091 = vadd.f32 %v7071, %v7090
        %7092 = vdwg.mxu0
        %7093 = vmatpush.msra.mxu0 %v6293
        %7094 = vmatpush.msra.mxu0 %v6291
        %7095 = vmatpush.msra.mxu0 %v6289
        %7096 = vmatpush.msra.mxu0 %v6287
        %7097 = vmatpush.msra.mxu0 %v6285
        %7098 = vmatpush.msra.mxu0 %v6283
        %7099 = vmatpush.msra.mxu0 %v6281
        %7100 = vmatpush.msra.mxu0 %v6279
        %7101 = vmatpush.msra.mxu0 %v6277
        %7102 = vmatpush.msra.mxu0 %v6275
        %7103 = vmatpush.msra.mxu0 %v6273
        %7104 = vmatpush.msra.mxu0 %v6271
        %7105 = vmatpush.msra.mxu0 %v6269
        %7106 = vmatpush.msra.mxu0 %v6267
        %7107 = vmatpush.msra.mxu0 %v6265
        %7108 = vmatpush.msra.mxu0 %v6263
        %7109 = vmatmul.f32.gmra.mxu0 %v6122
        %v7110 = vpop.f32.mrf.mxu0
        %v7111 = vadd.f32 %v7091, %v7110
        %7112 = vdwg.mxu0
        %7113 = vmatpush.msra.mxu0 %v6325
        %7114 = vmatpush.msra.mxu0 %v6323
        %7115 = vmatpush.msra.mxu0 %v6321
        %7116 = vmatpush.msra.mxu0 %v6319
        %7117 = vmatpush.msra.mxu0 %v6317
        %7118 = vmatpush.msra.mxu0 %v6315
        %7119 = vmatpush.msra.mxu0 %v6313
        %7120 = vmatpush.msra.mxu0 %v6311
        %7121 = vmatpush.msra.mxu0 %v6309
        %7122 = vmatpush.msra.mxu0 %v6307
        %7123 = vmatpush.msra.mxu0 %v6305
        %7124 = vmatpush.msra.mxu0 %v6303
        %7125 = vmatpush.msra.mxu0 %v6301
        %7126 = vmatpush.msra.mxu0 %v6299
        %7127 = vmatpush.msra.mxu0 %v6297
        %7128 = vmatpush.msra.mxu0 %v6295
        %7129 = vmatmul.f32.gmra.mxu0 %v6123
        %v7130 = vpop.f32.mrf.mxu0
        %v7131 = vadd.f32 %v7111, %v7130
        %7132 = vdwg.mxu0
        %7133 = vmatpush.msra.mxu0 %v6357
        %7134 = vmatpush.msra.mxu0 %v6355
        %7135 = vmatpush.msra.mxu0 %v6353
        %7136 = vmatpush.msra.mxu0 %v6351
        %7137 = vmatpush.msra.mxu0 %v6349
        %7138 = vmatpush.msra.mxu0 %v6347
        %7139 = vmatpush.msra.mxu0 %v6345
        %7140 = vmatpush.msra.mxu0 %v6343
        %7141 = vmatpush.msra.mxu0 %v6341
        %7142 = vmatpush.msra.mxu0 %v6339
        %7143 = vmatpush.msra.mxu0 %v6337
        %7144 = vmatpush.msra.mxu0 %v6335
        %7145 = vmatpush.msra.mxu0 %v6333
        %7146 = vmatpush.msra.mxu0 %v6331
        %7147 = vmatpush.msra.mxu0 %v6329
        %7148 = vmatpush.msra.mxu0 %v6327
        %7149 = vmatmul.f32.gmra.mxu0 %v6124
        %v7150 = vpop.f32.mrf.mxu0
        %v7151 = vadd.f32 %v7131, %v7150
        %7152 = vdwg.mxu0
        %7153 = vmatpush.msra.mxu0 %v6389
        %7154 = vmatpush.msra.mxu0 %v6387
        %7155 = vmatpush.msra.mxu0 %v6385
        %7156 = vmatpush.msra.mxu0 %v6383
        %7157 = vmatpush.msra.mxu0 %v6381
        %7158 = vmatpush.msra.mxu0 %v6379
        %7159 = vmatpush.msra.mxu0 %v6377
        %7160 = vmatpush.msra.mxu0 %v6375
        %7161 = vmatpush.msra.mxu0 %v6373
        %7162 = vmatpush.msra.mxu0 %v6371
        %7163 = vmatpush.msra.mxu0 %v6369
        %7164 = vmatpush.msra.mxu0 %v6367
        %7165 = vmatpush.msra.mxu0 %v6365
        %7166 = vmatpush.msra.mxu0 %v6363
        %7167 = vmatpush.msra.mxu0 %v6361
        %7168 = vmatpush.msra.mxu0 %v6359
        %7169 = vmatmul.f32.gmra.mxu0 %v6125
        %v7170 = vpop.f32.mrf.mxu0
        %v7171 = vadd.f32 %v7151, %v7170
        %7172 = vdwg.mxu0
        %7173 = vmatpush.msra.mxu0 %v6421
        %7174 = vmatpush.msra.mxu0 %v6419
        %7175 = vmatpush.msra.mxu0 %v6417
        %7176 = vmatpush.msra.mxu0 %v6415
        %7177 = vmatpush.msra.mxu0 %v6413
        %7178 = vmatpush.msra.mxu0 %v6411
        %7179 = vmatpush.msra.mxu0 %v6409
        %7180 = vmatpush.msra.mxu0 %v6407
        %7181 = vmatpush.msra.mxu0 %v6405
        %7182 = vmatpush.msra.mxu0 %v6403
        %7183 = vmatpush.msra.mxu0 %v6401
        %7184 = vmatpush.msra.mxu0 %v6399
        %7185 = vmatpush.msra.mxu0 %v6397
        %7186 = vmatpush.msra.mxu0 %v6395
        %7187 = vmatpush.msra.mxu0 %v6393
        %7188 = vmatpush.msra.mxu0 %v6391
        %7189 = vmatmul.f32.gmra.mxu0 %v6126
        %v7190 = vpop.f32.mrf.mxu0
        %v7191 = vadd.f32 %v7171, %v7190
        %7192 = vdwg.mxu0
        %7193 = vmatpush.msra.mxu0 %v6453
        %7194 = vmatpush.msra.mxu0 %v6451
        %7195 = vmatpush.msra.mxu0 %v6449
        %7196 = vmatpush.msra.mxu0 %v6447
        %7197 = vmatpush.msra.mxu0 %v6445
        %7198 = vmatpush.msra.mxu0 %v6443
        %7199 = vmatpush.msra.mxu0 %v6441
        %7200 = vmatpush.msra.mxu0 %v6439
        %7201 = vmatpush.msra.mxu0 %v6437
        %7202 = vmatpush.msra.mxu0 %v6435
        %7203 = vmatpush.msra.mxu0 %v6433
        %7204 = vmatpush.msra.mxu0 %v6431
        %7205 = vmatpush.msra.mxu0 %v6429
        %7206 = vmatpush.msra.mxu0 %v6427
        %7207 = vmatpush.msra.mxu0 %v6425
        %7208 = vmatpush.msra.mxu0 %v6423
        %7209 = vmatmul.f32.gmra.mxu0 %v6127
        %v7210 = vpop.f32.mrf.mxu0
        %v7211 = vadd.f32 %v7191, %v7210
        %7212 = vdwg.mxu0
        %7213 = vmatpush.msra.mxu0 %v6485
        %7214 = vmatpush.msra.mxu0 %v6483
        %7215 = vmatpush.msra.mxu0 %v6481
        %7216 = vmatpush.msra.mxu0 %v6479
        %7217 = vmatpush.msra.mxu0 %v6477
        %7218 = vmatpush.msra.mxu0 %v6475
        %7219 = vmatpush.msra.mxu0 %v6473
        %7220 = vmatpush.msra.mxu0 %v6471
        %7221 = vmatpush.msra.mxu0 %v6469
        %7222 = vmatpush.msra.mxu0 %v6467
        %7223 = vmatpush.msra.mxu0 %v6465
        %7224 = vmatpush.msra.mxu0 %v6463
        %7225 = vmatpush.msra.mxu0 %v6461
        %7226 = vmatpush.msra.mxu0 %v6459
        %7227 = vmatpush.msra.mxu0 %v6457
        %7228 = vmatpush.msra.mxu0 %v6455
        %7229 = vmatmul.f32.gmra.mxu0 %v6128
        %v7230 = vpop.f32.mrf.mxu0
        %v7231 = vadd.f32 %v7211, %v7230
        %7232 = vdwg.mxu0
        %7233 = vmatpush.msra.mxu0 %v6517
        %7234 = vmatpush.msra.mxu0 %v6515
        %7235 = vmatpush.msra.mxu0 %v6513
        %7236 = vmatpush.msra.mxu0 %v6511
        %7237 = vmatpush.msra.mxu0 %v6509
        %7238 = vmatpush.msra.mxu0 %v6507
        %7239 = vmatpush.msra.mxu0 %v6505
        %7240 = vmatpush.msra.mxu0 %v6503
        %7241 = vmatpush.msra.mxu0 %v6501
        %7242 = vmatpush.msra.mxu0 %v6499
        %7243 = vmatpush.msra.mxu0 %v6497
        %7244 = vmatpush.msra.mxu0 %v6495
        %7245 = vmatpush.msra.mxu0 %v6493
        %7246 = vmatpush.msra.mxu0 %v6491
        %7247 = vmatpush.msra.mxu0 %v6489
        %7248 = vmatpush.msra.mxu0 %v6487
        %7249 = vmatmul.f32.gmra.mxu0 %v6129
        %v7250 = vpop.f32.mrf.mxu0
        %v7251 = vadd.f32 %v7231, %v7250
        %7252 = vdwg.mxu0
        %7253 = vmatpush.msra.mxu0 %v6549
        %7254 = vmatpush.msra.mxu0 %v6547
        %7255 = vmatpush.msra.mxu0 %v6545
        %7256 = vmatpush.msra.mxu0 %v6543
        %7257 = vmatpush.msra.mxu0 %v6541
        %7258 = vmatpush.msra.mxu0 %v6539
        %7259 = vmatpush.msra.mxu0 %v6537
        %7260 = vmatpush.msra.mxu0 %v6535
        %7261 = vmatpush.msra.mxu0 %v6533
        %7262 = vmatpush.msra.mxu0 %v6531
        %7263 = vmatpush.msra.mxu0 %v6529
        %7264 = vmatpush.msra.mxu0 %v6527
        %7265 = vmatpush.msra.mxu0 %v6525
        %7266 = vmatpush.msra.mxu0 %v6523
        %7267 = vmatpush.msra.mxu0 %v6521
        %7268 = vmatpush.msra.mxu0 %v6519
        %7269 = vmatmul.f32.gmra.mxu0 %v6130
        %v7270 = vpop.f32.mrf.mxu0
        %v7271 = vadd.f32 %v7251, %v7270
        %7272 = vdwg.mxu0
        %7273 = vmatpush.msra.mxu0 %v6581
        %7274 = vmatpush.msra.mxu0 %v6579
        %7275 = vmatpush.msra.mxu0 %v6577
        %7276 = vmatpush.msra.mxu0 %v6575
        %7277 = vmatpush.msra.mxu0 %v6573
        %7278 = vmatpush.msra.mxu0 %v6571
        %7279 = vmatpush.msra.mxu0 %v6569
        %7280 = vmatpush.msra.mxu0 %v6567
        %7281 = vmatpush.msra.mxu0 %v6565
        %7282 = vmatpush.msra.mxu0 %v6563
        %7283 = vmatpush.msra.mxu0 %v6561
        %7284 = vmatpush.msra.mxu0 %v6559
        %7285 = vmatpush.msra.mxu0 %v6557
        %7286 = vmatpush.msra.mxu0 %v6555
        %7287 = vmatpush.msra.mxu0 %v6553
        %7288 = vmatpush.msra.mxu0 %v6551
        %7289 = vmatmul.f32.gmra.mxu0 %v6131
        %v7290 = vpop.f32.mrf.mxu0
        %v7291 = vadd.f32 %v7271, %v7290
        %7292 = vdwg.mxu0
        %7293 = vmatpush.msra.mxu0 %v6613
        %7294 = vmatpush.msra.mxu0 %v6611
        %7295 = vmatpush.msra.mxu0 %v6609
        %7296 = vmatpush.msra.mxu0 %v6607
        %7297 = vmatpush.msra.mxu0 %v6605
        %7298 = vmatpush.msra.mxu0 %v6603
        %7299 = vmatpush.msra.mxu0 %v6601
        %7300 = vmatpush.msra.mxu0 %v6599
        %7301 = vmatpush.msra.mxu0 %v6597
        %7302 = vmatpush.msra.mxu0 %v6595
        %7303 = vmatpush.msra.mxu0 %v6593
        %7304 = vmatpush.msra.mxu0 %v6591
        %7305 = vmatpush.msra.mxu0 %v6589
        %7306 = vmatpush.msra.mxu0 %v6587
        %7307 = vmatpush.msra.mxu0 %v6585
        %7308 = vmatpush.msra.mxu0 %v6583
        %7309 = vmatmul.f32.gmra.mxu0 %v6132
        %v7310 = vpop.f32.mrf.mxu0
        %v7311 = vadd.f32 %v7291, %v7310
        %7312 = vdwg.mxu0
        %7313 = vmatpush.msra.mxu0 %v6645
        %7314 = vmatpush.msra.mxu0 %v6643
        %7315 = vmatpush.msra.mxu0 %v6641
        %7316 = vmatpush.msra.mxu0 %v6639
        %7317 = vmatpush.msra.mxu0 %v6637
        %7318 = vmatpush.msra.mxu0 %v6635
        %7319 = vmatpush.msra.mxu0 %v6633
        %7320 = vmatpush.msra.mxu0 %v6631
        %7321 = vmatpush.msra.mxu0 %v6629
        %7322 = vmatpush.msra.mxu0 %v6627
        %7323 = vmatpush.msra.mxu0 %v6625
        %7324 = vmatpush.msra.mxu0 %v6623
        %7325 = vmatpush.msra.mxu0 %v6621
        %7326 = vmatpush.msra.mxu0 %v6619
        %7327 = vmatpush.msra.mxu0 %v6617
        %7328 = vmatpush.msra.mxu0 %v6615
        %7329 = vmatmul.f32.gmra.mxu0 %v6133
        %v7330 = vpop.f32.mrf.mxu0
        %v7331 = vadd.f32 %v7311, %v7330
        %7332 = vdwg.mxu0
        %v7333 = vld [vmem:[#allocation4] sm:$0x3]
        %v7334 = vld [vmem:[%s780] sm:$0xff]
        %7336 = vst [vmem:[#allocation1] ss:$2 sm:$0xff] %v7334
        %v7337 = vld.sshfl [vmem:[#allocation1] sm:$0xff pattern:$0x75316420]
        %v7338 = vld.sshfl [vmem:[#allocation1 + $0x8] sm:$0xff pattern:$0x75316420]
        %vm7339 = vcmask 31744
        %v7341 = vsel %vm7339, %v7333, 0
        %vm7343 = vcmask 1043456
        %v7344 = vsel %vm7343, %v7337, 0
        %v7346 = vsel %vm7343, %v7338, 0
        %7348 = vmatpush.msra.mxu0 0.0
        %7349 = vmatpush.msra.mxu0 0.0
        %7350 = vmatpush.msra.mxu0 0.0
        %7351 = vmatpush.msra.mxu0 0.0
        %7352 = vmatpush.msra.mxu0 0.0
        %7353 = vmatpush.msra.mxu0 0.0
        %7354 = vmatpush.msra.mxu0 0.0
        %7355 = vmatpush.msra.mxu0 0.0
        %7356 = vmatpush.msra.mxu0 0.0
        %7357 = vmatpush.msra.mxu0 0.0
        %7358 = vmatpush.msra.mxu0 0.0
        %7359 = vmatpush.msra.mxu0 0.0
        %7360 = vmatpush.msra.mxu0 0.0
        %7361 = vmatpush.msra.mxu0 0.0
        %7362 = vmatpush.msra.mxu0 0.0
        %7363 = vmatpush.msra.mxu0 %v7344
        %7364 = vmatmul.f32.gmra.mxu0 %v7341
        %v7365 = vpop.f32.mrf.mxu0
        %v7366 = vadd.f32 0.0, %v7365
        %7367 = vdwg.mxu0
        %7368 = vmatpush.msra.mxu0 0.0
        %7369 = vmatpush.msra.mxu0 0.0
        %7370 = vmatpush.msra.mxu0 0.0
        %7371 = vmatpush.msra.mxu0 0.0
        %7372 = vmatpush.msra.mxu0 0.0
        %7373 = vmatpush.msra.mxu0 0.0
        %7374 = vmatpush.msra.mxu0 0.0
        %7375 = vmatpush.msra.mxu0 0.0
        %7376 = vmatpush.msra.mxu0 0.0
        %7377 = vmatpush.msra.mxu0 0.0
        %7378 = vmatpush.msra.mxu0 0.0
        %7379 = vmatpush.msra.mxu0 0.0
        %7380 = vmatpush.msra.mxu0 0.0
        %7381 = vmatpush.msra.mxu0 0.0
        %7382 = vmatpush.msra.mxu0 0.0
        %7383 = vmatpush.msra.mxu0 %v7346
        %7384 = vmatmul.f32.gmra.mxu0 %v7341
        %v7385 = vpop.f32.mrf.mxu0
        %v7386 = vadd.f32 0.0, %v7385
        %7387 = vdwg.mxu0
        %v7388 = vadd.f32 %v7011, %v7366
        %v7389 = vadd.f32 %v7331, %v7386
        %v7390 = vld [vmem:[%s790] sm:$0x3]
        %v7392 = vperm.slane %v7390, 0
        %v7393 = vperm.slane %v7390, 1
        %v7396 = vadd.f32 %v7388, %v7392
        %v7397 = vadd.f32 %v7389, %v7393
        %v7398 = vmax.f32 %v7396, 0.0
        %v7399 = vmax.f32 %v7397, 0.0
        %v7400 = vld [vmem:[%s800] sm:$0xff]
        %v7401 = vld [vmem:[%s800 + $0x8] sm:$0xff]
        %v7402 = vld [vmem:[%s800 + $0x10] sm:$0xff]
        %v7403 = vld [vmem:[%s800 + $0x18] sm:$0xff]
        %v7404 = vld [vmem:[%s800 + $0x20] sm:$0xff]
        %v7405 = vld [vmem:[%s800 + $0x28] sm:$0xff]
        %v7406 = vld [vmem:[%s800 + $0x30] sm:$0xff]
        %v7407 = vld [vmem:[%s800 + $0x38] sm:$0xff]
        %v7408 = vld [vmem:[%s800 + $0x40] sm:$0xff]
        %v7409 = vld [vmem:[%s800 + $0x48] sm:$0xff]
        %v7410 = vld [vmem:[%s800 + $0x50] sm:$0xff]
        %v7411 = vld [vmem:[%s800 + $0x58] sm:$0xff]
        %v7412 = vld [vmem:[%s800 + $0x60] sm:$0xff]
        %v7413 = vld [vmem:[%s800 + $0x68] sm:$0xff]
        %v7414 = vld [vmem:[%s800 + $0x70] sm:$0xff]
        %v7415 = vld [vmem:[%s800 + $0x78] sm:$0xff]
        %v7416 = vld [vmem:[%s800 + $0x80] sm:$0xff]
        %v7417 = vld [vmem:[%s800 + $0x88] sm:$0xff]
        %v7418 = vld [vmem:[%s800 + $0x90] sm:$0xff]
        %v7419 = vld [vmem:[%s800 + $0x98] sm:$0xff]
        %v7420 = vld [vmem:[%s800 + $0xa0] sm:$0xff]
        %v7421 = vld [vmem:[%s800 + $0xa8] sm:$0xff]
        %v7422 = vld [vmem:[%s800 + $0xb0] sm:$0xff]
        %v7423 = vld [vmem:[%s800 + $0xb8] sm:$0xff]
        %v7424 = vld [vmem:[%s800 + $0xc0] sm:$0xff]
        %v7425 = vld [vmem:[%s800 + $0xc8] sm:$0xff]
        %v7426 = vld [vmem:[%s800 + $0xd0] sm:$0xff]
        %v7427 = vld [vmem:[%s800 + $0xd8] sm:$0xff]
        %v7428 = vld [vmem:[%s800 + $0xe0] sm:$0xff]
        %v7429 = vld [vmem:[%s800 + $0xe8] sm:$0xff]
        %v7430 = vld [vmem:[%s800 + $0xf0] sm:$0xff]
        %v7431 = vld [vmem:[%s800 + $0xf8] sm:$0xff]
        %v7432 = vld [vmem:[%s800 + $0x100] sm:$0xff]
        %v7433 = vld [vmem:[%s800 + $0x108] sm:$0xff]
        %v7434 = vld [vmem:[%s800 + $0x110] sm:$0xff]
        %v7435 = vld [vmem:[%s800 + $0x118] sm:$0xff]
        %v7436 = vld [vmem:[%s800 + $0x120] sm:$0xff]
        %v7437 = vld [vmem:[%s800 + $0x128] sm:$0xff]
        %v7438 = vld [vmem:[%s800 + $0x130] sm:$0xff]
        %v7439 = vld [vmem:[%s800 + $0x138] sm:$0xff]
        %v7440 = vld [vmem:[%s800 + $0x140] sm:$0xff]
        %v7441 = vld [vmem:[%s800 + $0x148] sm:$0xff]
        %v7442 = vld [vmem:[%s800 + $0x150] sm:$0xff]
        %v7443 = vld [vmem:[%s800 + $0x158] sm:$0xff]
        %v7444 = vld [vmem:[%s800 + $0x160] sm:$0xff]
        %v7445 = vld [vmem:[%s800 + $0x168] sm:$0xff]
        %v7446 = vld [vmem:[%s800 + $0x170] sm:$0xff]
        %v7447 = vld [vmem:[%s800 + $0x178] sm:$0xff]
        %v7448 = vld [vmem:[%s800 + $0x180] sm:$0xff]
        %v7449 = vld [vmem:[%s800 + $0x188] sm:$0xff]
        %v7450 = vld [vmem:[%s800 + $0x190] sm:$0xff]
        %v7451 = vld [vmem:[%s800 + $0x198] sm:$0xff]
        %v7452 = vld [vmem:[%s800 + $0x1a0] sm:$0xff]
        %v7453 = vld [vmem:[%s800 + $0x1a8] sm:$0xff]
        %v7454 = vld [vmem:[%s800 + $0x1b0] sm:$0xff]
        %v7455 = vld [vmem:[%s800 + $0x1b8] sm:$0xff]
        %v7456 = vld [vmem:[%s800 + $0x1c0] sm:$0xff]
        %v7457 = vld [vmem:[%s800 + $0x1c8] sm:$0xff]
        %v7458 = vld [vmem:[%s800 + $0x1d0] sm:$0xff]
        %v7459 = vld [vmem:[%s800 + $0x1d8] sm:$0xff]
        %v7460 = vld [vmem:[%s800 + $0x1e0] sm:$0xff]
        %v7461 = vld [vmem:[%s800 + $0x1e8] sm:$0xff]
        %v7462 = vld [vmem:[%s800 + $0x1f0] sm:$0xff]
        %v7463 = vld [vmem:[%s800 + $0x1f8] sm:$0xff]
        %v7464 = vld [vmem:[%s810] sm:$0x3]
        %v7466 = vperm.slane %v7464, 0
        %v7467 = vperm.slane %v7464, 1
        %7470 = vmatpush.msra.mxu0 %v7430
        %7471 = vmatpush.msra.mxu0 %v7428
        %7472 = vmatpush.msra.mxu0 %v7426
        %7473 = vmatpush.msra.mxu0 %v7424
        %7474 = vmatpush.msra.mxu0 %v7422
        %7475 = vmatpush.msra.mxu0 %v7420
        %7476 = vmatpush.msra.mxu0 %v7418
        %7477 = vmatpush.msra.mxu0 %v7416
        %7478 = vmatpush.msra.mxu0 %v7414
        %7479 = vmatpush.msra.mxu0 %v7412
        %7480 = vmatpush.msra.mxu0 %v7410
        %7481 = vmatpush.msra.mxu0 %v7408
        %7482 = vmatpush.msra.mxu0 %v7406
        %7483 = vmatpush.msra.mxu0 %v7404
        %7484 = vmatpush.msra.mxu0 %v7402
        %7485 = vmatpush.msra.mxu0 %v7400
        %7486 = vmatmul.f32.gmra.mxu0 %v7398
        %v7487 = vpop.f32.mrf.mxu0
        %v7488 = vadd.f32 %v7466, %v7487
        %7489 = vdwg.mxu0
        %7490 = vmatpush.msra.mxu0 %v7462
        %7491 = vmatpush.msra.mxu0 %v7460
        %7492 = vmatpush.msra.mxu0 %v7458
        %7493 = vmatpush.msra.mxu0 %v7456
        %7494 = vmatpush.msra.mxu0 %v7454
        %7495 = vmatpush.msra.mxu0 %v7452
        %7496 = vmatpush.msra.mxu0 %v7450
        %7497 = vmatpush.msra.mxu0 %v7448
        %7498 = vmatpush.msra.mxu0 %v7446
        %7499 = vmatpush.msra.mxu0 %v7444
        %7500 = vmatpush.msra.mxu0 %v7442
        %7501 = vmatpush.msra.mxu0 %v7440
        %7502 = vmatpush.msra.mxu0 %v7438
        %7503 = vmatpush.msra.mxu0 %v7436
        %7504 = vmatpush.msra.mxu0 %v7434
        %7505 = vmatpush.msra.mxu0 %v7432
        %7506 = vmatmul.f32.gmra.mxu0 %v7399
        %v7507 = vpop.f32.mrf.mxu0
        %v7508 = vadd.f32 %v7488, %v7507
        %7509 = vdwg.mxu0
        %7510 = vmatpush.msra.mxu0 %v7431
        %7511 = vmatpush.msra.mxu0 %v7429
        %7512 = vmatpush.msra.mxu0 %v7427
        %7513 = vmatpush.msra.mxu0 %v7425
        %7514 = vmatpush.msra.mxu0 %v7423
        %7515 = vmatpush.msra.mxu0 %v7421
        %7516 = vmatpush.msra.mxu0 %v7419
        %7517 = vmatpush.msra.mxu0 %v7417
        %7518 = vmatpush.msra.mxu0 %v7415
        %7519 = vmatpush.msra.mxu0 %v7413
        %7520 = vmatpush.msra.mxu0 %v7411
        %7521 = vmatpush.msra.mxu0 %v7409
        %7522 = vmatpush.msra.mxu0 %v7407
        %7523 = vmatpush.msra.mxu0 %v7405
        %7524 = vmatpush.msra.mxu0 %v7403
        %7525 = vmatpush.msra.mxu0 %v7401
        %7526 = vmatmul.f32.gmra.mxu0 %v7398
        %v7527 = vpop.f32.mrf.mxu0
        %v7528 = vadd.f32 %v7467, %v7527
        %7529 = vdwg.mxu0
        %7530 = vmatpush.msra.mxu0 %v7463
        %7531 = vmatpush.msra.mxu0 %v7461
        %7532 = vmatpush.msra.mxu0 %v7459
        %7533 = vmatpush.msra.mxu0 %v7457
        %7534 = vmatpush.msra.mxu0 %v7455
        %7535 = vmatpush.msra.mxu0 %v7453
        %7536 = vmatpush.msra.mxu0 %v7451
        %7537 = vmatpush.msra.mxu0 %v7449
        %7538 = vmatpush.msra.mxu0 %v7447
        %7539 = vmatpush.msra.mxu0 %v7445
        %7540 = vmatpush.msra.mxu0 %v7443
        %7541 = vmatpush.msra.mxu0 %v7441
        %7542 = vmatpush.msra.mxu0 %v7439
        %7543 = vmatpush.msra.mxu0 %v7437
        %7544 = vmatpush.msra.mxu0 %v7435
        %7545 = vmatpush.msra.mxu0 %v7433
        %7546 = vmatmul.f32.gmra.mxu0 %v7399
        %v7547 = vpop.f32.mrf.mxu0
        %v7548 = vadd.f32 %v7528, %v7547
        %7549 = vdwg.mxu0
        %v7550 = vmax.f32 %v7508, 0.0
        %v7551 = vmax.f32 %v7548, 0.0
        %v7552 = vld [vmem:[%s820] sm:$0x3]
        %v7554 = vperm.slane %v7552, 0
        %v7555 = vperm.slane %v7552, 1
        %v7558 = vmul.f32 %v7550, %v7554
        %v7559 = vmul.f32 %v7551, %v7555
        %vm7560 = vcmask 1041408
        %v7561 = vsel %vm7560, %v7558, 0.0
        %v7562 = vsel %vm7560, %v7559, 0.0
        %v7563 = vadd.f32 %v7561, %v7562
        %7564 = vadd.xlane.f32.xlu0 %v7563
        %v7565 = vpop.xlane.xlu0 %7564
        %v7566 = vld [vmem:[%s922] sm:$0x1]
        %v7568 = vperm.slane %v7566, 0
        %v7570 = vadd.f32 %v7565, %v7568
        %vm7571 = vcmask 1024
        %7572 = vst.msk [vmem:[%s926] sm:$0x3] %vm7571, %v7570
        %p7573 = scmp.lt.s32.totalorder %s28, 1
        %s7574 = scalar_select %p7573, %s28, 1
        %s7575 = smul.addr %s7574, 2
        %s7576 = scalar_lea.vmem %s15, %s7575
        // Predicated region
        $region133: #{dual_critic_forward.1} parent=79 // pred_check
          %p7577 = pneg %p421
        $region134: #{dual_critic_forward.1} parent=79 // pred_check_branch
          %7579 = sbr.rel (%p7577) target = $region136
        $region135: #{dual_critic_forward.1} parent=79 // pred_region
          _
        $region136: #{dual_critic_forward.1} parent=79 // pred_fallthru
          _
      $region80: #{dual_critic_forward.1} parent=5 // pred_fallthru
        _
      %p7580 = scmp.le.s32.totalorder 2, %s23
      // Predicated region
      $region137: #{dual_critic_forward.1} parent=5 // pred_check
        %p7581 = pneg %p7580
      $region138: #{dual_critic_forward.1} parent=5 // pred_check_branch
        %7583 = sbr.rel (%p7581) target = $region140
      $region139: #{dual_critic_forward.1} parent=5 // pred_region
        %s7584 = ssub.s32 %s23, 2
        // Predicated region
        $region141: #{dual_critic_forward.1} parent=139 // pred_check
          %p7585 = pneg %p427
        $region142: #{dual_critic_forward.1} parent=139 // pred_check_branch
          %7587 = sbr.rel (%p7585) target = $region144
        $region143: #{dual_critic_forward.1} parent=139 // pred_region
          %p7588 = scmp.lt.s32.totalorder %s29, 1
          %s7589 = scalar_select %p7588, %s29, 1
          %s7590 = smul.addr %s7589, 2
          %s7591 = scalar_lea.vmem %s15, %s7590
        $region144: #{dual_critic_forward.1} parent=139 // pred_fallthru
          _
      $region140: #{dual_critic_forward.1} parent=5 // pred_fallthru
        _
    $region6: #{dual_critic_forward.1} parent=1 // loop_footer
      %s27 = sadd.s32 1, %s23
    $region7: #{dual_critic_forward.1} parent=1 // loop_footer_branch
      %22 = sbr.rel target = $region3
    $region8: #{dual_critic_forward.1} parent=1 // loop_exit
      _
    %7592 = vsyncpa [#allocation3], 1
    %s7593 = scalar_lea.sflag [#allocation3], 1
    %7594 = vsyncpa %s7593, 1
    %7595 = vsyncpa [#allocation5], 1

</llo_original>
